<compile_context>
chip_gen: v6e
topology: v6e:2x2x1
jax: 0.10.0
libtpu: 0.0.40
codegen_flags: <defaults>
</compile_context>

<pallas_src>
import functools

import jax
import jax.numpy as jnp
from jax.experimental import pallas as pl
from jax.experimental.pallas import tpu as pltpu


def _round_up(x, m):
    return (x + m - 1) // m * m


# ----------------------------------------------------------------------------
# Tiled matmul with fused bias / activation epilogue
# ----------------------------------------------------------------------------

def _mm_kernel(a_ref, b_ref, o_ref, acc_ref, *, act):
    k = pl.program_id(2)

    @pl.when(k == 0)
    def _():
        acc_ref[...] = jnp.zeros_like(acc_ref)

    acc_ref[...] += jnp.dot(a_ref[...], b_ref[...],
                            preferred_element_type=jnp.float32)

    @pl.when(k == pl.num_programs(2) - 1)
    def _():
        y = acc_ref[...]
        if act == "relu":
            y = jnp.maximum(y, 0.0)
        elif act == "tanh":
            y = jnp.tanh(y)
        o_ref[...] = y.astype(o_ref.dtype)


def _mm_bias_kernel(a_ref, b_ref, bias_ref, o_ref, acc_ref, *, act):
    k = pl.program_id(2)

    @pl.when(k == 0)
    def _():
        acc_ref[...] = jnp.zeros_like(acc_ref)

    acc_ref[...] += jnp.dot(a_ref[...], b_ref[...],
                            preferred_element_type=jnp.float32)

    @pl.when(k == pl.num_programs(2) - 1)
    def _():
        y = acc_ref[...] + bias_ref[...]
        if act == "relu":
            y = jnp.maximum(y, 0.0)
        elif act == "tanh":
            y = jnp.tanh(y)
        o_ref[...] = y.astype(o_ref.dtype)


_TM, _TN, _TK = 256, 256, 512


def pallas_matmul(a, b, bias=None, act="none", out_dtype=jnp.float32):
    """C = act(A @ B + bias).  A/B in bf16, f32 accumulation on the MXU.

    Small dims use a single full-extent block (no 128-padding); large dims
    tile at 256/512 with zero-padding (sliced off afterwards)."""
    M, K = a.shape
    K2, N = b.shape
    assert K == K2

    def tile(d, t):
        return (d, d) if d <= t else (t, _round_up(d, t))

    bm, Mp = tile(M, _TM)
    bn, Np = tile(N, _TN)
    bk, Kp = tile(K, _TK)

    a = a.astype(jnp.bfloat16)
    b = b.astype(jnp.bfloat16)
    if (Mp, Kp) != (M, K):
        a = jnp.pad(a, ((0, Mp - M), (0, Kp - K)))
    if (Kp, Np) != (K, N):
        b = jnp.pad(b, ((0, Kp - K), (0, Np - N)))

    in_specs = [pl.BlockSpec((bm, bk), lambda i, j, k: (i, k)),
                pl.BlockSpec((bk, bn), lambda i, j, k: (k, j))]
    args = [a, b]
    if bias is not None:
        bias2d = bias.reshape(1, N).astype(jnp.float32)
        if Np != N:
            bias2d = jnp.pad(bias2d, ((0, 0), (0, Np - N)))
        in_specs.append(pl.BlockSpec((1, bn), lambda i, j, k: (0, j)))
        args.append(bias2d)
        kernel = functools.partial(_mm_bias_kernel, act=act)
    else:
        kernel = functools.partial(_mm_kernel, act=act)

    out = pl.pallas_call(
        kernel,
        out_shape=jax.ShapeDtypeStruct((Mp, Np), out_dtype),
        grid=(Mp // bm, Np // bn, Kp // bk),
        in_specs=in_specs,
        out_specs=pl.BlockSpec((bm, bn), lambda i, j, k: (i, j)),
        scratch_shapes=[pltpu.VMEM((bm, bn), jnp.float32)],
        compiler_params=pltpu.CompilerParams(
            dimension_semantics=("parallel", "parallel", "arbitrary"),
            vmem_limit_bytes=48 * 1024 * 1024),
    )(*args)
    if (Mp, Np) != (M, N):
        out = out[:M, :N]
    return out


# ----------------------------------------------------------------------------
# BatchNorm2d (training-mode batch statistics) -- two-pass, tiled, fused
# ----------------------------------------------------------------------------

def _bn_stats_kernel(x_ref, s_ref, ss_ref):
    @pl.when(pl.program_id(0) == 0)
    def _():
        s_ref[...] = jnp.zeros_like(s_ref)
        ss_ref[...] = jnp.zeros_like(ss_ref)

    x = x_ref[...]
    s_ref[...] += jnp.sum(x, axis=0, keepdims=True)
    ss_ref[...] += jnp.sum(x * x, axis=0, keepdims=True)


def _bn_apply_kernel(x_ref, sc_ref, sh_ref, o_ref, *, relu):
    y = x_ref[...] * sc_ref[...] + sh_ref[...]
    if relu:
        y = jnp.maximum(y, 0.0)
    o_ref[...] = y


def _bn_apply_res_kernel(x_ref, sc_ref, sh_ref, r_ref, o_ref, *, relu):
    y = x_ref[...] * sc_ref[...] + sh_ref[...] + r_ref[...]
    if relu:
        y = jnp.maximum(y, 0.0)
    o_ref[...] = y


def _row_tile(m, row_elems, budget_bytes=2 * 1024 * 1024):
    bm = max(8, min(1024, budget_bytes // max(4 * row_elems, 1)))
    bm = max(8, (bm // 8) * 8)
    if m <= bm:
        return m, m
    return bm, _round_up(m, bm)


def batchnorm_act(x4, gamma, beta, relu=False, residual=None, eps=1e-5):
    """BatchNorm2d in training mode (batch stats, biased var), optionally fused
    with ReLU and a residual add (y = residual + BN(x))."""
    N, H, W, C = x4.shape
    M, L = N * H, W * C                      # lane-dense 2-D view (trailing W*C)
    xw = x4.reshape(M, L)

    bm, Mp = _row_tile(M, L)
    x_in = xw if Mp == M else jnp.pad(xw, ((0, Mp - M), (0, 0)))

    # Pass 1: per-column sum / sum-of-squares accumulated across row tiles.
    s, ss = pl.pallas_call(
        _bn_stats_kernel,
        out_shape=(jax.ShapeDtypeStruct((1, L), jnp.float32),
                   jax.ShapeDtypeStruct((1, L), jnp.float32)),
        grid=(Mp // bm,),
        in_specs=[pl.BlockSpec((bm, L), lambda i: (i, 0))],
        out_specs=(pl.BlockSpec((1, L), lambda i: (0, 0)),
                   pl.BlockSpec((1, L), lambda i: (0, 0))),
        compiler_params=pltpu.CompilerParams(
            dimension_semantics=("arbitrary",)),
    )(x_in)

    # Tiny per-channel glue (C-sized): fold W groups, build scale/shift rows.
    count = jnp.float32(N * H * W)
    csum = s.reshape(W, C).sum(axis=0)
    csumsq = ss.reshape(W, C).sum(axis=0)
    mean = csum / count
    var = csumsq / count - mean * mean
    scale = gamma * jax.lax.rsqrt(var + eps)
    shift = beta - mean * scale
    scale_w = jnp.tile(scale, W).reshape(1, L)
    shift_w = jnp.tile(shift, W).reshape(1, L)

    # Pass 2: normalize (+ optional residual) (+ optional ReLU), row-tiled.
    if residual is None:
        kern = functools.partial(_bn_apply_kernel, relu=relu)
        in_specs = [pl.BlockSpec((bm, L), lambda i: (i, 0)),
                    pl.BlockSpec((1, L), lambda i: (0, 0)),
                    pl.BlockSpec((1, L), lambda i: (0, 0))]
        args = (x_in, scale_w, shift_w)
    else:
        rw = residual.reshape(M, L)
        r_in = rw if Mp == M else jnp.pad(rw, ((0, Mp - M), (0, 0)))
        kern = functools.partial(_bn_apply_res_kernel, relu=relu)
        in_specs = [pl.BlockSpec((bm, L), lambda i: (i, 0)),
                    pl.BlockSpec((1, L), lambda i: (0, 0)),
                    pl.BlockSpec((1, L), lambda i: (0, 0)),
                    pl.BlockSpec((bm, L), lambda i: (i, 0))]
        args = (x_in, scale_w, shift_w, r_in)

    y = pl.pallas_call(
        kern,
        out_shape=jax.ShapeDtypeStruct((Mp, L), jnp.float32),
        grid=(Mp // bm,),
        in_specs=in_specs,
        out_specs=pl.BlockSpec((bm, L), lambda i: (i, 0)),
        compiler_params=pltpu.CompilerParams(
            dimension_semantics=("parallel",)),
    )(*args)
    if Mp != M:
        y = y[:M]
    return y.reshape(N, H, W, C)


# ----------------------------------------------------------------------------
# Convolution glue: im2col (data movement) + Pallas matmul (hot path)
# ----------------------------------------------------------------------------

def _im2col(xp, kh, kw, stride):
    N, Hp, Wp, C = xp.shape
    Ho = (Hp - kh) // stride + 1
    Wo = (Wp - kw) // stride + 1
    cols = []
    for dy in range(kh):
        for dx in range(kw):
            cols.append(xp[:, dy:dy + stride * (Ho - 1) + 1:stride,
                           dx:dx + stride * (Wo - 1) + 1:stride, :])
    patches = jnp.stack(cols, axis=3)                 # (N, Ho, Wo, kh*kw, C)
    return patches.reshape(N * Ho * Wo, kh * kw * C), (N, Ho, Wo)


def conv2d(x, w, stride=1, pad=0, pad_mode="constant", bias=None, act="none"):
    # w: PyTorch Conv2d layout (Cout, Cin, kh, kw)
    # TODO(synk): stream im2col taps HBM->VMEM per grid step (extra K grid
    # iterations with shifted index_maps) instead of materializing the
    # kh*kw-times-inflated patch tensor.
    Cout, Cin, kh, kw = w.shape
    x = x.astype(jnp.bfloat16)                        # halve im2col HBM traffic
    if pad > 0:
        x = jnp.pad(x, ((0, 0), (pad, pad), (pad, pad), (0, 0)), mode=pad_mode)
    cols, (N, Ho, Wo) = _im2col(x, kh, kw, stride)
    w_mat = jnp.transpose(w, (2, 3, 1, 0)).reshape(kh * kw * Cin, Cout)
    y = pallas_matmul(cols, w_mat.astype(jnp.bfloat16), bias=bias, act=act)
    return y.reshape(N, Ho, Wo, Cout)


def conv_transpose2d(x, w_t, stride=2, pad=1, out_pad=1):
    # w_t: PyTorch ConvTranspose2d layout (Cin, Cout, kh, kw).
    # Implemented as zero-dilation + pad + ordinary conv with a flipped kernel.
    # TODO(synk): sub-pixel decomposition (4 stride-1 sub-convs) to skip the
    # ~75% zero rows introduced by the dilation.
    Cin, Cout, kh, kw = w_t.shape
    N, H, W, C = x.shape
    x = x.astype(jnp.bfloat16)
    Hd, Wd = (H - 1) * stride + 1, (W - 1) * stride + 1
    xd = jnp.zeros((N, Hd, Wd, C), x.dtype).at[:, ::stride, ::stride, :].set(x)
    pt = kh - 1 - pad
    xd = jnp.pad(xd, ((0, 0), (pt, pt + out_pad), (pt, pt + out_pad), (0, 0)))
    w_flip = jnp.flip(w_t, axis=(2, 3))               # (Cin, Cout, kh, kw)
    w_mat = jnp.transpose(w_flip, (2, 3, 0, 1)).reshape(kh * kw * Cin, Cout)
    cols, (N2, Ho, Wo) = _im2col(xd, kh, kw, 1)
    y = pallas_matmul(cols, w_mat.astype(jnp.bfloat16))
    return y.reshape(N2, Ho, Wo, Cout)


# ----------------------------------------------------------------------------
# Self-attention: fully fused per-batch kernel
# ----------------------------------------------------------------------------

def _self_attn_kernel(x_ref, wq_ref, bq_ref, wk_ref, bk_ref, wv_ref, bv_ref,
                      gamma_ref, o_ref):
    x = x_ref[0]                                               # (HW, C) f32
    q = jnp.dot(x, wq_ref[...], preferred_element_type=jnp.float32) + bq_ref[...]
    k = jnp.dot(x, wk_ref[...], preferred_element_type=jnp.float32) + bk_ref[...]
    v = jnp.dot(x, wv_ref[...], preferred_element_type=jnp.float32) + bv_ref[...]
    # energy[i, j] = <q_i, k_j>; softmax over j (nn.Softmax(dim=-1)).
    energy = jax.lax.dot_general(q, k, (((1,), (1,)), ((), ())),
                                 preferred_element_type=jnp.float32)
    m = jnp.max(energy, axis=-1, keepdims=True)
    e = jnp.exp(energy - m)
    attn = e * pl.reciprocal(jnp.sum(e, axis=-1, keepdims=True), approx=True)
    out = jnp.dot(attn, v, preferred_element_type=jnp.float32)  # (HW, C)
    o_ref[0] = gamma_ref[...] * out + x                         # gamma*out + x


def self_attn(x, p):
    # TODO(synk): flash-style tiling over HW for high resolutions where the
    # (HW, HW) energy block would not fit VMEM.
    N, H, W, C = x.shape
    HW = H * W
    c8 = p["q_w"].shape[0]
    wq = p["q_w"].reshape(c8, C).T
    wk = p["k_w"].reshape(c8, C).T
    wv = p["v_w"].reshape(C, C).T
    gamma = jnp.asarray(p["gamma"], jnp.float32).reshape(1, 1)
    x3 = x.reshape(N, HW, C)

    y = pl.pallas_call(
        _self_attn_kernel,
        out_shape=jax.ShapeDtypeStruct((N, HW, C), jnp.float32),
        grid=(N,),
        in_specs=[
            pl.BlockSpec((1, HW, C), lambda b: (b, 0, 0)),
            pl.BlockSpec((C, c8), lambda b: (0, 0)),
            pl.BlockSpec((1, c8), lambda b: (0, 0)),
            pl.BlockSpec((C, c8), lambda b: (0, 0)),
            pl.BlockSpec((1, c8), lambda b: (0, 0)),
            pl.BlockSpec((C, C), lambda b: (0, 0)),
            pl.BlockSpec((1, C), lambda b: (0, 0)),
            pl.BlockSpec((1, 1), lambda b: (0, 0)),
        ],
        out_specs=pl.BlockSpec((1, HW, C), lambda b: (b, 0, 0)),
        compiler_params=pltpu.CompilerParams(
            dimension_semantics=("parallel",),
            vmem_limit_bytes=48 * 1024 * 1024),
    )(x3, wq, p["q_b"].reshape(1, c8), wk, p["k_b"].reshape(1, c8),
      wv, p["v_b"].reshape(1, C), gamma)
    return y.reshape(N, H, W, C)


# ----------------------------------------------------------------------------
# Model sub-blocks
# ----------------------------------------------------------------------------

def resnet_block(x, p):
    h = conv2d(x, p["w1"], stride=1, pad=1, pad_mode="edge")      # ReplicationPad2d(1)
    h = batchnorm_act(h, p["g1"], p["b1"], relu=True)
    h = conv2d(h, p["w2"], stride=1, pad=1, pad_mode="reflect")   # ReflectionPad2d(1)
    return batchnorm_act(h, p["g2"], p["b2"], relu=False, residual=x)  # x + block(x)


def resnet_generator_forward(x_nchw, params):
    x = jnp.transpose(x_nchw, (0, 2, 3, 1)).astype(jnp.float32)   # NCHW -> NHWC
    # stem: ReflectionPad2d(3) + Conv7x7 (no bias) + BN + ReLU
    h = conv2d(x, params["c1_w"], stride=1, pad=3, pad_mode="reflect")
    h = batchnorm_act(h, params["bn1_g"], params["bn1_b"], relu=True)
    # Self_Attn(ngf)
    h = self_attn(h, params["attn"])
    # 2x downsampling: Conv3x3 s2 p1 (no bias) + BN + ReLU
    for d in params["down"]:
        h = conv2d(h, d["w"], stride=2, pad=1, pad_mode="constant")
        h = batchnorm_act(h, d["g"], d["b"], relu=True)
    # n_blocks ResnetBlocks
    for blk in params["blocks"]:
        h = resnet_block(h, blk)
    # 2x upsampling: ConvTranspose3x3 s2 p1 op1 (no bias) + BN + ReLU
    for u in params["up"]:
        h = conv_transpose2d(h, u["w"], stride=2, pad=1, out_pad=1)
        h = batchnorm_act(h, u["g"], u["b"], relu=True)
    # ReflectionPad2d(3) + Conv7x7 (bias) + Tanh -- bias+tanh fused in matmul
    h = conv2d(h, params["cL_w"], stride=1, pad=3, pad_mode="reflect",
               bias=params["cL_b"], act="tanh")
    return jnp.transpose(h, (0, 3, 1, 2))                         # NHWC -> NCHW


# ----------------------------------------------------------------------------
# Deterministic parameter init (shapes from ResnetGenerator.__init__)
# ----------------------------------------------------------------------------

def init_params(key, input_nc, output_nc, ngf, n_blocks):
    keys = jax.random.split(key, 64)
    it = iter(keys)

    def nrm(shape, scale=0.1):
        return scale * jax.random.normal(next(it), shape, jnp.float32)

    params = {}
    params["c1_w"] = nrm((ngf, input_nc, 7, 7))                   # bias=False (BatchNorm)
    params["bn1_g"] = jnp.ones((ngf,), jnp.float32) + nrm((ngf,))
    params["bn1_b"] = nrm((ngf,))

    c8 = max(ngf // 8, 1)
    params["attn"] = dict(
        q_w=nrm((c8, ngf, 1, 1)), q_b=nrm((c8,)),
        k_w=nrm((c8, ngf, 1, 1)), k_b=nrm((c8,)),
        v_w=nrm((ngf, ngf, 1, 1)), v_b=nrm((ngf,)),
        gamma=jnp.zeros((1, 1), jnp.float32),   # matches PyTorch gamma init = 0
    )

    down = []
    for i in range(2):
        cin = ngf * (2 ** i)
        cout = cin * 2
        down.append(dict(w=nrm((cout, cin, 3, 3)),
                         g=jnp.ones((cout,), jnp.float32) + nrm((cout,)),
                         b=nrm((cout,))))
    params["down"] = down

    dim = ngf * 4
    blocks = []
    for _ in range(n_blocks):
        blocks.append(dict(
            w1=nrm((dim, dim, 3, 3)),
            g1=jnp.ones((dim,), jnp.float32) + nrm((dim,)), b1=nrm((dim,)),
            w2=nrm((dim, dim, 3, 3)),
            g2=jnp.ones((dim,), jnp.float32) + nrm((dim,)), b2=nrm((dim,))))
    params["blocks"] = blocks

    up = []
    for i in range(2):
        cin = ngf * (2 ** (2 - i))
        cout = cin // 2
        up.append(dict(w=nrm((cin, cout, 3, 3)),   # ConvTranspose weight (Cin, Cout, kh, kw)
                       g=jnp.ones((cout,), jnp.float32) + nrm((cout,)),
                       b=nrm((cout,))))
    params["up"] = up

    params["cL_w"] = nrm((output_nc, ngf, 7, 7))
    params["cL_b"] = nrm((output_nc,))
    return params


# TODO(synk): use_dropout=False (default) so nn.Dropout is omitted; BatchNorm is
# implemented in training mode (batch statistics), matching a fresh nn.Module.

if __name__ == "__main__":
    key = jax.random.PRNGKey(0)
    kx, kp = jax.random.split(key)

    input_nc, output_nc, ngf, n_blocks = 4, 4, 8, 2
    x = jax.random.normal(kx, (2, input_nc, 16, 16), jnp.float32)  # NCHW, like PyTorch
    params = init_params(kp, input_nc, output_nc, ngf, n_blocks)

    fwd = jax.jit(resnet_generator_forward)
    y = fwd(x, params)
    jax.block_until_ready(y)

    assert y.shape == (2, output_nc, 16, 16), y.shape
    assert bool(jnp.all(jnp.isfinite(y)))
    assert bool(jnp.all(jnp.abs(y) <= 1.0))  # tanh output range
    print("KERNEL_OK")
</pallas_src>

<mosaic_0001>
module attributes {stable_mosaic.version = 11 : i64} {
  func.func @_mm_kernel(%arg0: i32, %arg1: i32, %arg2: i32, %arg3: memref<256x196xbf16, #tpu.memory_space<vmem>>, %arg4: memref<196x8xbf16, #tpu.memory_space<vmem>>, %arg5: memref<256x8xf32, #tpu.memory_space<vmem>>, %arg6: memref<256x8xf32, #tpu.memory_space<vmem>>) attributes {dimension_semantics = [#tpu.dimension_semantics<parallel>, #tpu.dimension_semantics<parallel>, #tpu.dimension_semantics<arbitrary>], iteration_bounds = array<i64: 2, 1, 1>, scalar_prefetch = 0 : i64, scratch_operands = 1 : i64, tpu.core_type = #tpu.core_type<tc>, window_params = [{transform_indices = @transform_0, window_bounds = array<i64: 256, 196>}, {transform_indices = @transform_1, window_bounds = array<i64: 196, 8>}, {transform_indices = @transform_2, window_bounds = array<i64: 256, 8>}]} {
    %c0_i32 = arith.constant 0 : i32
    %0 = arith.cmpi eq, %arg2, %c0_i32 : i32
    %1 = arith.extui %0 : i1 to i32
    %c0_i32_0 = arith.constant 0 : i32
    %2 = arith.cmpi ne, %1, %c0_i32_0 : i32
    scf.if %2 {
      %cst_10 = arith.constant 0.000000e+00 : f32
      %12 = vector.broadcast %cst_10 : f32 to vector<256x8xf32>
      %c0_11 = arith.constant 0 : index
      %c0_12 = arith.constant 0 : index
      %13 = vector.load %arg6[%c0_11, %c0_12] : memref<256x8xf32, #tpu.memory_space<vmem>>, vector<256x8xf32>
      tpu.vector_store %arg6[%c0_11, %c0_12], %12 {strides = array<i32>} : memref<256x8xf32, #tpu.memory_space<vmem>>, vector<256x8xf32>,
    } else {
    }
    %c0 = arith.constant 0 : index
    %c0_1 = arith.constant 0 : index
    %3 = vector.load %arg6[%c0, %c0_1] : memref<256x8xf32, #tpu.memory_space<vmem>>, vector<256x8xf32>
    %c0_2 = arith.constant 0 : index
    %c0_3 = arith.constant 0 : index
    %4 = vector.load %arg3[%c0_2, %c0_3] : memref<256x196xbf16, #tpu.memory_space<vmem>>, vector<256x196xbf16>
    %c0_4 = arith.constant 0 : index
    %c0_5 = arith.constant 0 : index
    %5 = vector.load %arg4[%c0_4, %c0_5] : memref<196x8xbf16, #tpu.memory_space<vmem>>, vector<196x8xbf16>
    %cst = arith.constant dense<0.000000e+00> : vector<256x8xf32>
    %6 = tpu.matmul %4, %5, %cst {dimension_numbers = #tpu.dot_dimension_numbers<[1], [0], [0], [1], [0, 0, 1, 1], [], []>} : vector<256x196xbf16>, vector<196x8xbf16>, vector<256x8xf32> -> vector<256x8xf32>
    %7 = arith.addf %3, %6 : vector<256x8xf32>
    %c0_6 = arith.constant 0 : index
    %c0_7 = arith.constant 0 : index
    %8 = vector.load %arg6[%c0_6, %c0_7] : memref<256x8xf32, #tpu.memory_space<vmem>>, vector<256x8xf32>
    tpu.vector_store %arg6[%c0_6, %c0_7], %7 {strides = array<i32>} : memref<256x8xf32, #tpu.memory_space<vmem>>, vector<256x8xf32>,
    %c0_i32_8 = arith.constant 0 : i32
    %9 = arith.cmpi eq, %arg2, %c0_i32_8 : i32
    %10 = arith.extui %9 : i1 to i32
    %c0_i32_9 = arith.constant 0 : i32
    %11 = arith.cmpi ne, %10, %c0_i32_9 : i32
    scf.if %11 {
      %c0_10 = arith.constant 0 : index
      %c0_11 = arith.constant 0 : index
      %12 = vector.load %arg6[%c0_10, %c0_11] : memref<256x8xf32, #tpu.memory_space<vmem>>, vector<256x8xf32>
      %c0_12 = arith.constant 0 : index
      %c0_13 = arith.constant 0 : index
      %13 = vector.load %arg5[%c0_12, %c0_13] : memref<256x8xf32, #tpu.memory_space<vmem>>, vector<256x8xf32>
      tpu.vector_store %arg5[%c0_12, %c0_13], %12 {strides = array<i32>} : memref<256x8xf32, #tpu.memory_space<vmem>>, vector<256x8xf32>,
    } else {
    }
    return
  }
  func.func @transform_0(%arg0: i32, %arg1: i32, %arg2: i32) -> (i32, i32) {
    %c0_i32 = arith.constant 0 : i32
    return %arg0, %arg2 : i32, i32
  }
  func.func @transform_1(%arg0: i32, %arg1: i32, %arg2: i32) -> (i32, i32) {
    %c0_i32 = arith.constant 0 : i32
    return %arg2, %arg1 : i32, i32
  }
  func.func @transform_2(%arg0: i32, %arg1: i32, %arg2: i32) -> (i32, i32) {
    %c0_i32 = arith.constant 0 : i32
    return %arg0, %arg1 : i32, i32
  }
}

module attributes {stable_mosaic.version = 11 : i64} {
  func.func @_bn_stats_kernel(%arg0: i32, %arg1: memref<32x128xf32, #tpu.memory_space<vmem>>, %arg2: memref<1x128xf32, #tpu.memory_space<vmem>>, %arg3: memref<1x128xf32, #tpu.memory_space<vmem>>) attributes {dimension_semantics = [#tpu.dimension_semantics<arbitrary>], iteration_bounds = array<i64: 1>, scalar_prefetch = 0 : i64, scratch_operands = 0 : i64, tpu.core_type = #tpu.core_type<tc>, window_params = [{transform_indices = @transform_0, window_bounds = array<i64: 32, 128>}, {pipeline_mode = #tpu.pipeline_mode<synchronous>, transform_indices = @transform_1, window_bounds = array<i64: 1, 128>}, {pipeline_mode = #tpu.pipeline_mode<synchronous>, transform_indices = @transform_2, window_bounds = array<i64: 1, 128>}]} {
    %c0_i32 = arith.constant 0 : i32
    %0 = arith.cmpi eq, %arg0, %c0_i32 : i32
    %1 = arith.extui %0 : i1 to i32
    %c0_i32_0 = arith.constant 0 : i32
    %2 = arith.cmpi ne, %1, %c0_i32_0 : i32
    scf.if %2 {
      %cst_11 = arith.constant 0.000000e+00 : f32
      %15 = vector.broadcast %cst_11 : f32 to vector<1x128xf32>
      %c0_12 = arith.constant 0 : index
      %c0_13 = arith.constant 0 : index
      %16 = vector.load %arg2[%c0_12, %c0_13] : memref<1x128xf32, #tpu.memory_space<vmem>>, vector<1x128xf32>
      tpu.vector_store %arg2[%c0_12, %c0_13], %15 {strides = array<i32>} : memref<1x128xf32, #tpu.memory_space<vmem>>, vector<1x128xf32>,
      %cst_14 = arith.constant 0.000000e+00 : f32
      %17 = vector.broadcast %cst_14 : f32 to vector<1x128xf32>
      %c0_15 = arith.constant 0 : index
      %c0_16 = arith.constant 0 : index
      %18 = vector.load %arg3[%c0_15, %c0_16] : memref<1x128xf32, #tpu.memory_space<vmem>>, vector<1x128xf32>
      tpu.vector_store %arg3[%c0_15, %c0_16], %17 {strides = array<i32>} : memref<1x128xf32, #tpu.memory_space<vmem>>, vector<1x128xf32>,
    } else {
    }
    %c0 = arith.constant 0 : index
    %c0_1 = arith.constant 0 : index
    %3 = vector.load %arg1[%c0, %c0_1] : memref<32x128xf32, #tpu.memory_space<vmem>>, vector<32x128xf32>
    %c0_2 = arith.constant 0 : index
    %c0_3 = arith.constant 0 : index
    %4 = vector.load %arg2[%c0_2, %c0_3] : memref<1x128xf32, #tpu.memory_space<vmem>>, vector<1x128xf32>
    %cst = arith.constant dense<0.000000e+00> : vector<128xf32>
    %5 = vector.multi_reduction <add>, %3, %cst [0] : vector<32x128xf32> to vector<128xf32>
    %6 = vector.shape_cast %5 : vector<128xf32> to vector<1x128xf32>
    %7 = arith.addf %4, %6 : vector<1x128xf32>
    %c0_4 = arith.constant 0 : index
    %c0_5 = arith.constant 0 : index
    %8 = vector.load %arg2[%c0_4, %c0_5] : memref<1x128xf32, #tpu.memory_space<vmem>>, vector<1x128xf32>
    tpu.vector_store %arg2[%c0_4, %c0_5], %7 {strides = array<i32>} : memref<1x128xf32, #tpu.memory_space<vmem>>, vector<1x128xf32>,
    %c0_6 = arith.constant 0 : index
    %c0_7 = arith.constant 0 : index
    %9 = vector.load %arg3[%c0_6, %c0_7] : memref<1x128xf32, #tpu.memory_space<vmem>>, vector<1x128xf32>
    %10 = arith.mulf %3, %3 : vector<32x128xf32>
    %cst_8 = arith.constant dense<0.000000e+00> : vector<128xf32>
    %11 = vector.multi_reduction <add>, %10, %cst_8 [0] : vector<32x128xf32> to vector<128xf32>
    %12 = vector.shape_cast %11 : vector<128xf32> to vector<1x128xf32>
    %13 = arith.addf %9, %12 : vector<1x128xf32>
    %c0_9 = arith.constant 0 : index
    %c0_10 = arith.constant 0 : index
    %14 = vector.load %arg3[%c0_9, %c0_10] : memref<1x128xf32, #tpu.memory_space<vmem>>, vector<1x128xf32>
    tpu.vector_store %arg3[%c0_9, %c0_10], %13 {strides = array<i32>} : memref<1x128xf32, #tpu.memory_space<vmem>>, vector<1x128xf32>,
    return
  }
  func.func @transform_0(%arg0: i32) -> (i32, i32) {
    %c0_i32 = arith.constant 0 : i32
    %c0_i32_0 = arith.constant 0 : i32
    return %arg0, %c0_i32 : i32, i32
  }
  func.func @transform_1(%arg0: i32) -> (i32, i32) {
    %c0_i32 = arith.constant 0 : i32
    %c0_i32_0 = arith.constant 0 : i32
    %c0_i32_1 = arith.constant 0 : i32
    return %c0_i32, %c0_i32_0 : i32, i32
  }
  func.func @transform_2(%arg0: i32) -> (i32, i32) {
    %c0_i32 = arith.constant 0 : i32
    %c0_i32_0 = arith.constant 0 : i32
    %c0_i32_1 = arith.constant 0 : i32
    return %c0_i32, %c0_i32_0 : i32, i32
  }
}

module attributes {stable_mosaic.version = 11 : i64} {
  func.func @_bn_apply_kernel(%arg0: i32, %arg1: memref<32x128xf32, #tpu.memory_space<vmem>>, %arg2: memref<1x128xf32, #tpu.memory_space<vmem>>, %arg3: memref<1x128xf32, #tpu.memory_space<vmem>>, %arg4: memref<32x128xf32, #tpu.memory_space<vmem>>) attributes {dimension_semantics = [#tpu.dimension_semantics<parallel>], iteration_bounds = array<i64: 1>, scalar_prefetch = 0 : i64, scratch_operands = 0 : i64, tpu.core_type = #tpu.core_type<tc>, window_params = [{transform_indices = @transform_0, window_bounds = array<i64: 32, 128>}, {pipeline_mode = #tpu.pipeline_mode<synchronous>, transform_indices = @transform_1, window_bounds = array<i64: 1, 128>}, {pipeline_mode = #tpu.pipeline_mode<synchronous>, transform_indices = @transform_2, window_bounds = array<i64: 1, 128>}, {transform_indices = @transform_3, window_bounds = array<i64: 32, 128>}]} {
    %c0 = arith.constant 0 : index
    %c0_0 = arith.constant 0 : index
    %0 = vector.load %arg1[%c0, %c0_0] : memref<32x128xf32, #tpu.memory_space<vmem>>, vector<32x128xf32>
    %c0_1 = arith.constant 0 : index
    %c0_2 = arith.constant 0 : index
    %1 = vector.load %arg2[%c0_1, %c0_2] : memref<1x128xf32, #tpu.memory_space<vmem>>, vector<1x128xf32>
    %2 = vector.broadcast %1 : vector<1x128xf32> to vector<32x128xf32>
    %3 = arith.mulf %0, %2 : vector<32x128xf32>
    %c0_3 = arith.constant 0 : index
    %c0_4 = arith.constant 0 : index
    %4 = vector.load %arg3[%c0_3, %c0_4] : memref<1x128xf32, #tpu.memory_space<vmem>>, vector<1x128xf32>
    %5 = vector.broadcast %4 : vector<1x128xf32> to vector<32x128xf32>
    %6 = arith.addf %3, %5 : vector<32x128xf32>
    %cst = arith.constant 0.000000e+00 : f32
    %7 = vector.broadcast %cst : f32 to vector<32x128xf32>
    %8 = arith.maximumf %6, %7 : vector<32x128xf32>
    %c0_5 = arith.constant 0 : index
    %c0_6 = arith.constant 0 : index
    %9 = vector.load %arg4[%c0_5, %c0_6] : memref<32x128xf32, #tpu.memory_space<vmem>>, vector<32x128xf32>
    tpu.vector_store %arg4[%c0_5, %c0_6], %8 {strides = array<i32>} : memref<32x128xf32, #tpu.memory_space<vmem>>, vector<32x128xf32>,
    return
  }
  func.func @transform_0(%arg0: i32) -> (i32, i32) {
    %c0_i32 = arith.constant 0 : i32
    %c0_i32_0 = arith.constant 0 : i32
    return %arg0, %c0_i32 : i32, i32
  }
  func.func @transform_1(%arg0: i32) -> (i32, i32) {
    %c0_i32 = arith.constant 0 : i32
    %c0_i32_0 = arith.constant 0 : i32
    %c0_i32_1 = arith.constant 0 : i32
    return %c0_i32, %c0_i32_0 : i32, i32
  }
  func.func @transform_2(%arg0: i32) -> (i32, i32) {
    %c0_i32 = arith.constant 0 : i32
    %c0_i32_0 = arith.constant 0 : i32
    %c0_i32_1 = arith.constant 0 : i32
    return %c0_i32, %c0_i32_0 : i32, i32
  }
  func.func @transform_3(%arg0: i32) -> (i32, i32) {
    %c0_i32 = arith.constant 0 : i32
    %c0_i32_0 = arith.constant 0 : i32
    return %arg0, %c0_i32 : i32, i32
  }
}

module attributes {stable_mosaic.version = 11 : i64} {
  func.func @_self_attn_kernel(%arg0: i32, %arg1: memref<1x256x8xf32, #tpu.memory_space<vmem>>, %arg2: memref<8x1xf32, #tpu.memory_space<vmem>>, %arg3: memref<1x1xf32, #tpu.memory_space<vmem>>, %arg4: memref<8x1xf32, #tpu.memory_space<vmem>>, %arg5: memref<1x1xf32, #tpu.memory_space<vmem>>, %arg6: memref<8x8xf32, #tpu.memory_space<vmem>>, %arg7: memref<1x8xf32, #tpu.memory_space<vmem>>, %arg8: memref<1x1xf32, #tpu.memory_space<vmem>>, %arg9: memref<1x256x8xf32, #tpu.memory_space<vmem>>) attributes {dimension_semantics = [#tpu.dimension_semantics<parallel>], iteration_bounds = array<i64: 2>, scalar_prefetch = 0 : i64, scratch_operands = 0 : i64, tpu.core_type = #tpu.core_type<tc>, window_params = [{transform_indices = @transform_0, window_bounds = array<i64: 1, 256, 8>}, {pipeline_mode = #tpu.pipeline_mode<synchronous>, transform_indices = @transform_1, window_bounds = array<i64: 8, 1>}, {pipeline_mode = #tpu.pipeline_mode<synchronous>, transform_indices = @transform_2, window_bounds = array<i64: 1, 1>}, {pipeline_mode = #tpu.pipeline_mode<synchronous>, transform_indices = @transform_3, window_bounds = array<i64: 8, 1>}, {pipeline_mode = #tpu.pipeline_mode<synchronous>, transform_indices = @transform_4, window_bounds = array<i64: 1, 1>}, {pipeline_mode = #tpu.pipeline_mode<synchronous>, transform_indices = @transform_5, window_bounds = array<i64: 8, 8>}, {pipeline_mode = #tpu.pipeline_mode<synchronous>, transform_indices = @transform_6, window_bounds = array<i64: 1, 8>}, {pipeline_mode = #tpu.pipeline_mode<synchronous>, transform_indices = @transform_7, window_bounds = array<i64: 1, 1>}, {transform_indices = @transform_8, window_bounds = array<i64: 1, 256, 8>}]} {
    %c0 = arith.constant 0 : index
    %c0_0 = arith.constant 0 : index
    %c0_1 = arith.constant 0 : index
    %0 = vector.load %arg1[%c0, %c0_0, %c0_1] : memref<1x256x8xf32, #tpu.memory_space<vmem>>, vector<1x256x8xf32>
    %1 = vector.shape_cast %0 : vector<1x256x8xf32> to vector<256x8xf32>
    %c0_2 = arith.constant 0 : index
    %c0_3 = arith.constant 0 : index
    %2 = vector.load %arg2[%c0_2, %c0_3] : memref<8x1xf32, #tpu.memory_space<vmem>>, vector<8x1xf32>
    %cst = arith.constant dense<0.000000e+00> : vector<256x1xf32>
    %3 = tpu.matmul %1, %2, %cst {dimension_numbers = #tpu.dot_dimension_numbers<[1], [0], [0], [1], [0, 0, 1, 1], [], []>} : vector<256x8xf32>, vector<8x1xf32>, vector<256x1xf32> -> vector<256x1xf32>
    %c0_4 = arith.constant 0 : index
    %c0_5 = arith.constant 0 : index
    %4 = vector.load %arg3[%c0_4, %c0_5] : memref<1x1xf32, #tpu.memory_space<vmem>>, vector<1x1xf32>
    %5 = vector.broadcast %4 : vector<1x1xf32> to vector<256x1xf32>
    %6 = arith.addf %3, %5 : vector<256x1xf32>
    %c0_6 = arith.constant 0 : index
    %c0_7 = arith.constant 0 : index
    %7 = vector.load %arg4[%c0_6, %c0_7] : memref<8x1xf32, #tpu.memory_space<vmem>>, vector<8x1xf32>
    %cst_8 = arith.constant dense<0.000000e+00> : vector<256x1xf32>
    %8 = tpu.matmul %1, %7, %cst_8 {dimension_numbers = #tpu.dot_dimension_numbers<[1], [0], [0], [1], [0, 0, 1, 1], [], []>} : vector<256x8xf32>, vector<8x1xf32>, vector<256x1xf32> -> vector<256x1xf32>
    %c0_9 = arith.constant 0 : index
    %c0_10 = arith.constant 0 : index
    %9 = vector.load %arg5[%c0_9, %c0_10] : memref<1x1xf32, #tpu.memory_space<vmem>>, vector<1x1xf32>
    %10 = vector.broadcast %9 : vector<1x1xf32> to vector<256x1xf32>
    %11 = arith.addf %8, %10 : vector<256x1xf32>
    %c0_11 = arith.constant 0 : index
    %c0_12 = arith.constant 0 : index
    %12 = vector.load %arg6[%c0_11, %c0_12] : memref<8x8xf32, #tpu.memory_space<vmem>>, vector<8x8xf32>
    %cst_13 = arith.constant dense<0.000000e+00> : vector<256x8xf32>
    %13 = tpu.matmul %1, %12, %cst_13 {dimension_numbers = #tpu.dot_dimension_numbers<[1], [0], [0], [1], [0, 0, 1, 1], [], []>} : vector<256x8xf32>, vector<8x8xf32>, vector<256x8xf32> -> vector<256x8xf32>
    %c0_14 = arith.constant 0 : index
    %c0_15 = arith.constant 0 : index
    %14 = vector.load %arg7[%c0_14, %c0_15] : memref<1x8xf32, #tpu.memory_space<vmem>>, vector<1x8xf32>
    %15 = vector.broadcast %14 : vector<1x8xf32> to vector<256x8xf32>
    %16 = arith.addf %13, %15 : vector<256x8xf32>
    %cst_16 = arith.constant dense<0.000000e+00> : vector<256x256xf32>
    %17 = tpu.matmul %6, %11, %cst_16 {dimension_numbers = #tpu.dot_dimension_numbers<[1], [1], [0], [0], [0, 0, 1, 0], [], []>} : vector<256x1xf32>, vector<256x1xf32>, vector<256x256xf32> -> vector<256x256xf32>
    %cst_17 = arith.constant dense<0xFF800000> : vector<256xf32>
    %18 = vector.multi_reduction <maximumf>, %17, %cst_17 [1] : vector<256x256xf32> to vector<256xf32>
    %19 = vector.shape_cast %18 : vector<256xf32> to vector<256x1xf32>
    %20 = vector.broadcast %19 : vector<256x1xf32> to vector<256x256xf32>
    %21 = arith.subf %17, %20 : vector<256x256xf32>
    %22 = math.exp %21 : vector<256x256xf32>
    %cst_18 = arith.constant dense<0.000000e+00> : vector<256xf32>
    %23 = vector.multi_reduction <add>, %22, %cst_18 [1] : vector<256x256xf32> to vector<256xf32>
    %24 = vector.shape_cast %23 : vector<256xf32> to vector<256x1xf32>
    %25 = tpu.reciprocal %24 {approx = true} : vector<256x1xf32> -> vector<256x1xf32>
    %26 = vector.broadcast %25 : vector<256x1xf32> to vector<256x256xf32>
    %27 = arith.mulf %22, %26 : vector<256x256xf32>
    %cst_19 = arith.constant dense<0.000000e+00> : vector<256x8xf32>
    %28 = tpu.matmul %27, %16, %cst_19 {dimension_numbers = #tpu.dot_dimension_numbers<[1], [0], [0], [1], [0, 0, 1, 1], [], []>} : vector<256x256xf32>, vector<256x8xf32>, vector<256x8xf32> -> vector<256x8xf32>
    %c0_20 = arith.constant 0 : index
    %c0_21 = arith.constant 0 : index
    %29 = vector.load %arg8[%c0_20, %c0_21] : memref<1x1xf32, #tpu.memory_space<vmem>>, vector<1x1xf32>
    %30 = vector.broadcast %29 : vector<1x1xf32> to vector<256x8xf32>
    %31 = arith.mulf %30, %28 : vector<256x8xf32>
    %32 = arith.addf %31, %1 : vector<256x8xf32>
    %c0_22 = arith.constant 0 : index
    %c0_23 = arith.constant 0 : index
    %c0_24 = arith.constant 0 : index
    %33 = vector.load %arg9[%c0_22, %c0_23, %c0_24] : memref<1x256x8xf32, #tpu.memory_space<vmem>>, vector<1x256x8xf32>
    %34 = vector.shape_cast %33 : vector<1x256x8xf32> to vector<256x8xf32>
    %35 = vector.shape_cast %32 : vector<256x8xf32> to vector<1x256x8xf32>
    tpu.vector_store %arg9[%c0_22, %c0_23, %c0_24], %35 {strides = array<i32>} : memref<1x256x8xf32, #tpu.memory_space<vmem>>, vector<1x256x8xf32>,
    return
  }
  func.func @transform_0(%arg0: i32) -> (i32, i32, i32) {
    %c0_i32 = arith.constant 0 : i32
    %c0_i32_0 = arith.constant 0 : i32
    %c0_i32_1 = arith.constant 0 : i32
    return %arg0, %c0_i32, %c0_i32_0 : i32, i32, i32
  }
  func.func @transform_1(%arg0: i32) -> (i32, i32) {
    %c0_i32 = arith.constant 0 : i32
    %c0_i32_0 = arith.constant 0 : i32
    %c0_i32_1 = arith.constant 0 : i32
    return %c0_i32, %c0_i32_0 : i32, i32
  }
  func.func @transform_2(%arg0: i32) -> (i32, i32) {
    %c0_i32 = arith.constant 0 : i32
    %c0_i32_0 = arith.constant 0 : i32
    %c0_i32_1 = arith.constant 0 : i32
    return %c0_i32, %c0_i32_0 : i32, i32
  }
  func.func @transform_3(%arg0: i32) -> (i32, i32) {
    %c0_i32 = arith.constant 0 : i32
    %c0_i32_0 = arith.constant 0 : i32
    %c0_i32_1 = arith.constant 0 : i32
    return %c0_i32, %c0_i32_0 : i32, i32
  }
  func.func @transform_4(%arg0: i32) -> (i32, i32) {
    %c0_i32 = arith.constant 0 : i32
    %c0_i32_0 = arith.constant 0 : i32
    %c0_i32_1 = arith.constant 0 : i32
    return %c0_i32, %c0_i32_0 : i32, i32
  }
  func.func @transform_5(%arg0: i32) -> (i32, i32) {
    %c0_i32 = arith.constant 0 : i32
    %c0_i32_0 = arith.constant 0 : i32
    %c0_i32_1 = arith.constant 0 : i32
    return %c0_i32, %c0_i32_0 : i32, i32
  }
  func.func @transform_6(%arg0: i32) -> (i32, i32) {
    %c0_i32 = arith.constant 0 : i32
    %c0_i32_0 = arith.constant 0 : i32
    %c0_i32_1 = arith.constant 0 : i32
    return %c0_i32, %c0_i32_0 : i32, i32
  }
  func.func @transform_7(%arg0: i32) -> (i32, i32) {
    %c0_i32 = arith.constant 0 : i32
    %c0_i32_0 = arith.constant 0 : i32
    %c0_i32_1 = arith.constant 0 : i32
    return %c0_i32, %c0_i32_0 : i32, i32
  }
  func.func @transform_8(%arg0: i32) -> (i32, i32, i32) {
    %c0_i32 = arith.constant 0 : i32
    %c0_i32_0 = arith.constant 0 : i32
    %c0_i32_1 = arith.constant 0 : i32
    return %arg0, %c0_i32, %c0_i32_0 : i32, i32, i32
  }
}

module attributes {stable_mosaic.version = 11 : i64} {
  func.func @_mm_kernel(%arg0: i32, %arg1: i32, %arg2: i32, %arg3: memref<128x72xbf16, #tpu.memory_space<vmem>>, %arg4: memref<72x16xbf16, #tpu.memory_space<vmem>>, %arg5: memref<128x16xf32, #tpu.memory_space<vmem>>, %arg6: memref<128x16xf32, #tpu.memory_space<vmem>>) attributes {dimension_semantics = [#tpu.dimension_semantics<parallel>, #tpu.dimension_semantics<parallel>, #tpu.dimension_semantics<arbitrary>], iteration_bounds = array<i64: 1, 1, 1>, scalar_prefetch = 0 : i64, scratch_operands = 1 : i64, tpu.core_type = #tpu.core_type<tc>, window_params = [{transform_indices = @transform_0, window_bounds = array<i64: 128, 72>}, {transform_indices = @transform_1, window_bounds = array<i64: 72, 16>}, {transform_indices = @transform_2, window_bounds = array<i64: 128, 16>}]} {
    %c0_i32 = arith.constant 0 : i32
    %0 = arith.cmpi eq, %arg2, %c0_i32 : i32
    %1 = arith.extui %0 : i1 to i32
    %c0_i32_0 = arith.constant 0 : i32
    %2 = arith.cmpi ne, %1, %c0_i32_0 : i32
    scf.if %2 {
      %cst_10 = arith.constant 0.000000e+00 : f32
      %12 = vector.broadcast %cst_10 : f32 to vector<128x16xf32>
      %c0_11 = arith.constant 0 : index
      %c0_12 = arith.constant 0 : index
      %13 = vector.load %arg6[%c0_11, %c0_12] : memref<128x16xf32, #tpu.memory_space<vmem>>, vector<128x16xf32>
      tpu.vector_store %arg6[%c0_11, %c0_12], %12 {strides = array<i32>} : memref<128x16xf32, #tpu.memory_space<vmem>>, vector<128x16xf32>,
    } else {
    }
    %c0 = arith.constant 0 : index
    %c0_1 = arith.constant 0 : index
    %3 = vector.load %arg6[%c0, %c0_1] : memref<128x16xf32, #tpu.memory_space<vmem>>, vector<128x16xf32>
    %c0_2 = arith.constant 0 : index
    %c0_3 = arith.constant 0 : index
    %4 = vector.load %arg3[%c0_2, %c0_3] : memref<128x72xbf16, #tpu.memory_space<vmem>>, vector<128x72xbf16>
    %c0_4 = arith.constant 0 : index
    %c0_5 = arith.constant 0 : index
    %5 = vector.load %arg4[%c0_4, %c0_5] : memref<72x16xbf16, #tpu.memory_space<vmem>>, vector<72x16xbf16>
    %cst = arith.constant dense<0.000000e+00> : vector<128x16xf32>
    %6 = tpu.matmul %4, %5, %cst {dimension_numbers = #tpu.dot_dimension_numbers<[1], [0], [0], [1], [0, 0, 1, 1], [], []>} : vector<128x72xbf16>, vector<72x16xbf16>, vector<128x16xf32> -> vector<128x16xf32>
    %7 = arith.addf %3, %6 : vector<128x16xf32>
    %c0_6 = arith.constant 0 : index
    %c0_7 = arith.constant 0 : index
    %8 = vector.load %arg6[%c0_6, %c0_7] : memref<128x16xf32, #tpu.memory_space<vmem>>, vector<128x16xf32>
    tpu.vector_store %arg6[%c0_6, %c0_7], %7 {strides = array<i32>} : memref<128x16xf32, #tpu.memory_space<vmem>>, vector<128x16xf32>,
    %c0_i32_8 = arith.constant 0 : i32
    %9 = arith.cmpi eq, %arg2, %c0_i32_8 : i32
    %10 = arith.extui %9 : i1 to i32
    %c0_i32_9 = arith.constant 0 : i32
    %11 = arith.cmpi ne, %10, %c0_i32_9 : i32
    scf.if %11 {
      %c0_10 = arith.constant 0 : index
      %c0_11 = arith.constant 0 : index
      %12 = vector.load %arg6[%c0_10, %c0_11] : memref<128x16xf32, #tpu.memory_space<vmem>>, vector<128x16xf32>
      %c0_12 = arith.constant 0 : index
      %c0_13 = arith.constant 0 : index
      %13 = vector.load %arg5[%c0_12, %c0_13] : memref<128x16xf32, #tpu.memory_space<vmem>>, vector<128x16xf32>
      tpu.vector_store %arg5[%c0_12, %c0_13], %12 {strides = array<i32>} : memref<128x16xf32, #tpu.memory_space<vmem>>, vector<128x16xf32>,
    } else {
    }
    return
  }
  func.func @transform_0(%arg0: i32, %arg1: i32, %arg2: i32) -> (i32, i32) {
    %c0_i32 = arith.constant 0 : i32
    return %arg0, %arg2 : i32, i32
  }
  func.func @transform_1(%arg0: i32, %arg1: i32, %arg2: i32) -> (i32, i32) {
    %c0_i32 = arith.constant 0 : i32
    return %arg2, %arg1 : i32, i32
  }
  func.func @transform_2(%arg0: i32, %arg1: i32, %arg2: i32) -> (i32, i32) {
    %c0_i32 = arith.constant 0 : i32
    return %arg0, %arg1 : i32, i32
  }
}

module attributes {stable_mosaic.version = 11 : i64} {
  func.func @_bn_stats_kernel(%arg0: i32, %arg1: memref<16x128xf32, #tpu.memory_space<vmem>>, %arg2: memref<1x128xf32, #tpu.memory_space<vmem>>, %arg3: memref<1x128xf32, #tpu.memory_space<vmem>>) attributes {dimension_semantics = [#tpu.dimension_semantics<arbitrary>], iteration_bounds = array<i64: 1>, scalar_prefetch = 0 : i64, scratch_operands = 0 : i64, tpu.core_type = #tpu.core_type<tc>, window_params = [{transform_indices = @transform_0, window_bounds = array<i64: 16, 128>}, {pipeline_mode = #tpu.pipeline_mode<synchronous>, transform_indices = @transform_1, window_bounds = array<i64: 1, 128>}, {pipeline_mode = #tpu.pipeline_mode<synchronous>, transform_indices = @transform_2, window_bounds = array<i64: 1, 128>}]} {
    %c0_i32 = arith.constant 0 : i32
    %0 = arith.cmpi eq, %arg0, %c0_i32 : i32
    %1 = arith.extui %0 : i1 to i32
    %c0_i32_0 = arith.constant 0 : i32
    %2 = arith.cmpi ne, %1, %c0_i32_0 : i32
    scf.if %2 {
      %cst_11 = arith.constant 0.000000e+00 : f32
      %15 = vector.broadcast %cst_11 : f32 to vector<1x128xf32>
      %c0_12 = arith.constant 0 : index
      %c0_13 = arith.constant 0 : index
      %16 = vector.load %arg2[%c0_12, %c0_13] : memref<1x128xf32, #tpu.memory_space<vmem>>, vector<1x128xf32>
      tpu.vector_store %arg2[%c0_12, %c0_13], %15 {strides = array<i32>} : memref<1x128xf32, #tpu.memory_space<vmem>>, vector<1x128xf32>,
      %cst_14 = arith.constant 0.000000e+00 : f32
      %17 = vector.broadcast %cst_14 : f32 to vector<1x128xf32>
      %c0_15 = arith.constant 0 : index
      %c0_16 = arith.constant 0 : index
      %18 = vector.load %arg3[%c0_15, %c0_16] : memref<1x128xf32, #tpu.memory_space<vmem>>, vector<1x128xf32>
      tpu.vector_store %arg3[%c0_15, %c0_16], %17 {strides = array<i32>} : memref<1x128xf32, #tpu.memory_space<vmem>>, vector<1x128xf32>,
    } else {
    }
    %c0 = arith.constant 0 : index
    %c0_1 = arith.constant 0 : index
    %3 = vector.load %arg1[%c0, %c0_1] : memref<16x128xf32, #tpu.memory_space<vmem>>, vector<16x128xf32>
    %c0_2 = arith.constant 0 : index
    %c0_3 = arith.constant 0 : index
    %4 = vector.load %arg2[%c0_2, %c0_3] : memref<1x128xf32, #tpu.memory_space<vmem>>, vector<1x128xf32>
    %cst = arith.constant dense<0.000000e+00> : vector<128xf32>
    %5 = vector.multi_reduction <add>, %3, %cst [0] : vector<16x128xf32> to vector<128xf32>
    %6 = vector.shape_cast %5 : vector<128xf32> to vector<1x128xf32>
    %7 = arith.addf %4, %6 : vector<1x128xf32>
    %c0_4 = arith.constant 0 : index
    %c0_5 = arith.constant 0 : index
    %8 = vector.load %arg2[%c0_4, %c0_5] : memref<1x128xf32, #tpu.memory_space<vmem>>, vector<1x128xf32>
    tpu.vector_store %arg2[%c0_4, %c0_5], %7 {strides = array<i32>} : memref<1x128xf32, #tpu.memory_space<vmem>>, vector<1x128xf32>,
    %c0_6 = arith.constant 0 : index
    %c0_7 = arith.constant 0 : index
    %9 = vector.load %arg3[%c0_6, %c0_7] : memref<1x128xf32, #tpu.memory_space<vmem>>, vector<1x128xf32>
    %10 = arith.mulf %3, %3 : vector<16x128xf32>
    %cst_8 = arith.constant dense<0.000000e+00> : vector<128xf32>
    %11 = vector.multi_reduction <add>, %10, %cst_8 [0] : vector<16x128xf32> to vector<128xf32>
    %12 = vector.shape_cast %11 : vector<128xf32> to vector<1x128xf32>
    %13 = arith.addf %9, %12 : vector<1x128xf32>
    %c0_9 = arith.constant 0 : index
    %c0_10 = arith.constant 0 : index
    %14 = vector.load %arg3[%c0_9, %c0_10] : memref<1x128xf32, #tpu.memory_space<vmem>>, vector<1x128xf32>
    tpu.vector_store %arg3[%c0_9, %c0_10], %13 {strides = array<i32>} : memref<1x128xf32, #tpu.memory_space<vmem>>, vector<1x128xf32>,
    return
  }
  func.func @transform_0(%arg0: i32) -> (i32, i32) {
    %c0_i32 = arith.constant 0 : i32
    %c0_i32_0 = arith.constant 0 : i32
    return %arg0, %c0_i32 : i32, i32
  }
  func.func @transform_1(%arg0: i32) -> (i32, i32) {
    %c0_i32 = arith.constant 0 : i32
    %c0_i32_0 = arith.constant 0 : i32
    %c0_i32_1 = arith.constant 0 : i32
    return %c0_i32, %c0_i32_0 : i32, i32
  }
  func.func @transform_2(%arg0: i32) -> (i32, i32) {
    %c0_i32 = arith.constant 0 : i32
    %c0_i32_0 = arith.constant 0 : i32
    %c0_i32_1 = arith.constant 0 : i32
    return %c0_i32, %c0_i32_0 : i32, i32
  }
}

module attributes {stable_mosaic.version = 11 : i64} {
  func.func @_bn_apply_kernel(%arg0: i32, %arg1: memref<16x128xf32, #tpu.memory_space<vmem>>, %arg2: memref<1x128xf32, #tpu.memory_space<vmem>>, %arg3: memref<1x128xf32, #tpu.memory_space<vmem>>, %arg4: memref<16x128xf32, #tpu.memory_space<vmem>>) attributes {dimension_semantics = [#tpu.dimension_semantics<parallel>], iteration_bounds = array<i64: 1>, scalar_prefetch = 0 : i64, scratch_operands = 0 : i64, tpu.core_type = #tpu.core_type<tc>, window_params = [{transform_indices = @transform_0, window_bounds = array<i64: 16, 128>}, {pipeline_mode = #tpu.pipeline_mode<synchronous>, transform_indices = @transform_1, window_bounds = array<i64: 1, 128>}, {pipeline_mode = #tpu.pipeline_mode<synchronous>, transform_indices = @transform_2, window_bounds = array<i64: 1, 128>}, {transform_indices = @transform_3, window_bounds = array<i64: 16, 128>}]} {
    %c0 = arith.constant 0 : index
    %c0_0 = arith.constant 0 : index
    %0 = vector.load %arg1[%c0, %c0_0] : memref<16x128xf32, #tpu.memory_space<vmem>>, vector<16x128xf32>
    %c0_1 = arith.constant 0 : index
    %c0_2 = arith.constant 0 : index
    %1 = vector.load %arg2[%c0_1, %c0_2] : memref<1x128xf32, #tpu.memory_space<vmem>>, vector<1x128xf32>
    %2 = vector.broadcast %1 : vector<1x128xf32> to vector<16x128xf32>
    %3 = arith.mulf %0, %2 : vector<16x128xf32>
    %c0_3 = arith.constant 0 : index
    %c0_4 = arith.constant 0 : index
    %4 = vector.load %arg3[%c0_3, %c0_4] : memref<1x128xf32, #tpu.memory_space<vmem>>, vector<1x128xf32>
    %5 = vector.broadcast %4 : vector<1x128xf32> to vector<16x128xf32>
    %6 = arith.addf %3, %5 : vector<16x128xf32>
    %cst = arith.constant 0.000000e+00 : f32
    %7 = vector.broadcast %cst : f32 to vector<16x128xf32>
    %8 = arith.maximumf %6, %7 : vector<16x128xf32>
    %c0_5 = arith.constant 0 : index
    %c0_6 = arith.constant 0 : index
    %9 = vector.load %arg4[%c0_5, %c0_6] : memref<16x128xf32, #tpu.memory_space<vmem>>, vector<16x128xf32>
    tpu.vector_store %arg4[%c0_5, %c0_6], %8 {strides = array<i32>} : memref<16x128xf32, #tpu.memory_space<vmem>>, vector<16x128xf32>,
    return
  }
  func.func @transform_0(%arg0: i32) -> (i32, i32) {
    %c0_i32 = arith.constant 0 : i32
    %c0_i32_0 = arith.constant 0 : i32
    return %arg0, %c0_i32 : i32, i32
  }
  func.func @transform_1(%arg0: i32) -> (i32, i32) {
    %c0_i32 = arith.constant 0 : i32
    %c0_i32_0 = arith.constant 0 : i32
    %c0_i32_1 = arith.constant 0 : i32
    return %c0_i32, %c0_i32_0 : i32, i32
  }
  func.func @transform_2(%arg0: i32) -> (i32, i32) {
    %c0_i32 = arith.constant 0 : i32
    %c0_i32_0 = arith.constant 0 : i32
    %c0_i32_1 = arith.constant 0 : i32
    return %c0_i32, %c0_i32_0 : i32, i32
  }
  func.func @transform_3(%arg0: i32) -> (i32, i32) {
    %c0_i32 = arith.constant 0 : i32
    %c0_i32_0 = arith.constant 0 : i32
    return %arg0, %c0_i32 : i32, i32
  }
}

module attributes {stable_mosaic.version = 11 : i64} {
  func.func @_mm_kernel(%arg0: i32, %arg1: i32, %arg2: i32, %arg3: memref<32x144xbf16, #tpu.memory_space<vmem>>, %arg4: memref<144x32xbf16, #tpu.memory_space<vmem>>, %arg5: memref<32x32xf32, #tpu.memory_space<vmem>>, %arg6: memref<32x32xf32, #tpu.memory_space<vmem>>) attributes {dimension_semantics = [#tpu.dimension_semantics<parallel>, #tpu.dimension_semantics<parallel>, #tpu.dimension_semantics<arbitrary>], iteration_bounds = array<i64: 1, 1, 1>, scalar_prefetch = 0 : i64, scratch_operands = 1 : i64, tpu.core_type = #tpu.core_type<tc>, window_params = [{transform_indices = @transform_0, window_bounds = array<i64: 32, 144>}, {transform_indices = @transform_1, window_bounds = array<i64: 144, 32>}, {transform_indices = @transform_2, window_bounds = array<i64: 32, 32>}]} {
    %c0_i32 = arith.constant 0 : i32
    %0 = arith.cmpi eq, %arg2, %c0_i32 : i32
    %1 = arith.extui %0 : i1 to i32
    %c0_i32_0 = arith.constant 0 : i32
    %2 = arith.cmpi ne, %1, %c0_i32_0 : i32
    scf.if %2 {
      %cst_10 = arith.constant 0.000000e+00 : f32
      %12 = vector.broadcast %cst_10 : f32 to vector<32x32xf32>
      %c0_11 = arith.constant 0 : index
      %c0_12 = arith.constant 0 : index
      %13 = vector.load %arg6[%c0_11, %c0_12] : memref<32x32xf32, #tpu.memory_space<vmem>>, vector<32x32xf32>
      tpu.vector_store %arg6[%c0_11, %c0_12], %12 {strides = array<i32>} : memref<32x32xf32, #tpu.memory_space<vmem>>, vector<32x32xf32>,
    } else {
    }
    %c0 = arith.constant 0 : index
    %c0_1 = arith.constant 0 : index
    %3 = vector.load %arg6[%c0, %c0_1] : memref<32x32xf32, #tpu.memory_space<vmem>>, vector<32x32xf32>
    %c0_2 = arith.constant 0 : index
    %c0_3 = arith.constant 0 : index
    %4 = vector.load %arg3[%c0_2, %c0_3] : memref<32x144xbf16, #tpu.memory_space<vmem>>, vector<32x144xbf16>
    %c0_4 = arith.constant 0 : index
    %c0_5 = arith.constant 0 : index
    %5 = vector.load %arg4[%c0_4, %c0_5] : memref<144x32xbf16, #tpu.memory_space<vmem>>, vector<144x32xbf16>
    %cst = arith.constant dense<0.000000e+00> : vector<32x32xf32>
    %6 = tpu.matmul %4, %5, %cst {dimension_numbers = #tpu.dot_dimension_numbers<[1], [0], [0], [1], [0, 0, 1, 1], [], []>} : vector<32x144xbf16>, vector<144x32xbf16>, vector<32x32xf32> -> vector<32x32xf32>
    %7 = arith.addf %3, %6 : vector<32x32xf32>
    %c0_6 = arith.constant 0 : index
    %c0_7 = arith.constant 0 : index
    %8 = vector.load %arg6[%c0_6, %c0_7] : memref<32x32xf32, #tpu.memory_space<vmem>>, vector<32x32xf32>
    tpu.vector_store %arg6[%c0_6, %c0_7], %7 {strides = array<i32>} : memref<32x32xf32, #tpu.memory_space<vmem>>, vector<32x32xf32>,
    %c0_i32_8 = arith.constant 0 : i32
    %9 = arith.cmpi eq, %arg2, %c0_i32_8 : i32
    %10 = arith.extui %9 : i1 to i32
    %c0_i32_9 = arith.constant 0 : i32
    %11 = arith.cmpi ne, %10, %c0_i32_9 : i32
    scf.if %11 {
      %c0_10 = arith.constant 0 : index
      %c0_11 = arith.constant 0 : index
      %12 = vector.load %arg6[%c0_10, %c0_11] : memref<32x32xf32, #tpu.memory_space<vmem>>, vector<32x32xf32>
      %c0_12 = arith.constant 0 : index
      %c0_13 = arith.constant 0 : index
      %13 = vector.load %arg5[%c0_12, %c0_13] : memref<32x32xf32, #tpu.memory_space<vmem>>, vector<32x32xf32>
      tpu.vector_store %arg5[%c0_12, %c0_13], %12 {strides = array<i32>} : memref<32x32xf32, #tpu.memory_space<vmem>>, vector<32x32xf32>,
    } else {
    }
    return
  }
  func.func @transform_0(%arg0: i32, %arg1: i32, %arg2: i32) -> (i32, i32) {
    %c0_i32 = arith.constant 0 : i32
    return %arg0, %arg2 : i32, i32
  }
  func.func @transform_1(%arg0: i32, %arg1: i32, %arg2: i32) -> (i32, i32) {
    %c0_i32 = arith.constant 0 : i32
    return %arg2, %arg1 : i32, i32
  }
  func.func @transform_2(%arg0: i32, %arg1: i32, %arg2: i32) -> (i32, i32) {
    %c0_i32 = arith.constant 0 : i32
    return %arg0, %arg1 : i32, i32
  }
}

module attributes {stable_mosaic.version = 11 : i64} {
  func.func @_bn_stats_kernel(%arg0: i32, %arg1: memref<8x128xf32, #tpu.memory_space<vmem>>, %arg2: memref<1x128xf32, #tpu.memory_space<vmem>>, %arg3: memref<1x128xf32, #tpu.memory_space<vmem>>) attributes {dimension_semantics = [#tpu.dimension_semantics<arbitrary>], iteration_bounds = array<i64: 1>, scalar_prefetch = 0 : i64, scratch_operands = 0 : i64, tpu.core_type = #tpu.core_type<tc>, window_params = [{transform_indices = @transform_0, window_bounds = array<i64: 8, 128>}, {pipeline_mode = #tpu.pipeline_mode<synchronous>, transform_indices = @transform_1, window_bounds = array<i64: 1, 128>}, {pipeline_mode = #tpu.pipeline_mode<synchronous>, transform_indices = @transform_2, window_bounds = array<i64: 1, 128>}]} {
    %c0_i32 = arith.constant 0 : i32
    %0 = arith.cmpi eq, %arg0, %c0_i32 : i32
    %1 = arith.extui %0 : i1 to i32
    %c0_i32_0 = arith.constant 0 : i32
    %2 = arith.cmpi ne, %1, %c0_i32_0 : i32
    scf.if %2 {
      %cst_11 = arith.constant 0.000000e+00 : f32
      %15 = vector.broadcast %cst_11 : f32 to vector<1x128xf32>
      %c0_12 = arith.constant 0 : index
      %c0_13 = arith.constant 0 : index
      %16 = vector.load %arg2[%c0_12, %c0_13] : memref<1x128xf32, #tpu.memory_space<vmem>>, vector<1x128xf32>
      tpu.vector_store %arg2[%c0_12, %c0_13], %15 {strides = array<i32>} : memref<1x128xf32, #tpu.memory_space<vmem>>, vector<1x128xf32>,
      %cst_14 = arith.constant 0.000000e+00 : f32
      %17 = vector.broadcast %cst_14 : f32 to vector<1x128xf32>
      %c0_15 = arith.constant 0 : index
      %c0_16 = arith.constant 0 : index
      %18 = vector.load %arg3[%c0_15, %c0_16] : memref<1x128xf32, #tpu.memory_space<vmem>>, vector<1x128xf32>
      tpu.vector_store %arg3[%c0_15, %c0_16], %17 {strides = array<i32>} : memref<1x128xf32, #tpu.memory_space<vmem>>, vector<1x128xf32>,
    } else {
    }
    %c0 = arith.constant 0 : index
    %c0_1 = arith.constant 0 : index
    %3 = vector.load %arg1[%c0, %c0_1] : memref<8x128xf32, #tpu.memory_space<vmem>>, vector<8x128xf32>
    %c0_2 = arith.constant 0 : index
    %c0_3 = arith.constant 0 : index
    %4 = vector.load %arg2[%c0_2, %c0_3] : memref<1x128xf32, #tpu.memory_space<vmem>>, vector<1x128xf32>
    %cst = arith.constant dense<0.000000e+00> : vector<128xf32>
    %5 = vector.multi_reduction <add>, %3, %cst [0] : vector<8x128xf32> to vector<128xf32>
    %6 = vector.shape_cast %5 : vector<128xf32> to vector<1x128xf32>
    %7 = arith.addf %4, %6 : vector<1x128xf32>
    %c0_4 = arith.constant 0 : index
    %c0_5 = arith.constant 0 : index
    %8 = vector.load %arg2[%c0_4, %c0_5] : memref<1x128xf32, #tpu.memory_space<vmem>>, vector<1x128xf32>
    tpu.vector_store %arg2[%c0_4, %c0_5], %7 {strides = array<i32>} : memref<1x128xf32, #tpu.memory_space<vmem>>, vector<1x128xf32>,
    %c0_6 = arith.constant 0 : index
    %c0_7 = arith.constant 0 : index
    %9 = vector.load %arg3[%c0_6, %c0_7] : memref<1x128xf32, #tpu.memory_space<vmem>>, vector<1x128xf32>
    %10 = arith.mulf %3, %3 : vector<8x128xf32>
    %cst_8 = arith.constant dense<0.000000e+00> : vector<128xf32>
    %11 = vector.multi_reduction <add>, %10, %cst_8 [0] : vector<8x128xf32> to vector<128xf32>
    %12 = vector.shape_cast %11 : vector<128xf32> to vector<1x128xf32>
    %13 = arith.addf %9, %12 : vector<1x128xf32>
    %c0_9 = arith.constant 0 : index
    %c0_10 = arith.constant 0 : index
    %14 = vector.load %arg3[%c0_9, %c0_10] : memref<1x128xf32, #tpu.memory_space<vmem>>, vector<1x128xf32>
    tpu.vector_store %arg3[%c0_9, %c0_10], %13 {strides = array<i32>} : memref<1x128xf32, #tpu.memory_space<vmem>>, vector<1x128xf32>,
    return
  }
  func.func @transform_0(%arg0: i32) -> (i32, i32) {
    %c0_i32 = arith.constant 0 : i32
    %c0_i32_0 = arith.constant 0 : i32
    return %arg0, %c0_i32 : i32, i32
  }
  func.func @transform_1(%arg0: i32) -> (i32, i32) {
    %c0_i32 = arith.constant 0 : i32
    %c0_i32_0 = arith.constant 0 : i32
    %c0_i32_1 = arith.constant 0 : i32
    return %c0_i32, %c0_i32_0 : i32, i32
  }
  func.func @transform_2(%arg0: i32) -> (i32, i32) {
    %c0_i32 = arith.constant 0 : i32
    %c0_i32_0 = arith.constant 0 : i32
    %c0_i32_1 = arith.constant 0 : i32
    return %c0_i32, %c0_i32_0 : i32, i32
  }
}

module attributes {stable_mosaic.version = 11 : i64} {
  func.func @_bn_apply_kernel(%arg0: i32, %arg1: memref<8x128xf32, #tpu.memory_space<vmem>>, %arg2: memref<1x128xf32, #tpu.memory_space<vmem>>, %arg3: memref<1x128xf32, #tpu.memory_space<vmem>>, %arg4: memref<8x128xf32, #tpu.memory_space<vmem>>) attributes {dimension_semantics = [#tpu.dimension_semantics<parallel>], iteration_bounds = array<i64: 1>, scalar_prefetch = 0 : i64, scratch_operands = 0 : i64, tpu.core_type = #tpu.core_type<tc>, window_params = [{transform_indices = @transform_0, window_bounds = array<i64: 8, 128>}, {pipeline_mode = #tpu.pipeline_mode<synchronous>, transform_indices = @transform_1, window_bounds = array<i64: 1, 128>}, {pipeline_mode = #tpu.pipeline_mode<synchronous>, transform_indices = @transform_2, window_bounds = array<i64: 1, 128>}, {transform_indices = @transform_3, window_bounds = array<i64: 8, 128>}]} {
    %c0 = arith.constant 0 : index
    %c0_0 = arith.constant 0 : index
    %0 = vector.load %arg1[%c0, %c0_0] : memref<8x128xf32, #tpu.memory_space<vmem>>, vector<8x128xf32>
    %c0_1 = arith.constant 0 : index
    %c0_2 = arith.constant 0 : index
    %1 = vector.load %arg2[%c0_1, %c0_2] : memref<1x128xf32, #tpu.memory_space<vmem>>, vector<1x128xf32>
    %2 = vector.broadcast %1 : vector<1x128xf32> to vector<8x128xf32>
    %3 = arith.mulf %0, %2 : vector<8x128xf32>
    %c0_3 = arith.constant 0 : index
    %c0_4 = arith.constant 0 : index
    %4 = vector.load %arg3[%c0_3, %c0_4] : memref<1x128xf32, #tpu.memory_space<vmem>>, vector<1x128xf32>
    %5 = vector.broadcast %4 : vector<1x128xf32> to vector<8x128xf32>
    %6 = arith.addf %3, %5 : vector<8x128xf32>
    %cst = arith.constant 0.000000e+00 : f32
    %7 = vector.broadcast %cst : f32 to vector<8x128xf32>
    %8 = arith.maximumf %6, %7 : vector<8x128xf32>
    %c0_5 = arith.constant 0 : index
    %c0_6 = arith.constant 0 : index
    %9 = vector.load %arg4[%c0_5, %c0_6] : memref<8x128xf32, #tpu.memory_space<vmem>>, vector<8x128xf32>
    tpu.vector_store %arg4[%c0_5, %c0_6], %8 {strides = array<i32>} : memref<8x128xf32, #tpu.memory_space<vmem>>, vector<8x128xf32>,
    return
  }
  func.func @transform_0(%arg0: i32) -> (i32, i32) {
    %c0_i32 = arith.constant 0 : i32
    %c0_i32_0 = arith.constant 0 : i32
    return %arg0, %c0_i32 : i32, i32
  }
  func.func @transform_1(%arg0: i32) -> (i32, i32) {
    %c0_i32 = arith.constant 0 : i32
    %c0_i32_0 = arith.constant 0 : i32
    %c0_i32_1 = arith.constant 0 : i32
    return %c0_i32, %c0_i32_0 : i32, i32
  }
  func.func @transform_2(%arg0: i32) -> (i32, i32) {
    %c0_i32 = arith.constant 0 : i32
    %c0_i32_0 = arith.constant 0 : i32
    %c0_i32_1 = arith.constant 0 : i32
    return %c0_i32, %c0_i32_0 : i32, i32
  }
  func.func @transform_3(%arg0: i32) -> (i32, i32) {
    %c0_i32 = arith.constant 0 : i32
    %c0_i32_0 = arith.constant 0 : i32
    return %arg0, %c0_i32 : i32, i32
  }
}

module attributes {stable_mosaic.version = 11 : i64} {
  func.func @_mm_kernel(%arg0: i32, %arg1: i32, %arg2: i32, %arg3: memref<32x288xbf16, #tpu.memory_space<vmem>>, %arg4: memref<288x32xbf16, #tpu.memory_space<vmem>>, %arg5: memref<32x32xf32, #tpu.memory_space<vmem>>, %arg6: memref<32x32xf32, #tpu.memory_space<vmem>>) attributes {dimension_semantics = [#tpu.dimension_semantics<parallel>, #tpu.dimension_semantics<parallel>, #tpu.dimension_semantics<arbitrary>], iteration_bounds = array<i64: 1, 1, 1>, scalar_prefetch = 0 : i64, scratch_operands = 1 : i64, tpu.core_type = #tpu.core_type<tc>, window_params = [{transform_indices = @transform_0, window_bounds = array<i64: 32, 288>}, {transform_indices = @transform_1, window_bounds = array<i64: 288, 32>}, {transform_indices = @transform_2, window_bounds = array<i64: 32, 32>}]} {
    %c0_i32 = arith.constant 0 : i32
    %0 = arith.cmpi eq, %arg2, %c0_i32 : i32
    %1 = arith.extui %0 : i1 to i32
    %c0_i32_0 = arith.constant 0 : i32
    %2 = arith.cmpi ne, %1, %c0_i32_0 : i32
    scf.if %2 {
      %cst_10 = arith.constant 0.000000e+00 : f32
      %12 = vector.broadcast %cst_10 : f32 to vector<32x32xf32>
      %c0_11 = arith.constant 0 : index
      %c0_12 = arith.constant 0 : index
      %13 = vector.load %arg6[%c0_11, %c0_12] : memref<32x32xf32, #tpu.memory_space<vmem>>, vector<32x32xf32>
      tpu.vector_store %arg6[%c0_11, %c0_12], %12 {strides = array<i32>} : memref<32x32xf32, #tpu.memory_space<vmem>>, vector<32x32xf32>,
    } else {
    }
    %c0 = arith.constant 0 : index
    %c0_1 = arith.constant 0 : index
    %3 = vector.load %arg6[%c0, %c0_1] : memref<32x32xf32, #tpu.memory_space<vmem>>, vector<32x32xf32>
    %c0_2 = arith.constant 0 : index
    %c0_3 = arith.constant 0 : index
    %4 = vector.load %arg3[%c0_2, %c0_3] : memref<32x288xbf16, #tpu.memory_space<vmem>>, vector<32x288xbf16>
    %c0_4 = arith.constant 0 : index
    %c0_5 = arith.constant 0 : index
    %5 = vector.load %arg4[%c0_4, %c0_5] : memref<288x32xbf16, #tpu.memory_space<vmem>>, vector<288x32xbf16>
    %cst = arith.constant dense<0.000000e+00> : vector<32x32xf32>
    %6 = tpu.matmul %4, %5, %cst {dimension_numbers = #tpu.dot_dimension_numbers<[1], [0], [0], [1], [0, 0, 1, 1], [], []>} : vector<32x288xbf16>, vector<288x32xbf16>, vector<32x32xf32> -> vector<32x32xf32>
    %7 = arith.addf %3, %6 : vector<32x32xf32>
    %c0_6 = arith.constant 0 : index
    %c0_7 = arith.constant 0 : index
    %8 = vector.load %arg6[%c0_6, %c0_7] : memref<32x32xf32, #tpu.memory_space<vmem>>, vector<32x32xf32>
    tpu.vector_store %arg6[%c0_6, %c0_7], %7 {strides = array<i32>} : memref<32x32xf32, #tpu.memory_space<vmem>>, vector<32x32xf32>,
    %c0_i32_8 = arith.constant 0 : i32
    %9 = arith.cmpi eq, %arg2, %c0_i32_8 : i32
    %10 = arith.extui %9 : i1 to i32
    %c0_i32_9 = arith.constant 0 : i32
    %11 = arith.cmpi ne, %10, %c0_i32_9 : i32
    scf.if %11 {
      %c0_10 = arith.constant 0 : index
      %c0_11 = arith.constant 0 : index
      %12 = vector.load %arg6[%c0_10, %c0_11] : memref<32x32xf32, #tpu.memory_space<vmem>>, vector<32x32xf32>
      %c0_12 = arith.constant 0 : index
      %c0_13 = arith.constant 0 : index
      %13 = vector.load %arg5[%c0_12, %c0_13] : memref<32x32xf32, #tpu.memory_space<vmem>>, vector<32x32xf32>
      tpu.vector_store %arg5[%c0_12, %c0_13], %12 {strides = array<i32>} : memref<32x32xf32, #tpu.memory_space<vmem>>, vector<32x32xf32>,
    } else {
    }
    return
  }
  func.func @transform_0(%arg0: i32, %arg1: i32, %arg2: i32) -> (i32, i32) {
    %c0_i32 = arith.constant 0 : i32
    return %arg0, %arg2 : i32, i32
  }
  func.func @transform_1(%arg0: i32, %arg1: i32, %arg2: i32) -> (i32, i32) {
    %c0_i32 = arith.constant 0 : i32
    return %arg2, %arg1 : i32, i32
  }
  func.func @transform_2(%arg0: i32, %arg1: i32, %arg2: i32) -> (i32, i32) {
    %c0_i32 = arith.constant 0 : i32
    return %arg0, %arg1 : i32, i32
  }
}

module attributes {stable_mosaic.version = 11 : i64} {
  func.func @_bn_apply_res_kernel(%arg0: i32, %arg1: memref<8x128xf32, #tpu.memory_space<vmem>>, %arg2: memref<1x128xf32, #tpu.memory_space<vmem>>, %arg3: memref<1x128xf32, #tpu.memory_space<vmem>>, %arg4: memref<8x128xf32, #tpu.memory_space<vmem>>, %arg5: memref<8x128xf32, #tpu.memory_space<vmem>>) attributes {dimension_semantics = [#tpu.dimension_semantics<parallel>], iteration_bounds = array<i64: 1>, scalar_prefetch = 0 : i64, scratch_operands = 0 : i64, tpu.core_type = #tpu.core_type<tc>, window_params = [{transform_indices = @transform_0, window_bounds = array<i64: 8, 128>}, {pipeline_mode = #tpu.pipeline_mode<synchronous>, transform_indices = @transform_1, window_bounds = array<i64: 1, 128>}, {pipeline_mode = #tpu.pipeline_mode<synchronous>, transform_indices = @transform_2, window_bounds = array<i64: 1, 128>}, {transform_indices = @transform_3, window_bounds = array<i64: 8, 128>}, {transform_indices = @transform_4, window_bounds = array<i64: 8, 128>}]} {
    %c0 = arith.constant 0 : index
    %c0_0 = arith.constant 0 : index
    %0 = vector.load %arg1[%c0, %c0_0] : memref<8x128xf32, #tpu.memory_space<vmem>>, vector<8x128xf32>
    %c0_1 = arith.constant 0 : index
    %c0_2 = arith.constant 0 : index
    %1 = vector.load %arg2[%c0_1, %c0_2] : memref<1x128xf32, #tpu.memory_space<vmem>>, vector<1x128xf32>
    %2 = vector.broadcast %1 : vector<1x128xf32> to vector<8x128xf32>
    %3 = arith.mulf %0, %2 : vector<8x128xf32>
    %c0_3 = arith.constant 0 : index
    %c0_4 = arith.constant 0 : index
    %4 = vector.load %arg3[%c0_3, %c0_4] : memref<1x128xf32, #tpu.memory_space<vmem>>, vector<1x128xf32>
    %5 = vector.broadcast %4 : vector<1x128xf32> to vector<8x128xf32>
    %6 = arith.addf %3, %5 : vector<8x128xf32>
    %c0_5 = arith.constant 0 : index
    %c0_6 = arith.constant 0 : index
    %7 = vector.load %arg4[%c0_5, %c0_6] : memref<8x128xf32, #tpu.memory_space<vmem>>, vector<8x128xf32>
    %8 = arith.addf %6, %7 : vector<8x128xf32>
    %c0_7 = arith.constant 0 : index
    %c0_8 = arith.constant 0 : index
    %9 = vector.load %arg5[%c0_7, %c0_8] : memref<8x128xf32, #tpu.memory_space<vmem>>, vector<8x128xf32>
    tpu.vector_store %arg5[%c0_7, %c0_8], %8 {strides = array<i32>} : memref<8x128xf32, #tpu.memory_space<vmem>>, vector<8x128xf32>,
    return
  }
  func.func @transform_0(%arg0: i32) -> (i32, i32) {
    %c0_i32 = arith.constant 0 : i32
    %c0_i32_0 = arith.constant 0 : i32
    return %arg0, %c0_i32 : i32, i32
  }
  func.func @transform_1(%arg0: i32) -> (i32, i32) {
    %c0_i32 = arith.constant 0 : i32
    %c0_i32_0 = arith.constant 0 : i32
    %c0_i32_1 = arith.constant 0 : i32
    return %c0_i32, %c0_i32_0 : i32, i32
  }
  func.func @transform_2(%arg0: i32) -> (i32, i32) {
    %c0_i32 = arith.constant 0 : i32
    %c0_i32_0 = arith.constant 0 : i32
    %c0_i32_1 = arith.constant 0 : i32
    return %c0_i32, %c0_i32_0 : i32, i32
  }
  func.func @transform_3(%arg0: i32) -> (i32, i32) {
    %c0_i32 = arith.constant 0 : i32
    %c0_i32_0 = arith.constant 0 : i32
    return %arg0, %c0_i32 : i32, i32
  }
  func.func @transform_4(%arg0: i32) -> (i32, i32) {
    %c0_i32 = arith.constant 0 : i32
    %c0_i32_0 = arith.constant 0 : i32
    return %arg0, %c0_i32 : i32, i32
  }
}

module attributes {stable_mosaic.version = 11 : i64} {
  func.func @_mm_kernel(%arg0: i32, %arg1: i32, %arg2: i32, %arg3: memref<128x288xbf16, #tpu.memory_space<vmem>>, %arg4: memref<288x16xbf16, #tpu.memory_space<vmem>>, %arg5: memref<128x16xf32, #tpu.memory_space<vmem>>, %arg6: memref<128x16xf32, #tpu.memory_space<vmem>>) attributes {dimension_semantics = [#tpu.dimension_semantics<parallel>, #tpu.dimension_semantics<parallel>, #tpu.dimension_semantics<arbitrary>], iteration_bounds = array<i64: 1, 1, 1>, scalar_prefetch = 0 : i64, scratch_operands = 1 : i64, tpu.core_type = #tpu.core_type<tc>, window_params = [{transform_indices = @transform_0, window_bounds = array<i64: 128, 288>}, {transform_indices = @transform_1, window_bounds = array<i64: 288, 16>}, {transform_indices = @transform_2, window_bounds = array<i64: 128, 16>}]} {
    %c0_i32 = arith.constant 0 : i32
    %0 = arith.cmpi eq, %arg2, %c0_i32 : i32
    %1 = arith.extui %0 : i1 to i32
    %c0_i32_0 = arith.constant 0 : i32
    %2 = arith.cmpi ne, %1, %c0_i32_0 : i32
    scf.if %2 {
      %cst_10 = arith.constant 0.000000e+00 : f32
      %12 = vector.broadcast %cst_10 : f32 to vector<128x16xf32>
      %c0_11 = arith.constant 0 : index
      %c0_12 = arith.constant 0 : index
      %13 = vector.load %arg6[%c0_11, %c0_12] : memref<128x16xf32, #tpu.memory_space<vmem>>, vector<128x16xf32>
      tpu.vector_store %arg6[%c0_11, %c0_12], %12 {strides = array<i32>} : memref<128x16xf32, #tpu.memory_space<vmem>>, vector<128x16xf32>,
    } else {
    }
    %c0 = arith.constant 0 : index
    %c0_1 = arith.constant 0 : index
    %3 = vector.load %arg6[%c0, %c0_1] : memref<128x16xf32, #tpu.memory_space<vmem>>, vector<128x16xf32>
    %c0_2 = arith.constant 0 : index
    %c0_3 = arith.constant 0 : index
    %4 = vector.load %arg3[%c0_2, %c0_3] : memref<128x288xbf16, #tpu.memory_space<vmem>>, vector<128x288xbf16>
    %c0_4 = arith.constant 0 : index
    %c0_5 = arith.constant 0 : index
    %5 = vector.load %arg4[%c0_4, %c0_5] : memref<288x16xbf16, #tpu.memory_space<vmem>>, vector<288x16xbf16>
    %cst = arith.constant dense<0.000000e+00> : vector<128x16xf32>
    %6 = tpu.matmul %4, %5, %cst {dimension_numbers = #tpu.dot_dimension_numbers<[1], [0], [0], [1], [0, 0, 1, 1], [], []>} : vector<128x288xbf16>, vector<288x16xbf16>, vector<128x16xf32> -> vector<128x16xf32>
    %7 = arith.addf %3, %6 : vector<128x16xf32>
    %c0_6 = arith.constant 0 : index
    %c0_7 = arith.constant 0 : index
    %8 = vector.load %arg6[%c0_6, %c0_7] : memref<128x16xf32, #tpu.memory_space<vmem>>, vector<128x16xf32>
    tpu.vector_store %arg6[%c0_6, %c0_7], %7 {strides = array<i32>} : memref<128x16xf32, #tpu.memory_space<vmem>>, vector<128x16xf32>,
    %c0_i32_8 = arith.constant 0 : i32
    %9 = arith.cmpi eq, %arg2, %c0_i32_8 : i32
    %10 = arith.extui %9 : i1 to i32
    %c0_i32_9 = arith.constant 0 : i32
    %11 = arith.cmpi ne, %10, %c0_i32_9 : i32
    scf.if %11 {
      %c0_10 = arith.constant 0 : index
      %c0_11 = arith.constant 0 : index
      %12 = vector.load %arg6[%c0_10, %c0_11] : memref<128x16xf32, #tpu.memory_space<vmem>>, vector<128x16xf32>
      %c0_12 = arith.constant 0 : index
      %c0_13 = arith.constant 0 : index
      %13 = vector.load %arg5[%c0_12, %c0_13] : memref<128x16xf32, #tpu.memory_space<vmem>>, vector<128x16xf32>
      tpu.vector_store %arg5[%c0_12, %c0_13], %12 {strides = array<i32>} : memref<128x16xf32, #tpu.memory_space<vmem>>, vector<128x16xf32>,
    } else {
    }
    return
  }
  func.func @transform_0(%arg0: i32, %arg1: i32, %arg2: i32) -> (i32, i32) {
    %c0_i32 = arith.constant 0 : i32
    return %arg0, %arg2 : i32, i32
  }
  func.func @transform_1(%arg0: i32, %arg1: i32, %arg2: i32) -> (i32, i32) {
    %c0_i32 = arith.constant 0 : i32
    return %arg2, %arg1 : i32, i32
  }
  func.func @transform_2(%arg0: i32, %arg1: i32, %arg2: i32) -> (i32, i32) {
    %c0_i32 = arith.constant 0 : i32
    return %arg0, %arg1 : i32, i32
  }
}

module attributes {stable_mosaic.version = 11 : i64} {
  func.func @_mm_kernel(%arg0: i32, %arg1: i32, %arg2: i32, %arg3: memref<256x144xbf16, #tpu.memory_space<vmem>>, %arg4: memref<144x8xbf16, #tpu.memory_space<vmem>>, %arg5: memref<256x8xf32, #tpu.memory_space<vmem>>, %arg6: memref<256x8xf32, #tpu.memory_space<vmem>>) attributes {dimension_semantics = [#tpu.dimension_semantics<parallel>, #tpu.dimension_semantics<parallel>, #tpu.dimension_semantics<arbitrary>], iteration_bounds = array<i64: 2, 1, 1>, scalar_prefetch = 0 : i64, scratch_operands = 1 : i64, tpu.core_type = #tpu.core_type<tc>, window_params = [{transform_indices = @transform_0, window_bounds = array<i64: 256, 144>}, {transform_indices = @transform_1, window_bounds = array<i64: 144, 8>}, {transform_indices = @transform_2, window_bounds = array<i64: 256, 8>}]} {
    %c0_i32 = arith.constant 0 : i32
    %0 = arith.cmpi eq, %arg2, %c0_i32 : i32
    %1 = arith.extui %0 : i1 to i32
    %c0_i32_0 = arith.constant 0 : i32
    %2 = arith.cmpi ne, %1, %c0_i32_0 : i32
    scf.if %2 {
      %cst_10 = arith.constant 0.000000e+00 : f32
      %12 = vector.broadcast %cst_10 : f32 to vector<256x8xf32>
      %c0_11 = arith.constant 0 : index
      %c0_12 = arith.constant 0 : index
      %13 = vector.load %arg6[%c0_11, %c0_12] : memref<256x8xf32, #tpu.memory_space<vmem>>, vector<256x8xf32>
      tpu.vector_store %arg6[%c0_11, %c0_12], %12 {strides = array<i32>} : memref<256x8xf32, #tpu.memory_space<vmem>>, vector<256x8xf32>,
    } else {
    }
    %c0 = arith.constant 0 : index
    %c0_1 = arith.constant 0 : index
    %3 = vector.load %arg6[%c0, %c0_1] : memref<256x8xf32, #tpu.memory_space<vmem>>, vector<256x8xf32>
    %c0_2 = arith.constant 0 : index
    %c0_3 = arith.constant 0 : index
    %4 = vector.load %arg3[%c0_2, %c0_3] : memref<256x144xbf16, #tpu.memory_space<vmem>>, vector<256x144xbf16>
    %c0_4 = arith.constant 0 : index
    %c0_5 = arith.constant 0 : index
    %5 = vector.load %arg4[%c0_4, %c0_5] : memref<144x8xbf16, #tpu.memory_space<vmem>>, vector<144x8xbf16>
    %cst = arith.constant dense<0.000000e+00> : vector<256x8xf32>
    %6 = tpu.matmul %4, %5, %cst {dimension_numbers = #tpu.dot_dimension_numbers<[1], [0], [0], [1], [0, 0, 1, 1], [], []>} : vector<256x144xbf16>, vector<144x8xbf16>, vector<256x8xf32> -> vector<256x8xf32>
    %7 = arith.addf %3, %6 : vector<256x8xf32>
    %c0_6 = arith.constant 0 : index
    %c0_7 = arith.constant 0 : index
    %8 = vector.load %arg6[%c0_6, %c0_7] : memref<256x8xf32, #tpu.memory_space<vmem>>, vector<256x8xf32>
    tpu.vector_store %arg6[%c0_6, %c0_7], %7 {strides = array<i32>} : memref<256x8xf32, #tpu.memory_space<vmem>>, vector<256x8xf32>,
    %c0_i32_8 = arith.constant 0 : i32
    %9 = arith.cmpi eq, %arg2, %c0_i32_8 : i32
    %10 = arith.extui %9 : i1 to i32
    %c0_i32_9 = arith.constant 0 : i32
    %11 = arith.cmpi ne, %10, %c0_i32_9 : i32
    scf.if %11 {
      %c0_10 = arith.constant 0 : index
      %c0_11 = arith.constant 0 : index
      %12 = vector.load %arg6[%c0_10, %c0_11] : memref<256x8xf32, #tpu.memory_space<vmem>>, vector<256x8xf32>
      %c0_12 = arith.constant 0 : index
      %c0_13 = arith.constant 0 : index
      %13 = vector.load %arg5[%c0_12, %c0_13] : memref<256x8xf32, #tpu.memory_space<vmem>>, vector<256x8xf32>
      tpu.vector_store %arg5[%c0_12, %c0_13], %12 {strides = array<i32>} : memref<256x8xf32, #tpu.memory_space<vmem>>, vector<256x8xf32>,
    } else {
    }
    return
  }
  func.func @transform_0(%arg0: i32, %arg1: i32, %arg2: i32) -> (i32, i32) {
    %c0_i32 = arith.constant 0 : i32
    return %arg0, %arg2 : i32, i32
  }
  func.func @transform_1(%arg0: i32, %arg1: i32, %arg2: i32) -> (i32, i32) {
    %c0_i32 = arith.constant 0 : i32
    return %arg2, %arg1 : i32, i32
  }
  func.func @transform_2(%arg0: i32, %arg1: i32, %arg2: i32) -> (i32, i32) {
    %c0_i32 = arith.constant 0 : i32
    return %arg0, %arg1 : i32, i32
  }
}

module attributes {stable_mosaic.version = 11 : i64} {
  func.func @_mm_bias_kernel(%arg0: i32, %arg1: i32, %arg2: i32, %arg3: memref<256x392xbf16, #tpu.memory_space<vmem>>, %arg4: memref<392x4xbf16, #tpu.memory_space<vmem>>, %arg5: memref<1x4xf32, #tpu.memory_space<vmem>>, %arg6: memref<256x4xf32, #tpu.memory_space<vmem>>, %arg7: memref<256x4xf32, #tpu.memory_space<vmem>>) attributes {dimension_semantics = [#tpu.dimension_semantics<parallel>, #tpu.dimension_semantics<parallel>, #tpu.dimension_semantics<arbitrary>], iteration_bounds = array<i64: 2, 1, 1>, scalar_prefetch = 0 : i64, scratch_operands = 1 : i64, tpu.core_type = #tpu.core_type<tc>, window_params = [{transform_indices = @transform_0, window_bounds = array<i64: 256, 392>}, {transform_indices = @transform_1, window_bounds = array<i64: 392, 4>}, {transform_indices = @transform_2, window_bounds = array<i64: 1, 4>}, {transform_indices = @transform_3, window_bounds = array<i64: 256, 4>}]} {
    %c0_i32 = arith.constant 0 : i32
    %0 = arith.cmpi eq, %arg2, %c0_i32 : i32
    %1 = arith.extui %0 : i1 to i32
    %c0_i32_0 = arith.constant 0 : i32
    %2 = arith.cmpi ne, %1, %c0_i32_0 : i32
    scf.if %2 {
      %cst_10 = arith.constant 0.000000e+00 : f32
      %12 = vector.broadcast %cst_10 : f32 to vector<256x4xf32>
      %c0_11 = arith.constant 0 : index
      %c0_12 = arith.constant 0 : index
      %13 = vector.load %arg7[%c0_11, %c0_12] : memref<256x4xf32, #tpu.memory_space<vmem>>, vector<256x4xf32>
      tpu.vector_store %arg7[%c0_11, %c0_12], %12 {strides = array<i32>} : memref<256x4xf32, #tpu.memory_space<vmem>>, vector<256x4xf32>,
    } else {
    }
    %c0 = arith.constant 0 : index
    %c0_1 = arith.constant 0 : index
    %3 = vector.load %arg7[%c0, %c0_1] : memref<256x4xf32, #tpu.memory_space<vmem>>, vector<256x4xf32>
    %c0_2 = arith.constant 0 : index
    %c0_3 = arith.constant 0 : index
    %4 = vector.load %arg3[%c0_2, %c0_3] : memref<256x392xbf16, #tpu.memory_space<vmem>>, vector<256x392xbf16>
    %c0_4 = arith.constant 0 : index
    %c0_5 = arith.constant 0 : index
    %5 = vector.load %arg4[%c0_4, %c0_5] : memref<392x4xbf16, #tpu.memory_space<vmem>>, vector<392x4xbf16>
    %cst = arith.constant dense<0.000000e+00> : vector<256x4xf32>
    %6 = tpu.matmul %4, %5, %cst {dimension_numbers = #tpu.dot_dimension_numbers<[1], [0], [0], [1], [0, 0, 1, 1], [], []>} : vector<256x392xbf16>, vector<392x4xbf16>, vector<256x4xf32> -> vector<256x4xf32>
    %7 = arith.addf %3, %6 : vector<256x4xf32>
    %c0_6 = arith.constant 0 : index
    %c0_7 = arith.constant 0 : index
    %8 = vector.load %arg7[%c0_6, %c0_7] : memref<256x4xf32, #tpu.memory_space<vmem>>, vector<256x4xf32>
    tpu.vector_store %arg7[%c0_6, %c0_7], %7 {strides = array<i32>} : memref<256x4xf32, #tpu.memory_space<vmem>>, vector<256x4xf32>,
    %c0_i32_8 = arith.constant 0 : i32
    %9 = arith.cmpi eq, %arg2, %c0_i32_8 : i32
    %10 = arith.extui %9 : i1 to i32
    %c0_i32_9 = arith.constant 0 : i32
    %11 = arith.cmpi ne, %10, %c0_i32_9 : i32
    scf.if %11 {
      %c0_10 = arith.constant 0 : index
      %c0_11 = arith.constant 0 : index
      %12 = vector.load %arg7[%c0_10, %c0_11] : memref<256x4xf32, #tpu.memory_space<vmem>>, vector<256x4xf32>
      %c0_12 = arith.constant 0 : index
      %c0_13 = arith.constant 0 : index
      %13 = vector.load %arg5[%c0_12, %c0_13] : memref<1x4xf32, #tpu.memory_space<vmem>>, vector<1x4xf32>
      %14 = vector.broadcast %13 : vector<1x4xf32> to vector<256x4xf32>
      %15 = arith.addf %12, %14 : vector<256x4xf32>
      %16 = math.tanh %15 : vector<256x4xf32>
      %c0_14 = arith.constant 0 : index
      %c0_15 = arith.constant 0 : index
      %17 = vector.load %arg6[%c0_14, %c0_15] : memref<256x4xf32, #tpu.memory_space<vmem>>, vector<256x4xf32>
      tpu.vector_store %arg6[%c0_14, %c0_15], %16 {strides = array<i32>} : memref<256x4xf32, #tpu.memory_space<vmem>>, vector<256x4xf32>,
    } else {
    }
    return
  }
  func.func @transform_0(%arg0: i32, %arg1: i32, %arg2: i32) -> (i32, i32) {
    %c0_i32 = arith.constant 0 : i32
    return %arg0, %arg2 : i32, i32
  }
  func.func @transform_1(%arg0: i32, %arg1: i32, %arg2: i32) -> (i32, i32) {
    %c0_i32 = arith.constant 0 : i32
    return %arg2, %arg1 : i32, i32
  }
  func.func @transform_2(%arg0: i32, %arg1: i32, %arg2: i32) -> (i32, i32) {
    %c0_i32 = arith.constant 0 : i32
    %c0_i32_0 = arith.constant 0 : i32
    return %c0_i32, %arg1 : i32, i32
  }
  func.func @transform_3(%arg0: i32, %arg1: i32, %arg2: i32) -> (i32, i32) {
    %c0_i32 = arith.constant 0 : i32
    return %arg0, %arg1 : i32, i32
  }
}

</mosaic_0001>

<llo_original>
// kernel: resnet_generator_forward.29
$region0: #{resnet_generator_forward.29}
  #allocation0 [shape = 'u32[]', space=smem, size = 0x4, offset = 0x4, fixed_abs, tag = 'smem constant byte address 0x4 - core index']
  #allocation1 [shape = 'u32[144,128]{1,0:T(1,128)}', space=vmem, size = 0x12000, scoped, tag = 'internal scratch']
  #allocation2 [shape = 'f32[256,8]{1,0:T(8,128)}', space=vmem, size = 0x20000, scoped, tag = 'scratch operand']
  %s0 = inlined_call_operand.vmem [shape: bf16[512,196], index: 0, kind: input, shape index: {}]
  %s1 = inlined_call_operand.vmem [shape: bf16[196,8], index: 1, kind: input, shape index: {}]
  %s2 = inlined_call_operand.vmem [shape: f32[512,8], index: 2, kind: output, shape index: {}]
  %s3 = sld [smem:[#allocation0]]
  $region49: #{resnet_generator_forward.29} parent=0
    _
  %s5 = ssub.s32 1, %s3
  %s6 = scalar_select 0, %s5, %s3
  loop: start=0, step=1, limit=4
  $region2: #{resnet_generator_forward.29} parent=0 // loop_pre_header
    _
  $region3: #{resnet_generator_forward.29} parent=0 // loop_header
    %s8 = sphi 0, %s12
    %p9 = scmp.ge.s32.totalorder %s8, 4
    %s15 = sphi 0, %s34
    %s16 = sphi 0, %s30
    %s17 = sphi 0, %s26
    %s18 = sphi 0, %s15
    %s19 = sphi 0, %s16
    %s20 = sphi 0, %s17
    %s21 = sphi 0, %s18
    %s22 = sphi 0, %s19
    %s23 = sphi 0, %s20
    %s39 = sphi 0, %s41
    %s42 = sphi 0, %s39
    %s43 = sphi 0, %s42
    %s59 = sphi 0, %s43
    %s67 = sphi 0, %s69
    %s70 = sphi 0, %s67
    %s71 = sphi 0, %s70
    %s87 = sphi 0, %s71
    %s95 = sphi 0, %s97
    %s98 = sphi 0, %s95
    %s99 = sphi 0, %s98
    %s115 = sphi 0, %s99
  $region4: #{resnet_generator_forward.29} parent=0 // loop_header_branch
    %11 = sbr.rel (%p9) target = $region8
  $region5: #{resnet_generator_forward.29} parent=0 // loop_body
    %s13 = ssub.s32 %s8, 1
    %s14 = ssub.s32 %s8, 2
    %s24 = sadd.s32 1, %s17
    %p25 = scmp.ge.s32.totalorder %s24, 1
    %s26 = scalar_select %p25, 0, %s24
    %s27 = sadd.s32 1, %s16
    %s28 = scalar_select %p25, %s27, %s16
    %p29 = scmp.ge.s32.totalorder %s28, 1
    %s30 = scalar_select %p29, 0, %s28
    %s31 = sadd.s32 1, %s15
    %s32 = scalar_select %p29, %s31, %s15
    %p33 = scmp.ge.s32.totalorder %s32, 2
    %s34 = scalar_select %p33, 0, %s32
    %s35 = ssub.s32 %s15, %s34
    %s36 = ssub.s32 %s17, %s26
    %s37 = sor.u32 %s35, %s36
    %p38 = scmp.eq.s32.totalorder %s37, 0
    %s40 = sadd.s32 %s39, 1
    %s41 = scalar_select %p38, %s39, %s40
    %p44 = pneg %p38
    %p45 = scmp.eq.s32.totalorder %s8, 1
    %p46 = por %p44, %p45
    %p47 = scmp.ne.s32.totalorder %s39, %s42
    %p48 = scmp.eq.s32.totalorder %s8, 0
    %p49 = por %p47, %p48
    %p50 = scmp.ne.s32.totalorder %s39, %s42
    %p51 = scmp.eq.s32.totalorder %s13, 1
    %p52 = por %p50, %p51
    %p53 = scmp.ne.s32.totalorder %s42, %s43
    %p54 = scmp.eq.s32.totalorder %s13, 0
    %p55 = por %p53, %p54
    %p56 = scmp.ne.s32.totalorder %s42, %s43
    %p57 = scmp.eq.s32.totalorder %s14, 1
    %p58 = por %p56, %p57
    %p60 = scmp.ne.s32.totalorder %s43, %s59
    %p61 = scmp.eq.s32.totalorder %s14, 0
    %p62 = por %p60, %p61
    %s63 = ssub.s32 %s17, %s26
    %s64 = ssub.s32 %s16, %s30
    %s65 = sor.u32 %s63, %s64
    %p66 = scmp.eq.s32.totalorder %s65, 0
    %s68 = sadd.s32 %s67, 1
    %s69 = scalar_select %p66, %s67, %s68
    %p72 = pneg %p66
    %p73 = scmp.eq.s32.totalorder %s8, 1
    %p74 = por %p72, %p73
    %p75 = scmp.ne.s32.totalorder %s67, %s70
    %p76 = scmp.eq.s32.totalorder %s8, 0
    %p77 = por %p75, %p76
    %p78 = scmp.ne.s32.totalorder %s67, %s70
    %p79 = scmp.eq.s32.totalorder %s13, 1
    %p80 = por %p78, %p79
    %p81 = scmp.ne.s32.totalorder %s70, %s71
    %p82 = scmp.eq.s32.totalorder %s13, 0
    %p83 = por %p81, %p82
    %p84 = scmp.ne.s32.totalorder %s70, %s71
    %p85 = scmp.eq.s32.totalorder %s14, 1
    %p86 = por %p84, %p85
    %p88 = scmp.ne.s32.totalorder %s71, %s87
    %p89 = scmp.eq.s32.totalorder %s14, 0
    %p90 = por %p88, %p89
    %s91 = ssub.s32 %s15, %s34
    %s92 = ssub.s32 %s16, %s30
    %s93 = sor.u32 %s91, %s92
    %p94 = scmp.eq.s32.totalorder %s93, 0
    %s96 = sadd.s32 %s95, 1
    %s97 = scalar_select %p94, %s95, %s96
    %p100 = pneg %p94
    %p101 = scmp.eq.s32.totalorder %s8, 1
    %p102 = por %p100, %p101
    %p103 = scmp.ne.s32.totalorder %s95, %s98
    %p104 = scmp.eq.s32.totalorder %s8, 0
    %p105 = por %p103, %p104
    %p106 = scmp.ne.s32.totalorder %s95, %s98
    %p107 = scmp.eq.s32.totalorder %s13, 1
    %p108 = por %p106, %p107
    %p109 = scmp.ne.s32.totalorder %s98, %s99
    %p110 = scmp.eq.s32.totalorder %s13, 0
    %p111 = por %p109, %p110
    %p112 = scmp.ne.s32.totalorder %s98, %s99
    %p113 = scmp.eq.s32.totalorder %s14, 1
    %p114 = por %p112, %p113
    %p116 = scmp.ne.s32.totalorder %s99, %s115
    %p117 = scmp.eq.s32.totalorder %s14, 0
    %p118 = por %p116, %p117
    %p119 = scmp.le.s32.totalorder 1, %s8
    %p120 = scmp.lt.s32.totalorder %s8, 3
    %p121 = pnand %p119, %p120
    %p122 = pneg %p121
    // Predicated region
    $region9: #{resnet_generator_forward.29} parent=5 // pred_check
      _
    $region10: #{resnet_generator_forward.29} parent=5 // pred_check_branch
      %124 = sbr.rel (%p121) target = $region12
    $region11: #{resnet_generator_forward.29} parent=5 // pred_region
      %s125 = ssub.s32 %s8, 1
      // Predicated region
      $region13: #{resnet_generator_forward.29} parent=11 // pred_check
        %p126 = pneg %p83
      $region14: #{resnet_generator_forward.29} parent=11 // pred_check_branch
        %128 = sbr.rel (%p126) target = $region16
      $region15: #{resnet_generator_forward.29} parent=11 // pred_region
        %s129 = smul.u32 25, %s20
        %p130 = scmp.lt.s32.totalorder %s129, 24
        %s131 = scalar_select %p130, %s129, 24
        %p132 = scmp.lt.s32.totalorder %s19, 0
        %s133 = scalar_select %p132, %s19, 0
        %s134 = sadd.s32 %s133, %s131
        %s135 = smul.addr %s134, 4
        %s136 = scalar_lea.vmem %s1, %s135
        %s137 = smul.u32 25, %s20
      $region16: #{resnet_generator_forward.29} parent=11 // pred_fallthru
        _
    $region12: #{resnet_generator_forward.29} parent=5 // pred_fallthru
      _
    %p138 = scmp.lt.s32.totalorder %s8, 2
    // Predicated region
    $region17: #{resnet_generator_forward.29} parent=5 // pred_check
      %p139 = pneg %p138
    $region18: #{resnet_generator_forward.29} parent=5 // pred_check_branch
      %141 = sbr.rel (%p139) target = $region20
    $region19: #{resnet_generator_forward.29} parent=5 // pred_region
      // Predicated region
      $region21: #{resnet_generator_forward.29} parent=19 // pred_check
        %p142 = pneg %p49
      $region22: #{resnet_generator_forward.29} parent=19 // pred_check_branch
        %144 = sbr.rel (%p142) target = $region24
      $region23: #{resnet_generator_forward.29} parent=19 // pred_region
        %s145 = smul.u32 32, %s15
        %s146 = smul.u32 2, %s17
        %p147 = scmp.lt.s32.totalorder %s145, 63
        %s148 = scalar_select %p147, %s145, 63
        %p149 = scmp.lt.s32.totalorder %s146, 1
        %s150 = scalar_select %p149, %s146, 1
        %s151 = smul.addr %s148, 2
        %s152 = sadd.s32 %s150, %s151
        %s153 = smul.addr %s152, 4
        %s154 = scalar_lea.vmem %s0, %s153
        %s155 = smul.u32 32, %s15
        %s156 = smul.u32 2, %s17
      $region24: #{resnet_generator_forward.29} parent=19 // pred_fallthru
        _
    $region20: #{resnet_generator_forward.29} parent=5 // pred_fallthru
      _
    %p157 = scmp.le.s32.totalorder 1, %s8
    %p158 = scmp.lt.s32.totalorder %s8, 3
    %p159 = pnand %p157, %p158
    %p160 = pneg %p159
    // Predicated region
    $region25: #{resnet_generator_forward.29} parent=5 // pred_check
      _
    $region26: #{resnet_generator_forward.29} parent=5 // pred_check_branch
      %162 = sbr.rel (%p159) target = $region28
    $region27: #{resnet_generator_forward.29} parent=5 // pred_region
      %s163 = ssub.s32 %s8, 1
      %s164 = smul.u32 32, %s18
      %s165 = smul.u32 2, %s20
      %p166 = scmp.lt.s32.totalorder %s164, 63
      %s167 = scalar_select %p166, %s164, 63
      %p168 = scmp.lt.s32.totalorder %s165, 1
      %s169 = scalar_select %p168, %s165, 1
      %s170 = smul.addr %s167, 2
      %s171 = sadd.s32 %s169, %s170
      %s172 = smul.addr %s171, 4
      %s173 = scalar_lea.vmem %s0, %s172
      %p174 = pneg %p55
      %p175 = pneg %p52
      %s176 = smul.u32 25, %s20
      %p177 = scmp.lt.s32.totalorder %s176, 24
      %s178 = scalar_select %p177, %s176, 24
      %p179 = scmp.lt.s32.totalorder %s19, 0
      %s180 = scalar_select %p179, %s19, 0
      %s181 = sadd.s32 %s180, %s178
      %s182 = smul.addr %s181, 4
      %s183 = scalar_lea.vmem %s1, %s182
      %p184 = pneg %p83
      %p185 = pneg %p80
      %p186 = pneg %p111
      %p187 = pneg %p108
      %s188 = smul.u32 32, %s18
      %p189 = scmp.lt.s32.totalorder %s188, 63
      %s190 = scalar_select %p189, %s188, 63
      %p191 = scmp.lt.s32.totalorder %s19, 0
      %s192 = scalar_select %p191, %s19, 0
      %s193 = sadd.s32 %s192, %s190
      %s194 = smul.addr %s193, 8
      %s195 = scalar_lea.vmem %s2, %s194
      %s196 = smul.u32 32, %s18
      %s197 = smul.u32 2, %s20
      %p198 = scmp.lt.s32.totalorder %s196, 63
      %s199 = scalar_select %p198, %s196, 63
      %p200 = scmp.lt.s32.totalorder %s197, 1
      %s201 = scalar_select %p200, %s197, 1
      %s202 = smul.addr %s199, 2
      %s203 = sadd.s32 %s201, %s202
      %s204 = smul.addr %s203, 4
      %s205 = scalar_lea.vmem %s0, %s204
      %s206 = smul.u32 32, %s18
      %s207 = smul.u32 2, %s20
      %s208 = smul.u32 25, %s20
      %p209 = scmp.lt.s32.totalorder %s208, 24
      %s210 = scalar_select %p209, %s208, 24
      %p211 = scmp.lt.s32.totalorder %s19, 0
      %s212 = scalar_select %p211, %s19, 0
      %s213 = sadd.s32 %s212, %s210
      %s214 = smul.addr %s213, 4
      %s215 = scalar_lea.vmem %s1, %s214
      %s216 = smul.u32 25, %s20
      %s217 = smul.u32 32, %s18
      %p218 = scmp.lt.s32.totalorder %s217, 63
      %s219 = scalar_select %p218, %s217, 63
      %p220 = scmp.lt.s32.totalorder %s19, 0
      %s221 = scalar_select %p220, %s19, 0
      %s222 = sadd.s32 %s221, %s219
      %s223 = smul.addr %s222, 8
      %s224 = scalar_lea.vmem %s2, %s223
      %s225 = smul.u32 32, %s18
      %p227 = scmp.eq.s32.totalorder %s20, 0
      // Predicated region
      $region29: #{resnet_generator_forward.29} parent=27 // pred_check
        %p228 = pneg %p227
      $region30: #{resnet_generator_forward.29} parent=27 // pred_check_branch
        %230 = sbr.rel (%p228) target = $region32
      $region31: #{resnet_generator_forward.29} parent=27 // pred_region
        %vm231 = vcmask 64512
        %232 = vst.msk [vmem:[#allocation2] sm:$0xff] %vm231, 0.0
        %233 = vst.msk [vmem:[#allocation2 + $0x8] sm:$0xff] %vm231, 0.0
        %234 = vst.msk [vmem:[#allocation2 + $0x10] sm:$0xff] %vm231, 0.0
        %235 = vst.msk [vmem:[#allocation2 + $0x18] sm:$0xff] %vm231, 0.0
        %236 = vst.msk [vmem:[#allocation2 + $0x20] sm:$0xff] %vm231, 0.0
        %237 = vst.msk [vmem:[#allocation2 + $0x28] sm:$0xff] %vm231, 0.0
        %238 = vst.msk [vmem:[#allocation2 + $0x30] sm:$0xff] %vm231, 0.0
        %239 = vst.msk [vmem:[#allocation2 + $0x38] sm:$0xff] %vm231, 0.0
        %240 = vst.msk [vmem:[#allocation2 + $0x40] sm:$0xff] %vm231, 0.0
        %241 = vst.msk [vmem:[#allocation2 + $0x48] sm:$0xff] %vm231, 0.0
        %242 = vst.msk [vmem:[#allocation2 + $0x50] sm:$0xff] %vm231, 0.0
        %243 = vst.msk [vmem:[#allocation2 + $0x58] sm:$0xff] %vm231, 0.0
        %244 = vst.msk [vmem:[#allocation2 + $0x60] sm:$0xff] %vm231, 0.0
        %245 = vst.msk [vmem:[#allocation2 + $0x68] sm:$0xff] %vm231, 0.0
        %246 = vst.msk [vmem:[#allocation2 + $0x70] sm:$0xff] %vm231, 0.0
        %247 = vst.msk [vmem:[#allocation2 + $0x78] sm:$0xff] %vm231, 0.0
        %248 = vst.msk [vmem:[#allocation2 + $0x80] sm:$0xff] %vm231, 0.0
        %249 = vst.msk [vmem:[#allocation2 + $0x88] sm:$0xff] %vm231, 0.0
        %250 = vst.msk [vmem:[#allocation2 + $0x90] sm:$0xff] %vm231, 0.0
        %251 = vst.msk [vmem:[#allocation2 + $0x98] sm:$0xff] %vm231, 0.0
        %252 = vst.msk [vmem:[#allocation2 + $0xa0] sm:$0xff] %vm231, 0.0
        %253 = vst.msk [vmem:[#allocation2 + $0xa8] sm:$0xff] %vm231, 0.0
        %254 = vst.msk [vmem:[#allocation2 + $0xb0] sm:$0xff] %vm231, 0.0
        %255 = vst.msk [vmem:[#allocation2 + $0xb8] sm:$0xff] %vm231, 0.0
        %256 = vst.msk [vmem:[#allocation2 + $0xc0] sm:$0xff] %vm231, 0.0
        %257 = vst.msk [vmem:[#allocation2 + $0xc8] sm:$0xff] %vm231, 0.0
        %258 = vst.msk [vmem:[#allocation2 + $0xd0] sm:$0xff] %vm231, 0.0
        %259 = vst.msk [vmem:[#allocation2 + $0xd8] sm:$0xff] %vm231, 0.0
        %260 = vst.msk [vmem:[#allocation2 + $0xe0] sm:$0xff] %vm231, 0.0
        %261 = vst.msk [vmem:[#allocation2 + $0xe8] sm:$0xff] %vm231, 0.0
        %262 = vst.msk [vmem:[#allocation2 + $0xf0] sm:$0xff] %vm231, 0.0
        %263 = vst.msk [vmem:[#allocation2 + $0xf8] sm:$0xff] %vm231, 0.0
      $region32: #{resnet_generator_forward.29} parent=27 // pred_fallthru
        _
      %v264 = vld [vmem:[#allocation2] sm:$0xff]
      %v265 = vld [vmem:[#allocation2 + $0x8] sm:$0xff]
      %v266 = vld [vmem:[#allocation2 + $0x10] sm:$0xff]
      %v267 = vld [vmem:[#allocation2 + $0x18] sm:$0xff]
      %v268 = vld [vmem:[#allocation2 + $0x20] sm:$0xff]
      %v269 = vld [vmem:[#allocation2 + $0x28] sm:$0xff]
      %v270 = vld [vmem:[#allocation2 + $0x30] sm:$0xff]
      %v271 = vld [vmem:[#allocation2 + $0x38] sm:$0xff]
      %v272 = vld [vmem:[#allocation2 + $0x40] sm:$0xff]
      %v273 = vld [vmem:[#allocation2 + $0x48] sm:$0xff]
      %v274 = vld [vmem:[#allocation2 + $0x50] sm:$0xff]
      %v275 = vld [vmem:[#allocation2 + $0x58] sm:$0xff]
      %v276 = vld [vmem:[#allocation2 + $0x60] sm:$0xff]
      %v277 = vld [vmem:[#allocation2 + $0x68] sm:$0xff]
      %v278 = vld [vmem:[#allocation2 + $0x70] sm:$0xff]
      %v279 = vld [vmem:[#allocation2 + $0x78] sm:$0xff]
      %v280 = vld [vmem:[#allocation2 + $0x80] sm:$0xff]
      %v281 = vld [vmem:[#allocation2 + $0x88] sm:$0xff]
      %v282 = vld [vmem:[#allocation2 + $0x90] sm:$0xff]
      %v283 = vld [vmem:[#allocation2 + $0x98] sm:$0xff]
      %v284 = vld [vmem:[#allocation2 + $0xa0] sm:$0xff]
      %v285 = vld [vmem:[#allocation2 + $0xa8] sm:$0xff]
      %v286 = vld [vmem:[#allocation2 + $0xb0] sm:$0xff]
      %v287 = vld [vmem:[#allocation2 + $0xb8] sm:$0xff]
      %v288 = vld [vmem:[#allocation2 + $0xc0] sm:$0xff]
      %v289 = vld [vmem:[#allocation2 + $0xc8] sm:$0xff]
      %v290 = vld [vmem:[#allocation2 + $0xd0] sm:$0xff]
      %v291 = vld [vmem:[#allocation2 + $0xd8] sm:$0xff]
      %v292 = vld [vmem:[#allocation2 + $0xe0] sm:$0xff]
      %v293 = vld [vmem:[#allocation2 + $0xe8] sm:$0xff]
      %v294 = vld [vmem:[#allocation2 + $0xf0] sm:$0xff]
      %v295 = vld [vmem:[#allocation2 + $0xf8] sm:$0xff]
      %v296 = vld [vmem:[%s205] sm:$0xff]
      %v297 = vld [vmem:[%s205 + $0x8] sm:$0xff]
      %v298 = vld [vmem:[%s205 + $0x10] sm:$0xff]
      %v299 = vld [vmem:[%s205 + $0x18] sm:$0xff]
      %v300 = vld [vmem:[%s205 + $0x20] sm:$0xff]
      %v301 = vld [vmem:[%s205 + $0x28] sm:$0xff]
      %v302 = vld [vmem:[%s205 + $0x30] sm:$0xff]
      %v303 = vld [vmem:[%s205 + $0x38] sm:$0xff]
      %v304 = vld [vmem:[%s205 + $0x40] sm:$0xff]
      %v305 = vld [vmem:[%s205 + $0x48] sm:$0xff]
      %v306 = vld [vmem:[%s205 + $0x50] sm:$0xff]
      %v307 = vld [vmem:[%s205 + $0x58] sm:$0xff]
      %v308 = vld [vmem:[%s205 + $0x60] sm:$0xff]
      %v309 = vld [vmem:[%s205 + $0x68] sm:$0xff]
      %v310 = vld [vmem:[%s205 + $0x70] sm:$0xff]
      %v311 = vld [vmem:[%s205 + $0x78] sm:$0xff]
      %v312 = vld [vmem:[%s205 + $0x80] sm:$0xff]
      %v313 = vld [vmem:[%s205 + $0x88] sm:$0xff]
      %v314 = vld [vmem:[%s205 + $0x90] sm:$0xff]
      %v315 = vld [vmem:[%s205 + $0x98] sm:$0xff]
      %v316 = vld [vmem:[%s205 + $0xa0] sm:$0xff]
      %v317 = vld [vmem:[%s205 + $0xa8] sm:$0xff]
      %v318 = vld [vmem:[%s205 + $0xb0] sm:$0xff]
      %v319 = vld [vmem:[%s205 + $0xb8] sm:$0xff]
      %v320 = vld [vmem:[%s205 + $0xc0] sm:$0xff]
      %v321 = vld [vmem:[%s205 + $0xc8] sm:$0xff]
      %v322 = vld [vmem:[%s205 + $0xd0] sm:$0xff]
      %v323 = vld [vmem:[%s205 + $0xd8] sm:$0xff]
      %v324 = vld [vmem:[%s205 + $0xe0] sm:$0xff]
      %v325 = vld [vmem:[%s205 + $0xe8] sm:$0xff]
      %v326 = vld [vmem:[%s205 + $0xf0] sm:$0xff]
      %v327 = vld [vmem:[%s205 + $0xf8] sm:$0xff]
      %v328 = vld [vmem:[%s215] sm:$0xf]
      %v329 = vld [vmem:[%s215 + $0x4] sm:$0xf]
      %v330 = vld [vmem:[%s215 + $0x8] sm:$0xf]
      %v331 = vld [vmem:[%s215 + $0xc] sm:$0xf]
      %v332 = vld [vmem:[%s215 + $0x10] sm:$0xf]
      %v333 = vld [vmem:[%s215 + $0x14] sm:$0xf]
      %v334 = vld [vmem:[%s215 + $0x18] sm:$0xf]
      %v335 = vld [vmem:[%s215 + $0x1c] sm:$0xf]
      %v336 = vld [vmem:[%s215 + $0x20] sm:$0xf]
      %v337 = vld [vmem:[%s215 + $0x24] sm:$0xf]
      %v338 = vld [vmem:[%s215 + $0x28] sm:$0xf]
      %v339 = vld [vmem:[%s215 + $0x2c] sm:$0xf]
      %v340 = vld [vmem:[%s215 + $0x30] sm:$0xf]
      %v341 = vld [vmem:[%s215 + $0x34] sm:$0xf]
      %v342 = vld [vmem:[%s215 + $0x38] sm:$0xf]
      %v343 = vld [vmem:[%s215 + $0x3c] sm:$0xf]
      %v344 = vld [vmem:[%s215 + $0x40] sm:$0xf]
      %v345 = vld [vmem:[%s215 + $0x44] sm:$0xf]
      %v346 = vld [vmem:[%s215 + $0x48] sm:$0xf]
      %v347 = vld [vmem:[%s215 + $0x4c] sm:$0xf]
      %v348 = vld [vmem:[%s215 + $0x50] sm:$0xf]
      %v349 = vld [vmem:[%s215 + $0x54] sm:$0xf]
      %v350 = vld [vmem:[%s215 + $0x58] sm:$0xf]
      %v351 = vld [vmem:[%s215 + $0x5c] sm:$0xf]
      %v352 = vld [vmem:[%s215 + $0x60] sm:$0x3]
      %v385 = vunpack.c.l.b16 %v296
      %v386 = vunpack.c.h.b16 %v296
      %v387 = vunpack.c.l.b16 %v297
      %v388 = vunpack.c.h.b16 %v297
      %v389 = vunpack.c.l.b16 %v298
      %v390 = vunpack.c.h.b16 %v298
      %v391 = vunpack.c.l.b16 %v299
      %v392 = vunpack.c.h.b16 %v299
      %v393 = vunpack.c.l.b16 %v300
      %v394 = vunpack.c.h.b16 %v300
      %v395 = vunpack.c.l.b16 %v301
      %v396 = vunpack.c.h.b16 %v301
      %v397 = vunpack.c.l.b16 %v302
      %v398 = vunpack.c.h.b16 %v302
      %v399 = vunpack.c.l.b16 %v303
      %v400 = vunpack.c.h.b16 %v303
      %v401 = vunpack.c.l.b16 %v304
      %v402 = vunpack.c.h.b16 %v304
      %v403 = vunpack.c.l.b16 %v305
      %v404 = vunpack.c.h.b16 %v305
      %v405 = vunpack.c.l.b16 %v306
      %v406 = vunpack.c.h.b16 %v306
      %v407 = vunpack.c.l.b16 %v307
      %v408 = vunpack.c.h.b16 %v307
      %v409 = vunpack.c.l.b16 %v308
      %v410 = vunpack.c.h.b16 %v308
      %v411 = vunpack.c.l.b16 %v309
      %v412 = vunpack.c.h.b16 %v309
      %v413 = vunpack.c.l.b16 %v310
      %v414 = vunpack.c.h.b16 %v310
      %v415 = vunpack.c.l.b16 %v311
      %v416 = vunpack.c.h.b16 %v311
      %v417 = vunpack.c.l.b16 %v312
      %v418 = vunpack.c.h.b16 %v312
      %v419 = vunpack.c.l.b16 %v313
      %v420 = vunpack.c.h.b16 %v313
      %v421 = vunpack.c.l.b16 %v314
      %v422 = vunpack.c.h.b16 %v314
      %v423 = vunpack.c.l.b16 %v315
      %v424 = vunpack.c.h.b16 %v315
      %v425 = vunpack.c.l.b16 %v316
      %v426 = vunpack.c.h.b16 %v316
      %v427 = vunpack.c.l.b16 %v317
      %v428 = vunpack.c.h.b16 %v317
      %v429 = vunpack.c.l.b16 %v318
      %v430 = vunpack.c.h.b16 %v318
      %v431 = vunpack.c.l.b16 %v319
      %v432 = vunpack.c.h.b16 %v319
      %v433 = vunpack.c.l.b16 %v320
      %v434 = vunpack.c.h.b16 %v320
      %v435 = vunpack.c.l.b16 %v321
      %v436 = vunpack.c.h.b16 %v321
      %v437 = vunpack.c.l.b16 %v322
      %v438 = vunpack.c.h.b16 %v322
      %v439 = vunpack.c.l.b16 %v323
      %v440 = vunpack.c.h.b16 %v323
      %v441 = vunpack.c.l.b16 %v324
      %v442 = vunpack.c.h.b16 %v324
      %v443 = vunpack.c.l.b16 %v325
      %v444 = vunpack.c.h.b16 %v325
      %v445 = vunpack.c.l.b16 %v326
      %v446 = vunpack.c.h.b16 %v326
      %v447 = vunpack.c.l.b16 %v327
      %v448 = vunpack.c.h.b16 %v327
      %v449 = vpack.c.b16 %v387, %v385
      %v450 = vpack.c.b16 %v388, %v386
      %v451 = vpack.c.b16 %v391, %v389
      %v452 = vpack.c.b16 %v392, %v390
      %v453 = vpack.c.b16 %v395, %v393
      %v454 = vpack.c.b16 %v396, %v394
      %v455 = vpack.c.b16 %v399, %v397
      %v456 = vpack.c.b16 %v400, %v398
      %v457 = vpack.c.b16 %v403, %v401
      %v458 = vpack.c.b16 %v404, %v402
      %v459 = vpack.c.b16 %v407, %v405
      %v460 = vpack.c.b16 %v408, %v406
      %v461 = vpack.c.b16 %v411, %v409
      %v462 = vpack.c.b16 %v412, %v410
      %v463 = vpack.c.b16 %v415, %v413
      %v464 = vpack.c.b16 %v416, %v414
      %v465 = vpack.c.b16 %v419, %v417
      %v466 = vpack.c.b16 %v420, %v418
      %v467 = vpack.c.b16 %v423, %v421
      %v468 = vpack.c.b16 %v424, %v422
      %v469 = vpack.c.b16 %v427, %v425
      %v470 = vpack.c.b16 %v428, %v426
      %v471 = vpack.c.b16 %v431, %v429
      %v472 = vpack.c.b16 %v432, %v430
      %v473 = vpack.c.b16 %v435, %v433
      %v474 = vpack.c.b16 %v436, %v434
      %v475 = vpack.c.b16 %v439, %v437
      %v476 = vpack.c.b16 %v440, %v438
      %v477 = vpack.c.b16 %v443, %v441
      %v478 = vpack.c.b16 %v444, %v442
      %v479 = vpack.c.b16 %v447, %v445
      %v480 = vpack.c.b16 %v448, %v446
      %v522 = vunpack.c.l.b16 %v328
      %v523 = vunpack.c.l.b16 %v329
      %v524 = vunpack.c.l.b16 %v330
      %v525 = vunpack.c.l.b16 %v331
      %v526 = vunpack.c.l.b16 %v332
      %v527 = vunpack.c.l.b16 %v333
      %v528 = vunpack.c.l.b16 %v334
      %v529 = vunpack.c.l.b16 %v335
      %v530 = vunpack.c.l.b16 %v336
      %v531 = vunpack.c.l.b16 %v337
      %v532 = vunpack.c.l.b16 %v338
      %v533 = vunpack.c.l.b16 %v339
      %v534 = vunpack.c.l.b16 %v340
      %v535 = vunpack.c.l.b16 %v341
      %v536 = vunpack.c.l.b16 %v342
      %v537 = vunpack.c.l.b16 %v343
      %v538 = vunpack.c.l.b16 %v344
      %v539 = vunpack.c.l.b16 %v345
      %v540 = vunpack.c.l.b16 %v346
      %v541 = vunpack.c.l.b16 %v347
      %v542 = vunpack.c.l.b16 %v348
      %v543 = vunpack.c.l.b16 %v349
      %v544 = vunpack.c.l.b16 %v350
      %v545 = vunpack.c.l.b16 %v351
      %v546 = vunpack.c.l.b16 %v352
      %v547 = vpack.c.b16 %v523, %v522
      %v548 = vpack.c.b16 %v525, %v524
      %v549 = vpack.c.b16 %v527, %v526
      %v550 = vpack.c.b16 %v529, %v528
      %v551 = vpack.c.b16 %v531, %v530
      %v552 = vpack.c.b16 %v533, %v532
      %v553 = vpack.c.b16 %v535, %v534
      %v554 = vpack.c.b16 %v537, %v536
      %v555 = vpack.c.b16 %v539, %v538
      %v556 = vpack.c.b16 %v541, %v540
      %v557 = vpack.c.b16 %v543, %v542
      %v558 = vpack.c.b16 %v545, %v544
      %v559 = vpack.c.b16 %v546, %v546
      %vm572 = vcmask 556032
      %v574 = vsel %vm572, %v450, 0
      %v577 = vsel %vm572, %v452, 0
      %v580 = vsel %vm572, %v454, 0
      %v583 = vsel %vm572, %v456, 0
      %v586 = vsel %vm572, %v458, 0
      %v589 = vsel %vm572, %v460, 0
      %v592 = vsel %vm572, %v462, 0
      %v595 = vsel %vm572, %v464, 0
      %v598 = vsel %vm572, %v466, 0
      %v601 = vsel %vm572, %v468, 0
      %v604 = vsel %vm572, %v470, 0
      %v607 = vsel %vm572, %v472, 0
      %v610 = vsel %vm572, %v474, 0
      %v613 = vsel %vm572, %v476, 0
      %v616 = vsel %vm572, %v478, 0
      %v619 = vsel %vm572, %v480, 0
      %vm621 = vcmask 1041408
      %v623 = vsel %vm621, %v559, 0
      %625 = vmatprep.subr.bf16.mxu0 0
      %626 = vmatpush1.bf16.msra.mxu0 %v554
      %627 = vmatprep.subr.bf16.mxu0 0
      %628 = vmatpush1.bf16.msra.mxu0 %v553
      %629 = vmatprep.subr.bf16.mxu0 0
      %630 = vmatpush1.bf16.msra.mxu0 %v552
      %631 = vmatprep.subr.bf16.mxu0 0
      %632 = vmatpush1.bf16.msra.mxu0 %v551
      %633 = vmatprep.subr.bf16.mxu0 0
      %634 = vmatpush1.bf16.msra.mxu0 %v550
      %635 = vmatprep.subr.bf16.mxu0 0
      %636 = vmatpush1.bf16.msra.mxu0 %v549
      %637 = vmatprep.subr.bf16.mxu0 0
      %638 = vmatpush1.bf16.msra.mxu0 %v548
      %639 = vmatprep.subr.bf16.mxu0 0
      %640 = vmatpush1.bf16.msra.mxu0 %v547
      %641 = vmatprep.subr.bf16.mxu0 0
      %642 = vmatpush2.bf16.msra.mxu0 0
      %643 = vmatprep.subr.bf16.mxu0 0
      %644 = vmatpush2.bf16.msra.mxu0 0
      %645 = vmatprep.subr.bf16.mxu0 0
      %646 = vmatpush2.bf16.msra.mxu0 0
      %647 = vmatprep.subr.bf16.mxu0 0
      %648 = vmatpush2.bf16.msra.mxu0 %v623
      %649 = vmatprep.subr.bf16.mxu0 0
      %650 = vmatpush2.bf16.msra.mxu0 %v558
      %651 = vmatprep.subr.bf16.mxu0 0
      %652 = vmatpush2.bf16.msra.mxu0 %v557
      %653 = vmatprep.subr.bf16.mxu0 0
      %654 = vmatpush2.bf16.msra.mxu0 %v556
      %655 = vmatprep.subr.bf16.mxu0 0
      %656 = vmatpush2.bf16.msra.mxu0 %v555
      %657 = vmatprep.mubr.bf16.mxu0 %v574
      %658 = vmatmul.mubr.bf16.gmra.mxu0 %v449
      %v659 = vpop.f32.mrf.mxu0
      %v660 = vadd.f32 0.0, %v659
      %v661 = vpop.f32.mrf.mxu0
      %v662 = vpop.f32.mrf.mxu0
      %v663 = vadd.f32 0.0, %v662
      %v664 = vpop.f32.mrf.mxu0
      %665 = vmatprep.mubr.bf16.mxu0 %v577
      %666 = vmatmul.mubr.bf16.gmra.mxu0 %v451
      %v667 = vpop.f32.mrf.mxu0
      %v668 = vadd.f32 0.0, %v667
      %v669 = vpop.f32.mrf.mxu0
      %v670 = vpop.f32.mrf.mxu0
      %v671 = vadd.f32 0.0, %v670
      %v672 = vpop.f32.mrf.mxu0
      %673 = vmatprep.mubr.bf16.mxu0 %v580
      %674 = vmatmul.mubr.bf16.gmra.mxu0 %v453
      %v675 = vpop.f32.mrf.mxu0
      %v676 = vadd.f32 0.0, %v675
      %v677 = vpop.f32.mrf.mxu0
      %v678 = vpop.f32.mrf.mxu0
      %v679 = vadd.f32 0.0, %v678
      %v680 = vpop.f32.mrf.mxu0
      %681 = vmatprep.mubr.bf16.mxu0 %v583
      %682 = vmatmul.mubr.bf16.gmra.mxu0 %v455
      %v683 = vpop.f32.mrf.mxu0
      %v684 = vadd.f32 0.0, %v683
      %v685 = vpop.f32.mrf.mxu0
      %v686 = vpop.f32.mrf.mxu0
      %v687 = vadd.f32 0.0, %v686
      %v688 = vpop.f32.mrf.mxu0
      %689 = vmatprep.mubr.bf16.mxu0 %v586
      %690 = vmatmul.mubr.bf16.gmra.mxu0 %v457
      %v691 = vpop.f32.mrf.mxu0
      %v692 = vadd.f32 0.0, %v691
      %v693 = vpop.f32.mrf.mxu0
      %v694 = vpop.f32.mrf.mxu0
      %v695 = vadd.f32 0.0, %v694
      %v696 = vpop.f32.mrf.mxu0
      %697 = vmatprep.mubr.bf16.mxu0 %v589
      %698 = vmatmul.mubr.bf16.gmra.mxu0 %v459
      %v699 = vpop.f32.mrf.mxu0
      %v700 = vadd.f32 0.0, %v699
      %v701 = vpop.f32.mrf.mxu0
      %v702 = vpop.f32.mrf.mxu0
      %v703 = vadd.f32 0.0, %v702
      %v704 = vpop.f32.mrf.mxu0
      %705 = vmatprep.mubr.bf16.mxu0 %v592
      %706 = vmatmul.mubr.bf16.gmra.mxu0 %v461
      %v707 = vpop.f32.mrf.mxu0
      %v708 = vadd.f32 0.0, %v707
      %v709 = vpop.f32.mrf.mxu0
      %v710 = vpop.f32.mrf.mxu0
      %v711 = vadd.f32 0.0, %v710
      %v712 = vpop.f32.mrf.mxu0
      %713 = vmatprep.mubr.bf16.mxu0 %v595
      %714 = vmatmul.mubr.bf16.gmra.mxu0 %v463
      %v715 = vpop.f32.mrf.mxu0
      %v716 = vadd.f32 0.0, %v715
      %v717 = vpop.f32.mrf.mxu0
      %v718 = vpop.f32.mrf.mxu0
      %v719 = vadd.f32 0.0, %v718
      %v720 = vpop.f32.mrf.mxu0
      %721 = vmatprep.mubr.bf16.mxu0 %v598
      %722 = vmatmul.mubr.bf16.gmra.mxu0 %v465
      %v723 = vpop.f32.mrf.mxu0
      %v724 = vadd.f32 0.0, %v723
      %v725 = vpop.f32.mrf.mxu0
      %v726 = vpop.f32.mrf.mxu0
      %v727 = vadd.f32 0.0, %v726
      %v728 = vpop.f32.mrf.mxu0
      %729 = vmatprep.mubr.bf16.mxu0 %v601
      %730 = vmatmul.mubr.bf16.gmra.mxu0 %v467
      %v731 = vpop.f32.mrf.mxu0
      %v732 = vadd.f32 0.0, %v731
      %v733 = vpop.f32.mrf.mxu0
      %v734 = vpop.f32.mrf.mxu0
      %v735 = vadd.f32 0.0, %v734
      %v736 = vpop.f32.mrf.mxu0
      %737 = vmatprep.mubr.bf16.mxu0 %v604
      %738 = vmatmul.mubr.bf16.gmra.mxu0 %v469
      %v739 = vpop.f32.mrf.mxu0
      %v740 = vadd.f32 0.0, %v739
      %v741 = vpop.f32.mrf.mxu0
      %v742 = vpop.f32.mrf.mxu0
      %v743 = vadd.f32 0.0, %v742
      %v744 = vpop.f32.mrf.mxu0
      %745 = vmatprep.mubr.bf16.mxu0 %v607
      %746 = vmatmul.mubr.bf16.gmra.mxu0 %v471
      %v747 = vpop.f32.mrf.mxu0
      %v748 = vadd.f32 0.0, %v747
      %v749 = vpop.f32.mrf.mxu0
      %v750 = vpop.f32.mrf.mxu0
      %v751 = vadd.f32 0.0, %v750
      %v752 = vpop.f32.mrf.mxu0
      %753 = vmatprep.mubr.bf16.mxu0 %v610
      %754 = vmatmul.mubr.bf16.gmra.mxu0 %v473
      %v755 = vpop.f32.mrf.mxu0
      %v756 = vadd.f32 0.0, %v755
      %v757 = vpop.f32.mrf.mxu0
      %v758 = vpop.f32.mrf.mxu0
      %v759 = vadd.f32 0.0, %v758
      %v760 = vpop.f32.mrf.mxu0
      %761 = vmatprep.mubr.bf16.mxu0 %v613
      %762 = vmatmul.mubr.bf16.gmra.mxu0 %v475
      %v763 = vpop.f32.mrf.mxu0
      %v764 = vadd.f32 0.0, %v763
      %v765 = vpop.f32.mrf.mxu0
      %v766 = vpop.f32.mrf.mxu0
      %v767 = vadd.f32 0.0, %v766
      %v768 = vpop.f32.mrf.mxu0
      %769 = vmatprep.mubr.bf16.mxu0 %v616
      %770 = vmatmul.mubr.bf16.gmra.mxu0 %v477
      %v771 = vpop.f32.mrf.mxu0
      %v772 = vadd.f32 0.0, %v771
      %v773 = vpop.f32.mrf.mxu0
      %v774 = vpop.f32.mrf.mxu0
      %v775 = vadd.f32 0.0, %v774
      %v776 = vpop.f32.mrf.mxu0
      %777 = vmatprep.mubr.bf16.mxu0 %v619
      %778 = vmatmul.mubr.bf16.gmra.mxu0 %v479
      %v779 = vpop.f32.mrf.mxu0
      %v780 = vadd.f32 0.0, %v779
      %v781 = vpop.f32.mrf.mxu0
      %v782 = vpop.f32.mrf.mxu0
      %v783 = vadd.f32 0.0, %v782
      %v784 = vpop.f32.mrf.mxu0
      %785 = vdwg.mxu0
      %v786 = vadd.f32 %v264, %v660
      %v787 = vadd.f32 %v265, %v663
      %v788 = vadd.f32 %v266, %v668
      %v789 = vadd.f32 %v267, %v671
      %v790 = vadd.f32 %v268, %v676
      %v791 = vadd.f32 %v269, %v679
      %v792 = vadd.f32 %v270, %v684
      %v793 = vadd.f32 %v271, %v687
      %v794 = vadd.f32 %v272, %v692
      %v795 = vadd.f32 %v273, %v695
      %v796 = vadd.f32 %v274, %v700
      %v797 = vadd.f32 %v275, %v703
      %v798 = vadd.f32 %v276, %v708
      %v799 = vadd.f32 %v277, %v711
      %v800 = vadd.f32 %v278, %v716
      %v801 = vadd.f32 %v279, %v719
      %v802 = vadd.f32 %v280, %v724
      %v803 = vadd.f32 %v281, %v727
      %v804 = vadd.f32 %v282, %v732
      %v805 = vadd.f32 %v283, %v735
      %v806 = vadd.f32 %v284, %v740
      %v807 = vadd.f32 %v285, %v743
      %v808 = vadd.f32 %v286, %v748
      %v809 = vadd.f32 %v287, %v751
      %v810 = vadd.f32 %v288, %v756
      %v811 = vadd.f32 %v289, %v759
      %v812 = vadd.f32 %v290, %v764
      %v813 = vadd.f32 %v291, %v767
      %v814 = vadd.f32 %v292, %v772
      %v815 = vadd.f32 %v293, %v775
      %v816 = vadd.f32 %v294, %v780
      %v817 = vadd.f32 %v295, %v783
      %vm818 = vcmask 64512
      %819 = vst.msk [vmem:[#allocation2] sm:$0xff] %vm818, %v786
      %820 = vst.msk [vmem:[#allocation2 + $0x8] sm:$0xff] %vm818, %v787
      %821 = vst.msk [vmem:[#allocation2 + $0x10] sm:$0xff] %vm818, %v788
      %822 = vst.msk [vmem:[#allocation2 + $0x18] sm:$0xff] %vm818, %v789
      %823 = vst.msk [vmem:[#allocation2 + $0x20] sm:$0xff] %vm818, %v790
      %824 = vst.msk [vmem:[#allocation2 + $0x28] sm:$0xff] %vm818, %v791
      %825 = vst.msk [vmem:[#allocation2 + $0x30] sm:$0xff] %vm818, %v792
      %826 = vst.msk [vmem:[#allocation2 + $0x38] sm:$0xff] %vm818, %v793
      %827 = vst.msk [vmem:[#allocation2 + $0x40] sm:$0xff] %vm818, %v794
      %828 = vst.msk [vmem:[#allocation2 + $0x48] sm:$0xff] %vm818, %v795
      %829 = vst.msk [vmem:[#allocation2 + $0x50] sm:$0xff] %vm818, %v796
      %830 = vst.msk [vmem:[#allocation2 + $0x58] sm:$0xff] %vm818, %v797
      %831 = vst.msk [vmem:[#allocation2 + $0x60] sm:$0xff] %vm818, %v798
      %832 = vst.msk [vmem:[#allocation2 + $0x68] sm:$0xff] %vm818, %v799
      %833 = vst.msk [vmem:[#allocation2 + $0x70] sm:$0xff] %vm818, %v800
      %834 = vst.msk [vmem:[#allocation2 + $0x78] sm:$0xff] %vm818, %v801
      %835 = vst.msk [vmem:[#allocation2 + $0x80] sm:$0xff] %vm818, %v802
      %836 = vst.msk [vmem:[#allocation2 + $0x88] sm:$0xff] %vm818, %v803
      %837 = vst.msk [vmem:[#allocation2 + $0x90] sm:$0xff] %vm818, %v804
      %838 = vst.msk [vmem:[#allocation2 + $0x98] sm:$0xff] %vm818, %v805
      %839 = vst.msk [vmem:[#allocation2 + $0xa0] sm:$0xff] %vm818, %v806
      %840 = vst.msk [vmem:[#allocation2 + $0xa8] sm:$0xff] %vm818, %v807
      %841 = vst.msk [vmem:[#allocation2 + $0xb0] sm:$0xff] %vm818, %v808
      %842 = vst.msk [vmem:[#allocation2 + $0xb8] sm:$0xff] %vm818, %v809
      %843 = vst.msk [vmem:[#allocation2 + $0xc0] sm:$0xff] %vm818, %v810
      %844 = vst.msk [vmem:[#allocation2 + $0xc8] sm:$0xff] %vm818, %v811
      %845 = vst.msk [vmem:[#allocation2 + $0xd0] sm:$0xff] %vm818, %v812
      %846 = vst.msk [vmem:[#allocation2 + $0xd8] sm:$0xff] %vm818, %v813
      %847 = vst.msk [vmem:[#allocation2 + $0xe0] sm:$0xff] %vm818, %v814
      %848 = vst.msk [vmem:[#allocation2 + $0xe8] sm:$0xff] %vm818, %v815
      %849 = vst.msk [vmem:[#allocation2 + $0xf0] sm:$0xff] %vm818, %v816
      %850 = vst.msk [vmem:[#allocation2 + $0xf8] sm:$0xff] %vm818, %v817
      // Predicated region
      $region33: #{resnet_generator_forward.29} parent=27 // pred_check
        %p851 = pneg %p227
      $region34: #{resnet_generator_forward.29} parent=27 // pred_check_branch
        %853 = sbr.rel (%p851) target = $region36
      $region35: #{resnet_generator_forward.29} parent=27 // pred_region
        %v854 = vld [vmem:[#allocation2] sm:$0xff]
        %v855 = vld [vmem:[#allocation2 + $0x8] sm:$0xff]
        %v856 = vld [vmem:[#allocation2 + $0x10] sm:$0xff]
        %v857 = vld [vmem:[#allocation2 + $0x18] sm:$0xff]
        %v858 = vld [vmem:[#allocation2 + $0x20] sm:$0xff]
        %v859 = vld [vmem:[#allocation2 + $0x28] sm:$0xff]
        %v860 = vld [vmem:[#allocation2 + $0x30] sm:$0xff]
        %v861 = vld [vmem:[#allocation2 + $0x38] sm:$0xff]
        %v862 = vld [vmem:[#allocation2 + $0x40] sm:$0xff]
        %v863 = vld [vmem:[#allocation2 + $0x48] sm:$0xff]
        %v864 = vld [vmem:[#allocation2 + $0x50] sm:$0xff]
        %v865 = vld [vmem:[#allocation2 + $0x58] sm:$0xff]
        %v866 = vld [vmem:[#allocation2 + $0x60] sm:$0xff]
        %v867 = vld [vmem:[#allocation2 + $0x68] sm:$0xff]
        %v868 = vld [vmem:[#allocation2 + $0x70] sm:$0xff]
        %v869 = vld [vmem:[#allocation2 + $0x78] sm:$0xff]
        %v870 = vld [vmem:[#allocation2 + $0x80] sm:$0xff]
        %v871 = vld [vmem:[#allocation2 + $0x88] sm:$0xff]
        %v872 = vld [vmem:[#allocation2 + $0x90] sm:$0xff]
        %v873 = vld [vmem:[#allocation2 + $0x98] sm:$0xff]
        %v874 = vld [vmem:[#allocation2 + $0xa0] sm:$0xff]
        %v875 = vld [vmem:[#allocation2 + $0xa8] sm:$0xff]
        %v876 = vld [vmem:[#allocation2 + $0xb0] sm:$0xff]
        %v877 = vld [vmem:[#allocation2 + $0xb8] sm:$0xff]
        %v878 = vld [vmem:[#allocation2 + $0xc0] sm:$0xff]
        %v879 = vld [vmem:[#allocation2 + $0xc8] sm:$0xff]
        %v880 = vld [vmem:[#allocation2 + $0xd0] sm:$0xff]
        %v881 = vld [vmem:[#allocation2 + $0xd8] sm:$0xff]
        %v882 = vld [vmem:[#allocation2 + $0xe0] sm:$0xff]
        %v883 = vld [vmem:[#allocation2 + $0xe8] sm:$0xff]
        %v884 = vld [vmem:[#allocation2 + $0xf0] sm:$0xff]
        %v885 = vld [vmem:[#allocation2 + $0xf8] sm:$0xff]
        %886 = vst.msk [vmem:[%s224] sm:$0xff] %vm818, %v854
        %887 = vst.msk [vmem:[%s224 + $0x8] sm:$0xff] %vm818, %v855
        %888 = vst.msk [vmem:[%s224 + $0x10] sm:$0xff] %vm818, %v856
        %889 = vst.msk [vmem:[%s224 + $0x18] sm:$0xff] %vm818, %v857
        %890 = vst.msk [vmem:[%s224 + $0x20] sm:$0xff] %vm818, %v858
        %891 = vst.msk [vmem:[%s224 + $0x28] sm:$0xff] %vm818, %v859
        %892 = vst.msk [vmem:[%s224 + $0x30] sm:$0xff] %vm818, %v860
        %893 = vst.msk [vmem:[%s224 + $0x38] sm:$0xff] %vm818, %v861
        %894 = vst.msk [vmem:[%s224 + $0x40] sm:$0xff] %vm818, %v862
        %895 = vst.msk [vmem:[%s224 + $0x48] sm:$0xff] %vm818, %v863
        %896 = vst.msk [vmem:[%s224 + $0x50] sm:$0xff] %vm818, %v864
        %897 = vst.msk [vmem:[%s224 + $0x58] sm:$0xff] %vm818, %v865
        %898 = vst.msk [vmem:[%s224 + $0x60] sm:$0xff] %vm818, %v866
        %899 = vst.msk [vmem:[%s224 + $0x68] sm:$0xff] %vm818, %v867
        %900 = vst.msk [vmem:[%s224 + $0x70] sm:$0xff] %vm818, %v868
        %901 = vst.msk [vmem:[%s224 + $0x78] sm:$0xff] %vm818, %v869
        %902 = vst.msk [vmem:[%s224 + $0x80] sm:$0xff] %vm818, %v870
        %903 = vst.msk [vmem:[%s224 + $0x88] sm:$0xff] %vm818, %v871
        %904 = vst.msk [vmem:[%s224 + $0x90] sm:$0xff] %vm818, %v872
        %905 = vst.msk [vmem:[%s224 + $0x98] sm:$0xff] %vm818, %v873
        %906 = vst.msk [vmem:[%s224 + $0xa0] sm:$0xff] %vm818, %v874
        %907 = vst.msk [vmem:[%s224 + $0xa8] sm:$0xff] %vm818, %v875
        %908 = vst.msk [vmem:[%s224 + $0xb0] sm:$0xff] %vm818, %v876
        %909 = vst.msk [vmem:[%s224 + $0xb8] sm:$0xff] %vm818, %v877
        %910 = vst.msk [vmem:[%s224 + $0xc0] sm:$0xff] %vm818, %v878
        %911 = vst.msk [vmem:[%s224 + $0xc8] sm:$0xff] %vm818, %v879
        %912 = vst.msk [vmem:[%s224 + $0xd0] sm:$0xff] %vm818, %v880
        %913 = vst.msk [vmem:[%s224 + $0xd8] sm:$0xff] %vm818, %v881
        %914 = vst.msk [vmem:[%s224 + $0xe0] sm:$0xff] %vm818, %v882
        %915 = vst.msk [vmem:[%s224 + $0xe8] sm:$0xff] %vm818, %v883
        %916 = vst.msk [vmem:[%s224 + $0xf0] sm:$0xff] %vm818, %v884
        %917 = vst.msk [vmem:[%s224 + $0xf8] sm:$0xff] %vm818, %v885
      $region36: #{resnet_generator_forward.29} parent=27 // pred_fallthru
        _
      %s918 = smul.u32 32, %s18
      %p919 = scmp.lt.s32.totalorder %s918, 63
      %s920 = scalar_select %p919, %s918, 63
      %p921 = scmp.lt.s32.totalorder %s19, 0
      %s922 = scalar_select %p921, %s19, 0
      %s923 = sadd.s32 %s922, %s920
      %s924 = smul.addr %s923, 8
      %s925 = scalar_lea.vmem %s2, %s924
      // Predicated region
      $region37: #{resnet_generator_forward.29} parent=27 // pred_check
        %p926 = pneg %p108
      $region38: #{resnet_generator_forward.29} parent=27 // pred_check_branch
        %928 = sbr.rel (%p926) target = $region40
      $region39: #{resnet_generator_forward.29} parent=27 // pred_region
        %s929 = smul.u32 32, %s18
      $region40: #{resnet_generator_forward.29} parent=27 // pred_fallthru
        _
    $region28: #{resnet_generator_forward.29} parent=5 // pred_fallthru
      _
    %p930 = scmp.le.s32.totalorder 2, %s8
    // Predicated region
    $region41: #{resnet_generator_forward.29} parent=5 // pred_check
      %p931 = pneg %p930
    $region42: #{resnet_generator_forward.29} parent=5 // pred_check_branch
      %933 = sbr.rel (%p931) target = $region44
    $region43: #{resnet_generator_forward.29} parent=5 // pred_region
      %s934 = ssub.s32 %s8, 2
      // Predicated region
      $region45: #{resnet_generator_forward.29} parent=43 // pred_check
        %p935 = pneg %p114
      $region46: #{resnet_generator_forward.29} parent=43 // pred_check_branch
        %937 = sbr.rel (%p935) target = $region48
      $region47: #{resnet_generator_forward.29} parent=43 // pred_region
        %s938 = smul.u32 32, %s21
        %p939 = scmp.lt.s32.totalorder %s938, 63
        %s940 = scalar_select %p939, %s938, 63
        %p941 = scmp.lt.s32.totalorder %s22, 0
        %s942 = scalar_select %p941, %s22, 0
        %s943 = sadd.s32 %s942, %s940
        %s944 = smul.addr %s943, 8
        %s945 = scalar_lea.vmem %s2, %s944
      $region48: #{resnet_generator_forward.29} parent=43 // pred_fallthru
        _
    $region44: #{resnet_generator_forward.29} parent=5 // pred_fallthru
      _
  $region6: #{resnet_generator_forward.29} parent=0 // loop_footer
    %s12 = sadd.s32 1, %s8
  $region7: #{resnet_generator_forward.29} parent=0 // loop_footer_branch
    %7 = sbr.rel target = $region3
  $region8: #{resnet_generator_forward.29} parent=0 // loop_exit
    _

// kernel: resnet_generator_forward.30
$region0: #{resnet_generator_forward.30}
  #allocation0 [shape = 'u32[]', space=smem, size = 0x4, offset = 0x4, fixed_abs, tag = 'smem constant byte address 0x4 - core index']
  #allocation1 [shape = 'u32[144,128]{1,0:T(1,128)}', space=vmem, size = 0x12000, scoped, tag = 'internal scratch']
  %s0 = inlined_call_operand.vmem [shape: f32[32,128], index: 0, kind: input, shape index: {}]
  %s1 = inlined_call_operand.vmem [shape: f32[1,128], index: 1, kind: output, shape index: {0}]
  %s2 = inlined_call_operand.vmem [shape: f32[1,128], index: 2, kind: output, shape index: {1}]
  %3 = xla_tuple %s1, %s2
  %s4 = sld [smem:[#allocation0]]
  $region26: #{resnet_generator_forward.30} parent=0
    _
  %s6 = ssub.s32 1, %s4
  %s7 = scalar_select 0, %s6, %s4
  // Predicated region
  $region2: #{resnet_generator_forward.30} parent=0 // pred_check
    _
  $region3: #{resnet_generator_forward.30} parent=0 // pred_check_branch
    %9 = sbr.rel (0) target = $region5
  $region4: #{resnet_generator_forward.30} parent=0 // pred_region
    _
  $region5: #{resnet_generator_forward.30} parent=0 // pred_fallthru
    _
  %p10 = scmp.eq.s32.totalorder 0, 0
  // Predicated region
  $region6: #{resnet_generator_forward.30} parent=0 // pred_check
    %p11 = pneg %p10
  $region7: #{resnet_generator_forward.30} parent=0 // pred_check_branch
    %13 = sbr.rel (%p11) target = $region9
  $region8: #{resnet_generator_forward.30} parent=0 // pred_region
    %14 = vst [vmem:[%s1] sm:$0x1] 0.0
    %15 = vst [vmem:[%s2] sm:$0x1] 0.0
  $region9: #{resnet_generator_forward.30} parent=0 // pred_fallthru
    _
  %v16 = vld [vmem:[%s0] sm:$0xff]
  %v17 = vld [vmem:[%s0 + $0x8] sm:$0xff]
  %v18 = vld [vmem:[%s0 + $0x10] sm:$0xff]
  %v19 = vld [vmem:[%s0 + $0x18] sm:$0xff]
  %v20 = vld [vmem:[%s1] sm:$0x1]
  %v21 = vadd.f32 %v16, %v17
  %v22 = vadd.f32 %v21, %v18
  %v23 = vadd.f32 %v22, %v19
  %v24 = vrot.slane %v23, 4
  %v25 = vadd.f32 %v23, %v24
  %v26 = vrot.slane %v25, 2
  %v27 = vadd.f32 %v25, %v26
  %v28 = vrot.slane %v27, 1
  %v29 = vadd.f32 %v27, %v28
  %v30 = vadd.f32 %v20, %v29
  %31 = vst [vmem:[%s1] sm:$0x1] %v30
  %v32 = vld [vmem:[%s2] sm:$0x1]
  %v33 = vmul.f32 %v16, %v16
  %v34 = vmul.f32 %v17, %v17
  %v35 = vmul.f32 %v18, %v18
  %v36 = vmul.f32 %v19, %v19
  %v37 = vadd.f32 %v33, %v34
  %v38 = vadd.f32 %v37, %v35
  %v39 = vadd.f32 %v38, %v36
  %v40 = vrot.slane %v39, 4
  %v41 = vadd.f32 %v39, %v40
  %v42 = vrot.slane %v41, 2
  %v43 = vadd.f32 %v41, %v42
  %v44 = vrot.slane %v43, 1
  %v45 = vadd.f32 %v43, %v44
  %v46 = vadd.f32 %v32, %v45
  %47 = vst [vmem:[%s2] sm:$0x1] %v46
  // Predicated region
  $region10: #{resnet_generator_forward.30} parent=0 // pred_check
    _
  $region11: #{resnet_generator_forward.30} parent=0 // pred_check_branch
    %49 = sbr.rel (0) target = $region13
  $region12: #{resnet_generator_forward.30} parent=0 // pred_region
    _
  $region13: #{resnet_generator_forward.30} parent=0 // pred_fallthru
    _
  // Predicated region
  $region14: #{resnet_generator_forward.30} parent=0 // pred_check
    _
  $region15: #{resnet_generator_forward.30} parent=0 // pred_check_branch
    %51 = sbr.rel (0) target = $region17
  $region16: #{resnet_generator_forward.30} parent=0 // pred_region
    _
  $region17: #{resnet_generator_forward.30} parent=0 // pred_fallthru
    _
  // Predicated region
  $region18: #{resnet_generator_forward.30} parent=0 // pred_check
    _
  $region19: #{resnet_generator_forward.30} parent=0 // pred_check_branch
    %53 = sbr.rel (0) target = $region21
  $region20: #{resnet_generator_forward.30} parent=0 // pred_region
    _
  $region21: #{resnet_generator_forward.30} parent=0 // pred_fallthru
    _
  // Predicated region
  $region22: #{resnet_generator_forward.30} parent=0 // pred_check
    _
  $region23: #{resnet_generator_forward.30} parent=0 // pred_check_branch
    %55 = sbr.rel (0) target = $region25
  $region24: #{resnet_generator_forward.30} parent=0 // pred_region
    _
  $region25: #{resnet_generator_forward.30} parent=0 // pred_fallthru
    _

// kernel: tile.93
$region0: #{tile.93}
  #allocation0 [shape = 's32[1]{0}', space=sflag, size = 0x4, scoped, tag = 'scoped memory for tile.93']
  %s0 = inlined_call_operand.vmem [shape: f32[8], index: 0, kind: input, shape index: {}]
  %s1 = inlined_call_operand.vmem [shape: f32[16,8], index: 1, kind: output, shape index: {}]
  // Predicated region
  $region2: #{tile.93} parent=0 // pred_check
    _
  $region3: #{tile.93} parent=0 // pred_check_branch
    %3 = sbr.rel (0) target = $region5
  $region4: #{tile.93} parent=0 // pred_region
    _
  $region5: #{tile.93} parent=0 // pred_fallthru
    _
  %v4 = vld [vmem:[%s0] ss:$0 sm:$0xff]
  %5 = vst [vmem:[%s1] sm:$0xff] %v4
  %s6 = scalar_lea.vmem %s1, 8
  %7 = vst [vmem:[%s6] sm:$0xff] %v4

// kernel: tile.94
$region0: #{tile.94}
  %s0 = inlined_call_operand.vmem [shape: f32[16,8], index: 0, kind: input, shape index: {}]
  %s1 = inlined_call_operand.vmem [shape: f32[1,128], index: 1, kind: output, shape index: {}]
  $region1: #{tile.94} parent=0
    #allocation0 [shape = 'u8[4096]{0}', space=vmem, size = 0x1000, scoped, tag = 'scoped mem for output reshape']
    %v2 = vld [vmem:[%s0] sm:$0x1]
    %vm3 = vcmask 64512
    %4 = vst.msk [vmem:[#allocation0] sm:$0x1] %vm3, %v2
    %s5 = scalar_lea.vmem %s0, 15
    %v6 = vld [vmem:[%s5] sm:$0x1]
    %7 = vrot.lane.b32.xlu0 %v6, 120
    %v8 = vpop.permute.xlu0 %7
    %vm9 = vcmask 1048512
    %10 = vst.msk [vmem:[#allocation0] sm:$0x1] %vm9, %v8
    %s11 = scalar_lea.vmem %s0, 14
    %v12 = vld [vmem:[%s11] sm:$0x1]
    %13 = vrot.lane.b32.xlu0 %v12, 112
    %v14 = vpop.permute.xlu0 %13
    %vm15 = vcmask 982912
    %16 = vst.msk [vmem:[#allocation0] sm:$0x1] %vm15, %v14
    %s17 = scalar_lea.vmem %s0, 13
    %v18 = vld [vmem:[%s17] sm:$0x1]
    %19 = vrot.lane.b32.xlu0 %v18, 104
    %v20 = vpop.permute.xlu0 %19
    %vm21 = vcmask 917312
    %22 = vst.msk [vmem:[#allocation0] sm:$0x1] %vm21, %v20
    %s23 = scalar_lea.vmem %s0, 12
    %v24 = vld [vmem:[%s23] sm:$0x1]
    %25 = vrot.lane.b32.xlu0 %v24, 96
    %v26 = vpop.permute.xlu0 %25
    %vm27 = vcmask 851712
    %28 = vst.msk [vmem:[#allocation0] sm:$0x1] %vm27, %v26
    %s29 = scalar_lea.vmem %s0, 11
    %v30 = vld [vmem:[%s29] sm:$0x1]
    %31 = vrot.lane.b32.xlu0 %v30, 88
    %v32 = vpop.permute.xlu0 %31
    %vm33 = vcmask 786112
    %34 = vst.msk [vmem:[#allocation0] sm:$0x1] %vm33, %v32
    %s35 = scalar_lea.vmem %s0, 10
    %v36 = vld [vmem:[%s35] sm:$0x1]
    %37 = vrot.lane.b32.xlu0 %v36, 80
    %v38 = vpop.permute.xlu0 %37
    %vm39 = vcmask 720512
    %40 = vst.msk [vmem:[#allocation0] sm:$0x1] %vm39, %v38
    %s41 = scalar_lea.vmem %s0, 9
    %v42 = vld [vmem:[%s41] sm:$0x1]
    %43 = vrot.lane.b32.xlu0 %v42, 72
    %v44 = vpop.permute.xlu0 %43
    %vm45 = vcmask 654912
    %46 = vst.msk [vmem:[#allocation0] sm:$0x1] %vm45, %v44
    %s47 = scalar_lea.vmem %s0, 8
    %v48 = vld [vmem:[%s47] sm:$0x1]
    %49 = vrot.lane.b32.xlu0 %v48, 64
    %v50 = vpop.permute.xlu0 %49
    %vm51 = vcmask 589312
    %52 = vst.msk [vmem:[#allocation0] sm:$0x1] %vm51, %v50
    %s53 = scalar_lea.vmem %s0, 7
    %v54 = vld [vmem:[%s53] sm:$0x1]
    %55 = vrot.lane.b32.xlu0 %v54, 56
    %v56 = vpop.permute.xlu0 %55
    %vm57 = vcmask 523712
    %58 = vst.msk [vmem:[#allocation0] sm:$0x1] %vm57, %v56
    %s59 = scalar_lea.vmem %s0, 6
    %v60 = vld [vmem:[%s59] sm:$0x1]
    %61 = vrot.lane.b32.xlu0 %v60, 48
    %v62 = vpop.permute.xlu0 %61
    %vm63 = vcmask 458112
    %64 = vst.msk [vmem:[#allocation0] sm:$0x1] %vm63, %v62
    %s65 = scalar_lea.vmem %s0, 5
    %v66 = vld [vmem:[%s65] sm:$0x1]
    %67 = vrot.lane.b32.xlu0 %v66, 40
    %v68 = vpop.permute.xlu0 %67
    %vm69 = vcmask 392512
    %70 = vst.msk [vmem:[#allocation0] sm:$0x1] %vm69, %v68
    %s71 = scalar_lea.vmem %s0, 4
    %v72 = vld [vmem:[%s71] sm:$0x1]
    %73 = vrot.lane.b32.xlu0 %v72, 32
    %v74 = vpop.permute.xlu0 %73
    %vm75 = vcmask 326912
    %76 = vst.msk [vmem:[#allocation0] sm:$0x1] %vm75, %v74
    %s77 = scalar_lea.vmem %s0, 3
    %v78 = vld [vmem:[%s77] sm:$0x1]
    %79 = vrot.lane.b32.xlu0 %v78, 24
    %v80 = vpop.permute.xlu0 %79
    %vm81 = vcmask 261312
    %82 = vst.msk [vmem:[#allocation0] sm:$0x1] %vm81, %v80
    %s83 = scalar_lea.vmem %s0, 2
    %v84 = vld [vmem:[%s83] sm:$0x1]
    %85 = vrot.lane.b32.xlu0 %v84, 16
    %v86 = vpop.permute.xlu0 %85
    %vm87 = vcmask 195712
    %88 = vst.msk [vmem:[#allocation0] sm:$0x1] %vm87, %v86
    %s89 = scalar_lea.vmem %s0, 1
    %v90 = vld [vmem:[%s89] sm:$0x1]
    %91 = vrot.lane.b32.xlu0 %v90, 8
    %v92 = vpop.permute.xlu0 %91
    %vm93 = vcmask 130112
    %94 = vst.msk [vmem:[#allocation0] sm:$0x1] %vm93, %v92
    %s96 = sshll.u32 1, 1
    %s97 = ssub.s32 %s96, 1
    %v99 = vld [vmem:[#allocation0] sm:%s97]
    %s100 = sshll.u32 1, 1
    %s101 = ssub.s32 %s100, 1
    %102 = vst [vmem:[%s1] sm:%s101] %v99

// kernel: resnet_generator_forward.31
$region0: #{resnet_generator_forward.31}
  #allocation0 [shape = 'u32[]', space=smem, size = 0x4, offset = 0x4, fixed_abs, tag = 'smem constant byte address 0x4 - core index']
  #allocation1 [shape = 'u32[144,128]{1,0:T(1,128)}', space=vmem, size = 0x12000, scoped, tag = 'internal scratch']
  %s0 = inlined_call_operand.vmem [shape: f32[32,128], index: 0, kind: input, shape index: {}]
  %s1 = inlined_call_operand.vmem [shape: f32[1,128], index: 1, kind: input, shape index: {}]
  %s2 = inlined_call_operand.vmem [shape: f32[1,128], index: 2, kind: input, shape index: {}]
  %s3 = inlined_call_operand.vmem [shape: f32[32,128], index: 3, kind: output, shape index: {}]
  %s4 = sld [smem:[#allocation0]]
  $region22: #{resnet_generator_forward.31} parent=0
    _
  %s6 = ssub.s32 1, %s4
  %s7 = scalar_select 0, %s6, %s4
  // Predicated region
  $region2: #{resnet_generator_forward.31} parent=0 // pred_check
    _
  $region3: #{resnet_generator_forward.31} parent=0 // pred_check_branch
    %9 = sbr.rel (0) target = $region5
  $region4: #{resnet_generator_forward.31} parent=0 // pred_region
    _
  $region5: #{resnet_generator_forward.31} parent=0 // pred_fallthru
    _
  // Predicated region
  $region6: #{resnet_generator_forward.31} parent=0 // pred_check
    _
  $region7: #{resnet_generator_forward.31} parent=0 // pred_check_branch
    %11 = sbr.rel (0) target = $region9
  $region8: #{resnet_generator_forward.31} parent=0 // pred_region
    _
  $region9: #{resnet_generator_forward.31} parent=0 // pred_fallthru
    _
  // Predicated region
  $region10: #{resnet_generator_forward.31} parent=0 // pred_check
    _
  $region11: #{resnet_generator_forward.31} parent=0 // pred_check_branch
    %13 = sbr.rel (0) target = $region13
  $region12: #{resnet_generator_forward.31} parent=0 // pred_region
    _
  $region13: #{resnet_generator_forward.31} parent=0 // pred_fallthru
    _
  %v14 = vld [vmem:[%s0] sm:$0xff]
  %v15 = vld [vmem:[%s0 + $0x8] sm:$0xff]
  %v16 = vld [vmem:[%s0 + $0x10] sm:$0xff]
  %v17 = vld [vmem:[%s0 + $0x18] sm:$0xff]
  %v18 = vld [vmem:[%s1] sm:$0x1]
  %v20 = vlaneseq
  %v21 = vshrl.u32 %v20, 7
  %v22 = vsub.s32 0, %v21
  %v23 = vrot.slane %v18, %v22
  %v25 = vmul.f32 %v14, %v23
  %v26 = vmul.f32 %v15, %v23
  %v27 = vmul.f32 %v16, %v23
  %v28 = vmul.f32 %v17, %v23
  %v29 = vld [vmem:[%s2] sm:$0x1]
  %v31 = vlaneseq
  %v32 = vshrl.u32 %v31, 7
  %v33 = vsub.s32 0, %v32
  %v34 = vrot.slane %v29, %v33
  %v36 = vadd.f32 %v25, %v34
  %v37 = vadd.f32 %v26, %v34
  %v38 = vadd.f32 %v27, %v34
  %v39 = vadd.f32 %v28, %v34
  %v40 = vmax.f32 %v36, 0.0
  %v41 = vmax.f32 %v37, 0.0
  %v42 = vmax.f32 %v38, 0.0
  %v43 = vmax.f32 %v39, 0.0
  %44 = vst [vmem:[%s3] sm:$0xff] %v40
  %45 = vst [vmem:[%s3 + $0x8] sm:$0xff] %v41
  %46 = vst [vmem:[%s3 + $0x10] sm:$0xff] %v42
  %47 = vst [vmem:[%s3 + $0x18] sm:$0xff] %v43
  // Predicated region
  $region14: #{resnet_generator_forward.31} parent=0 // pred_check
    _
  $region15: #{resnet_generator_forward.31} parent=0 // pred_check_branch
    %49 = sbr.rel (0) target = $region17
  $region16: #{resnet_generator_forward.31} parent=0 // pred_region
    _
  $region17: #{resnet_generator_forward.31} parent=0 // pred_fallthru
    _
  // Predicated region
  $region18: #{resnet_generator_forward.31} parent=0 // pred_check
    _
  $region19: #{resnet_generator_forward.31} parent=0 // pred_check_branch
    %51 = sbr.rel (0) target = $region21
  $region20: #{resnet_generator_forward.31} parent=0 // pred_region
    _
  $region21: #{resnet_generator_forward.31} parent=0 // pred_fallthru
    _

// kernel: resnet_generator_forward.32
$region0: #{resnet_generator_forward.32}
  #allocation0 [shape = 'u32[]', space=smem, size = 0x4, offset = 0x4, fixed_abs, tag = 'smem constant byte address 0x4 - core index']
  #allocation1 [shape = 'u32[144,128]{1,0:T(1,128)}', space=vmem, size = 0x12000, scoped, tag = 'internal scratch']
  #allocation2 [shape = 'f32[1,1]{1,0:T(1,128)S(1)}', space=vmem, size = 0x200, scoped, tag = 'scoped memory for resnet_generator_forward.32']
  #allocation3 [shape = 'f32[1,1]{1,0:T(1,128)S(1)}', space=vmem, size = 0x200, scoped, tag = 'scoped memory for resnet_generator_forward.32']
  #allocation4 [shape = 'f32[1,1]{1,0:T(1,128)S(1)}', space=vmem, size = 0x200, scoped, tag = 'scoped memory for resnet_generator_forward.32']
  %s0 = inlined_call_operand.vmem [shape: f32[2,256,8], index: 0, kind: input, shape index: {}]
  %s1 = inlined_call_operand.vmem [shape: f32[8,1], index: 1, kind: input, shape index: {}]
  %s2 = inlined_call_operand.<no memory space> [shape: f32[1,1], index: 2, kind: input, shape index: {}]
  %s3 = inlined_call_operand.vmem [shape: f32[8,1], index: 3, kind: input, shape index: {}]
  %s4 = inlined_call_operand.<no memory space> [shape: f32[1,1], index: 4, kind: input, shape index: {}]
  %s5 = inlined_call_operand.vmem [shape: f32[8,8], index: 5, kind: input, shape index: {}]
  %s6 = inlined_call_operand.vmem [shape: f32[1,8], index: 6, kind: input, shape index: {}]
  %s7 = inlined_call_operand.<no memory space> [shape: f32[1,1], index: 7, kind: input, shape index: {}]
  %s8 = inlined_call_operand.vmem [shape: f32[2,256,8], index: 8, kind: output, shape index: {}]
  %s9 = sld [smem:[#allocation0]]
  $region65: #{resnet_generator_forward.32} parent=0
    _
  %s11 = ssub.s32 1, %s9
  %s12 = scalar_select 0, %s11, %s9
  %v13 = vstv %s2
  %14 = vst [vmem:[#allocation2] sm:$0x1] %v13
  %v15 = vstv %s4
  %16 = vst [vmem:[#allocation3] sm:$0x1] %v15
  %v17 = vstv %s7
  %18 = vst [vmem:[#allocation4] sm:$0x1] %v17
  loop: start=0, step=1, limit=4
  $region2: #{resnet_generator_forward.32} parent=0 // loop_pre_header
    _
  $region3: #{resnet_generator_forward.32} parent=0 // loop_header
    %s20 = sphi 0, %s24
    %p21 = scmp.ge.s32.totalorder %s20, 4
    %s30 = sphi 0, %s32
    %s33 = sphi 0, %s30
    %s34 = sphi 0, %s33
    %s50 = sphi 0, %s34
    %s54 = sphi 0, %s54
    %s56 = sphi 0, %s54
    %s57 = sphi 0, %s56
    %s71 = sphi 0, %s57
    %s75 = sphi 0, %s75
    %s77 = sphi 0, %s75
    %s78 = sphi 0, %s77
    %s92 = sphi 0, %s78
    %s96 = sphi 0, %s96
    %s98 = sphi 0, %s96
    %s99 = sphi 0, %s98
    %s113 = sphi 0, %s99
    %s117 = sphi 0, %s117
    %s119 = sphi 0, %s117
    %s120 = sphi 0, %s119
    %s134 = sphi 0, %s120
    %s138 = sphi 0, %s138
    %s140 = sphi 0, %s138
    %s141 = sphi 0, %s140
    %s155 = sphi 0, %s141
    %s159 = sphi 0, %s159
    %s161 = sphi 0, %s159
    %s162 = sphi 0, %s161
    %s176 = sphi 0, %s162
    %s180 = sphi 0, %s180
    %s182 = sphi 0, %s180
    %s183 = sphi 0, %s182
    %s197 = sphi 0, %s183
    %s203 = sphi 0, %s205
    %s206 = sphi 0, %s203
    %s207 = sphi 0, %s206
    %s223 = sphi 0, %s207
  $region4: #{resnet_generator_forward.32} parent=0 // loop_header_branch
    %23 = sbr.rel (%p21) target = $region8
  $region5: #{resnet_generator_forward.32} parent=0 // loop_body
    %s25 = ssub.s32 %s20, 1
    %s26 = ssub.s32 %s20, 2
    %s27 = sadd.s32 %s20, 1
    %s28 = ssub.s32 %s20, %s27
    %p29 = scmp.eq.s32.totalorder %s28, 0
    %s31 = sadd.s32 %s30, 1
    %s32 = scalar_select %p29, %s30, %s31
    %p35 = pneg %p29
    %p36 = scmp.eq.s32.totalorder %s20, 1
    %p37 = por %p35, %p36
    %p38 = scmp.ne.s32.totalorder %s30, %s33
    %p39 = scmp.eq.s32.totalorder %s20, 0
    %p40 = por %p38, %p39
    %p41 = scmp.ne.s32.totalorder %s30, %s33
    %p42 = scmp.eq.s32.totalorder %s25, 1
    %p43 = por %p41, %p42
    %p44 = scmp.ne.s32.totalorder %s33, %s34
    %p45 = scmp.eq.s32.totalorder %s25, 0
    %p46 = por %p44, %p45
    %p47 = scmp.ne.s32.totalorder %s33, %s34
    %p48 = scmp.eq.s32.totalorder %s26, 1
    %p49 = por %p47, %p48
    %p51 = scmp.ne.s32.totalorder %s34, %s50
    %p52 = scmp.eq.s32.totalorder %s26, 0
    %p53 = por %p51, %p52
    %s55 = sadd.s32 %s54, 1
    %p58 = scmp.eq.s32.totalorder %s20, 1
    %p59 = scmp.ne.s32.totalorder %s54, %s56
    %p60 = scmp.eq.s32.totalorder %s20, 0
    %p61 = por %p59, %p60
    %p62 = scmp.ne.s32.totalorder %s54, %s56
    %p63 = scmp.eq.s32.totalorder %s25, 1
    %p64 = por %p62, %p63
    %p65 = scmp.ne.s32.totalorder %s56, %s57
    %p66 = scmp.eq.s32.totalorder %s25, 0
    %p67 = por %p65, %p66
    %p68 = scmp.ne.s32.totalorder %s56, %s57
    %p69 = scmp.eq.s32.totalorder %s26, 1
    %p70 = por %p68, %p69
    %p72 = scmp.ne.s32.totalorder %s57, %s71
    %p73 = scmp.eq.s32.totalorder %s26, 0
    %p74 = por %p72, %p73
    %s76 = sadd.s32 %s75, 1
    %p79 = scmp.eq.s32.totalorder %s20, 1
    %p80 = scmp.ne.s32.totalorder %s75, %s77
    %p81 = scmp.eq.s32.totalorder %s20, 0
    %p82 = por %p80, %p81
    %p83 = scmp.ne.s32.totalorder %s75, %s77
    %p84 = scmp.eq.s32.totalorder %s25, 1
    %p85 = por %p83, %p84
    %p86 = scmp.ne.s32.totalorder %s77, %s78
    %p87 = scmp.eq.s32.totalorder %s25, 0
    %p88 = por %p86, %p87
    %p89 = scmp.ne.s32.totalorder %s77, %s78
    %p90 = scmp.eq.s32.totalorder %s26, 1
    %p91 = por %p89, %p90
    %p93 = scmp.ne.s32.totalorder %s78, %s92
    %p94 = scmp.eq.s32.totalorder %s26, 0
    %p95 = por %p93, %p94
    %s97 = sadd.s32 %s96, 1
    %p100 = scmp.eq.s32.totalorder %s20, 1
    %p101 = scmp.ne.s32.totalorder %s96, %s98
    %p102 = scmp.eq.s32.totalorder %s20, 0
    %p103 = por %p101, %p102
    %p104 = scmp.ne.s32.totalorder %s96, %s98
    %p105 = scmp.eq.s32.totalorder %s25, 1
    %p106 = por %p104, %p105
    %p107 = scmp.ne.s32.totalorder %s98, %s99
    %p108 = scmp.eq.s32.totalorder %s25, 0
    %p109 = por %p107, %p108
    %p110 = scmp.ne.s32.totalorder %s98, %s99
    %p111 = scmp.eq.s32.totalorder %s26, 1
    %p112 = por %p110, %p111
    %p114 = scmp.ne.s32.totalorder %s99, %s113
    %p115 = scmp.eq.s32.totalorder %s26, 0
    %p116 = por %p114, %p115
    %s118 = sadd.s32 %s117, 1
    %p121 = scmp.eq.s32.totalorder %s20, 1
    %p122 = scmp.ne.s32.totalorder %s117, %s119
    %p123 = scmp.eq.s32.totalorder %s20, 0
    %p124 = por %p122, %p123
    %p125 = scmp.ne.s32.totalorder %s117, %s119
    %p126 = scmp.eq.s32.totalorder %s25, 1
    %p127 = por %p125, %p126
    %p128 = scmp.ne.s32.totalorder %s119, %s120
    %p129 = scmp.eq.s32.totalorder %s25, 0
    %p130 = por %p128, %p129
    %p131 = scmp.ne.s32.totalorder %s119, %s120
    %p132 = scmp.eq.s32.totalorder %s26, 1
    %p133 = por %p131, %p132
    %p135 = scmp.ne.s32.totalorder %s120, %s134
    %p136 = scmp.eq.s32.totalorder %s26, 0
    %p137 = por %p135, %p136
    %s139 = sadd.s32 %s138, 1
    %p142 = scmp.eq.s32.totalorder %s20, 1
    %p143 = scmp.ne.s32.totalorder %s138, %s140
    %p144 = scmp.eq.s32.totalorder %s20, 0
    %p145 = por %p143, %p144
    %p146 = scmp.ne.s32.totalorder %s138, %s140
    %p147 = scmp.eq.s32.totalorder %s25, 1
    %p148 = por %p146, %p147
    %p149 = scmp.ne.s32.totalorder %s140, %s141
    %p150 = scmp.eq.s32.totalorder %s25, 0
    %p151 = por %p149, %p150
    %p152 = scmp.ne.s32.totalorder %s140, %s141
    %p153 = scmp.eq.s32.totalorder %s26, 1
    %p154 = por %p152, %p153
    %p156 = scmp.ne.s32.totalorder %s141, %s155
    %p157 = scmp.eq.s32.totalorder %s26, 0
    %p158 = por %p156, %p157
    %s160 = sadd.s32 %s159, 1
    %p163 = scmp.eq.s32.totalorder %s20, 1
    %p164 = scmp.ne.s32.totalorder %s159, %s161
    %p165 = scmp.eq.s32.totalorder %s20, 0
    %p166 = por %p164, %p165
    %p167 = scmp.ne.s32.totalorder %s159, %s161
    %p168 = scmp.eq.s32.totalorder %s25, 1
    %p169 = por %p167, %p168
    %p170 = scmp.ne.s32.totalorder %s161, %s162
    %p171 = scmp.eq.s32.totalorder %s25, 0
    %p172 = por %p170, %p171
    %p173 = scmp.ne.s32.totalorder %s161, %s162
    %p174 = scmp.eq.s32.totalorder %s26, 1
    %p175 = por %p173, %p174
    %p177 = scmp.ne.s32.totalorder %s162, %s176
    %p178 = scmp.eq.s32.totalorder %s26, 0
    %p179 = por %p177, %p178
    %s181 = sadd.s32 %s180, 1
    %p184 = scmp.eq.s32.totalorder %s20, 1
    %p185 = scmp.ne.s32.totalorder %s180, %s182
    %p186 = scmp.eq.s32.totalorder %s20, 0
    %p187 = por %p185, %p186
    %p188 = scmp.ne.s32.totalorder %s180, %s182
    %p189 = scmp.eq.s32.totalorder %s25, 1
    %p190 = por %p188, %p189
    %p191 = scmp.ne.s32.totalorder %s182, %s183
    %p192 = scmp.eq.s32.totalorder %s25, 0
    %p193 = por %p191, %p192
    %p194 = scmp.ne.s32.totalorder %s182, %s183
    %p195 = scmp.eq.s32.totalorder %s26, 1
    %p196 = por %p194, %p195
    %p198 = scmp.ne.s32.totalorder %s183, %s197
    %p199 = scmp.eq.s32.totalorder %s26, 0
    %p200 = por %p198, %p199
    %s201 = ssub.s32 %s20, %s27
    %p202 = scmp.eq.s32.totalorder %s201, 0
    %s204 = sadd.s32 %s203, 1
    %s205 = scalar_select %p202, %s203, %s204
    %p208 = pneg %p202
    %p209 = scmp.eq.s32.totalorder %s20, 1
    %p210 = por %p208, %p209
    %p211 = scmp.ne.s32.totalorder %s203, %s206
    %p212 = scmp.eq.s32.totalorder %s20, 0
    %p213 = por %p211, %p212
    %p214 = scmp.ne.s32.totalorder %s203, %s206
    %p215 = scmp.eq.s32.totalorder %s25, 1
    %p216 = por %p214, %p215
    %p217 = scmp.ne.s32.totalorder %s206, %s207
    %p218 = scmp.eq.s32.totalorder %s25, 0
    %p219 = por %p217, %p218
    %p220 = scmp.ne.s32.totalorder %s206, %s207
    %p221 = scmp.eq.s32.totalorder %s26, 1
    %p222 = por %p220, %p221
    %p224 = scmp.ne.s32.totalorder %s207, %s223
    %p225 = scmp.eq.s32.totalorder %s26, 0
    %p226 = por %p224, %p225
    %p227 = scmp.le.s32.totalorder 1, %s20
    %p228 = scmp.lt.s32.totalorder %s20, 3
    %p229 = pnand %p227, %p228
    %p230 = pneg %p229
    // Predicated region
    $region9: #{resnet_generator_forward.32} parent=5 // pred_check
      _
    $region10: #{resnet_generator_forward.32} parent=5 // pred_check_branch
      %232 = sbr.rel (%p229) target = $region12
    $region11: #{resnet_generator_forward.32} parent=5 // pred_region
      %s233 = ssub.s32 %s20, 1
      // Predicated region
      $region13: #{resnet_generator_forward.32} parent=11 // pred_check
        %p234 = pneg %p67
      $region14: #{resnet_generator_forward.32} parent=11 // pred_check_branch
        %236 = sbr.rel (%p234) target = $region16
      $region15: #{resnet_generator_forward.32} parent=11 // pred_region
        _
      $region16: #{resnet_generator_forward.32} parent=11 // pred_fallthru
        _
      // Predicated region
      $region17: #{resnet_generator_forward.32} parent=11 // pred_check
        %p237 = pneg %p88
      $region18: #{resnet_generator_forward.32} parent=11 // pred_check_branch
        %239 = sbr.rel (%p237) target = $region20
      $region19: #{resnet_generator_forward.32} parent=11 // pred_region
        _
      $region20: #{resnet_generator_forward.32} parent=11 // pred_fallthru
        _
      // Predicated region
      $region21: #{resnet_generator_forward.32} parent=11 // pred_check
        %p240 = pneg %p109
      $region22: #{resnet_generator_forward.32} parent=11 // pred_check_branch
        %242 = sbr.rel (%p240) target = $region24
      $region23: #{resnet_generator_forward.32} parent=11 // pred_region
        _
      $region24: #{resnet_generator_forward.32} parent=11 // pred_fallthru
        _
      // Predicated region
      $region25: #{resnet_generator_forward.32} parent=11 // pred_check
        %p243 = pneg %p130
      $region26: #{resnet_generator_forward.32} parent=11 // pred_check_branch
        %245 = sbr.rel (%p243) target = $region28
      $region27: #{resnet_generator_forward.32} parent=11 // pred_region
        _
      $region28: #{resnet_generator_forward.32} parent=11 // pred_fallthru
        _
      // Predicated region
      $region29: #{resnet_generator_forward.32} parent=11 // pred_check
        %p246 = pneg %p151
      $region30: #{resnet_generator_forward.32} parent=11 // pred_check_branch
        %248 = sbr.rel (%p246) target = $region32
      $region31: #{resnet_generator_forward.32} parent=11 // pred_region
        _
      $region32: #{resnet_generator_forward.32} parent=11 // pred_fallthru
        _
      // Predicated region
      $region33: #{resnet_generator_forward.32} parent=11 // pred_check
        %p249 = pneg %p172
      $region34: #{resnet_generator_forward.32} parent=11 // pred_check_branch
        %251 = sbr.rel (%p249) target = $region36
      $region35: #{resnet_generator_forward.32} parent=11 // pred_region
        _
      $region36: #{resnet_generator_forward.32} parent=11 // pred_fallthru
        _
      // Predicated region
      $region37: #{resnet_generator_forward.32} parent=11 // pred_check
        %p252 = pneg %p193
      $region38: #{resnet_generator_forward.32} parent=11 // pred_check_branch
        %254 = sbr.rel (%p252) target = $region40
      $region39: #{resnet_generator_forward.32} parent=11 // pred_region
        _
      $region40: #{resnet_generator_forward.32} parent=11 // pred_fallthru
        _
    $region12: #{resnet_generator_forward.32} parent=5 // pred_fallthru
      _
    %p255 = scmp.lt.s32.totalorder %s20, 2
    // Predicated region
    $region41: #{resnet_generator_forward.32} parent=5 // pred_check
      %p256 = pneg %p255
    $region42: #{resnet_generator_forward.32} parent=5 // pred_check_branch
      %258 = sbr.rel (%p256) target = $region44
    $region43: #{resnet_generator_forward.32} parent=5 // pred_region
      // Predicated region
      $region45: #{resnet_generator_forward.32} parent=43 // pred_check
        %p259 = pneg %p40
      $region46: #{resnet_generator_forward.32} parent=43 // pred_check_branch
        %261 = sbr.rel (%p259) target = $region48
      $region47: #{resnet_generator_forward.32} parent=43 // pred_region
        %p262 = scmp.lt.s32.totalorder %s20, 1
        %s263 = scalar_select %p262, %s20, 1
        %s264 = smul.addr %s263, 32
        %s265 = smul.addr %s264, 8
        %s266 = scalar_lea.vmem %s0, %s265
      $region48: #{resnet_generator_forward.32} parent=43 // pred_fallthru
        _
    $region44: #{resnet_generator_forward.32} parent=5 // pred_fallthru
      _
    %p267 = scmp.le.s32.totalorder 1, %s20
    %p268 = scmp.lt.s32.totalorder %s20, 3
    %p269 = pnand %p267, %p268
    %p270 = pneg %p269
    // Predicated region
    $region49: #{resnet_generator_forward.32} parent=5 // pred_check
      _
    $region50: #{resnet_generator_forward.32} parent=5 // pred_check_branch
      %272 = sbr.rel (%p269) target = $region52
    $region51: #{resnet_generator_forward.32} parent=5 // pred_region
      %s273 = ssub.s32 %s20, 1
      %p274 = scmp.lt.s32.totalorder %s25, 1
      %s275 = scalar_select %p274, %s25, 1
      %s276 = smul.addr %s275, 32
      %s277 = smul.addr %s276, 8
      %s278 = scalar_lea.vmem %s0, %s277
      %p279 = pneg %p46
      %p280 = pneg %p43
      %p281 = pneg %p67
      %p282 = pneg %p64
      %p283 = pneg %p88
      %p284 = pneg %p85
      %p285 = pneg %p109
      %p286 = pneg %p106
      %p287 = pneg %p130
      %p288 = pneg %p127
      %p289 = pneg %p151
      %p290 = pneg %p148
      %p291 = pneg %p172
      %p292 = pneg %p169
      %p293 = pneg %p193
      %p294 = pneg %p190
      %p295 = pneg %p219
      %p296 = pneg %p216
      %p297 = scmp.lt.s32.totalorder %s25, 1
      %s298 = scalar_select %p297, %s25, 1
      %s299 = smul.addr %s298, 32
      %s300 = smul.addr %s299, 8
      %s301 = scalar_lea.vmem %s8, %s300
      %p302 = scmp.lt.s32.totalorder %s25, 1
      %s303 = scalar_select %p302, %s25, 1
      %s304 = smul.addr %s303, 32
      %s305 = smul.addr %s304, 8
      %s306 = scalar_lea.vmem %s0, %s305
      %p307 = scmp.lt.s32.totalorder %s25, 1
      %s308 = scalar_select %p307, %s25, 1
      %s309 = smul.addr %s308, 32
      %s310 = smul.addr %s309, 8
      %s311 = scalar_lea.vmem %s8, %s310
      %v312 = vld [vmem:[%s306] sm:$0xff]
      %v313 = vld [vmem:[%s306 + $0x8] sm:$0xff]
      %v314 = vld [vmem:[%s306 + $0x10] sm:$0xff]
      %v315 = vld [vmem:[%s306 + $0x18] sm:$0xff]
      %v316 = vld [vmem:[%s306 + $0x20] sm:$0xff]
      %v317 = vld [vmem:[%s306 + $0x28] sm:$0xff]
      %v318 = vld [vmem:[%s306 + $0x30] sm:$0xff]
      %v319 = vld [vmem:[%s306 + $0x38] sm:$0xff]
      %v320 = vld [vmem:[%s306 + $0x40] sm:$0xff]
      %v321 = vld [vmem:[%s306 + $0x48] sm:$0xff]
      %v322 = vld [vmem:[%s306 + $0x50] sm:$0xff]
      %v323 = vld [vmem:[%s306 + $0x58] sm:$0xff]
      %v324 = vld [vmem:[%s306 + $0x60] sm:$0xff]
      %v325 = vld [vmem:[%s306 + $0x68] sm:$0xff]
      %v326 = vld [vmem:[%s306 + $0x70] sm:$0xff]
      %v327 = vld [vmem:[%s306 + $0x78] sm:$0xff]
      %v328 = vld [vmem:[%s306 + $0x80] sm:$0xff]
      %v329 = vld [vmem:[%s306 + $0x88] sm:$0xff]
      %v330 = vld [vmem:[%s306 + $0x90] sm:$0xff]
      %v331 = vld [vmem:[%s306 + $0x98] sm:$0xff]
      %v332 = vld [vmem:[%s306 + $0xa0] sm:$0xff]
      %v333 = vld [vmem:[%s306 + $0xa8] sm:$0xff]
      %v334 = vld [vmem:[%s306 + $0xb0] sm:$0xff]
      %v335 = vld [vmem:[%s306 + $0xb8] sm:$0xff]
      %v336 = vld [vmem:[%s306 + $0xc0] sm:$0xff]
      %v337 = vld [vmem:[%s306 + $0xc8] sm:$0xff]
      %v338 = vld [vmem:[%s306 + $0xd0] sm:$0xff]
      %v339 = vld [vmem:[%s306 + $0xd8] sm:$0xff]
      %v340 = vld [vmem:[%s306 + $0xe0] sm:$0xff]
      %v341 = vld [vmem:[%s306 + $0xe8] sm:$0xff]
      %v342 = vld [vmem:[%s306 + $0xf0] sm:$0xff]
      %v343 = vld [vmem:[%s306 + $0xf8] sm:$0xff]
      %v344 = vld [vmem:[%s1] sm:$0xff]
      %v345 = vld [vmem:[#allocation2] sm:$0x1]
      %v347 = vlaneseq
      %v348 = vshrl.u32 %v347, 7
      %v349 = vsub.s32 0, %v348
      %v350 = vrot.slane %v345, %v349
      %vm352 = vcmask 64512
      %v354 = vsel %vm352, %v312, 0
      %v357 = vsel %vm352, %v313, 0
      %v360 = vsel %vm352, %v314, 0
      %v363 = vsel %vm352, %v315, 0
      %v366 = vsel %vm352, %v316, 0
      %v369 = vsel %vm352, %v317, 0
      %v372 = vsel %vm352, %v318, 0
      %v375 = vsel %vm352, %v319, 0
      %v378 = vsel %vm352, %v320, 0
      %v381 = vsel %vm352, %v321, 0
      %v384 = vsel %vm352, %v322, 0
      %v387 = vsel %vm352, %v323, 0
      %v390 = vsel %vm352, %v324, 0
      %v393 = vsel %vm352, %v325, 0
      %v396 = vsel %vm352, %v326, 0
      %v399 = vsel %vm352, %v327, 0
      %v402 = vsel %vm352, %v328, 0
      %v405 = vsel %vm352, %v329, 0
      %v408 = vsel %vm352, %v330, 0
      %v411 = vsel %vm352, %v331, 0
      %v414 = vsel %vm352, %v332, 0
      %v417 = vsel %vm352, %v333, 0
      %v420 = vsel %vm352, %v334, 0
      %v423 = vsel %vm352, %v335, 0
      %v426 = vsel %vm352, %v336, 0
      %v429 = vsel %vm352, %v337, 0
      %v432 = vsel %vm352, %v338, 0
      %v435 = vsel %vm352, %v339, 0
      %v438 = vsel %vm352, %v340, 0
      %v441 = vsel %vm352, %v341, 0
      %v444 = vsel %vm352, %v342, 0
      %v447 = vsel %vm352, %v343, 0
      %449 = vmatprep.subr.mxu0 0.0
      %450 = vmatpush1.msra.mxu0 0.0
      %451 = vmatprep.subr.mxu0 0.0
      %452 = vmatpush1.msra.mxu0 0.0
      %453 = vmatprep.subr.mxu0 0.0
      %454 = vmatpush1.msra.mxu0 0.0
      %455 = vmatprep.subr.mxu0 0.0
      %456 = vmatpush1.msra.mxu0 0.0
      %457 = vmatprep.subr.mxu0 0.0
      %458 = vmatpush1.msra.mxu0 0.0
      %459 = vmatprep.subr.mxu0 0.0
      %460 = vmatpush1.msra.mxu0 0.0
      %461 = vmatprep.subr.mxu0 0.0
      %462 = vmatpush1.msra.mxu0 0.0
      %463 = vmatprep.subr.mxu0 0.0
      %464 = vmatpush1.msra.mxu0 0.0
      %465 = vmatprep.subr.mxu0 0.0
      %466 = vmatpush1.msra.mxu0 0.0
      %467 = vmatprep.subr.mxu0 0.0
      %468 = vmatpush1.msra.mxu0 0.0
      %469 = vmatprep.subr.mxu0 0.0
      %470 = vmatpush1.msra.mxu0 0.0
      %471 = vmatprep.subr.mxu0 0.0
      %472 = vmatpush1.msra.mxu0 0.0
      %473 = vmatprep.subr.mxu0 0.0
      %474 = vmatpush1.msra.mxu0 0.0
      %475 = vmatprep.subr.mxu0 0.0
      %476 = vmatpush1.msra.mxu0 0.0
      %477 = vmatprep.subr.mxu0 0.0
      %478 = vmatpush1.msra.mxu0 0.0
      %479 = vmatprep.subr.mxu0 0.0
      %480 = vmatpush1.msra.mxu0 %v344
      %481 = vmatprep.subr.mxu0 0.0
      %482 = vmatpush2.msra.mxu0 0.0
      %483 = vmatprep.subr.mxu0 0.0
      %484 = vmatpush2.msra.mxu0 0.0
      %485 = vmatprep.subr.mxu0 0.0
      %486 = vmatpush2.msra.mxu0 0.0
      %487 = vmatprep.subr.mxu0 0.0
      %488 = vmatpush2.msra.mxu0 0.0
      %489 = vmatprep.subr.mxu0 0.0
      %490 = vmatpush2.msra.mxu0 0.0
      %491 = vmatprep.subr.mxu0 0.0
      %492 = vmatpush2.msra.mxu0 0.0
      %493 = vmatprep.subr.mxu0 0.0
      %494 = vmatpush2.msra.mxu0 0.0
      %495 = vmatprep.subr.mxu0 0.0
      %496 = vmatpush2.msra.mxu0 0.0
      %497 = vmatprep.subr.mxu0 0.0
      %498 = vmatpush2.msra.mxu0 0.0
      %499 = vmatprep.subr.mxu0 0.0
      %500 = vmatpush2.msra.mxu0 0.0
      %501 = vmatprep.subr.mxu0 0.0
      %502 = vmatpush2.msra.mxu0 0.0
      %503 = vmatprep.subr.mxu0 0.0
      %504 = vmatpush2.msra.mxu0 0.0
      %505 = vmatprep.subr.mxu0 0.0
      %506 = vmatpush2.msra.mxu0 0.0
      %507 = vmatprep.subr.mxu0 0.0
      %508 = vmatpush2.msra.mxu0 0.0
      %509 = vmatprep.subr.mxu0 0.0
      %510 = vmatpush2.msra.mxu0 0.0
      %511 = vmatprep.subr.mxu0 0.0
      %512 = vmatpush2.msra.mxu0 0.0
      %513 = vmatprep.mubr.f32.mxu0 0.0
      %514 = vmatmul.mubr.f32.gmra.mxu0 %v354
      %v515 = vpop.f32.mrf.mxu0
      %v516 = vadd.f32 %v350, %v515
      %v517 = vpop.f32.mrf.mxu0
      %518 = vmatprep.mubr.f32.mxu0 0.0
      %519 = vmatmul.mubr.f32.gmra.mxu0 %v357
      %v520 = vpop.f32.mrf.mxu0
      %v521 = vadd.f32 %v350, %v520
      %v522 = vpop.f32.mrf.mxu0
      %523 = vmatprep.mubr.f32.mxu0 0.0
      %524 = vmatmul.mubr.f32.gmra.mxu0 %v360
      %v525 = vpop.f32.mrf.mxu0
      %v526 = vadd.f32 %v350, %v525
      %v527 = vpop.f32.mrf.mxu0
      %528 = vmatprep.mubr.f32.mxu0 0.0
      %529 = vmatmul.mubr.f32.gmra.mxu0 %v363
      %v530 = vpop.f32.mrf.mxu0
      %v531 = vadd.f32 %v350, %v530
      %v532 = vpop.f32.mrf.mxu0
      %533 = vmatprep.mubr.f32.mxu0 0.0
      %534 = vmatmul.mubr.f32.gmra.mxu0 %v366
      %v535 = vpop.f32.mrf.mxu0
      %v536 = vadd.f32 %v350, %v535
      %v537 = vpop.f32.mrf.mxu0
      %538 = vmatprep.mubr.f32.mxu0 0.0
      %539 = vmatmul.mubr.f32.gmra.mxu0 %v369
      %v540 = vpop.f32.mrf.mxu0
      %v541 = vadd.f32 %v350, %v540
      %v542 = vpop.f32.mrf.mxu0
      %543 = vmatprep.mubr.f32.mxu0 0.0
      %544 = vmatmul.mubr.f32.gmra.mxu0 %v372
      %v545 = vpop.f32.mrf.mxu0
      %v546 = vadd.f32 %v350, %v545
      %v547 = vpop.f32.mrf.mxu0
      %548 = vmatprep.mubr.f32.mxu0 0.0
      %549 = vmatmul.mubr.f32.gmra.mxu0 %v375
      %v550 = vpop.f32.mrf.mxu0
      %v551 = vadd.f32 %v350, %v550
      %v552 = vpop.f32.mrf.mxu0
      %553 = vmatprep.mubr.f32.mxu0 0.0
      %554 = vmatmul.mubr.f32.gmra.mxu0 %v378
      %v555 = vpop.f32.mrf.mxu0
      %v556 = vadd.f32 %v350, %v555
      %v557 = vpop.f32.mrf.mxu0
      %558 = vmatprep.mubr.f32.mxu0 0.0
      %559 = vmatmul.mubr.f32.gmra.mxu0 %v381
      %v560 = vpop.f32.mrf.mxu0
      %v561 = vadd.f32 %v350, %v560
      %v562 = vpop.f32.mrf.mxu0
      %563 = vmatprep.mubr.f32.mxu0 0.0
      %564 = vmatmul.mubr.f32.gmra.mxu0 %v384
      %v565 = vpop.f32.mrf.mxu0
      %v566 = vadd.f32 %v350, %v565
      %v567 = vpop.f32.mrf.mxu0
      %568 = vmatprep.mubr.f32.mxu0 0.0
      %569 = vmatmul.mubr.f32.gmra.mxu0 %v387
      %v570 = vpop.f32.mrf.mxu0
      %v571 = vadd.f32 %v350, %v570
      %v572 = vpop.f32.mrf.mxu0
      %573 = vmatprep.mubr.f32.mxu0 0.0
      %574 = vmatmul.mubr.f32.gmra.mxu0 %v390
      %v575 = vpop.f32.mrf.mxu0
      %v576 = vadd.f32 %v350, %v575
      %v577 = vpop.f32.mrf.mxu0
      %578 = vmatprep.mubr.f32.mxu0 0.0
      %579 = vmatmul.mubr.f32.gmra.mxu0 %v393
      %v580 = vpop.f32.mrf.mxu0
      %v581 = vadd.f32 %v350, %v580
      %v582 = vpop.f32.mrf.mxu0
      %583 = vmatprep.mubr.f32.mxu0 0.0
      %584 = vmatmul.mubr.f32.gmra.mxu0 %v396
      %v585 = vpop.f32.mrf.mxu0
      %v586 = vadd.f32 %v350, %v585
      %v587 = vpop.f32.mrf.mxu0
      %588 = vmatprep.mubr.f32.mxu0 0.0
      %589 = vmatmul.mubr.f32.gmra.mxu0 %v399
      %v590 = vpop.f32.mrf.mxu0
      %v591 = vadd.f32 %v350, %v590
      %v592 = vpop.f32.mrf.mxu0
      %593 = vmatprep.mubr.f32.mxu0 0.0
      %594 = vmatmul.mubr.f32.gmra.mxu0 %v402
      %v595 = vpop.f32.mrf.mxu0
      %v596 = vadd.f32 %v350, %v595
      %v597 = vpop.f32.mrf.mxu0
      %598 = vmatprep.mubr.f32.mxu0 0.0
      %599 = vmatmul.mubr.f32.gmra.mxu0 %v405
      %v600 = vpop.f32.mrf.mxu0
      %v601 = vadd.f32 %v350, %v600
      %v602 = vpop.f32.mrf.mxu0
      %603 = vmatprep.mubr.f32.mxu0 0.0
      %604 = vmatmul.mubr.f32.gmra.mxu0 %v408
      %v605 = vpop.f32.mrf.mxu0
      %v606 = vadd.f32 %v350, %v605
      %v607 = vpop.f32.mrf.mxu0
      %608 = vmatprep.mubr.f32.mxu0 0.0
      %609 = vmatmul.mubr.f32.gmra.mxu0 %v411
      %v610 = vpop.f32.mrf.mxu0
      %v611 = vadd.f32 %v350, %v610
      %v612 = vpop.f32.mrf.mxu0
      %613 = vmatprep.mubr.f32.mxu0 0.0
      %614 = vmatmul.mubr.f32.gmra.mxu0 %v414
      %v615 = vpop.f32.mrf.mxu0
      %v616 = vadd.f32 %v350, %v615
      %v617 = vpop.f32.mrf.mxu0
      %618 = vmatprep.mubr.f32.mxu0 0.0
      %619 = vmatmul.mubr.f32.gmra.mxu0 %v417
      %v620 = vpop.f32.mrf.mxu0
      %v621 = vadd.f32 %v350, %v620
      %v622 = vpop.f32.mrf.mxu0
      %623 = vmatprep.mubr.f32.mxu0 0.0
      %624 = vmatmul.mubr.f32.gmra.mxu0 %v420
      %v625 = vpop.f32.mrf.mxu0
      %v626 = vadd.f32 %v350, %v625
      %v627 = vpop.f32.mrf.mxu0
      %628 = vmatprep.mubr.f32.mxu0 0.0
      %629 = vmatmul.mubr.f32.gmra.mxu0 %v423
      %v630 = vpop.f32.mrf.mxu0
      %v631 = vadd.f32 %v350, %v630
      %v632 = vpop.f32.mrf.mxu0
      %633 = vmatprep.mubr.f32.mxu0 0.0
      %634 = vmatmul.mubr.f32.gmra.mxu0 %v426
      %v635 = vpop.f32.mrf.mxu0
      %v636 = vadd.f32 %v350, %v635
      %v637 = vpop.f32.mrf.mxu0
      %638 = vmatprep.mubr.f32.mxu0 0.0
      %639 = vmatmul.mubr.f32.gmra.mxu0 %v429
      %v640 = vpop.f32.mrf.mxu0
      %v641 = vadd.f32 %v350, %v640
      %v642 = vpop.f32.mrf.mxu0
      %643 = vmatprep.mubr.f32.mxu0 0.0
      %644 = vmatmul.mubr.f32.gmra.mxu0 %v432
      %v645 = vpop.f32.mrf.mxu0
      %v646 = vadd.f32 %v350, %v645
      %v647 = vpop.f32.mrf.mxu0
      %648 = vmatprep.mubr.f32.mxu0 0.0
      %649 = vmatmul.mubr.f32.gmra.mxu0 %v435
      %v650 = vpop.f32.mrf.mxu0
      %v651 = vadd.f32 %v350, %v650
      %v652 = vpop.f32.mrf.mxu0
      %653 = vmatprep.mubr.f32.mxu0 0.0
      %654 = vmatmul.mubr.f32.gmra.mxu0 %v438
      %v655 = vpop.f32.mrf.mxu0
      %v656 = vadd.f32 %v350, %v655
      %v657 = vpop.f32.mrf.mxu0
      %658 = vmatprep.mubr.f32.mxu0 0.0
      %659 = vmatmul.mubr.f32.gmra.mxu0 %v441
      %v660 = vpop.f32.mrf.mxu0
      %v661 = vadd.f32 %v350, %v660
      %v662 = vpop.f32.mrf.mxu0
      %663 = vmatprep.mubr.f32.mxu0 0.0
      %664 = vmatmul.mubr.f32.gmra.mxu0 %v444
      %v665 = vpop.f32.mrf.mxu0
      %v666 = vadd.f32 %v350, %v665
      %v667 = vpop.f32.mrf.mxu0
      %668 = vmatprep.mubr.f32.mxu0 0.0
      %669 = vmatmul.mubr.f32.gmra.mxu0 %v447
      %v670 = vpop.f32.mrf.mxu0
      %v671 = vadd.f32 %v350, %v670
      %v672 = vpop.f32.mrf.mxu0
      %673 = vdwg.mxu0
      %v674 = vld [vmem:[%s3] sm:$0xff]
      %v675 = vld [vmem:[#allocation3] sm:$0x1]
      %v677 = vlaneseq
      %v678 = vshrl.u32 %v677, 7
      %v679 = vsub.s32 0, %v678
      %v680 = vrot.slane %v675, %v679
      %682 = vmatprep.subr.mxu0 0.0
      %683 = vmatpush1.msra.mxu0 0.0
      %684 = vmatprep.subr.mxu0 0.0
      %685 = vmatpush1.msra.mxu0 0.0
      %686 = vmatprep.subr.mxu0 0.0
      %687 = vmatpush1.msra.mxu0 0.0
      %688 = vmatprep.subr.mxu0 0.0
      %689 = vmatpush1.msra.mxu0 0.0
      %690 = vmatprep.subr.mxu0 0.0
      %691 = vmatpush1.msra.mxu0 0.0
      %692 = vmatprep.subr.mxu0 0.0
      %693 = vmatpush1.msra.mxu0 0.0
      %694 = vmatprep.subr.mxu0 0.0
      %695 = vmatpush1.msra.mxu0 0.0
      %696 = vmatprep.subr.mxu0 0.0
      %697 = vmatpush1.msra.mxu0 0.0
      %698 = vmatprep.subr.mxu0 0.0
      %699 = vmatpush1.msra.mxu0 0.0
      %700 = vmatprep.subr.mxu0 0.0
      %701 = vmatpush1.msra.mxu0 0.0
      %702 = vmatprep.subr.mxu0 0.0
      %703 = vmatpush1.msra.mxu0 0.0
      %704 = vmatprep.subr.mxu0 0.0
      %705 = vmatpush1.msra.mxu0 0.0
      %706 = vmatprep.subr.mxu0 0.0
      %707 = vmatpush1.msra.mxu0 0.0
      %708 = vmatprep.subr.mxu0 0.0
      %709 = vmatpush1.msra.mxu0 0.0
      %710 = vmatprep.subr.mxu0 0.0
      %711 = vmatpush1.msra.mxu0 0.0
      %712 = vmatprep.subr.mxu0 0.0
      %713 = vmatpush1.msra.mxu0 %v674
      %714 = vmatprep.subr.mxu0 0.0
      %715 = vmatpush2.msra.mxu0 0.0
      %716 = vmatprep.subr.mxu0 0.0
      %717 = vmatpush2.msra.mxu0 0.0
      %718 = vmatprep.subr.mxu0 0.0
      %719 = vmatpush2.msra.mxu0 0.0
      %720 = vmatprep.subr.mxu0 0.0
      %721 = vmatpush2.msra.mxu0 0.0
      %722 = vmatprep.subr.mxu0 0.0
      %723 = vmatpush2.msra.mxu0 0.0
      %724 = vmatprep.subr.mxu0 0.0
      %725 = vmatpush2.msra.mxu0 0.0
      %726 = vmatprep.subr.mxu0 0.0
      %727 = vmatpush2.msra.mxu0 0.0
      %728 = vmatprep.subr.mxu0 0.0
      %729 = vmatpush2.msra.mxu0 0.0
      %730 = vmatprep.subr.mxu0 0.0
      %731 = vmatpush2.msra.mxu0 0.0
      %732 = vmatprep.subr.mxu0 0.0
      %733 = vmatpush2.msra.mxu0 0.0
      %734 = vmatprep.subr.mxu0 0.0
      %735 = vmatpush2.msra.mxu0 0.0
      %736 = vmatprep.subr.mxu0 0.0
      %737 = vmatpush2.msra.mxu0 0.0
      %738 = vmatprep.subr.mxu0 0.0
      %739 = vmatpush2.msra.mxu0 0.0
      %740 = vmatprep.subr.mxu0 0.0
      %741 = vmatpush2.msra.mxu0 0.0
      %742 = vmatprep.subr.mxu0 0.0
      %743 = vmatpush2.msra.mxu0 0.0
      %744 = vmatprep.subr.mxu0 0.0
      %745 = vmatpush2.msra.mxu0 0.0
      %746 = vmatprep.mubr.f32.mxu0 0.0
      %747 = vmatmul.mubr.f32.gmra.mxu0 %v354
      %v748 = vpop.f32.mrf.mxu0
      %v749 = vadd.f32 %v680, %v748
      %v750 = vpop.f32.mrf.mxu0
      %751 = vmatprep.mubr.f32.mxu0 0.0
      %752 = vmatmul.mubr.f32.gmra.mxu0 %v357
      %v753 = vpop.f32.mrf.mxu0
      %v754 = vadd.f32 %v680, %v753
      %v755 = vpop.f32.mrf.mxu0
      %756 = vmatprep.mubr.f32.mxu0 0.0
      %757 = vmatmul.mubr.f32.gmra.mxu0 %v360
      %v758 = vpop.f32.mrf.mxu0
      %v759 = vadd.f32 %v680, %v758
      %v760 = vpop.f32.mrf.mxu0
      %761 = vmatprep.mubr.f32.mxu0 0.0
      %762 = vmatmul.mubr.f32.gmra.mxu0 %v363
      %v763 = vpop.f32.mrf.mxu0
      %v764 = vadd.f32 %v680, %v763
      %v765 = vpop.f32.mrf.mxu0
      %766 = vmatprep.mubr.f32.mxu0 0.0
      %767 = vmatmul.mubr.f32.gmra.mxu0 %v366
      %v768 = vpop.f32.mrf.mxu0
      %v769 = vadd.f32 %v680, %v768
      %v770 = vpop.f32.mrf.mxu0
      %771 = vmatprep.mubr.f32.mxu0 0.0
      %772 = vmatmul.mubr.f32.gmra.mxu0 %v369
      %v773 = vpop.f32.mrf.mxu0
      %v774 = vadd.f32 %v680, %v773
      %v775 = vpop.f32.mrf.mxu0
      %776 = vmatprep.mubr.f32.mxu0 0.0
      %777 = vmatmul.mubr.f32.gmra.mxu0 %v372
      %v778 = vpop.f32.mrf.mxu0
      %v779 = vadd.f32 %v680, %v778
      %v780 = vpop.f32.mrf.mxu0
      %781 = vmatprep.mubr.f32.mxu0 0.0
      %782 = vmatmul.mubr.f32.gmra.mxu0 %v375
      %v783 = vpop.f32.mrf.mxu0
      %v784 = vadd.f32 %v680, %v783
      %v785 = vpop.f32.mrf.mxu0
      %786 = vmatprep.mubr.f32.mxu0 0.0
      %787 = vmatmul.mubr.f32.gmra.mxu0 %v378
      %v788 = vpop.f32.mrf.mxu0
      %v789 = vadd.f32 %v680, %v788
      %v790 = vpop.f32.mrf.mxu0
      %791 = vmatprep.mubr.f32.mxu0 0.0
      %792 = vmatmul.mubr.f32.gmra.mxu0 %v381
      %v793 = vpop.f32.mrf.mxu0
      %v794 = vadd.f32 %v680, %v793
      %v795 = vpop.f32.mrf.mxu0
      %796 = vmatprep.mubr.f32.mxu0 0.0
      %797 = vmatmul.mubr.f32.gmra.mxu0 %v384
      %v798 = vpop.f32.mrf.mxu0
      %v799 = vadd.f32 %v680, %v798
      %v800 = vpop.f32.mrf.mxu0
      %801 = vmatprep.mubr.f32.mxu0 0.0
      %802 = vmatmul.mubr.f32.gmra.mxu0 %v387
      %v803 = vpop.f32.mrf.mxu0
      %v804 = vadd.f32 %v680, %v803
      %v805 = vpop.f32.mrf.mxu0
      %806 = vmatprep.mubr.f32.mxu0 0.0
      %807 = vmatmul.mubr.f32.gmra.mxu0 %v390
      %v808 = vpop.f32.mrf.mxu0
      %v809 = vadd.f32 %v680, %v808
      %v810 = vpop.f32.mrf.mxu0
      %811 = vmatprep.mubr.f32.mxu0 0.0
      %812 = vmatmul.mubr.f32.gmra.mxu0 %v393
      %v813 = vpop.f32.mrf.mxu0
      %v814 = vadd.f32 %v680, %v813
      %v815 = vpop.f32.mrf.mxu0
      %816 = vmatprep.mubr.f32.mxu0 0.0
      %817 = vmatmul.mubr.f32.gmra.mxu0 %v396
      %v818 = vpop.f32.mrf.mxu0
      %v819 = vadd.f32 %v680, %v818
      %v820 = vpop.f32.mrf.mxu0
      %821 = vmatprep.mubr.f32.mxu0 0.0
      %822 = vmatmul.mubr.f32.gmra.mxu0 %v399
      %v823 = vpop.f32.mrf.mxu0
      %v824 = vadd.f32 %v680, %v823
      %v825 = vpop.f32.mrf.mxu0
      %826 = vmatprep.mubr.f32.mxu0 0.0
      %827 = vmatmul.mubr.f32.gmra.mxu0 %v402
      %v828 = vpop.f32.mrf.mxu0
      %v829 = vadd.f32 %v680, %v828
      %v830 = vpop.f32.mrf.mxu0
      %831 = vmatprep.mubr.f32.mxu0 0.0
      %832 = vmatmul.mubr.f32.gmra.mxu0 %v405
      %v833 = vpop.f32.mrf.mxu0
      %v834 = vadd.f32 %v680, %v833
      %v835 = vpop.f32.mrf.mxu0
      %836 = vmatprep.mubr.f32.mxu0 0.0
      %837 = vmatmul.mubr.f32.gmra.mxu0 %v408
      %v838 = vpop.f32.mrf.mxu0
      %v839 = vadd.f32 %v680, %v838
      %v840 = vpop.f32.mrf.mxu0
      %841 = vmatprep.mubr.f32.mxu0 0.0
      %842 = vmatmul.mubr.f32.gmra.mxu0 %v411
      %v843 = vpop.f32.mrf.mxu0
      %v844 = vadd.f32 %v680, %v843
      %v845 = vpop.f32.mrf.mxu0
      %846 = vmatprep.mubr.f32.mxu0 0.0
      %847 = vmatmul.mubr.f32.gmra.mxu0 %v414
      %v848 = vpop.f32.mrf.mxu0
      %v849 = vadd.f32 %v680, %v848
      %v850 = vpop.f32.mrf.mxu0
      %851 = vmatprep.mubr.f32.mxu0 0.0
      %852 = vmatmul.mubr.f32.gmra.mxu0 %v417
      %v853 = vpop.f32.mrf.mxu0
      %v854 = vadd.f32 %v680, %v853
      %v855 = vpop.f32.mrf.mxu0
      %856 = vmatprep.mubr.f32.mxu0 0.0
      %857 = vmatmul.mubr.f32.gmra.mxu0 %v420
      %v858 = vpop.f32.mrf.mxu0
      %v859 = vadd.f32 %v680, %v858
      %v860 = vpop.f32.mrf.mxu0
      %861 = vmatprep.mubr.f32.mxu0 0.0
      %862 = vmatmul.mubr.f32.gmra.mxu0 %v423
      %v863 = vpop.f32.mrf.mxu0
      %v864 = vadd.f32 %v680, %v863
      %v865 = vpop.f32.mrf.mxu0
      %866 = vmatprep.mubr.f32.mxu0 0.0
      %867 = vmatmul.mubr.f32.gmra.mxu0 %v426
      %v868 = vpop.f32.mrf.mxu0
      %v869 = vadd.f32 %v680, %v868
      %v870 = vpop.f32.mrf.mxu0
      %871 = vmatprep.mubr.f32.mxu0 0.0
      %872 = vmatmul.mubr.f32.gmra.mxu0 %v429
      %v873 = vpop.f32.mrf.mxu0
      %v874 = vadd.f32 %v680, %v873
      %v875 = vpop.f32.mrf.mxu0
      %876 = vmatprep.mubr.f32.mxu0 0.0
      %877 = vmatmul.mubr.f32.gmra.mxu0 %v432
      %v878 = vpop.f32.mrf.mxu0
      %v879 = vadd.f32 %v680, %v878
      %v880 = vpop.f32.mrf.mxu0
      %881 = vmatprep.mubr.f32.mxu0 0.0
      %882 = vmatmul.mubr.f32.gmra.mxu0 %v435
      %v883 = vpop.f32.mrf.mxu0
      %v884 = vadd.f32 %v680, %v883
      %v885 = vpop.f32.mrf.mxu0
      %886 = vmatprep.mubr.f32.mxu0 0.0
      %887 = vmatmul.mubr.f32.gmra.mxu0 %v438
      %v888 = vpop.f32.mrf.mxu0
      %v889 = vadd.f32 %v680, %v888
      %v890 = vpop.f32.mrf.mxu0
      %891 = vmatprep.mubr.f32.mxu0 0.0
      %892 = vmatmul.mubr.f32.gmra.mxu0 %v441
      %v893 = vpop.f32.mrf.mxu0
      %v894 = vadd.f32 %v680, %v893
      %v895 = vpop.f32.mrf.mxu0
      %896 = vmatprep.mubr.f32.mxu0 0.0
      %897 = vmatmul.mubr.f32.gmra.mxu0 %v444
      %v898 = vpop.f32.mrf.mxu0
      %v899 = vadd.f32 %v680, %v898
      %v900 = vpop.f32.mrf.mxu0
      %901 = vmatprep.mubr.f32.mxu0 0.0
      %902 = vmatmul.mubr.f32.gmra.mxu0 %v447
      %v903 = vpop.f32.mrf.mxu0
      %v904 = vadd.f32 %v680, %v903
      %v905 = vpop.f32.mrf.mxu0
      %906 = vdwg.mxu0
      %v907 = vld [vmem:[%s5] sm:$0xff]
      %v908 = vld [vmem:[%s6] sm:$0x1]
      %v910 = vlaneseq
      %v911 = vshrl.u32 %v910, 7
      %v912 = vsub.s32 0, %v911
      %v913 = vrot.slane %v908, %v912
      %915 = vmatprep.subr.mxu0 0.0
      %916 = vmatpush1.msra.mxu0 0.0
      %917 = vmatprep.subr.mxu0 0.0
      %918 = vmatpush1.msra.mxu0 0.0
      %919 = vmatprep.subr.mxu0 0.0
      %920 = vmatpush1.msra.mxu0 0.0
      %921 = vmatprep.subr.mxu0 0.0
      %922 = vmatpush1.msra.mxu0 0.0
      %923 = vmatprep.subr.mxu0 0.0
      %924 = vmatpush1.msra.mxu0 0.0
      %925 = vmatprep.subr.mxu0 0.0
      %926 = vmatpush1.msra.mxu0 0.0
      %927 = vmatprep.subr.mxu0 0.0
      %928 = vmatpush1.msra.mxu0 0.0
      %929 = vmatprep.subr.mxu0 0.0
      %930 = vmatpush1.msra.mxu0 0.0
      %931 = vmatprep.subr.mxu0 0.0
      %932 = vmatpush1.msra.mxu0 0.0
      %933 = vmatprep.subr.mxu0 0.0
      %934 = vmatpush1.msra.mxu0 0.0
      %935 = vmatprep.subr.mxu0 0.0
      %936 = vmatpush1.msra.mxu0 0.0
      %937 = vmatprep.subr.mxu0 0.0
      %938 = vmatpush1.msra.mxu0 0.0
      %939 = vmatprep.subr.mxu0 0.0
      %940 = vmatpush1.msra.mxu0 0.0
      %941 = vmatprep.subr.mxu0 0.0
      %942 = vmatpush1.msra.mxu0 0.0
      %943 = vmatprep.subr.mxu0 0.0
      %944 = vmatpush1.msra.mxu0 0.0
      %945 = vmatprep.subr.mxu0 0.0
      %946 = vmatpush1.msra.mxu0 %v907
      %947 = vmatprep.subr.mxu0 0.0
      %948 = vmatpush2.msra.mxu0 0.0
      %949 = vmatprep.subr.mxu0 0.0
      %950 = vmatpush2.msra.mxu0 0.0
      %951 = vmatprep.subr.mxu0 0.0
      %952 = vmatpush2.msra.mxu0 0.0
      %953 = vmatprep.subr.mxu0 0.0
      %954 = vmatpush2.msra.mxu0 0.0
      %955 = vmatprep.subr.mxu0 0.0
      %956 = vmatpush2.msra.mxu0 0.0
      %957 = vmatprep.subr.mxu0 0.0
      %958 = vmatpush2.msra.mxu0 0.0
      %959 = vmatprep.subr.mxu0 0.0
      %960 = vmatpush2.msra.mxu0 0.0
      %961 = vmatprep.subr.mxu0 0.0
      %962 = vmatpush2.msra.mxu0 0.0
      %963 = vmatprep.subr.mxu0 0.0
      %964 = vmatpush2.msra.mxu0 0.0
      %965 = vmatprep.subr.mxu0 0.0
      %966 = vmatpush2.msra.mxu0 0.0
      %967 = vmatprep.subr.mxu0 0.0
      %968 = vmatpush2.msra.mxu0 0.0
      %969 = vmatprep.subr.mxu0 0.0
      %970 = vmatpush2.msra.mxu0 0.0
      %971 = vmatprep.subr.mxu0 0.0
      %972 = vmatpush2.msra.mxu0 0.0
      %973 = vmatprep.subr.mxu0 0.0
      %974 = vmatpush2.msra.mxu0 0.0
      %975 = vmatprep.subr.mxu0 0.0
      %976 = vmatpush2.msra.mxu0 0.0
      %977 = vmatprep.subr.mxu0 0.0
      %978 = vmatpush2.msra.mxu0 0.0
      %979 = vmatprep.mubr.f32.mxu0 0.0
      %980 = vmatmul.mubr.f32.gmra.mxu0 %v354
      %v981 = vpop.f32.mrf.mxu0
      %v982 = vadd.f32 %v913, %v981
      %v983 = vpop.f32.mrf.mxu0
      %984 = vmatprep.mubr.f32.mxu0 0.0
      %985 = vmatmul.mubr.f32.gmra.mxu0 %v357
      %v986 = vpop.f32.mrf.mxu0
      %v987 = vadd.f32 %v913, %v986
      %v988 = vpop.f32.mrf.mxu0
      %989 = vmatprep.mubr.f32.mxu0 0.0
      %990 = vmatmul.mubr.f32.gmra.mxu0 %v360
      %v991 = vpop.f32.mrf.mxu0
      %v992 = vadd.f32 %v913, %v991
      %v993 = vpop.f32.mrf.mxu0
      %994 = vmatprep.mubr.f32.mxu0 0.0
      %995 = vmatmul.mubr.f32.gmra.mxu0 %v363
      %v996 = vpop.f32.mrf.mxu0
      %v997 = vadd.f32 %v913, %v996
      %v998 = vpop.f32.mrf.mxu0
      %999 = vmatprep.mubr.f32.mxu0 0.0
      %1000 = vmatmul.mubr.f32.gmra.mxu0 %v366
      %v1001 = vpop.f32.mrf.mxu0
      %v1002 = vadd.f32 %v913, %v1001
      %v1003 = vpop.f32.mrf.mxu0
      %1004 = vmatprep.mubr.f32.mxu0 0.0
      %1005 = vmatmul.mubr.f32.gmra.mxu0 %v369
      %v1006 = vpop.f32.mrf.mxu0
      %v1007 = vadd.f32 %v913, %v1006
      %v1008 = vpop.f32.mrf.mxu0
      %1009 = vmatprep.mubr.f32.mxu0 0.0
      %1010 = vmatmul.mubr.f32.gmra.mxu0 %v372
      %v1011 = vpop.f32.mrf.mxu0
      %v1012 = vadd.f32 %v913, %v1011
      %v1013 = vpop.f32.mrf.mxu0
      %1014 = vmatprep.mubr.f32.mxu0 0.0
      %1015 = vmatmul.mubr.f32.gmra.mxu0 %v375
      %v1016 = vpop.f32.mrf.mxu0
      %v1017 = vadd.f32 %v913, %v1016
      %v1018 = vpop.f32.mrf.mxu0
      %1019 = vmatprep.mubr.f32.mxu0 0.0
      %1020 = vmatmul.mubr.f32.gmra.mxu0 %v378
      %v1021 = vpop.f32.mrf.mxu0
      %v1022 = vadd.f32 %v913, %v1021
      %v1023 = vpop.f32.mrf.mxu0
      %1024 = vmatprep.mubr.f32.mxu0 0.0
      %1025 = vmatmul.mubr.f32.gmra.mxu0 %v381
      %v1026 = vpop.f32.mrf.mxu0
      %v1027 = vadd.f32 %v913, %v1026
      %v1028 = vpop.f32.mrf.mxu0
      %1029 = vmatprep.mubr.f32.mxu0 0.0
      %1030 = vmatmul.mubr.f32.gmra.mxu0 %v384
      %v1031 = vpop.f32.mrf.mxu0
      %v1032 = vadd.f32 %v913, %v1031
      %v1033 = vpop.f32.mrf.mxu0
      %1034 = vmatprep.mubr.f32.mxu0 0.0
      %1035 = vmatmul.mubr.f32.gmra.mxu0 %v387
      %v1036 = vpop.f32.mrf.mxu0
      %v1037 = vadd.f32 %v913, %v1036
      %v1038 = vpop.f32.mrf.mxu0
      %1039 = vmatprep.mubr.f32.mxu0 0.0
      %1040 = vmatmul.mubr.f32.gmra.mxu0 %v390
      %v1041 = vpop.f32.mrf.mxu0
      %v1042 = vadd.f32 %v913, %v1041
      %v1043 = vpop.f32.mrf.mxu0
      %1044 = vmatprep.mubr.f32.mxu0 0.0
      %1045 = vmatmul.mubr.f32.gmra.mxu0 %v393
      %v1046 = vpop.f32.mrf.mxu0
      %v1047 = vadd.f32 %v913, %v1046
      %v1048 = vpop.f32.mrf.mxu0
      %1049 = vmatprep.mubr.f32.mxu0 0.0
      %1050 = vmatmul.mubr.f32.gmra.mxu0 %v396
      %v1051 = vpop.f32.mrf.mxu0
      %v1052 = vadd.f32 %v913, %v1051
      %v1053 = vpop.f32.mrf.mxu0
      %1054 = vmatprep.mubr.f32.mxu0 0.0
      %1055 = vmatmul.mubr.f32.gmra.mxu0 %v399
      %v1056 = vpop.f32.mrf.mxu0
      %v1057 = vadd.f32 %v913, %v1056
      %v1058 = vpop.f32.mrf.mxu0
      %1059 = vmatprep.mubr.f32.mxu0 0.0
      %1060 = vmatmul.mubr.f32.gmra.mxu0 %v402
      %v1061 = vpop.f32.mrf.mxu0
      %v1062 = vadd.f32 %v913, %v1061
      %v1063 = vpop.f32.mrf.mxu0
      %1064 = vmatprep.mubr.f32.mxu0 0.0
      %1065 = vmatmul.mubr.f32.gmra.mxu0 %v405
      %v1066 = vpop.f32.mrf.mxu0
      %v1067 = vadd.f32 %v913, %v1066
      %v1068 = vpop.f32.mrf.mxu0
      %1069 = vmatprep.mubr.f32.mxu0 0.0
      %1070 = vmatmul.mubr.f32.gmra.mxu0 %v408
      %v1071 = vpop.f32.mrf.mxu0
      %v1072 = vadd.f32 %v913, %v1071
      %v1073 = vpop.f32.mrf.mxu0
      %1074 = vmatprep.mubr.f32.mxu0 0.0
      %1075 = vmatmul.mubr.f32.gmra.mxu0 %v411
      %v1076 = vpop.f32.mrf.mxu0
      %v1077 = vadd.f32 %v913, %v1076
      %v1078 = vpop.f32.mrf.mxu0
      %1079 = vmatprep.mubr.f32.mxu0 0.0
      %1080 = vmatmul.mubr.f32.gmra.mxu0 %v414
      %v1081 = vpop.f32.mrf.mxu0
      %v1082 = vadd.f32 %v913, %v1081
      %v1083 = vpop.f32.mrf.mxu0
      %1084 = vmatprep.mubr.f32.mxu0 0.0
      %1085 = vmatmul.mubr.f32.gmra.mxu0 %v417
      %v1086 = vpop.f32.mrf.mxu0
      %v1087 = vadd.f32 %v913, %v1086
      %v1088 = vpop.f32.mrf.mxu0
      %1089 = vmatprep.mubr.f32.mxu0 0.0
      %1090 = vmatmul.mubr.f32.gmra.mxu0 %v420
      %v1091 = vpop.f32.mrf.mxu0
      %v1092 = vadd.f32 %v913, %v1091
      %v1093 = vpop.f32.mrf.mxu0
      %1094 = vmatprep.mubr.f32.mxu0 0.0
      %1095 = vmatmul.mubr.f32.gmra.mxu0 %v423
      %v1096 = vpop.f32.mrf.mxu0
      %v1097 = vadd.f32 %v913, %v1096
      %v1098 = vpop.f32.mrf.mxu0
      %1099 = vmatprep.mubr.f32.mxu0 0.0
      %1100 = vmatmul.mubr.f32.gmra.mxu0 %v426
      %v1101 = vpop.f32.mrf.mxu0
      %v1102 = vadd.f32 %v913, %v1101
      %v1103 = vpop.f32.mrf.mxu0
      %1104 = vmatprep.mubr.f32.mxu0 0.0
      %1105 = vmatmul.mubr.f32.gmra.mxu0 %v429
      %v1106 = vpop.f32.mrf.mxu0
      %v1107 = vadd.f32 %v913, %v1106
      %v1108 = vpop.f32.mrf.mxu0
      %1109 = vmatprep.mubr.f32.mxu0 0.0
      %1110 = vmatmul.mubr.f32.gmra.mxu0 %v432
      %v1111 = vpop.f32.mrf.mxu0
      %v1112 = vadd.f32 %v913, %v1111
      %v1113 = vpop.f32.mrf.mxu0
      %1114 = vmatprep.mubr.f32.mxu0 0.0
      %1115 = vmatmul.mubr.f32.gmra.mxu0 %v435
      %v1116 = vpop.f32.mrf.mxu0
      %v1117 = vadd.f32 %v913, %v1116
      %v1118 = vpop.f32.mrf.mxu0
      %1119 = vmatprep.mubr.f32.mxu0 0.0
      %1120 = vmatmul.mubr.f32.gmra.mxu0 %v438
      %v1121 = vpop.f32.mrf.mxu0
      %v1122 = vadd.f32 %v913, %v1121
      %v1123 = vpop.f32.mrf.mxu0
      %1124 = vmatprep.mubr.f32.mxu0 0.0
      %1125 = vmatmul.mubr.f32.gmra.mxu0 %v441
      %v1126 = vpop.f32.mrf.mxu0
      %v1127 = vadd.f32 %v913, %v1126
      %v1128 = vpop.f32.mrf.mxu0
      %1129 = vmatprep.mubr.f32.mxu0 0.0
      %1130 = vmatmul.mubr.f32.gmra.mxu0 %v444
      %v1131 = vpop.f32.mrf.mxu0
      %v1132 = vadd.f32 %v913, %v1131
      %v1133 = vpop.f32.mrf.mxu0
      %1134 = vmatprep.mubr.f32.mxu0 0.0
      %1135 = vmatmul.mubr.f32.gmra.mxu0 %v447
      %v1136 = vpop.f32.mrf.mxu0
      %v1137 = vadd.f32 %v913, %v1136
      %v1138 = vpop.f32.mrf.mxu0
      %1139 = vdwg.mxu0
      %vm1140 = vcmask 7168
      %v1142 = vsel %vm1140, %v516, 0
      %v1145 = vsel %vm1140, %v521, 0
      %v1148 = vsel %vm1140, %v526, 0
      %v1151 = vsel %vm1140, %v531, 0
      %v1154 = vsel %vm1140, %v536, 0
      %v1157 = vsel %vm1140, %v541, 0
      %v1160 = vsel %vm1140, %v546, 0
      %v1163 = vsel %vm1140, %v551, 0
      %v1166 = vsel %vm1140, %v556, 0
      %v1169 = vsel %vm1140, %v561, 0
      %v1172 = vsel %vm1140, %v566, 0
      %v1175 = vsel %vm1140, %v571, 0
      %v1178 = vsel %vm1140, %v576, 0
      %v1181 = vsel %vm1140, %v581, 0
      %v1184 = vsel %vm1140, %v586, 0
      %v1187 = vsel %vm1140, %v591, 0
      %v1190 = vsel %vm1140, %v596, 0
      %v1193 = vsel %vm1140, %v601, 0
      %v1196 = vsel %vm1140, %v606, 0
      %v1199 = vsel %vm1140, %v611, 0
      %v1202 = vsel %vm1140, %v616, 0
      %v1205 = vsel %vm1140, %v621, 0
      %v1208 = vsel %vm1140, %v626, 0
      %v1211 = vsel %vm1140, %v631, 0
      %v1214 = vsel %vm1140, %v636, 0
      %v1217 = vsel %vm1140, %v641, 0
      %v1220 = vsel %vm1140, %v646, 0
      %v1223 = vsel %vm1140, %v651, 0
      %v1226 = vsel %vm1140, %v656, 0
      %v1229 = vsel %vm1140, %v661, 0
      %v1232 = vsel %vm1140, %v666, 0
      %v1235 = vsel %vm1140, %v671, 0
      %v1238 = vsel %vm1140, %v749, 0
      %v1241 = vsel %vm1140, %v754, 0
      %v1244 = vsel %vm1140, %v759, 0
      %v1247 = vsel %vm1140, %v764, 0
      %v1250 = vsel %vm1140, %v769, 0
      %v1253 = vsel %vm1140, %v774, 0
      %v1256 = vsel %vm1140, %v779, 0
      %v1259 = vsel %vm1140, %v784, 0
      %v1262 = vsel %vm1140, %v789, 0
      %v1265 = vsel %vm1140, %v794, 0
      %v1268 = vsel %vm1140, %v799, 0
      %v1271 = vsel %vm1140, %v804, 0
      %v1274 = vsel %vm1140, %v809, 0
      %v1277 = vsel %vm1140, %v814, 0
      %v1280 = vsel %vm1140, %v819, 0
      %v1283 = vsel %vm1140, %v824, 0
      %v1286 = vsel %vm1140, %v829, 0
      %v1289 = vsel %vm1140, %v834, 0
      %v1292 = vsel %vm1140, %v839, 0
      %v1295 = vsel %vm1140, %v844, 0
      %v1298 = vsel %vm1140, %v849, 0
      %v1301 = vsel %vm1140, %v854, 0
      %v1304 = vsel %vm1140, %v859, 0
      %v1307 = vsel %vm1140, %v864, 0
      %v1310 = vsel %vm1140, %v869, 0
      %v1313 = vsel %vm1140, %v874, 0
      %v1316 = vsel %vm1140, %v879, 0
      %v1319 = vsel %vm1140, %v884, 0
      %v1322 = vsel %vm1140, %v889, 0
      %v1325 = vsel %vm1140, %v894, 0
      %v1328 = vsel %vm1140, %v899, 0
      %v1331 = vsel %vm1140, %v904, 0
      %1333 = vmatprep.subr.mxu0 0.0
      %1334 = vmatpush1.xpose.msra.mxu0 %v1283
      %1335 = vmatprep.subr.mxu0 0.0
      %1336 = vmatpush1.xpose.msra.mxu0 %v1280
      %1337 = vmatprep.subr.mxu0 0.0
      %1338 = vmatpush1.xpose.msra.mxu0 %v1277
      %1339 = vmatprep.subr.mxu0 0.0
      %1340 = vmatpush1.xpose.msra.mxu0 %v1274
      %1341 = vmatprep.subr.mxu0 0.0
      %1342 = vmatpush1.xpose.msra.mxu0 %v1271
      %1343 = vmatprep.subr.mxu0 0.0
      %1344 = vmatpush1.xpose.msra.mxu0 %v1268
      %1345 = vmatprep.subr.mxu0 0.0
      %1346 = vmatpush1.xpose.msra.mxu0 %v1265
      %1347 = vmatprep.subr.mxu0 0.0
      %1348 = vmatpush1.xpose.msra.mxu0 %v1262
      %1349 = vmatprep.subr.mxu0 0.0
      %1350 = vmatpush1.xpose.msra.mxu0 %v1259
      %1351 = vmatprep.subr.mxu0 0.0
      %1352 = vmatpush1.xpose.msra.mxu0 %v1256
      %1353 = vmatprep.subr.mxu0 0.0
      %1354 = vmatpush1.xpose.msra.mxu0 %v1253
      %1355 = vmatprep.subr.mxu0 0.0
      %1356 = vmatpush1.xpose.msra.mxu0 %v1250
      %1357 = vmatprep.subr.mxu0 0.0
      %1358 = vmatpush1.xpose.msra.mxu0 %v1247
      %1359 = vmatprep.subr.mxu0 0.0
      %1360 = vmatpush1.xpose.msra.mxu0 %v1244
      %1361 = vmatprep.subr.mxu0 0.0
      %1362 = vmatpush1.xpose.msra.mxu0 %v1241
      %1363 = vmatprep.subr.mxu0 0.0
      %1364 = vmatpush1.xpose.msra.mxu0 %v1238
      %1365 = vmatprep.subr.mxu0 0.0
      %1366 = vmatpush2.xpose.msra.mxu0 %v1331
      %1367 = vmatprep.subr.mxu0 0.0
      %1368 = vmatpush2.xpose.msra.mxu0 %v1328
      %1369 = vmatprep.subr.mxu0 0.0
      %1370 = vmatpush2.xpose.msra.mxu0 %v1325
      %1371 = vmatprep.subr.mxu0 0.0
      %1372 = vmatpush2.xpose.msra.mxu0 %v1322
      %1373 = vmatprep.subr.mxu0 0.0
      %1374 = vmatpush2.xpose.msra.mxu0 %v1319
      %1375 = vmatprep.subr.mxu0 0.0
      %1376 = vmatpush2.xpose.msra.mxu0 %v1316
      %1377 = vmatprep.subr.mxu0 0.0
      %1378 = vmatpush2.xpose.msra.mxu0 %v1313
      %1379 = vmatprep.subr.mxu0 0.0
      %1380 = vmatpush2.xpose.msra.mxu0 %v1310
      %1381 = vmatprep.subr.mxu0 0.0
      %1382 = vmatpush2.xpose.msra.mxu0 %v1307
      %1383 = vmatprep.subr.mxu0 0.0
      %1384 = vmatpush2.xpose.msra.mxu0 %v1304
      %1385 = vmatprep.subr.mxu0 0.0
      %1386 = vmatpush2.xpose.msra.mxu0 %v1301
      %1387 = vmatprep.subr.mxu0 0.0
      %1388 = vmatpush2.xpose.msra.mxu0 %v1298
      %1389 = vmatprep.subr.mxu0 0.0
      %1390 = vmatpush2.xpose.msra.mxu0 %v1295
      %1391 = vmatprep.subr.mxu0 0.0
      %1392 = vmatpush2.xpose.msra.mxu0 %v1292
      %1393 = vmatprep.subr.mxu0 0.0
      %1394 = vmatpush2.xpose.msra.mxu0 %v1289
      %1395 = vmatprep.subr.mxu0 0.0
      %1396 = vmatpush2.xpose.msra.mxu0 %v1286
      %1397 = vmatprep.mubr.f32.mxu0 0.0
      %1398 = vmatmul.mubr.f32.gmra.mxu0 %v1142
      %v1399 = vpop.f32.mrf.mxu0
      %v1400 = vadd.f32 0.0, %v1399
      %v1401 = vpop.f32.mrf.mxu0
      %v1402 = vadd.f32 0.0, %v1401
      %1403 = vmatprep.mubr.f32.mxu0 0.0
      %1404 = vmatmul.mubr.f32.gmra.mxu0 %v1145
      %v1405 = vpop.f32.mrf.mxu0
      %v1406 = vadd.f32 0.0, %v1405
      %v1407 = vpop.f32.mrf.mxu0
      %v1408 = vadd.f32 0.0, %v1407
      %1409 = vmatprep.mubr.f32.mxu0 0.0
      %1410 = vmatmul.mubr.f32.gmra.mxu0 %v1148
      %v1411 = vpop.f32.mrf.mxu0
      %v1412 = vadd.f32 0.0, %v1411
      %v1413 = vpop.f32.mrf.mxu0
      %v1414 = vadd.f32 0.0, %v1413
      %1415 = vmatprep.mubr.f32.mxu0 0.0
      %1416 = vmatmul.mubr.f32.gmra.mxu0 %v1151
      %v1417 = vpop.f32.mrf.mxu0
      %v1418 = vadd.f32 0.0, %v1417
      %v1419 = vpop.f32.mrf.mxu0
      %v1420 = vadd.f32 0.0, %v1419
      %1421 = vmatprep.mubr.f32.mxu0 0.0
      %1422 = vmatmul.mubr.f32.gmra.mxu0 %v1154
      %v1423 = vpop.f32.mrf.mxu0
      %v1424 = vadd.f32 0.0, %v1423
      %v1425 = vpop.f32.mrf.mxu0
      %v1426 = vadd.f32 0.0, %v1425
      %1427 = vmatprep.mubr.f32.mxu0 0.0
      %1428 = vmatmul.mubr.f32.gmra.mxu0 %v1157
      %v1429 = vpop.f32.mrf.mxu0
      %v1430 = vadd.f32 0.0, %v1429
      %v1431 = vpop.f32.mrf.mxu0
      %v1432 = vadd.f32 0.0, %v1431
      %1433 = vmatprep.mubr.f32.mxu0 0.0
      %1434 = vmatmul.mubr.f32.gmra.mxu0 %v1160
      %v1435 = vpop.f32.mrf.mxu0
      %v1436 = vadd.f32 0.0, %v1435
      %v1437 = vpop.f32.mrf.mxu0
      %v1438 = vadd.f32 0.0, %v1437
      %1439 = vmatprep.mubr.f32.mxu0 0.0
      %1440 = vmatmul.mubr.f32.gmra.mxu0 %v1163
      %v1441 = vpop.f32.mrf.mxu0
      %v1442 = vadd.f32 0.0, %v1441
      %v1443 = vpop.f32.mrf.mxu0
      %v1444 = vadd.f32 0.0, %v1443
      %1445 = vmatprep.mubr.f32.mxu0 0.0
      %1446 = vmatmul.mubr.f32.gmra.mxu0 %v1166
      %v1447 = vpop.f32.mrf.mxu0
      %v1448 = vadd.f32 0.0, %v1447
      %v1449 = vpop.f32.mrf.mxu0
      %v1450 = vadd.f32 0.0, %v1449
      %1451 = vmatprep.mubr.f32.mxu0 0.0
      %1452 = vmatmul.mubr.f32.gmra.mxu0 %v1169
      %v1453 = vpop.f32.mrf.mxu0
      %v1454 = vadd.f32 0.0, %v1453
      %v1455 = vpop.f32.mrf.mxu0
      %v1456 = vadd.f32 0.0, %v1455
      %1457 = vmatprep.mubr.f32.mxu0 0.0
      %1458 = vmatmul.mubr.f32.gmra.mxu0 %v1172
      %v1459 = vpop.f32.mrf.mxu0
      %v1460 = vadd.f32 0.0, %v1459
      %v1461 = vpop.f32.mrf.mxu0
      %v1462 = vadd.f32 0.0, %v1461
      %1463 = vmatprep.mubr.f32.mxu0 0.0
      %1464 = vmatmul.mubr.f32.gmra.mxu0 %v1175
      %v1465 = vpop.f32.mrf.mxu0
      %v1466 = vadd.f32 0.0, %v1465
      %v1467 = vpop.f32.mrf.mxu0
      %v1468 = vadd.f32 0.0, %v1467
      %1469 = vmatprep.mubr.f32.mxu0 0.0
      %1470 = vmatmul.mubr.f32.gmra.mxu0 %v1178
      %v1471 = vpop.f32.mrf.mxu0
      %v1472 = vadd.f32 0.0, %v1471
      %v1473 = vpop.f32.mrf.mxu0
      %v1474 = vadd.f32 0.0, %v1473
      %1475 = vmatprep.mubr.f32.mxu0 0.0
      %1476 = vmatmul.mubr.f32.gmra.mxu0 %v1181
      %v1477 = vpop.f32.mrf.mxu0
      %v1478 = vadd.f32 0.0, %v1477
      %v1479 = vpop.f32.mrf.mxu0
      %v1480 = vadd.f32 0.0, %v1479
      %1481 = vmatprep.mubr.f32.mxu0 0.0
      %1482 = vmatmul.mubr.f32.gmra.mxu0 %v1184
      %v1483 = vpop.f32.mrf.mxu0
      %v1484 = vadd.f32 0.0, %v1483
      %v1485 = vpop.f32.mrf.mxu0
      %v1486 = vadd.f32 0.0, %v1485
      %1487 = vmatprep.mubr.f32.mxu0 0.0
      %1488 = vmatmul.mubr.f32.gmra.mxu0 %v1187
      %v1489 = vpop.f32.mrf.mxu0
      %v1490 = vadd.f32 0.0, %v1489
      %v1491 = vpop.f32.mrf.mxu0
      %v1492 = vadd.f32 0.0, %v1491
      %1493 = vmatprep.mubr.f32.mxu0 0.0
      %1494 = vmatmul.mubr.f32.gmra.mxu0 %v1190
      %v1495 = vpop.f32.mrf.mxu0
      %v1496 = vadd.f32 0.0, %v1495
      %v1497 = vpop.f32.mrf.mxu0
      %v1498 = vadd.f32 0.0, %v1497
      %1499 = vmatprep.mubr.f32.mxu0 0.0
      %1500 = vmatmul.mubr.f32.gmra.mxu0 %v1193
      %v1501 = vpop.f32.mrf.mxu0
      %v1502 = vadd.f32 0.0, %v1501
      %v1503 = vpop.f32.mrf.mxu0
      %v1504 = vadd.f32 0.0, %v1503
      %1505 = vmatprep.mubr.f32.mxu0 0.0
      %1506 = vmatmul.mubr.f32.gmra.mxu0 %v1196
      %v1507 = vpop.f32.mrf.mxu0
      %v1508 = vadd.f32 0.0, %v1507
      %v1509 = vpop.f32.mrf.mxu0
      %v1510 = vadd.f32 0.0, %v1509
      %1511 = vmatprep.mubr.f32.mxu0 0.0
      %1512 = vmatmul.mubr.f32.gmra.mxu0 %v1199
      %v1513 = vpop.f32.mrf.mxu0
      %v1514 = vadd.f32 0.0, %v1513
      %v1515 = vpop.f32.mrf.mxu0
      %v1516 = vadd.f32 0.0, %v1515
      %1517 = vmatprep.mubr.f32.mxu0 0.0
      %1518 = vmatmul.mubr.f32.gmra.mxu0 %v1202
      %v1519 = vpop.f32.mrf.mxu0
      %v1520 = vadd.f32 0.0, %v1519
      %v1521 = vpop.f32.mrf.mxu0
      %v1522 = vadd.f32 0.0, %v1521
      %1523 = vmatprep.mubr.f32.mxu0 0.0
      %1524 = vmatmul.mubr.f32.gmra.mxu0 %v1205
      %v1525 = vpop.f32.mrf.mxu0
      %v1526 = vadd.f32 0.0, %v1525
      %v1527 = vpop.f32.mrf.mxu0
      %v1528 = vadd.f32 0.0, %v1527
      %1529 = vmatprep.mubr.f32.mxu0 0.0
      %1530 = vmatmul.mubr.f32.gmra.mxu0 %v1208
      %v1531 = vpop.f32.mrf.mxu0
      %v1532 = vadd.f32 0.0, %v1531
      %v1533 = vpop.f32.mrf.mxu0
      %v1534 = vadd.f32 0.0, %v1533
      %1535 = vmatprep.mubr.f32.mxu0 0.0
      %1536 = vmatmul.mubr.f32.gmra.mxu0 %v1211
      %v1537 = vpop.f32.mrf.mxu0
      %v1538 = vadd.f32 0.0, %v1537
      %v1539 = vpop.f32.mrf.mxu0
      %v1540 = vadd.f32 0.0, %v1539
      %1541 = vmatprep.mubr.f32.mxu0 0.0
      %1542 = vmatmul.mubr.f32.gmra.mxu0 %v1214
      %v1543 = vpop.f32.mrf.mxu0
      %v1544 = vadd.f32 0.0, %v1543
      %v1545 = vpop.f32.mrf.mxu0
      %v1546 = vadd.f32 0.0, %v1545
      %1547 = vmatprep.mubr.f32.mxu0 0.0
      %1548 = vmatmul.mubr.f32.gmra.mxu0 %v1217
      %v1549 = vpop.f32.mrf.mxu0
      %v1550 = vadd.f32 0.0, %v1549
      %v1551 = vpop.f32.mrf.mxu0
      %v1552 = vadd.f32 0.0, %v1551
      %1553 = vmatprep.mubr.f32.mxu0 0.0
      %1554 = vmatmul.mubr.f32.gmra.mxu0 %v1220
      %v1555 = vpop.f32.mrf.mxu0
      %v1556 = vadd.f32 0.0, %v1555
      %v1557 = vpop.f32.mrf.mxu0
      %v1558 = vadd.f32 0.0, %v1557
      %1559 = vmatprep.mubr.f32.mxu0 0.0
      %1560 = vmatmul.mubr.f32.gmra.mxu0 %v1223
      %v1561 = vpop.f32.mrf.mxu0
      %v1562 = vadd.f32 0.0, %v1561
      %v1563 = vpop.f32.mrf.mxu0
      %v1564 = vadd.f32 0.0, %v1563
      %1565 = vmatprep.mubr.f32.mxu0 0.0
      %1566 = vmatmul.mubr.f32.gmra.mxu0 %v1226
      %v1567 = vpop.f32.mrf.mxu0
      %v1568 = vadd.f32 0.0, %v1567
      %v1569 = vpop.f32.mrf.mxu0
      %v1570 = vadd.f32 0.0, %v1569
      %1571 = vmatprep.mubr.f32.mxu0 0.0
      %1572 = vmatmul.mubr.f32.gmra.mxu0 %v1229
      %v1573 = vpop.f32.mrf.mxu0
      %v1574 = vadd.f32 0.0, %v1573
      %v1575 = vpop.f32.mrf.mxu0
      %v1576 = vadd.f32 0.0, %v1575
      %1577 = vmatprep.mubr.f32.mxu0 0.0
      %1578 = vmatmul.mubr.f32.gmra.mxu0 %v1232
      %v1579 = vpop.f32.mrf.mxu0
      %v1580 = vadd.f32 0.0, %v1579
      %v1581 = vpop.f32.mrf.mxu0
      %v1582 = vadd.f32 0.0, %v1581
      %1583 = vmatprep.mubr.f32.mxu0 0.0
      %1584 = vmatmul.mubr.f32.gmra.mxu0 %v1235
      %v1585 = vpop.f32.mrf.mxu0
      %v1586 = vadd.f32 0.0, %v1585
      %v1587 = vpop.f32.mrf.mxu0
      %v1588 = vadd.f32 0.0, %v1587
      %1589 = vdwg.mxu0
      %v1590 = vmax.f32 %v1400, %v1402
      %1591 = vmax.xlane.f32.xlu0 %v1590
      %v1592 = vpop.xlane.xlu0 %1591
      %v1593 = vmax.f32 %v1406, %v1408
      %1594 = vmax.xlane.f32.xlu0 %v1593
      %v1595 = vpop.xlane.xlu0 %1594
      %v1596 = vmax.f32 %v1412, %v1414
      %1597 = vmax.xlane.f32.xlu0 %v1596
      %v1598 = vpop.xlane.xlu0 %1597
      %v1599 = vmax.f32 %v1418, %v1420
      %1600 = vmax.xlane.f32.xlu0 %v1599
      %v1601 = vpop.xlane.xlu0 %1600
      %v1602 = vmax.f32 %v1424, %v1426
      %1603 = vmax.xlane.f32.xlu0 %v1602
      %v1604 = vpop.xlane.xlu0 %1603
      %v1605 = vmax.f32 %v1430, %v1432
      %1606 = vmax.xlane.f32.xlu0 %v1605
      %v1607 = vpop.xlane.xlu0 %1606
      %v1608 = vmax.f32 %v1436, %v1438
      %1609 = vmax.xlane.f32.xlu0 %v1608
      %v1610 = vpop.xlane.xlu0 %1609
      %v1611 = vmax.f32 %v1442, %v1444
      %1612 = vmax.xlane.f32.xlu0 %v1611
      %v1613 = vpop.xlane.xlu0 %1612
      %v1614 = vmax.f32 %v1448, %v1450
      %1615 = vmax.xlane.f32.xlu0 %v1614
      %v1616 = vpop.xlane.xlu0 %1615
      %v1617 = vmax.f32 %v1454, %v1456
      %1618 = vmax.xlane.f32.xlu0 %v1617
      %v1619 = vpop.xlane.xlu0 %1618
      %v1620 = vmax.f32 %v1460, %v1462
      %1621 = vmax.xlane.f32.xlu0 %v1620
      %v1622 = vpop.xlane.xlu0 %1621
      %v1623 = vmax.f32 %v1466, %v1468
      %1624 = vmax.xlane.f32.xlu0 %v1623
      %v1625 = vpop.xlane.xlu0 %1624
      %v1626 = vmax.f32 %v1472, %v1474
      %1627 = vmax.xlane.f32.xlu0 %v1626
      %v1628 = vpop.xlane.xlu0 %1627
      %v1629 = vmax.f32 %v1478, %v1480
      %1630 = vmax.xlane.f32.xlu0 %v1629
      %v1631 = vpop.xlane.xlu0 %1630
      %v1632 = vmax.f32 %v1484, %v1486
      %1633 = vmax.xlane.f32.xlu0 %v1632
      %v1634 = vpop.xlane.xlu0 %1633
      %v1635 = vmax.f32 %v1490, %v1492
      %1636 = vmax.xlane.f32.xlu0 %v1635
      %v1637 = vpop.xlane.xlu0 %1636
      %v1638 = vmax.f32 %v1496, %v1498
      %1639 = vmax.xlane.f32.xlu0 %v1638
      %v1640 = vpop.xlane.xlu0 %1639
      %v1641 = vmax.f32 %v1502, %v1504
      %1642 = vmax.xlane.f32.xlu0 %v1641
      %v1643 = vpop.xlane.xlu0 %1642
      %v1644 = vmax.f32 %v1508, %v1510
      %1645 = vmax.xlane.f32.xlu0 %v1644
      %v1646 = vpop.xlane.xlu0 %1645
      %v1647 = vmax.f32 %v1514, %v1516
      %1648 = vmax.xlane.f32.xlu0 %v1647
      %v1649 = vpop.xlane.xlu0 %1648
      %v1650 = vmax.f32 %v1520, %v1522
      %1651 = vmax.xlane.f32.xlu0 %v1650
      %v1652 = vpop.xlane.xlu0 %1651
      %v1653 = vmax.f32 %v1526, %v1528
      %1654 = vmax.xlane.f32.xlu0 %v1653
      %v1655 = vpop.xlane.xlu0 %1654
      %v1656 = vmax.f32 %v1532, %v1534
      %1657 = vmax.xlane.f32.xlu0 %v1656
      %v1658 = vpop.xlane.xlu0 %1657
      %v1659 = vmax.f32 %v1538, %v1540
      %1660 = vmax.xlane.f32.xlu0 %v1659
      %v1661 = vpop.xlane.xlu0 %1660
      %v1662 = vmax.f32 %v1544, %v1546
      %1663 = vmax.xlane.f32.xlu0 %v1662
      %v1664 = vpop.xlane.xlu0 %1663
      %v1665 = vmax.f32 %v1550, %v1552
      %1666 = vmax.xlane.f32.xlu0 %v1665
      %v1667 = vpop.xlane.xlu0 %1666
      %v1668 = vmax.f32 %v1556, %v1558
      %1669 = vmax.xlane.f32.xlu0 %v1668
      %v1670 = vpop.xlane.xlu0 %1669
      %v1671 = vmax.f32 %v1562, %v1564
      %1672 = vmax.xlane.f32.xlu0 %v1671
      %v1673 = vpop.xlane.xlu0 %1672
      %v1674 = vmax.f32 %v1568, %v1570
      %1675 = vmax.xlane.f32.xlu0 %v1674
      %v1676 = vpop.xlane.xlu0 %1675
      %v1677 = vmax.f32 %v1574, %v1576
      %1678 = vmax.xlane.f32.xlu0 %v1677
      %v1679 = vpop.xlane.xlu0 %1678
      %v1680 = vmax.f32 %v1580, %v1582
      %1681 = vmax.xlane.f32.xlu0 %v1680
      %v1682 = vpop.xlane.xlu0 %1681
      %v1683 = vmax.f32 %v1586, %v1588
      %1684 = vmax.xlane.f32.xlu0 %v1683
      %v1685 = vpop.xlane.xlu0 %1684
      %v1686 = vsub.f32 %v1400, %v1592
      %v1687 = vsub.f32 %v1402, %v1592
      %v1688 = vsub.f32 %v1406, %v1595
      %v1689 = vsub.f32 %v1408, %v1595
      %v1690 = vsub.f32 %v1412, %v1598
      %v1691 = vsub.f32 %v1414, %v1598
      %v1692 = vsub.f32 %v1418, %v1601
      %v1693 = vsub.f32 %v1420, %v1601
      %v1694 = vsub.f32 %v1424, %v1604
      %v1695 = vsub.f32 %v1426, %v1604
      %v1696 = vsub.f32 %v1430, %v1607
      %v1697 = vsub.f32 %v1432, %v1607
      %v1698 = vsub.f32 %v1436, %v1610
      %v1699 = vsub.f32 %v1438, %v1610
      %v1700 = vsub.f32 %v1442, %v1613
      %v1701 = vsub.f32 %v1444, %v1613
      %v1702 = vsub.f32 %v1448, %v1616
      %v1703 = vsub.f32 %v1450, %v1616
      %v1704 = vsub.f32 %v1454, %v1619
      %v1705 = vsub.f32 %v1456, %v1619
      %v1706 = vsub.f32 %v1460, %v1622
      %v1707 = vsub.f32 %v1462, %v1622
      %v1708 = vsub.f32 %v1466, %v1625
      %v1709 = vsub.f32 %v1468, %v1625
      %v1710 = vsub.f32 %v1472, %v1628
      %v1711 = vsub.f32 %v1474, %v1628
      %v1712 = vsub.f32 %v1478, %v1631
      %v1713 = vsub.f32 %v1480, %v1631
      %v1714 = vsub.f32 %v1484, %v1634
      %v1715 = vsub.f32 %v1486, %v1634
      %v1716 = vsub.f32 %v1490, %v1637
      %v1717 = vsub.f32 %v1492, %v1637
      %v1718 = vsub.f32 %v1496, %v1640
      %v1719 = vsub.f32 %v1498, %v1640
      %v1720 = vsub.f32 %v1502, %v1643
      %v1721 = vsub.f32 %v1504, %v1643
      %v1722 = vsub.f32 %v1508, %v1646
      %v1723 = vsub.f32 %v1510, %v1646
      %v1724 = vsub.f32 %v1514, %v1649
      %v1725 = vsub.f32 %v1516, %v1649
      %v1726 = vsub.f32 %v1520, %v1652
      %v1727 = vsub.f32 %v1522, %v1652
      %v1728 = vsub.f32 %v1526, %v1655
      %v1729 = vsub.f32 %v1528, %v1655
      %v1730 = vsub.f32 %v1532, %v1658
      %v1731 = vsub.f32 %v1534, %v1658
      %v1732 = vsub.f32 %v1538, %v1661
      %v1733 = vsub.f32 %v1540, %v1661
      %v1734 = vsub.f32 %v1544, %v1664
      %v1735 = vsub.f32 %v1546, %v1664
      %v1736 = vsub.f32 %v1550, %v1667
      %v1737 = vsub.f32 %v1552, %v1667
      %v1738 = vsub.f32 %v1556, %v1670
      %v1739 = vsub.f32 %v1558, %v1670
      %v1740 = vsub.f32 %v1562, %v1673
      %v1741 = vsub.f32 %v1564, %v1673
      %v1742 = vsub.f32 %v1568, %v1676
      %v1743 = vsub.f32 %v1570, %v1676
      %v1744 = vsub.f32 %v1574, %v1679
      %v1745 = vsub.f32 %v1576, %v1679
      %v1746 = vsub.f32 %v1580, %v1682
      %v1747 = vsub.f32 %v1582, %v1682
      %v1748 = vsub.f32 %v1586, %v1685
      %v1749 = vsub.f32 %v1588, %v1685
      %v1750 = vmul.f32 %v1686, 1.442695
      %v1751 = vpow.pop %v1750
      %v1752 = vmul.f32 %v1687, 1.442695
      %v1753 = vpow.pop %v1752
      %v1754 = vmul.f32 %v1688, 1.442695
      %v1755 = vpow.pop %v1754
      %v1756 = vmul.f32 %v1689, 1.442695
      %v1757 = vpow.pop %v1756
      %v1758 = vmul.f32 %v1690, 1.442695
      %v1759 = vpow.pop %v1758
      %v1760 = vmul.f32 %v1691, 1.442695
      %v1761 = vpow.pop %v1760
      %v1762 = vmul.f32 %v1692, 1.442695
      %v1763 = vpow.pop %v1762
      %v1764 = vmul.f32 %v1693, 1.442695
      %v1765 = vpow.pop %v1764
      %v1766 = vmul.f32 %v1694, 1.442695
      %v1767 = vpow.pop %v1766
      %v1768 = vmul.f32 %v1695, 1.442695
      %v1769 = vpow.pop %v1768
      %v1770 = vmul.f32 %v1696, 1.442695
      %v1771 = vpow.pop %v1770
      %v1772 = vmul.f32 %v1697, 1.442695
      %v1773 = vpow.pop %v1772
      %v1774 = vmul.f32 %v1698, 1.442695
      %v1775 = vpow.pop %v1774
      %v1776 = vmul.f32 %v1699, 1.442695
      %v1777 = vpow.pop %v1776
      %v1778 = vmul.f32 %v1700, 1.442695
      %v1779 = vpow.pop %v1778
      %v1780 = vmul.f32 %v1701, 1.442695
      %v1781 = vpow.pop %v1780
      %v1782 = vmul.f32 %v1702, 1.442695
      %v1783 = vpow.pop %v1782
      %v1784 = vmul.f32 %v1703, 1.442695
      %v1785 = vpow.pop %v1784
      %v1786 = vmul.f32 %v1704, 1.442695
      %v1787 = vpow.pop %v1786
      %v1788 = vmul.f32 %v1705, 1.442695
      %v1789 = vpow.pop %v1788
      %v1790 = vmul.f32 %v1706, 1.442695
      %v1791 = vpow.pop %v1790
      %v1792 = vmul.f32 %v1707, 1.442695
      %v1793 = vpow.pop %v1792
      %v1794 = vmul.f32 %v1708, 1.442695
      %v1795 = vpow.pop %v1794
      %v1796 = vmul.f32 %v1709, 1.442695
      %v1797 = vpow.pop %v1796
      %v1798 = vmul.f32 %v1710, 1.442695
      %v1799 = vpow.pop %v1798
      %v1800 = vmul.f32 %v1711, 1.442695
      %v1801 = vpow.pop %v1800
      %v1802 = vmul.f32 %v1712, 1.442695
      %v1803 = vpow.pop %v1802
      %v1804 = vmul.f32 %v1713, 1.442695
      %v1805 = vpow.pop %v1804
      %v1806 = vmul.f32 %v1714, 1.442695
      %v1807 = vpow.pop %v1806
      %v1808 = vmul.f32 %v1715, 1.442695
      %v1809 = vpow.pop %v1808
      %v1810 = vmul.f32 %v1716, 1.442695
      %v1811 = vpow.pop %v1810
      %v1812 = vmul.f32 %v1717, 1.442695
      %v1813 = vpow.pop %v1812
      %v1814 = vmul.f32 %v1718, 1.442695
      %v1815 = vpow.pop %v1814
      %v1816 = vmul.f32 %v1719, 1.442695
      %v1817 = vpow.pop %v1816
      %v1818 = vmul.f32 %v1720, 1.442695
      %v1819 = vpow.pop %v1818
      %v1820 = vmul.f32 %v1721, 1.442695
      %v1821 = vpow.pop %v1820
      %v1822 = vmul.f32 %v1722, 1.442695
      %v1823 = vpow.pop %v1822
      %v1824 = vmul.f32 %v1723, 1.442695
      %v1825 = vpow.pop %v1824
      %v1826 = vmul.f32 %v1724, 1.442695
      %v1827 = vpow.pop %v1826
      %v1828 = vmul.f32 %v1725, 1.442695
      %v1829 = vpow.pop %v1828
      %v1830 = vmul.f32 %v1726, 1.442695
      %v1831 = vpow.pop %v1830
      %v1832 = vmul.f32 %v1727, 1.442695
      %v1833 = vpow.pop %v1832
      %v1834 = vmul.f32 %v1728, 1.442695
      %v1835 = vpow.pop %v1834
      %v1836 = vmul.f32 %v1729, 1.442695
      %v1837 = vpow.pop %v1836
      %v1838 = vmul.f32 %v1730, 1.442695
      %v1839 = vpow.pop %v1838
      %v1840 = vmul.f32 %v1731, 1.442695
      %v1841 = vpow.pop %v1840
      %v1842 = vmul.f32 %v1732, 1.442695
      %v1843 = vpow.pop %v1842
      %v1844 = vmul.f32 %v1733, 1.442695
      %v1845 = vpow.pop %v1844
      %v1846 = vmul.f32 %v1734, 1.442695
      %v1847 = vpow.pop %v1846
      %v1848 = vmul.f32 %v1735, 1.442695
      %v1849 = vpow.pop %v1848
      %v1850 = vmul.f32 %v1736, 1.442695
      %v1851 = vpow.pop %v1850
      %v1852 = vmul.f32 %v1737, 1.442695
      %v1853 = vpow.pop %v1852
      %v1854 = vmul.f32 %v1738, 1.442695
      %v1855 = vpow.pop %v1854
      %v1856 = vmul.f32 %v1739, 1.442695
      %v1857 = vpow.pop %v1856
      %v1858 = vmul.f32 %v1740, 1.442695
      %v1859 = vpow.pop %v1858
      %v1860 = vmul.f32 %v1741, 1.442695
      %v1861 = vpow.pop %v1860
      %v1862 = vmul.f32 %v1742, 1.442695
      %v1863 = vpow.pop %v1862
      %v1864 = vmul.f32 %v1743, 1.442695
      %v1865 = vpow.pop %v1864
      %v1866 = vmul.f32 %v1744, 1.442695
      %v1867 = vpow.pop %v1866
      %v1868 = vmul.f32 %v1745, 1.442695
      %v1869 = vpow.pop %v1868
      %v1870 = vmul.f32 %v1746, 1.442695
      %v1871 = vpow.pop %v1870
      %v1872 = vmul.f32 %v1747, 1.442695
      %v1873 = vpow.pop %v1872
      %v1874 = vmul.f32 %v1748, 1.442695
      %v1875 = vpow.pop %v1874
      %v1876 = vmul.f32 %v1749, 1.442695
      %v1877 = vpow.pop %v1876
      %v1878 = vadd.f32 %v1751, %v1753
      %1879 = vadd.xlane.f32.xlu0 %v1878
      %v1880 = vpop.xlane.xlu0 %1879
      %v1881 = vadd.f32 %v1755, %v1757
      %1882 = vadd.xlane.f32.xlu0 %v1881
      %v1883 = vpop.xlane.xlu0 %1882
      %v1884 = vadd.f32 %v1759, %v1761
      %1885 = vadd.xlane.f32.xlu0 %v1884
      %v1886 = vpop.xlane.xlu0 %1885
      %v1887 = vadd.f32 %v1763, %v1765
      %1888 = vadd.xlane.f32.xlu0 %v1887
      %v1889 = vpop.xlane.xlu0 %1888
      %v1890 = vadd.f32 %v1767, %v1769
      %1891 = vadd.xlane.f32.xlu0 %v1890
      %v1892 = vpop.xlane.xlu0 %1891
      %v1893 = vadd.f32 %v1771, %v1773
      %1894 = vadd.xlane.f32.xlu0 %v1893
      %v1895 = vpop.xlane.xlu0 %1894
      %v1896 = vadd.f32 %v1775, %v1777
      %1897 = vadd.xlane.f32.xlu0 %v1896
      %v1898 = vpop.xlane.xlu0 %1897
      %v1899 = vadd.f32 %v1779, %v1781
      %1900 = vadd.xlane.f32.xlu0 %v1899
      %v1901 = vpop.xlane.xlu0 %1900
      %v1902 = vadd.f32 %v1783, %v1785
      %1903 = vadd.xlane.f32.xlu0 %v1902
      %v1904 = vpop.xlane.xlu0 %1903
      %v1905 = vadd.f32 %v1787, %v1789
      %1906 = vadd.xlane.f32.xlu0 %v1905
      %v1907 = vpop.xlane.xlu0 %1906
      %v1908 = vadd.f32 %v1791, %v1793
      %1909 = vadd.xlane.f32.xlu0 %v1908
      %v1910 = vpop.xlane.xlu0 %1909
      %v1911 = vadd.f32 %v1795, %v1797
      %1912 = vadd.xlane.f32.xlu0 %v1911
      %v1913 = vpop.xlane.xlu0 %1912
      %v1914 = vadd.f32 %v1799, %v1801
      %1915 = vadd.xlane.f32.xlu0 %v1914
      %v1916 = vpop.xlane.xlu0 %1915
      %v1917 = vadd.f32 %v1803, %v1805
      %1918 = vadd.xlane.f32.xlu0 %v1917
      %v1919 = vpop.xlane.xlu0 %1918
      %v1920 = vadd.f32 %v1807, %v1809
      %1921 = vadd.xlane.f32.xlu0 %v1920
      %v1922 = vpop.xlane.xlu0 %1921
      %v1923 = vadd.f32 %v1811, %v1813
      %1924 = vadd.xlane.f32.xlu0 %v1923
      %v1925 = vpop.xlane.xlu0 %1924
      %v1926 = vadd.f32 %v1815, %v1817
      %1927 = vadd.xlane.f32.xlu0 %v1926
      %v1928 = vpop.xlane.xlu0 %1927
      %v1929 = vadd.f32 %v1819, %v1821
      %1930 = vadd.xlane.f32.xlu0 %v1929
      %v1931 = vpop.xlane.xlu0 %1930
      %v1932 = vadd.f32 %v1823, %v1825
      %1933 = vadd.xlane.f32.xlu0 %v1932
      %v1934 = vpop.xlane.xlu0 %1933
      %v1935 = vadd.f32 %v1827, %v1829
      %1936 = vadd.xlane.f32.xlu0 %v1935
      %v1937 = vpop.xlane.xlu0 %1936
      %v1938 = vadd.f32 %v1831, %v1833
      %1939 = vadd.xlane.f32.xlu0 %v1938
      %v1940 = vpop.xlane.xlu0 %1939
      %v1941 = vadd.f32 %v1835, %v1837
      %1942 = vadd.xlane.f32.xlu0 %v1941
      %v1943 = vpop.xlane.xlu0 %1942
      %v1944 = vadd.f32 %v1839, %v1841
      %1945 = vadd.xlane.f32.xlu0 %v1944
      %v1946 = vpop.xlane.xlu0 %1945
      %v1947 = vadd.f32 %v1843, %v1845
      %1948 = vadd.xlane.f32.xlu0 %v1947
      %v1949 = vpop.xlane.xlu0 %1948
      %v1950 = vadd.f32 %v1847, %v1849
      %1951 = vadd.xlane.f32.xlu0 %v1950
      %v1952 = vpop.xlane.xlu0 %1951
      %v1953 = vadd.f32 %v1851, %v1853
      %1954 = vadd.xlane.f32.xlu0 %v1953
      %v1955 = vpop.xlane.xlu0 %1954
      %v1956 = vadd.f32 %v1855, %v1857
      %1957 = vadd.xlane.f32.xlu0 %v1956
      %v1958 = vpop.xlane.xlu0 %1957
      %v1959 = vadd.f32 %v1859, %v1861
      %1960 = vadd.xlane.f32.xlu0 %v1959
      %v1961 = vpop.xlane.xlu0 %1960
      %v1962 = vadd.f32 %v1863, %v1865
      %1963 = vadd.xlane.f32.xlu0 %v1962
      %v1964 = vpop.xlane.xlu0 %1963
      %v1965 = vadd.f32 %v1867, %v1869
      %1966 = vadd.xlane.f32.xlu0 %v1965
      %v1967 = vpop.xlane.xlu0 %1966
      %v1968 = vadd.f32 %v1871, %v1873
      %1969 = vadd.xlane.f32.xlu0 %v1968
      %v1970 = vpop.xlane.xlu0 %1969
      %v1971 = vadd.f32 %v1875, %v1877
      %1972 = vadd.xlane.f32.xlu0 %v1971
      %v1973 = vpop.xlane.xlu0 %1972
      %v1974 = vrcp.pop %v1880
      %v1975 = vrcp.pop %v1883
      %v1976 = vrcp.pop %v1886
      %v1977 = vrcp.pop %v1889
      %v1978 = vrcp.pop %v1892
      %v1979 = vrcp.pop %v1895
      %v1980 = vrcp.pop %v1898
      %v1981 = vrcp.pop %v1901
      %v1982 = vrcp.pop %v1904
      %v1983 = vrcp.pop %v1907
      %v1984 = vrcp.pop %v1910
      %v1985 = vrcp.pop %v1913
      %v1986 = vrcp.pop %v1916
      %v1987 = vrcp.pop %v1919
      %v1988 = vrcp.pop %v1922
      %v1989 = vrcp.pop %v1925
      %v1990 = vrcp.pop %v1928
      %v1991 = vrcp.pop %v1931
      %v1992 = vrcp.pop %v1934
      %v1993 = vrcp.pop %v1937
      %v1994 = vrcp.pop %v1940
      %v1995 = vrcp.pop %v1943
      %v1996 = vrcp.pop %v1946
      %v1997 = vrcp.pop %v1949
      %v1998 = vrcp.pop %v1952
      %v1999 = vrcp.pop %v1955
      %v2000 = vrcp.pop %v1958
      %v2001 = vrcp.pop %v1961
      %v2002 = vrcp.pop %v1964
      %v2003 = vrcp.pop %v1967
      %v2004 = vrcp.pop %v1970
      %v2005 = vrcp.pop %v1973
      %v2006 = vmul.f32 %v1751, %v1974
      %v2007 = vmul.f32 %v1753, %v1974
      %v2008 = vmul.f32 %v1755, %v1975
      %v2009 = vmul.f32 %v1757, %v1975
      %v2010 = vmul.f32 %v1759, %v1976
      %v2011 = vmul.f32 %v1761, %v1976
      %v2012 = vmul.f32 %v1763, %v1977
      %v2013 = vmul.f32 %v1765, %v1977
      %v2014 = vmul.f32 %v1767, %v1978
      %v2015 = vmul.f32 %v1769, %v1978
      %v2016 = vmul.f32 %v1771, %v1979
      %v2017 = vmul.f32 %v1773, %v1979
      %v2018 = vmul.f32 %v1775, %v1980
      %v2019 = vmul.f32 %v1777, %v1980
      %v2020 = vmul.f32 %v1779, %v1981
      %v2021 = vmul.f32 %v1781, %v1981
      %v2022 = vmul.f32 %v1783, %v1982
      %v2023 = vmul.f32 %v1785, %v1982
      %v2024 = vmul.f32 %v1787, %v1983
      %v2025 = vmul.f32 %v1789, %v1983
      %v2026 = vmul.f32 %v1791, %v1984
      %v2027 = vmul.f32 %v1793, %v1984
      %v2028 = vmul.f32 %v1795, %v1985
      %v2029 = vmul.f32 %v1797, %v1985
      %v2030 = vmul.f32 %v1799, %v1986
      %v2031 = vmul.f32 %v1801, %v1986
      %v2032 = vmul.f32 %v1803, %v1987
      %v2033 = vmul.f32 %v1805, %v1987
      %v2034 = vmul.f32 %v1807, %v1988
      %v2035 = vmul.f32 %v1809, %v1988
      %v2036 = vmul.f32 %v1811, %v1989
      %v2037 = vmul.f32 %v1813, %v1989
      %v2038 = vmul.f32 %v1815, %v1990
      %v2039 = vmul.f32 %v1817, %v1990
      %v2040 = vmul.f32 %v1819, %v1991
      %v2041 = vmul.f32 %v1821, %v1991
      %v2042 = vmul.f32 %v1823, %v1992
      %v2043 = vmul.f32 %v1825, %v1992
      %v2044 = vmul.f32 %v1827, %v1993
      %v2045 = vmul.f32 %v1829, %v1993
      %v2046 = vmul.f32 %v1831, %v1994
      %v2047 = vmul.f32 %v1833, %v1994
      %v2048 = vmul.f32 %v1835, %v1995
      %v2049 = vmul.f32 %v1837, %v1995
      %v2050 = vmul.f32 %v1839, %v1996
      %v2051 = vmul.f32 %v1841, %v1996
      %v2052 = vmul.f32 %v1843, %v1997
      %v2053 = vmul.f32 %v1845, %v1997
      %v2054 = vmul.f32 %v1847, %v1998
      %v2055 = vmul.f32 %v1849, %v1998
      %v2056 = vmul.f32 %v1851, %v1999
      %v2057 = vmul.f32 %v1853, %v1999
      %v2058 = vmul.f32 %v1855, %v2000
      %v2059 = vmul.f32 %v1857, %v2000
      %v2060 = vmul.f32 %v1859, %v2001
      %v2061 = vmul.f32 %v1861, %v2001
      %v2062 = vmul.f32 %v1863, %v2002
      %v2063 = vmul.f32 %v1865, %v2002
      %v2064 = vmul.f32 %v1867, %v2003
      %v2065 = vmul.f32 %v1869, %v2003
      %v2066 = vmul.f32 %v1871, %v2004
      %v2067 = vmul.f32 %v1873, %v2004
      %v2068 = vmul.f32 %v1875, %v2005
      %v2069 = vmul.f32 %v1877, %v2005
      %2070 = vmatprep.subr.mxu0 0.0
      %2071 = vmatpush1.msra.mxu0 %v1057
      %2072 = vmatprep.subr.mxu0 0.0
      %2073 = vmatpush1.msra.mxu0 %v1052
      %2074 = vmatprep.subr.mxu0 0.0
      %2075 = vmatpush1.msra.mxu0 %v1047
      %2076 = vmatprep.subr.mxu0 0.0
      %2077 = vmatpush1.msra.mxu0 %v1042
      %2078 = vmatprep.subr.mxu0 0.0
      %2079 = vmatpush1.msra.mxu0 %v1037
      %2080 = vmatprep.subr.mxu0 0.0
      %2081 = vmatpush1.msra.mxu0 %v1032
      %2082 = vmatprep.subr.mxu0 0.0
      %2083 = vmatpush1.msra.mxu0 %v1027
      %2084 = vmatprep.subr.mxu0 0.0
      %2085 = vmatpush1.msra.mxu0 %v1022
      %2086 = vmatprep.subr.mxu0 0.0
      %2087 = vmatpush1.msra.mxu0 %v1017
      %2088 = vmatprep.subr.mxu0 0.0
      %2089 = vmatpush1.msra.mxu0 %v1012
      %2090 = vmatprep.subr.mxu0 0.0
      %2091 = vmatpush1.msra.mxu0 %v1007
      %2092 = vmatprep.subr.mxu0 0.0
      %2093 = vmatpush1.msra.mxu0 %v1002
      %2094 = vmatprep.subr.mxu0 0.0
      %2095 = vmatpush1.msra.mxu0 %v997
      %2096 = vmatprep.subr.mxu0 0.0
      %2097 = vmatpush1.msra.mxu0 %v992
      %2098 = vmatprep.subr.mxu0 0.0
      %2099 = vmatpush1.msra.mxu0 %v987
      %2100 = vmatprep.subr.mxu0 0.0
      %2101 = vmatpush1.msra.mxu0 %v982
      %2102 = vmatprep.subr.mxu0 0.0
      %2103 = vmatpush2.msra.mxu0 %v1137
      %2104 = vmatprep.subr.mxu0 0.0
      %2105 = vmatpush2.msra.mxu0 %v1132
      %2106 = vmatprep.subr.mxu0 0.0
      %2107 = vmatpush2.msra.mxu0 %v1127
      %2108 = vmatprep.subr.mxu0 0.0
      %2109 = vmatpush2.msra.mxu0 %v1122
      %2110 = vmatprep.subr.mxu0 0.0
      %2111 = vmatpush2.msra.mxu0 %v1117
      %2112 = vmatprep.subr.mxu0 0.0
      %2113 = vmatpush2.msra.mxu0 %v1112
      %2114 = vmatprep.subr.mxu0 0.0
      %2115 = vmatpush2.msra.mxu0 %v1107
      %2116 = vmatprep.subr.mxu0 0.0
      %2117 = vmatpush2.msra.mxu0 %v1102
      %2118 = vmatprep.subr.mxu0 0.0
      %2119 = vmatpush2.msra.mxu0 %v1097
      %2120 = vmatprep.subr.mxu0 0.0
      %2121 = vmatpush2.msra.mxu0 %v1092
      %2122 = vmatprep.subr.mxu0 0.0
      %2123 = vmatpush2.msra.mxu0 %v1087
      %2124 = vmatprep.subr.mxu0 0.0
      %2125 = vmatpush2.msra.mxu0 %v1082
      %2126 = vmatprep.subr.mxu0 0.0
      %2127 = vmatpush2.msra.mxu0 %v1077
      %2128 = vmatprep.subr.mxu0 0.0
      %2129 = vmatpush2.msra.mxu0 %v1072
      %2130 = vmatprep.subr.mxu0 0.0
      %2131 = vmatpush2.msra.mxu0 %v1067
      %2132 = vmatprep.subr.mxu0 0.0
      %2133 = vmatpush2.msra.mxu0 %v1062
      %2134 = vmatprep.mubr.f32.mxu0 %v2007
      %2135 = vmatmul.mubr.f32.gmra.mxu0 %v2006
      %v2136 = vpop.f32.mrf.mxu0
      %v2137 = vadd.f32 0.0, %v2136
      %v2138 = vpop.f32.mrf.mxu0
      %2139 = vmatprep.mubr.f32.mxu0 %v2009
      %2140 = vmatmul.mubr.f32.gmra.mxu0 %v2008
      %v2141 = vpop.f32.mrf.mxu0
      %v2142 = vadd.f32 0.0, %v2141
      %v2143 = vpop.f32.mrf.mxu0
      %2144 = vmatprep.mubr.f32.mxu0 %v2011
      %2145 = vmatmul.mubr.f32.gmra.mxu0 %v2010
      %v2146 = vpop.f32.mrf.mxu0
      %v2147 = vadd.f32 0.0, %v2146
      %v2148 = vpop.f32.mrf.mxu0
      %2149 = vmatprep.mubr.f32.mxu0 %v2013
      %2150 = vmatmul.mubr.f32.gmra.mxu0 %v2012
      %v2151 = vpop.f32.mrf.mxu0
      %v2152 = vadd.f32 0.0, %v2151
      %v2153 = vpop.f32.mrf.mxu0
      %2154 = vmatprep.mubr.f32.mxu0 %v2015
      %2155 = vmatmul.mubr.f32.gmra.mxu0 %v2014
      %v2156 = vpop.f32.mrf.mxu0
      %v2157 = vadd.f32 0.0, %v2156
      %v2158 = vpop.f32.mrf.mxu0
      %2159 = vmatprep.mubr.f32.mxu0 %v2017
      %2160 = vmatmul.mubr.f32.gmra.mxu0 %v2016
      %v2161 = vpop.f32.mrf.mxu0
      %v2162 = vadd.f32 0.0, %v2161
      %v2163 = vpop.f32.mrf.mxu0
      %2164 = vmatprep.mubr.f32.mxu0 %v2019
      %2165 = vmatmul.mubr.f32.gmra.mxu0 %v2018
      %v2166 = vpop.f32.mrf.mxu0
      %v2167 = vadd.f32 0.0, %v2166
      %v2168 = vpop.f32.mrf.mxu0
      %2169 = vmatprep.mubr.f32.mxu0 %v2021
      %2170 = vmatmul.mubr.f32.gmra.mxu0 %v2020
      %v2171 = vpop.f32.mrf.mxu0
      %v2172 = vadd.f32 0.0, %v2171
      %v2173 = vpop.f32.mrf.mxu0
      %2174 = vmatprep.mubr.f32.mxu0 %v2023
      %2175 = vmatmul.mubr.f32.gmra.mxu0 %v2022
      %v2176 = vpop.f32.mrf.mxu0
      %v2177 = vadd.f32 0.0, %v2176
      %v2178 = vpop.f32.mrf.mxu0
      %2179 = vmatprep.mubr.f32.mxu0 %v2025
      %2180 = vmatmul.mubr.f32.gmra.mxu0 %v2024
      %v2181 = vpop.f32.mrf.mxu0
      %v2182 = vadd.f32 0.0, %v2181
      %v2183 = vpop.f32.mrf.mxu0
      %2184 = vmatprep.mubr.f32.mxu0 %v2027
      %2185 = vmatmul.mubr.f32.gmra.mxu0 %v2026
      %v2186 = vpop.f32.mrf.mxu0
      %v2187 = vadd.f32 0.0, %v2186
      %v2188 = vpop.f32.mrf.mxu0
      %2189 = vmatprep.mubr.f32.mxu0 %v2029
      %2190 = vmatmul.mubr.f32.gmra.mxu0 %v2028
      %v2191 = vpop.f32.mrf.mxu0
      %v2192 = vadd.f32 0.0, %v2191
      %v2193 = vpop.f32.mrf.mxu0
      %2194 = vmatprep.mubr.f32.mxu0 %v2031
      %2195 = vmatmul.mubr.f32.gmra.mxu0 %v2030
      %v2196 = vpop.f32.mrf.mxu0
      %v2197 = vadd.f32 0.0, %v2196
      %v2198 = vpop.f32.mrf.mxu0
      %2199 = vmatprep.mubr.f32.mxu0 %v2033
      %2200 = vmatmul.mubr.f32.gmra.mxu0 %v2032
      %v2201 = vpop.f32.mrf.mxu0
      %v2202 = vadd.f32 0.0, %v2201
      %v2203 = vpop.f32.mrf.mxu0
      %2204 = vmatprep.mubr.f32.mxu0 %v2035
      %2205 = vmatmul.mubr.f32.gmra.mxu0 %v2034
      %v2206 = vpop.f32.mrf.mxu0
      %v2207 = vadd.f32 0.0, %v2206
      %v2208 = vpop.f32.mrf.mxu0
      %2209 = vmatprep.mubr.f32.mxu0 %v2037
      %2210 = vmatmul.mubr.f32.gmra.mxu0 %v2036
      %v2211 = vpop.f32.mrf.mxu0
      %v2212 = vadd.f32 0.0, %v2211
      %v2213 = vpop.f32.mrf.mxu0
      %2214 = vmatprep.mubr.f32.mxu0 %v2039
      %2215 = vmatmul.mubr.f32.gmra.mxu0 %v2038
      %v2216 = vpop.f32.mrf.mxu0
      %v2217 = vadd.f32 0.0, %v2216
      %v2218 = vpop.f32.mrf.mxu0
      %2219 = vmatprep.mubr.f32.mxu0 %v2041
      %2220 = vmatmul.mubr.f32.gmra.mxu0 %v2040
      %v2221 = vpop.f32.mrf.mxu0
      %v2222 = vadd.f32 0.0, %v2221
      %v2223 = vpop.f32.mrf.mxu0
      %2224 = vmatprep.mubr.f32.mxu0 %v2043
      %2225 = vmatmul.mubr.f32.gmra.mxu0 %v2042
      %v2226 = vpop.f32.mrf.mxu0
      %v2227 = vadd.f32 0.0, %v2226
      %v2228 = vpop.f32.mrf.mxu0
      %2229 = vmatprep.mubr.f32.mxu0 %v2045
      %2230 = vmatmul.mubr.f32.gmra.mxu0 %v2044
      %v2231 = vpop.f32.mrf.mxu0
      %v2232 = vadd.f32 0.0, %v2231
      %v2233 = vpop.f32.mrf.mxu0
      %2234 = vmatprep.mubr.f32.mxu0 %v2047
      %2235 = vmatmul.mubr.f32.gmra.mxu0 %v2046
      %v2236 = vpop.f32.mrf.mxu0
      %v2237 = vadd.f32 0.0, %v2236
      %v2238 = vpop.f32.mrf.mxu0
      %2239 = vmatprep.mubr.f32.mxu0 %v2049
      %2240 = vmatmul.mubr.f32.gmra.mxu0 %v2048
      %v2241 = vpop.f32.mrf.mxu0
      %v2242 = vadd.f32 0.0, %v2241
      %v2243 = vpop.f32.mrf.mxu0
      %2244 = vmatprep.mubr.f32.mxu0 %v2051
      %2245 = vmatmul.mubr.f32.gmra.mxu0 %v2050
      %v2246 = vpop.f32.mrf.mxu0
      %v2247 = vadd.f32 0.0, %v2246
      %v2248 = vpop.f32.mrf.mxu0
      %2249 = vmatprep.mubr.f32.mxu0 %v2053
      %2250 = vmatmul.mubr.f32.gmra.mxu0 %v2052
      %v2251 = vpop.f32.mrf.mxu0
      %v2252 = vadd.f32 0.0, %v2251
      %v2253 = vpop.f32.mrf.mxu0
      %2254 = vmatprep.mubr.f32.mxu0 %v2055
      %2255 = vmatmul.mubr.f32.gmra.mxu0 %v2054
      %v2256 = vpop.f32.mrf.mxu0
      %v2257 = vadd.f32 0.0, %v2256
      %v2258 = vpop.f32.mrf.mxu0
      %2259 = vmatprep.mubr.f32.mxu0 %v2057
      %2260 = vmatmul.mubr.f32.gmra.mxu0 %v2056
      %v2261 = vpop.f32.mrf.mxu0
      %v2262 = vadd.f32 0.0, %v2261
      %v2263 = vpop.f32.mrf.mxu0
      %2264 = vmatprep.mubr.f32.mxu0 %v2059
      %2265 = vmatmul.mubr.f32.gmra.mxu0 %v2058
      %v2266 = vpop.f32.mrf.mxu0
      %v2267 = vadd.f32 0.0, %v2266
      %v2268 = vpop.f32.mrf.mxu0
      %2269 = vmatprep.mubr.f32.mxu0 %v2061
      %2270 = vmatmul.mubr.f32.gmra.mxu0 %v2060
      %v2271 = vpop.f32.mrf.mxu0
      %v2272 = vadd.f32 0.0, %v2271
      %v2273 = vpop.f32.mrf.mxu0
      %2274 = vmatprep.mubr.f32.mxu0 %v2063
      %2275 = vmatmul.mubr.f32.gmra.mxu0 %v2062
      %v2276 = vpop.f32.mrf.mxu0
      %v2277 = vadd.f32 0.0, %v2276
      %v2278 = vpop.f32.mrf.mxu0
      %2279 = vmatprep.mubr.f32.mxu0 %v2065
      %2280 = vmatmul.mubr.f32.gmra.mxu0 %v2064
      %v2281 = vpop.f32.mrf.mxu0
      %v2282 = vadd.f32 0.0, %v2281
      %v2283 = vpop.f32.mrf.mxu0
      %2284 = vmatprep.mubr.f32.mxu0 %v2067
      %2285 = vmatmul.mubr.f32.gmra.mxu0 %v2066
      %v2286 = vpop.f32.mrf.mxu0
      %v2287 = vadd.f32 0.0, %v2286
      %v2288 = vpop.f32.mrf.mxu0
      %2289 = vmatprep.mubr.f32.mxu0 %v2069
      %2290 = vmatmul.mubr.f32.gmra.mxu0 %v2068
      %v2291 = vpop.f32.mrf.mxu0
      %v2292 = vadd.f32 0.0, %v2291
      %v2293 = vpop.f32.mrf.mxu0
      %2294 = vdwg.mxu0
      %v2295 = vld [vmem:[#allocation4] sm:$0x1]
      %v2297 = vlaneseq
      %v2298 = vshrl.u32 %v2297, 7
      %v2299 = vsub.s32 0, %v2298
      %v2300 = vrot.slane %v2295, %v2299
      %2301 = vset.pattern.permute.xlu0 0
      %2302 = vperm.xlu0 %2301, %v2300
      %v2303 = vpop.permute.xlu0 %2302
      %v2305 = vmul.f32 %v2303, %v2137
      %v2306 = vmul.f32 %v2303, %v2142
      %v2307 = vmul.f32 %v2303, %v2147
      %v2308 = vmul.f32 %v2303, %v2152
      %v2309 = vmul.f32 %v2303, %v2157
      %v2310 = vmul.f32 %v2303, %v2162
      %v2311 = vmul.f32 %v2303, %v2167
      %v2312 = vmul.f32 %v2303, %v2172
      %v2313 = vmul.f32 %v2303, %v2177
      %v2314 = vmul.f32 %v2303, %v2182
      %v2315 = vmul.f32 %v2303, %v2187
      %v2316 = vmul.f32 %v2303, %v2192
      %v2317 = vmul.f32 %v2303, %v2197
      %v2318 = vmul.f32 %v2303, %v2202
      %v2319 = vmul.f32 %v2303, %v2207
      %v2320 = vmul.f32 %v2303, %v2212
      %v2321 = vmul.f32 %v2303, %v2217
      %v2322 = vmul.f32 %v2303, %v2222
      %v2323 = vmul.f32 %v2303, %v2227
      %v2324 = vmul.f32 %v2303, %v2232
      %v2325 = vmul.f32 %v2303, %v2237
      %v2326 = vmul.f32 %v2303, %v2242
      %v2327 = vmul.f32 %v2303, %v2247
      %v2328 = vmul.f32 %v2303, %v2252
      %v2329 = vmul.f32 %v2303, %v2257
      %v2330 = vmul.f32 %v2303, %v2262
      %v2331 = vmul.f32 %v2303, %v2267
      %v2332 = vmul.f32 %v2303, %v2272
      %v2333 = vmul.f32 %v2303, %v2277
      %v2334 = vmul.f32 %v2303, %v2282
      %v2335 = vmul.f32 %v2303, %v2287
      %v2336 = vmul.f32 %v2303, %v2292
      %v2337 = vadd.f32 %v2305, %v312
      %v2338 = vadd.f32 %v2306, %v313
      %v2339 = vadd.f32 %v2307, %v314
      %v2340 = vadd.f32 %v2308, %v315
      %v2341 = vadd.f32 %v2309, %v316
      %v2342 = vadd.f32 %v2310, %v317
      %v2343 = vadd.f32 %v2311, %v318
      %v2344 = vadd.f32 %v2312, %v319
      %v2345 = vadd.f32 %v2313, %v320
      %v2346 = vadd.f32 %v2314, %v321
      %v2347 = vadd.f32 %v2315, %v322
      %v2348 = vadd.f32 %v2316, %v323
      %v2349 = vadd.f32 %v2317, %v324
      %v2350 = vadd.f32 %v2318, %v325
      %v2351 = vadd.f32 %v2319, %v326
      %v2352 = vadd.f32 %v2320, %v327
      %v2353 = vadd.f32 %v2321, %v328
      %v2354 = vadd.f32 %v2322, %v329
      %v2355 = vadd.f32 %v2323, %v330
      %v2356 = vadd.f32 %v2324, %v331
      %v2357 = vadd.f32 %v2325, %v332
      %v2358 = vadd.f32 %v2326, %v333
      %v2359 = vadd.f32 %v2327, %v334
      %v2360 = vadd.f32 %v2328, %v335
      %v2361 = vadd.f32 %v2329, %v336
      %v2362 = vadd.f32 %v2330, %v337
      %v2363 = vadd.f32 %v2331, %v338
      %v2364 = vadd.f32 %v2332, %v339
      %v2365 = vadd.f32 %v2333, %v340
      %v2366 = vadd.f32 %v2334, %v341
      %v2367 = vadd.f32 %v2335, %v342
      %v2368 = vadd.f32 %v2336, %v343
      %2369 = vst.msk [vmem:[%s311] sm:$0xff] %vm352, %v2337
      %2370 = vst.msk [vmem:[%s311 + $0x8] sm:$0xff] %vm352, %v2338
      %2371 = vst.msk [vmem:[%s311 + $0x10] sm:$0xff] %vm352, %v2339
      %2372 = vst.msk [vmem:[%s311 + $0x18] sm:$0xff] %vm352, %v2340
      %2373 = vst.msk [vmem:[%s311 + $0x20] sm:$0xff] %vm352, %v2341
      %2374 = vst.msk [vmem:[%s311 + $0x28] sm:$0xff] %vm352, %v2342
      %2375 = vst.msk [vmem:[%s311 + $0x30] sm:$0xff] %vm352, %v2343
      %2376 = vst.msk [vmem:[%s311 + $0x38] sm:$0xff] %vm352, %v2344
      %2377 = vst.msk [vmem:[%s311 + $0x40] sm:$0xff] %vm352, %v2345
      %2378 = vst.msk [vmem:[%s311 + $0x48] sm:$0xff] %vm352, %v2346
      %2379 = vst.msk [vmem:[%s311 + $0x50] sm:$0xff] %vm352, %v2347
      %2380 = vst.msk [vmem:[%s311 + $0x58] sm:$0xff] %vm352, %v2348
      %2381 = vst.msk [vmem:[%s311 + $0x60] sm:$0xff] %vm352, %v2349
      %2382 = vst.msk [vmem:[%s311 + $0x68] sm:$0xff] %vm352, %v2350
      %2383 = vst.msk [vmem:[%s311 + $0x70] sm:$0xff] %vm352, %v2351
      %2384 = vst.msk [vmem:[%s311 + $0x78] sm:$0xff] %vm352, %v2352
      %2385 = vst.msk [vmem:[%s311 + $0x80] sm:$0xff] %vm352, %v2353
      %2386 = vst.msk [vmem:[%s311 + $0x88] sm:$0xff] %vm352, %v2354
      %2387 = vst.msk [vmem:[%s311 + $0x90] sm:$0xff] %vm352, %v2355
      %2388 = vst.msk [vmem:[%s311 + $0x98] sm:$0xff] %vm352, %v2356
      %2389 = vst.msk [vmem:[%s311 + $0xa0] sm:$0xff] %vm352, %v2357
      %2390 = vst.msk [vmem:[%s311 + $0xa8] sm:$0xff] %vm352, %v2358
      %2391 = vst.msk [vmem:[%s311 + $0xb0] sm:$0xff] %vm352, %v2359
      %2392 = vst.msk [vmem:[%s311 + $0xb8] sm:$0xff] %vm352, %v2360
      %2393 = vst.msk [vmem:[%s311 + $0xc0] sm:$0xff] %vm352, %v2361
      %2394 = vst.msk [vmem:[%s311 + $0xc8] sm:$0xff] %vm352, %v2362
      %2395 = vst.msk [vmem:[%s311 + $0xd0] sm:$0xff] %vm352, %v2363
      %2396 = vst.msk [vmem:[%s311 + $0xd8] sm:$0xff] %vm352, %v2364
      %2397 = vst.msk [vmem:[%s311 + $0xe0] sm:$0xff] %vm352, %v2365
      %2398 = vst.msk [vmem:[%s311 + $0xe8] sm:$0xff] %vm352, %v2366
      %2399 = vst.msk [vmem:[%s311 + $0xf0] sm:$0xff] %vm352, %v2367
      %2400 = vst.msk [vmem:[%s311 + $0xf8] sm:$0xff] %vm352, %v2368
      %p2401 = scmp.lt.s32.totalorder %s25, 1
      %s2402 = scalar_select %p2401, %s25, 1
      %s2403 = smul.addr %s2402, 32
      %s2404 = smul.addr %s2403, 8
      %s2405 = scalar_lea.vmem %s8, %s2404
      // Predicated region
      $region53: #{resnet_generator_forward.32} parent=51 // pred_check
        %p2406 = pneg %p216
      $region54: #{resnet_generator_forward.32} parent=51 // pred_check_branch
        %2408 = sbr.rel (%p2406) target = $region56
      $region55: #{resnet_generator_forward.32} parent=51 // pred_region
        _
      $region56: #{resnet_generator_forward.32} parent=51 // pred_fallthru
        _
    $region52: #{resnet_generator_forward.32} parent=5 // pred_fallthru
      _
    %p2409 = scmp.le.s32.totalorder 2, %s20
    // Predicated region
    $region57: #{resnet_generator_forward.32} parent=5 // pred_check
      %p2410 = pneg %p2409
    $region58: #{resnet_generator_forward.32} parent=5 // pred_check_branch
      %2412 = sbr.rel (%p2410) target = $region60
    $region59: #{resnet_generator_forward.32} parent=5 // pred_region
      %s2413 = ssub.s32 %s20, 2
      // Predicated region
      $region61: #{resnet_generator_forward.32} parent=59 // pred_check
        %p2414 = pneg %p222
      $region62: #{resnet_generator_forward.32} parent=59 // pred_check_branch
        %2416 = sbr.rel (%p2414) target = $region64
      $region63: #{resnet_generator_forward.32} parent=59 // pred_region
        %p2417 = scmp.lt.s32.totalorder %s26, 1
        %s2418 = scalar_select %p2417, %s26, 1
        %s2419 = smul.addr %s2418, 32
        %s2420 = smul.addr %s2419, 8
        %s2421 = scalar_lea.vmem %s8, %s2420
      $region64: #{resnet_generator_forward.32} parent=59 // pred_fallthru
        _
    $region60: #{resnet_generator_forward.32} parent=5 // pred_fallthru
      _
  $region6: #{resnet_generator_forward.32} parent=0 // loop_footer
    %s24 = sadd.s32 1, %s20
  $region7: #{resnet_generator_forward.32} parent=0 // loop_footer_branch
    %19 = sbr.rel target = $region3
  $region8: #{resnet_generator_forward.32} parent=0 // loop_exit
    _

// kernel: resnet_generator_forward.33
$region0: #{resnet_generator_forward.33}
  #allocation0 [shape = 'u32[]', space=smem, size = 0x4, offset = 0x4, fixed_abs, tag = 'smem constant byte address 0x4 - core index']
  #allocation1 [shape = 'u32[144,128]{1,0:T(1,128)}', space=vmem, size = 0x12000, scoped, tag = 'internal scratch']
  #allocation2 [shape = 'f32[128,16]{1,0:T(8,128)}', space=vmem, size = 0x10000, scoped, tag = 'scratch operand']
  %s0 = inlined_call_operand.vmem [shape: bf16[128,72], index: 0, kind: input, shape index: {}]
  %s1 = inlined_call_operand.vmem [shape: bf16[72,16], index: 1, kind: input, shape index: {}]
  %s2 = inlined_call_operand.vmem [shape: f32[128,16], index: 2, kind: output, shape index: {}]
  %s3 = sld [smem:[#allocation0]]
  $region26: #{resnet_generator_forward.33} parent=0
    _
  %s5 = ssub.s32 1, %s3
  %s6 = scalar_select 0, %s5, %s3
  // Predicated region
  $region2: #{resnet_generator_forward.33} parent=0 // pred_check
    _
  $region3: #{resnet_generator_forward.33} parent=0 // pred_check_branch
    %8 = sbr.rel (0) target = $region5
  $region4: #{resnet_generator_forward.33} parent=0 // pred_region
    _
  $region5: #{resnet_generator_forward.33} parent=0 // pred_fallthru
    _
  // Predicated region
  $region6: #{resnet_generator_forward.33} parent=0 // pred_check
    _
  $region7: #{resnet_generator_forward.33} parent=0 // pred_check_branch
    %10 = sbr.rel (0) target = $region9
  $region8: #{resnet_generator_forward.33} parent=0 // pred_region
    _
  $region9: #{resnet_generator_forward.33} parent=0 // pred_fallthru
    _
  %p12 = scmp.eq.s32.totalorder 0, 0
  // Predicated region
  $region10: #{resnet_generator_forward.33} parent=0 // pred_check
    %p13 = pneg %p12
  $region11: #{resnet_generator_forward.33} parent=0 // pred_check_branch
    %15 = sbr.rel (%p13) target = $region13
  $region12: #{resnet_generator_forward.33} parent=0 // pred_region
    %vm16 = vcmask 130048
    %17 = vst.msk [vmem:[#allocation2] sm:$0xff] %vm16, 0.0
    %18 = vst.msk [vmem:[#allocation2 + $0x8] sm:$0xff] %vm16, 0.0
    %19 = vst.msk [vmem:[#allocation2 + $0x10] sm:$0xff] %vm16, 0.0
    %20 = vst.msk [vmem:[#allocation2 + $0x18] sm:$0xff] %vm16, 0.0
    %21 = vst.msk [vmem:[#allocation2 + $0x20] sm:$0xff] %vm16, 0.0
    %22 = vst.msk [vmem:[#allocation2 + $0x28] sm:$0xff] %vm16, 0.0
    %23 = vst.msk [vmem:[#allocation2 + $0x30] sm:$0xff] %vm16, 0.0
    %24 = vst.msk [vmem:[#allocation2 + $0x38] sm:$0xff] %vm16, 0.0
    %25 = vst.msk [vmem:[#allocation2 + $0x40] sm:$0xff] %vm16, 0.0
    %26 = vst.msk [vmem:[#allocation2 + $0x48] sm:$0xff] %vm16, 0.0
    %27 = vst.msk [vmem:[#allocation2 + $0x50] sm:$0xff] %vm16, 0.0
    %28 = vst.msk [vmem:[#allocation2 + $0x58] sm:$0xff] %vm16, 0.0
    %29 = vst.msk [vmem:[#allocation2 + $0x60] sm:$0xff] %vm16, 0.0
    %30 = vst.msk [vmem:[#allocation2 + $0x68] sm:$0xff] %vm16, 0.0
    %31 = vst.msk [vmem:[#allocation2 + $0x70] sm:$0xff] %vm16, 0.0
    %32 = vst.msk [vmem:[#allocation2 + $0x78] sm:$0xff] %vm16, 0.0
  $region13: #{resnet_generator_forward.33} parent=0 // pred_fallthru
    _
  %v33 = vld [vmem:[#allocation2] sm:$0xff]
  %v34 = vld [vmem:[#allocation2 + $0x8] sm:$0xff]
  %v35 = vld [vmem:[#allocation2 + $0x10] sm:$0xff]
  %v36 = vld [vmem:[#allocation2 + $0x18] sm:$0xff]
  %v37 = vld [vmem:[#allocation2 + $0x20] sm:$0xff]
  %v38 = vld [vmem:[#allocation2 + $0x28] sm:$0xff]
  %v39 = vld [vmem:[#allocation2 + $0x30] sm:$0xff]
  %v40 = vld [vmem:[#allocation2 + $0x38] sm:$0xff]
  %v41 = vld [vmem:[#allocation2 + $0x40] sm:$0xff]
  %v42 = vld [vmem:[#allocation2 + $0x48] sm:$0xff]
  %v43 = vld [vmem:[#allocation2 + $0x50] sm:$0xff]
  %v44 = vld [vmem:[#allocation2 + $0x58] sm:$0xff]
  %v45 = vld [vmem:[#allocation2 + $0x60] sm:$0xff]
  %v46 = vld [vmem:[#allocation2 + $0x68] sm:$0xff]
  %v47 = vld [vmem:[#allocation2 + $0x70] sm:$0xff]
  %v48 = vld [vmem:[#allocation2 + $0x78] sm:$0xff]
  %v49 = vld [vmem:[%s0] sm:$0xf]
  %v50 = vld [vmem:[%s0 + $0x4] sm:$0xf]
  %v51 = vld [vmem:[%s0 + $0x8] sm:$0xf]
  %v52 = vld [vmem:[%s0 + $0xc] sm:$0xf]
  %v53 = vld [vmem:[%s0 + $0x10] sm:$0xf]
  %v54 = vld [vmem:[%s0 + $0x14] sm:$0xf]
  %v55 = vld [vmem:[%s0 + $0x18] sm:$0xf]
  %v56 = vld [vmem:[%s0 + $0x1c] sm:$0xf]
  %v57 = vld [vmem:[%s0 + $0x20] sm:$0xf]
  %v58 = vld [vmem:[%s0 + $0x24] sm:$0xf]
  %v59 = vld [vmem:[%s0 + $0x28] sm:$0xf]
  %v60 = vld [vmem:[%s0 + $0x2c] sm:$0xf]
  %v61 = vld [vmem:[%s0 + $0x30] sm:$0xf]
  %v62 = vld [vmem:[%s0 + $0x34] sm:$0xf]
  %v63 = vld [vmem:[%s0 + $0x38] sm:$0xf]
  %v64 = vld [vmem:[%s0 + $0x3c] sm:$0xf]
  %v65 = vld [vmem:[%s1] sm:$0xf]
  %v66 = vld [vmem:[%s1 + $0x4] sm:$0xf]
  %v67 = vld [vmem:[%s1 + $0x8] sm:$0xf]
  %v68 = vld [vmem:[%s1 + $0xc] sm:$0xf]
  %v69 = vld [vmem:[%s1 + $0x10] sm:$0xf]
  %v70 = vld [vmem:[%s1 + $0x14] sm:$0xf]
  %v71 = vld [vmem:[%s1 + $0x18] sm:$0xf]
  %v72 = vld [vmem:[%s1 + $0x1c] sm:$0xf]
  %v73 = vld [vmem:[%s1 + $0x20] sm:$0xf]
  %v90 = vunpack.c.l.b16 %v49
  %v91 = vunpack.c.l.b16 %v50
  %v92 = vunpack.c.l.b16 %v51
  %v93 = vunpack.c.l.b16 %v52
  %v94 = vunpack.c.l.b16 %v53
  %v95 = vunpack.c.l.b16 %v54
  %v96 = vunpack.c.l.b16 %v55
  %v97 = vunpack.c.l.b16 %v56
  %v98 = vunpack.c.l.b16 %v57
  %v99 = vunpack.c.l.b16 %v58
  %v100 = vunpack.c.l.b16 %v59
  %v101 = vunpack.c.l.b16 %v60
  %v102 = vunpack.c.l.b16 %v61
  %v103 = vunpack.c.l.b16 %v62
  %v104 = vunpack.c.l.b16 %v63
  %v105 = vunpack.c.l.b16 %v64
  %v106 = vpack.c.b16 %v91, %v90
  %v107 = vpack.c.b16 %v93, %v92
  %v108 = vpack.c.b16 %v95, %v94
  %v109 = vpack.c.b16 %v97, %v96
  %v110 = vpack.c.b16 %v99, %v98
  %v111 = vpack.c.b16 %v101, %v100
  %v112 = vpack.c.b16 %v103, %v102
  %v113 = vpack.c.b16 %v105, %v104
  %v123 = vunpack.c.l.b16 %v65
  %v124 = vunpack.c.l.b16 %v66
  %v125 = vunpack.c.l.b16 %v67
  %v126 = vunpack.c.l.b16 %v68
  %v127 = vunpack.c.l.b16 %v69
  %v128 = vunpack.c.l.b16 %v70
  %v129 = vunpack.c.l.b16 %v71
  %v130 = vunpack.c.l.b16 %v72
  %v131 = vunpack.c.l.b16 %v73
  %v132 = vpack.c.b16 %v124, %v123
  %v133 = vpack.c.b16 %v126, %v125
  %v134 = vpack.c.b16 %v128, %v127
  %v135 = vpack.c.b16 %v130, %v129
  %v136 = vpack.c.b16 %v131, %v131
  %vm141 = vcmask 588800
  %v143 = vsel %vm141, %v106, 0
  %v146 = vsel %vm141, %v107, 0
  %v149 = vsel %vm141, %v108, 0
  %v152 = vsel %vm141, %v109, 0
  %v155 = vsel %vm141, %v110, 0
  %v158 = vsel %vm141, %v111, 0
  %v161 = vsel %vm141, %v112, 0
  %v164 = vsel %vm141, %v113, 0
  %vm166 = vcmask 1043456
  %v168 = vsel %vm166, %v136, 0
  %170 = vmatprep.subr.bf16.mxu0 0
  %171 = vmatpush1.bf16.msra.mxu0 0
  %172 = vmatprep.subr.bf16.mxu0 0
  %173 = vmatpush1.bf16.msra.mxu0 0
  %174 = vmatprep.subr.bf16.mxu0 0
  %175 = vmatpush1.bf16.msra.mxu0 0
  %176 = vmatprep.subr.bf16.mxu0 0
  %177 = vmatpush1.bf16.msra.mxu0 %v168
  %178 = vmatprep.subr.bf16.mxu0 0
  %179 = vmatpush1.bf16.msra.mxu0 %v135
  %180 = vmatprep.subr.bf16.mxu0 0
  %181 = vmatpush1.bf16.msra.mxu0 %v134
  %182 = vmatprep.subr.bf16.mxu0 0
  %183 = vmatpush1.bf16.msra.mxu0 %v133
  %184 = vmatprep.subr.bf16.mxu0 0
  %185 = vmatpush1.bf16.msra.mxu0 %v132
  %186 = vmatprep.subr.bf16.mxu0 0
  %187 = vmatpush2.bf16.msra.mxu0 0
  %188 = vmatprep.subr.bf16.mxu0 0
  %189 = vmatpush2.bf16.msra.mxu0 0
  %190 = vmatprep.subr.bf16.mxu0 0
  %191 = vmatpush2.bf16.msra.mxu0 0
  %192 = vmatprep.subr.bf16.mxu0 0
  %193 = vmatpush2.bf16.msra.mxu0 0
  %194 = vmatprep.subr.bf16.mxu0 0
  %195 = vmatpush2.bf16.msra.mxu0 0
  %196 = vmatprep.subr.bf16.mxu0 0
  %197 = vmatpush2.bf16.msra.mxu0 0
  %198 = vmatprep.subr.bf16.mxu0 0
  %199 = vmatpush2.bf16.msra.mxu0 0
  %200 = vmatprep.subr.bf16.mxu0 0
  %201 = vmatpush2.bf16.msra.mxu0 0
  %202 = vmatprep.mubr.bf16.mxu0 0
  %203 = vmatmul.mubr.bf16.gmra.mxu0 %v143
  %v204 = vpop.f32.mrf.mxu0
  %v205 = vadd.f32 0.0, %v204
  %v206 = vpop.f32.mrf.mxu0
  %v207 = vpop.f32.mrf.mxu0
  %v208 = vadd.f32 0.0, %v207
  %v209 = vpop.f32.mrf.mxu0
  %210 = vmatprep.mubr.bf16.mxu0 0
  %211 = vmatmul.mubr.bf16.gmra.mxu0 %v146
  %v212 = vpop.f32.mrf.mxu0
  %v213 = vadd.f32 0.0, %v212
  %v214 = vpop.f32.mrf.mxu0
  %v215 = vpop.f32.mrf.mxu0
  %v216 = vadd.f32 0.0, %v215
  %v217 = vpop.f32.mrf.mxu0
  %218 = vmatprep.mubr.bf16.mxu0 0
  %219 = vmatmul.mubr.bf16.gmra.mxu0 %v149
  %v220 = vpop.f32.mrf.mxu0
  %v221 = vadd.f32 0.0, %v220
  %v222 = vpop.f32.mrf.mxu0
  %v223 = vpop.f32.mrf.mxu0
  %v224 = vadd.f32 0.0, %v223
  %v225 = vpop.f32.mrf.mxu0
  %226 = vmatprep.mubr.bf16.mxu0 0
  %227 = vmatmul.mubr.bf16.gmra.mxu0 %v152
  %v228 = vpop.f32.mrf.mxu0
  %v229 = vadd.f32 0.0, %v228
  %v230 = vpop.f32.mrf.mxu0
  %v231 = vpop.f32.mrf.mxu0
  %v232 = vadd.f32 0.0, %v231
  %v233 = vpop.f32.mrf.mxu0
  %234 = vmatprep.mubr.bf16.mxu0 0
  %235 = vmatmul.mubr.bf16.gmra.mxu0 %v155
  %v236 = vpop.f32.mrf.mxu0
  %v237 = vadd.f32 0.0, %v236
  %v238 = vpop.f32.mrf.mxu0
  %v239 = vpop.f32.mrf.mxu0
  %v240 = vadd.f32 0.0, %v239
  %v241 = vpop.f32.mrf.mxu0
  %242 = vmatprep.mubr.bf16.mxu0 0
  %243 = vmatmul.mubr.bf16.gmra.mxu0 %v158
  %v244 = vpop.f32.mrf.mxu0
  %v245 = vadd.f32 0.0, %v244
  %v246 = vpop.f32.mrf.mxu0
  %v247 = vpop.f32.mrf.mxu0
  %v248 = vadd.f32 0.0, %v247
  %v249 = vpop.f32.mrf.mxu0
  %250 = vmatprep.mubr.bf16.mxu0 0
  %251 = vmatmul.mubr.bf16.gmra.mxu0 %v161
  %v252 = vpop.f32.mrf.mxu0
  %v253 = vadd.f32 0.0, %v252
  %v254 = vpop.f32.mrf.mxu0
  %v255 = vpop.f32.mrf.mxu0
  %v256 = vadd.f32 0.0, %v255
  %v257 = vpop.f32.mrf.mxu0
  %258 = vmatprep.mubr.bf16.mxu0 0
  %259 = vmatmul.mubr.bf16.gmra.mxu0 %v164
  %v260 = vpop.f32.mrf.mxu0
  %v261 = vadd.f32 0.0, %v260
  %v262 = vpop.f32.mrf.mxu0
  %v263 = vpop.f32.mrf.mxu0
  %v264 = vadd.f32 0.0, %v263
  %v265 = vpop.f32.mrf.mxu0
  %266 = vdwg.mxu0
  %v267 = vadd.f32 %v33, %v205
  %v268 = vadd.f32 %v34, %v208
  %v269 = vadd.f32 %v35, %v213
  %v270 = vadd.f32 %v36, %v216
  %v271 = vadd.f32 %v37, %v221
  %v272 = vadd.f32 %v38, %v224
  %v273 = vadd.f32 %v39, %v229
  %v274 = vadd.f32 %v40, %v232
  %v275 = vadd.f32 %v41, %v237
  %v276 = vadd.f32 %v42, %v240
  %v277 = vadd.f32 %v43, %v245
  %v278 = vadd.f32 %v44, %v248
  %v279 = vadd.f32 %v45, %v253
  %v280 = vadd.f32 %v46, %v256
  %v281 = vadd.f32 %v47, %v261
  %v282 = vadd.f32 %v48, %v264
  %vm283 = vcmask 130048
  %284 = vst.msk [vmem:[#allocation2] sm:$0xff] %vm283, %v267
  %285 = vst.msk [vmem:[#allocation2 + $0x8] sm:$0xff] %vm283, %v268
  %286 = vst.msk [vmem:[#allocation2 + $0x10] sm:$0xff] %vm283, %v269
  %287 = vst.msk [vmem:[#allocation2 + $0x18] sm:$0xff] %vm283, %v270
  %288 = vst.msk [vmem:[#allocation2 + $0x20] sm:$0xff] %vm283, %v271
  %289 = vst.msk [vmem:[#allocation2 + $0x28] sm:$0xff] %vm283, %v272
  %290 = vst.msk [vmem:[#allocation2 + $0x30] sm:$0xff] %vm283, %v273
  %291 = vst.msk [vmem:[#allocation2 + $0x38] sm:$0xff] %vm283, %v274
  %292 = vst.msk [vmem:[#allocation2 + $0x40] sm:$0xff] %vm283, %v275
  %293 = vst.msk [vmem:[#allocation2 + $0x48] sm:$0xff] %vm283, %v276
  %294 = vst.msk [vmem:[#allocation2 + $0x50] sm:$0xff] %vm283, %v277
  %295 = vst.msk [vmem:[#allocation2 + $0x58] sm:$0xff] %vm283, %v278
  %296 = vst.msk [vmem:[#allocation2 + $0x60] sm:$0xff] %vm283, %v279
  %297 = vst.msk [vmem:[#allocation2 + $0x68] sm:$0xff] %vm283, %v280
  %298 = vst.msk [vmem:[#allocation2 + $0x70] sm:$0xff] %vm283, %v281
  %299 = vst.msk [vmem:[#allocation2 + $0x78] sm:$0xff] %vm283, %v282
  // Predicated region
  $region14: #{resnet_generator_forward.33} parent=0 // pred_check
    %p300 = pneg %p12
  $region15: #{resnet_generator_forward.33} parent=0 // pred_check_branch
    %302 = sbr.rel (%p300) target = $region17
  $region16: #{resnet_generator_forward.33} parent=0 // pred_region
    %v303 = vld [vmem:[#allocation2] sm:$0xff]
    %v304 = vld [vmem:[#allocation2 + $0x8] sm:$0xff]
    %v305 = vld [vmem:[#allocation2 + $0x10] sm:$0xff]
    %v306 = vld [vmem:[#allocation2 + $0x18] sm:$0xff]
    %v307 = vld [vmem:[#allocation2 + $0x20] sm:$0xff]
    %v308 = vld [vmem:[#allocation2 + $0x28] sm:$0xff]
    %v309 = vld [vmem:[#allocation2 + $0x30] sm:$0xff]
    %v310 = vld [vmem:[#allocation2 + $0x38] sm:$0xff]
    %v311 = vld [vmem:[#allocation2 + $0x40] sm:$0xff]
    %v312 = vld [vmem:[#allocation2 + $0x48] sm:$0xff]
    %v313 = vld [vmem:[#allocation2 + $0x50] sm:$0xff]
    %v314 = vld [vmem:[#allocation2 + $0x58] sm:$0xff]
    %v315 = vld [vmem:[#allocation2 + $0x60] sm:$0xff]
    %v316 = vld [vmem:[#allocation2 + $0x68] sm:$0xff]
    %v317 = vld [vmem:[#allocation2 + $0x70] sm:$0xff]
    %v318 = vld [vmem:[#allocation2 + $0x78] sm:$0xff]
    %319 = vst.msk [vmem:[%s2] sm:$0xff] %vm283, %v303
    %320 = vst.msk [vmem:[%s2 + $0x8] sm:$0xff] %vm283, %v304
    %321 = vst.msk [vmem:[%s2 + $0x10] sm:$0xff] %vm283, %v305
    %322 = vst.msk [vmem:[%s2 + $0x18] sm:$0xff] %vm283, %v306
    %323 = vst.msk [vmem:[%s2 + $0x20] sm:$0xff] %vm283, %v307
    %324 = vst.msk [vmem:[%s2 + $0x28] sm:$0xff] %vm283, %v308
    %325 = vst.msk [vmem:[%s2 + $0x30] sm:$0xff] %vm283, %v309
    %326 = vst.msk [vmem:[%s2 + $0x38] sm:$0xff] %vm283, %v310
    %327 = vst.msk [vmem:[%s2 + $0x40] sm:$0xff] %vm283, %v311
    %328 = vst.msk [vmem:[%s2 + $0x48] sm:$0xff] %vm283, %v312
    %329 = vst.msk [vmem:[%s2 + $0x50] sm:$0xff] %vm283, %v313
    %330 = vst.msk [vmem:[%s2 + $0x58] sm:$0xff] %vm283, %v314
    %331 = vst.msk [vmem:[%s2 + $0x60] sm:$0xff] %vm283, %v315
    %332 = vst.msk [vmem:[%s2 + $0x68] sm:$0xff] %vm283, %v316
    %333 = vst.msk [vmem:[%s2 + $0x70] sm:$0xff] %vm283, %v317
    %334 = vst.msk [vmem:[%s2 + $0x78] sm:$0xff] %vm283, %v318
  $region17: #{resnet_generator_forward.33} parent=0 // pred_fallthru
    _
  // Predicated region
  $region18: #{resnet_generator_forward.33} parent=0 // pred_check
    _
  $region19: #{resnet_generator_forward.33} parent=0 // pred_check_branch
    %336 = sbr.rel (0) target = $region21
  $region20: #{resnet_generator_forward.33} parent=0 // pred_region
    _
  $region21: #{resnet_generator_forward.33} parent=0 // pred_fallthru
    _
  // Predicated region
  $region22: #{resnet_generator_forward.33} parent=0 // pred_check
    _
  $region23: #{resnet_generator_forward.33} parent=0 // pred_check_branch
    %338 = sbr.rel (0) target = $region25
  $region24: #{resnet_generator_forward.33} parent=0 // pred_region
    _
  $region25: #{resnet_generator_forward.33} parent=0 // pred_fallthru
    _

// kernel: tile.103
$region0: #{tile.103}
  #allocation0 [shape = 's32[1]{0}', space=sflag, size = 0x4, scoped, tag = 'scoped memory for tile.103']
  %s0 = inlined_call_operand.vmem [shape: f32[16], index: 0, kind: input, shape index: {}]
  %s1 = inlined_call_operand.vmem [shape: f32[8,16], index: 1, kind: output, shape index: {}]
  // Predicated region
  $region2: #{tile.103} parent=0 // pred_check
    _
  $region3: #{tile.103} parent=0 // pred_check_branch
    %3 = sbr.rel (0) target = $region5
  $region4: #{tile.103} parent=0 // pred_region
    _
  $region5: #{tile.103} parent=0 // pred_fallthru
    _
  %v4 = vld [vmem:[%s0] ss:$0 sm:$0xff]
  %5 = vst [vmem:[%s1] sm:$0xff] %v4

// kernel: tile.104
$region0: #{tile.104}
  %s0 = inlined_call_operand.vmem [shape: f32[8,16], index: 0, kind: input, shape index: {}]
  %s1 = inlined_call_operand.vmem [shape: f32[1,128], index: 1, kind: output, shape index: {}]
  $region1: #{tile.104} parent=0
    #allocation0 [shape = 'u8[4096]{0}', space=vmem, size = 0x1000, scoped, tag = 'scoped mem for output reshape']
    %v2 = vld [vmem:[%s0] sm:$0x1]
    %vm3 = vcmask 130048
    %4 = vst.msk [vmem:[#allocation0] sm:$0x1] %vm3, %v2
    %s5 = scalar_lea.vmem %s0, 7
    %v6 = vld [vmem:[%s5] sm:$0x1]
    %7 = vrot.lane.b32.xlu0 %v6, 112
    %v8 = vpop.permute.xlu0 %7
    %vm9 = vcmask 1048448
    %10 = vst.msk [vmem:[#allocation0] sm:$0x1] %vm9, %v8
    %s11 = scalar_lea.vmem %s0, 6
    %v12 = vld [vmem:[%s11] sm:$0x1]
    %13 = vrot.lane.b32.xlu0 %v12, 96
    %v14 = vpop.permute.xlu0 %13
    %vm15 = vcmask 917248
    %16 = vst.msk [vmem:[#allocation0] sm:$0x1] %vm15, %v14
    %s17 = scalar_lea.vmem %s0, 5
    %v18 = vld [vmem:[%s17] sm:$0x1]
    %19 = vrot.lane.b32.xlu0 %v18, 80
    %v20 = vpop.permute.xlu0 %19
    %vm21 = vcmask 786048
    %22 = vst.msk [vmem:[#allocation0] sm:$0x1] %vm21, %v20
    %s23 = scalar_lea.vmem %s0, 4
    %v24 = vld [vmem:[%s23] sm:$0x1]
    %25 = vrot.lane.b32.xlu0 %v24, 64
    %v26 = vpop.permute.xlu0 %25
    %vm27 = vcmask 654848
    %28 = vst.msk [vmem:[#allocation0] sm:$0x1] %vm27, %v26
    %s29 = scalar_lea.vmem %s0, 3
    %v30 = vld [vmem:[%s29] sm:$0x1]
    %31 = vrot.lane.b32.xlu0 %v30, 48
    %v32 = vpop.permute.xlu0 %31
    %vm33 = vcmask 523648
    %34 = vst.msk [vmem:[#allocation0] sm:$0x1] %vm33, %v32
    %s35 = scalar_lea.vmem %s0, 2
    %v36 = vld [vmem:[%s35] sm:$0x1]
    %37 = vrot.lane.b32.xlu0 %v36, 32
    %v38 = vpop.permute.xlu0 %37
    %vm39 = vcmask 392448
    %40 = vst.msk [vmem:[#allocation0] sm:$0x1] %vm39, %v38
    %s41 = scalar_lea.vmem %s0, 1
    %v42 = vld [vmem:[%s41] sm:$0x1]
    %43 = vrot.lane.b32.xlu0 %v42, 16
    %v44 = vpop.permute.xlu0 %43
    %vm45 = vcmask 261248
    %46 = vst.msk [vmem:[#allocation0] sm:$0x1] %vm45, %v44
    %s48 = sshll.u32 1, 1
    %s49 = ssub.s32 %s48, 1
    %v51 = vld [vmem:[#allocation0] sm:%s49]
    %s52 = sshll.u32 1, 1
    %s53 = ssub.s32 %s52, 1
    %54 = vst [vmem:[%s1] sm:%s53] %v51

// kernel: resnet_generator_forward.34
$region0: #{resnet_generator_forward.34}
  #allocation0 [shape = 'u32[]', space=smem, size = 0x4, offset = 0x4, fixed_abs, tag = 'smem constant byte address 0x4 - core index']
  #allocation1 [shape = 'u32[144,128]{1,0:T(1,128)}', space=vmem, size = 0x12000, scoped, tag = 'internal scratch']
  %s0 = inlined_call_operand.vmem [shape: f32[16,128], index: 0, kind: input, shape index: {}]
  %s1 = inlined_call_operand.vmem [shape: f32[1,128], index: 1, kind: output, shape index: {0}]
  %s2 = inlined_call_operand.vmem [shape: f32[1,128], index: 2, kind: output, shape index: {1}]
  %3 = xla_tuple %s1, %s2
  %s4 = sld [smem:[#allocation0]]
  $region26: #{resnet_generator_forward.34} parent=0
    _
  %s6 = ssub.s32 1, %s4
  %s7 = scalar_select 0, %s6, %s4
  // Predicated region
  $region2: #{resnet_generator_forward.34} parent=0 // pred_check
    _
  $region3: #{resnet_generator_forward.34} parent=0 // pred_check_branch
    %9 = sbr.rel (0) target = $region5
  $region4: #{resnet_generator_forward.34} parent=0 // pred_region
    _
  $region5: #{resnet_generator_forward.34} parent=0 // pred_fallthru
    _
  %p10 = scmp.eq.s32.totalorder 0, 0
  // Predicated region
  $region6: #{resnet_generator_forward.34} parent=0 // pred_check
    %p11 = pneg %p10
  $region7: #{resnet_generator_forward.34} parent=0 // pred_check_branch
    %13 = sbr.rel (%p11) target = $region9
  $region8: #{resnet_generator_forward.34} parent=0 // pred_region
    %14 = vst [vmem:[%s1] sm:$0x1] 0.0
    %15 = vst [vmem:[%s2] sm:$0x1] 0.0
  $region9: #{resnet_generator_forward.34} parent=0 // pred_fallthru
    _
  %v16 = vld [vmem:[%s0] sm:$0xff]
  %v17 = vld [vmem:[%s0 + $0x8] sm:$0xff]
  %v18 = vld [vmem:[%s1] sm:$0x1]
  %v19 = vadd.f32 %v16, %v17
  %v20 = vrot.slane %v19, 4
  %v21 = vadd.f32 %v19, %v20
  %v22 = vrot.slane %v21, 2
  %v23 = vadd.f32 %v21, %v22
  %v24 = vrot.slane %v23, 1
  %v25 = vadd.f32 %v23, %v24
  %v26 = vadd.f32 %v18, %v25
  %27 = vst [vmem:[%s1] sm:$0x1] %v26
  %v28 = vld [vmem:[%s2] sm:$0x1]
  %v29 = vmul.f32 %v16, %v16
  %v30 = vmul.f32 %v17, %v17
  %v31 = vadd.f32 %v29, %v30
  %v32 = vrot.slane %v31, 4
  %v33 = vadd.f32 %v31, %v32
  %v34 = vrot.slane %v33, 2
  %v35 = vadd.f32 %v33, %v34
  %v36 = vrot.slane %v35, 1
  %v37 = vadd.f32 %v35, %v36
  %v38 = vadd.f32 %v28, %v37
  %39 = vst [vmem:[%s2] sm:$0x1] %v38
  // Predicated region
  $region10: #{resnet_generator_forward.34} parent=0 // pred_check
    _
  $region11: #{resnet_generator_forward.34} parent=0 // pred_check_branch
    %41 = sbr.rel (0) target = $region13
  $region12: #{resnet_generator_forward.34} parent=0 // pred_region
    _
  $region13: #{resnet_generator_forward.34} parent=0 // pred_fallthru
    _
  // Predicated region
  $region14: #{resnet_generator_forward.34} parent=0 // pred_check
    _
  $region15: #{resnet_generator_forward.34} parent=0 // pred_check_branch
    %43 = sbr.rel (0) target = $region17
  $region16: #{resnet_generator_forward.34} parent=0 // pred_region
    _
  $region17: #{resnet_generator_forward.34} parent=0 // pred_fallthru
    _
  // Predicated region
  $region18: #{resnet_generator_forward.34} parent=0 // pred_check
    _
  $region19: #{resnet_generator_forward.34} parent=0 // pred_check_branch
    %45 = sbr.rel (0) target = $region21
  $region20: #{resnet_generator_forward.34} parent=0 // pred_region
    _
  $region21: #{resnet_generator_forward.34} parent=0 // pred_fallthru
    _
  // Predicated region
  $region22: #{resnet_generator_forward.34} parent=0 // pred_check
    _
  $region23: #{resnet_generator_forward.34} parent=0 // pred_check_branch
    %47 = sbr.rel (0) target = $region25
  $region24: #{resnet_generator_forward.34} parent=0 // pred_region
    _
  $region25: #{resnet_generator_forward.34} parent=0 // pred_fallthru
    _

// kernel: resnet_generator_forward.35
$region0: #{resnet_generator_forward.35}
  #allocation0 [shape = 'u32[]', space=smem, size = 0x4, offset = 0x4, fixed_abs, tag = 'smem constant byte address 0x4 - core index']
  #allocation1 [shape = 'u32[144,128]{1,0:T(1,128)}', space=vmem, size = 0x12000, scoped, tag = 'internal scratch']
  %s0 = inlined_call_operand.vmem [shape: f32[16,128], index: 0, kind: input, shape index: {}]
  %s1 = inlined_call_operand.vmem [shape: f32[1,128], index: 1, kind: input, shape index: {}]
  %s2 = inlined_call_operand.vmem [shape: f32[1,128], index: 2, kind: input, shape index: {}]
  %s3 = inlined_call_operand.vmem [shape: f32[16,128], index: 3, kind: output, shape index: {}]
  %s4 = sld [smem:[#allocation0]]
  $region22: #{resnet_generator_forward.35} parent=0
    _
  %s6 = ssub.s32 1, %s4
  %s7 = scalar_select 0, %s6, %s4
  // Predicated region
  $region2: #{resnet_generator_forward.35} parent=0 // pred_check
    _
  $region3: #{resnet_generator_forward.35} parent=0 // pred_check_branch
    %9 = sbr.rel (0) target = $region5
  $region4: #{resnet_generator_forward.35} parent=0 // pred_region
    _
  $region5: #{resnet_generator_forward.35} parent=0 // pred_fallthru
    _
  // Predicated region
  $region6: #{resnet_generator_forward.35} parent=0 // pred_check
    _
  $region7: #{resnet_generator_forward.35} parent=0 // pred_check_branch
    %11 = sbr.rel (0) target = $region9
  $region8: #{resnet_generator_forward.35} parent=0 // pred_region
    _
  $region9: #{resnet_generator_forward.35} parent=0 // pred_fallthru
    _
  // Predicated region
  $region10: #{resnet_generator_forward.35} parent=0 // pred_check
    _
  $region11: #{resnet_generator_forward.35} parent=0 // pred_check_branch
    %13 = sbr.rel (0) target = $region13
  $region12: #{resnet_generator_forward.35} parent=0 // pred_region
    _
  $region13: #{resnet_generator_forward.35} parent=0 // pred_fallthru
    _
  %v14 = vld [vmem:[%s0] sm:$0xff]
  %v15 = vld [vmem:[%s0 + $0x8] sm:$0xff]
  %v16 = vld [vmem:[%s1] sm:$0x1]
  %v18 = vlaneseq
  %v19 = vshrl.u32 %v18, 7
  %v20 = vsub.s32 0, %v19
  %v21 = vrot.slane %v16, %v20
  %v23 = vmul.f32 %v14, %v21
  %v24 = vmul.f32 %v15, %v21
  %v25 = vld [vmem:[%s2] sm:$0x1]
  %v27 = vlaneseq
  %v28 = vshrl.u32 %v27, 7
  %v29 = vsub.s32 0, %v28
  %v30 = vrot.slane %v25, %v29
  %v32 = vadd.f32 %v23, %v30
  %v33 = vadd.f32 %v24, %v30
  %v34 = vmax.f32 %v32, 0.0
  %v35 = vmax.f32 %v33, 0.0
  %36 = vst [vmem:[%s3] sm:$0xff] %v34
  %37 = vst [vmem:[%s3 + $0x8] sm:$0xff] %v35
  // Predicated region
  $region14: #{resnet_generator_forward.35} parent=0 // pred_check
    _
  $region15: #{resnet_generator_forward.35} parent=0 // pred_check_branch
    %39 = sbr.rel (0) target = $region17
  $region16: #{resnet_generator_forward.35} parent=0 // pred_region
    _
  $region17: #{resnet_generator_forward.35} parent=0 // pred_fallthru
    _
  // Predicated region
  $region18: #{resnet_generator_forward.35} parent=0 // pred_check
    _
  $region19: #{resnet_generator_forward.35} parent=0 // pred_check_branch
    %41 = sbr.rel (0) target = $region21
  $region20: #{resnet_generator_forward.35} parent=0 // pred_region
    _
  $region21: #{resnet_generator_forward.35} parent=0 // pred_fallthru
    _

// kernel: tile.113
$region0: #{tile.113}
  #allocation0 [shape = 's32[1]{0}', space=sflag, size = 0x4, scoped, tag = 'scoped memory for tile.113']
  %s0 = inlined_call_operand.vmem [shape: f32[32], index: 0, kind: input, shape index: {}]
  %s1 = inlined_call_operand.vmem [shape: f32[4,32], index: 1, kind: output, shape index: {}]
  // Predicated region
  $region2: #{tile.113} parent=0 // pred_check
    _
  $region3: #{tile.113} parent=0 // pred_check_branch
    %3 = sbr.rel (0) target = $region5
  $region4: #{tile.113} parent=0 // pred_region
    _
  $region5: #{tile.113} parent=0 // pred_fallthru
    _
  %v4 = vld [vmem:[%s0] ss:$0 sm:$0xff]
  %5 = vst [vmem:[%s1] sm:$0xf] %v4

// kernel: tile.114
$region0: #{tile.114}
  %s0 = inlined_call_operand.vmem [shape: f32[4,32], index: 0, kind: input, shape index: {}]
  %s1 = inlined_call_operand.vmem [shape: f32[1,128], index: 1, kind: output, shape index: {}]
  $region1: #{tile.114} parent=0
    #allocation0 [shape = 'u8[4096]{0}', space=vmem, size = 0x1000, scoped, tag = 'scoped mem for output reshape']
    #allocation1 [shape = 'u8[4096]{0}', space=vmem, size = 0x1000, scoped, tag = 'scoped mem for input reshape']
    %s3 = sshll.u32 1, 4
    %s4 = ssub.s32 %s3, 1
    %v5 = vld [vmem:[%s0] sm:%s4]
    %6 = vst [vmem:[#allocation1] sm:%s4] %v5
    %v7 = vld [vmem:[#allocation1] sm:$0x1]
    %vm8 = vcmask 261120
    %9 = vst.msk [vmem:[#allocation0] sm:$0x1] %vm8, %v7
    %s10 = scalar_lea.vmem [#allocation1], 3
    %v11 = vld [vmem:[%s10] sm:$0x1]
    %12 = vrot.lane.b32.xlu0 %v11, 96
    %v13 = vpop.permute.xlu0 %12
    %vm14 = vcmask 1048320
    %15 = vst.msk [vmem:[#allocation0] sm:$0x1] %vm14, %v13
    %s16 = scalar_lea.vmem [#allocation1], 2
    %v17 = vld [vmem:[%s16] sm:$0x1]
    %18 = vrot.lane.b32.xlu0 %v17, 64
    %v19 = vpop.permute.xlu0 %18
    %vm20 = vcmask 785920
    %21 = vst.msk [vmem:[#allocation0] sm:$0x1] %vm20, %v19
    %s22 = scalar_lea.vmem [#allocation1], 1
    %v23 = vld [vmem:[%s22] sm:$0x1]
    %24 = vrot.lane.b32.xlu0 %v23, 32
    %v25 = vpop.permute.xlu0 %24
    %vm26 = vcmask 523520
    %27 = vst.msk [vmem:[#allocation0] sm:$0x1] %vm26, %v25
    %s29 = sshll.u32 1, 1
    %s30 = ssub.s32 %s29, 1
    %v32 = vld [vmem:[#allocation0] sm:%s30]
    %s33 = sshll.u32 1, 1
    %s34 = ssub.s32 %s33, 1
    %35 = vst [vmem:[%s1] sm:%s34] %v32

// kernel: resnet_generator_forward.36
$region0: #{resnet_generator_forward.36}
  #allocation0 [shape = 'u32[]', space=smem, size = 0x4, offset = 0x4, fixed_abs, tag = 'smem constant byte address 0x4 - core index']
  #allocation1 [shape = 'u32[144,128]{1,0:T(1,128)}', space=vmem, size = 0x12000, scoped, tag = 'internal scratch']
  #allocation2 [shape = 'f32[32,32]{1,0:T(8,128)}', space=vmem, size = 0x4000, scoped, tag = 'scratch operand']
  %s0 = inlined_call_operand.vmem [shape: bf16[32,144], index: 0, kind: input, shape index: {}]
  %s1 = inlined_call_operand.vmem [shape: bf16[144,32], index: 1, kind: input, shape index: {}]
  %s2 = inlined_call_operand.vmem [shape: f32[32,32], index: 2, kind: output, shape index: {}]
  %s3 = sld [smem:[#allocation0]]
  $region26: #{resnet_generator_forward.36} parent=0
    _
  %s5 = ssub.s32 1, %s3
  %s6 = scalar_select 0, %s5, %s3
  // Predicated region
  $region2: #{resnet_generator_forward.36} parent=0 // pred_check
    _
  $region3: #{resnet_generator_forward.36} parent=0 // pred_check_branch
    %8 = sbr.rel (0) target = $region5
  $region4: #{resnet_generator_forward.36} parent=0 // pred_region
    _
  $region5: #{resnet_generator_forward.36} parent=0 // pred_fallthru
    _
  // Predicated region
  $region6: #{resnet_generator_forward.36} parent=0 // pred_check
    _
  $region7: #{resnet_generator_forward.36} parent=0 // pred_check_branch
    %10 = sbr.rel (0) target = $region9
  $region8: #{resnet_generator_forward.36} parent=0 // pred_region
    _
  $region9: #{resnet_generator_forward.36} parent=0 // pred_fallthru
    _
  %p12 = scmp.eq.s32.totalorder 0, 0
  // Predicated region
  $region10: #{resnet_generator_forward.36} parent=0 // pred_check
    %p13 = pneg %p12
  $region11: #{resnet_generator_forward.36} parent=0 // pred_check_branch
    %15 = sbr.rel (%p13) target = $region13
  $region12: #{resnet_generator_forward.36} parent=0 // pred_region
    %vm16 = vcmask 261120
    %17 = vst.msk [vmem:[#allocation2] sm:$0xff] %vm16, 0.0
    %18 = vst.msk [vmem:[#allocation2 + $0x8] sm:$0xff] %vm16, 0.0
    %19 = vst.msk [vmem:[#allocation2 + $0x10] sm:$0xff] %vm16, 0.0
    %20 = vst.msk [vmem:[#allocation2 + $0x18] sm:$0xff] %vm16, 0.0
  $region13: #{resnet_generator_forward.36} parent=0 // pred_fallthru
    _
  %v21 = vld [vmem:[#allocation2] sm:$0xff]
  %v22 = vld [vmem:[#allocation2 + $0x8] sm:$0xff]
  %v23 = vld [vmem:[#allocation2 + $0x10] sm:$0xff]
  %v24 = vld [vmem:[#allocation2 + $0x18] sm:$0xff]
  %v25 = vld [vmem:[%s0] sm:$0xff]
  %v26 = vld [vmem:[%s0 + $0x8] sm:$0xff]
  %v27 = vld [vmem:[%s0 + $0x10] sm:$0xff]
  %v28 = vld [vmem:[%s0 + $0x18] sm:$0xff]
  %v29 = vld [vmem:[%s1] sm:$0xf]
  %v30 = vld [vmem:[%s1 + $0x4] sm:$0xf]
  %v31 = vld [vmem:[%s1 + $0x8] sm:$0xf]
  %v32 = vld [vmem:[%s1 + $0xc] sm:$0xf]
  %v33 = vld [vmem:[%s1 + $0x10] sm:$0xf]
  %v34 = vld [vmem:[%s1 + $0x14] sm:$0xf]
  %v35 = vld [vmem:[%s1 + $0x18] sm:$0xf]
  %v36 = vld [vmem:[%s1 + $0x1c] sm:$0xf]
  %v37 = vld [vmem:[%s1 + $0x20] sm:$0xf]
  %v38 = vld [vmem:[%s1 + $0x24] sm:$0xf]
  %v39 = vld [vmem:[%s1 + $0x28] sm:$0xf]
  %v40 = vld [vmem:[%s1 + $0x2c] sm:$0xf]
  %v41 = vld [vmem:[%s1 + $0x30] sm:$0xf]
  %v42 = vld [vmem:[%s1 + $0x34] sm:$0xf]
  %v43 = vld [vmem:[%s1 + $0x38] sm:$0xf]
  %v44 = vld [vmem:[%s1 + $0x3c] sm:$0xf]
  %v45 = vld [vmem:[%s1 + $0x40] sm:$0xf]
  %v46 = vld [vmem:[%s1 + $0x44] sm:$0xf]
  %v51 = vunpack.c.l.b16 %v25
  %v52 = vunpack.c.h.b16 %v25
  %v53 = vunpack.c.l.b16 %v26
  %v54 = vunpack.c.h.b16 %v26
  %v55 = vunpack.c.l.b16 %v27
  %v56 = vunpack.c.h.b16 %v27
  %v57 = vunpack.c.l.b16 %v28
  %v58 = vunpack.c.h.b16 %v28
  %v59 = vpack.c.b16 %v53, %v51
  %v60 = vpack.c.b16 %v54, %v52
  %v61 = vpack.c.b16 %v57, %v55
  %v62 = vpack.c.b16 %v58, %v56
  %v83 = vunpack.c.l.b16 %v29
  %v84 = vunpack.c.l.b16 %v30
  %v85 = vunpack.c.l.b16 %v31
  %v86 = vunpack.c.l.b16 %v32
  %v87 = vunpack.c.l.b16 %v33
  %v88 = vunpack.c.l.b16 %v34
  %v89 = vunpack.c.l.b16 %v35
  %v90 = vunpack.c.l.b16 %v36
  %v91 = vunpack.c.l.b16 %v37
  %v92 = vunpack.c.l.b16 %v38
  %v93 = vunpack.c.l.b16 %v39
  %v94 = vunpack.c.l.b16 %v40
  %v95 = vunpack.c.l.b16 %v41
  %v96 = vunpack.c.l.b16 %v42
  %v97 = vunpack.c.l.b16 %v43
  %v98 = vunpack.c.l.b16 %v44
  %v99 = vunpack.c.l.b16 %v45
  %v100 = vunpack.c.l.b16 %v46
  %v101 = vpack.c.b16 %v84, %v83
  %v102 = vpack.c.b16 %v86, %v85
  %v103 = vpack.c.b16 %v88, %v87
  %v104 = vpack.c.b16 %v90, %v89
  %v105 = vpack.c.b16 %v92, %v91
  %v106 = vpack.c.b16 %v94, %v93
  %v107 = vpack.c.b16 %v96, %v95
  %v108 = vpack.c.b16 %v98, %v97
  %v109 = vpack.c.b16 %v100, %v99
  %vm119 = vcmask 130048
  %v121 = vsel %vm119, %v60, 0
  %v124 = vsel %vm119, %v62, 0
  %126 = vmatprep.subr.bf16.mxu0 0
  %127 = vmatpush1.bf16.msra.mxu0 %v108
  %128 = vmatprep.subr.bf16.mxu0 0
  %129 = vmatpush1.bf16.msra.mxu0 %v107
  %130 = vmatprep.subr.bf16.mxu0 0
  %131 = vmatpush1.bf16.msra.mxu0 %v106
  %132 = vmatprep.subr.bf16.mxu0 0
  %133 = vmatpush1.bf16.msra.mxu0 %v105
  %134 = vmatprep.subr.bf16.mxu0 0
  %135 = vmatpush1.bf16.msra.mxu0 %v104
  %136 = vmatprep.subr.bf16.mxu0 0
  %137 = vmatpush1.bf16.msra.mxu0 %v103
  %138 = vmatprep.subr.bf16.mxu0 0
  %139 = vmatpush1.bf16.msra.mxu0 %v102
  %140 = vmatprep.subr.bf16.mxu0 0
  %141 = vmatpush1.bf16.msra.mxu0 %v101
  %142 = vmatprep.subr.bf16.mxu0 0
  %143 = vmatpush2.bf16.msra.mxu0 0
  %144 = vmatprep.subr.bf16.mxu0 0
  %145 = vmatpush2.bf16.msra.mxu0 0
  %146 = vmatprep.subr.bf16.mxu0 0
  %147 = vmatpush2.bf16.msra.mxu0 0
  %148 = vmatprep.subr.bf16.mxu0 0
  %149 = vmatpush2.bf16.msra.mxu0 0
  %150 = vmatprep.subr.bf16.mxu0 0
  %151 = vmatpush2.bf16.msra.mxu0 0
  %152 = vmatprep.subr.bf16.mxu0 0
  %153 = vmatpush2.bf16.msra.mxu0 0
  %154 = vmatprep.subr.bf16.mxu0 0
  %155 = vmatpush2.bf16.msra.mxu0 0
  %156 = vmatprep.subr.bf16.mxu0 0
  %157 = vmatpush2.bf16.msra.mxu0 %v109
  %158 = vmatprep.mubr.bf16.mxu0 %v121
  %159 = vmatmul.mubr.bf16.gmra.mxu0 %v59
  %v160 = vpop.f32.mrf.mxu0
  %v161 = vadd.f32 0.0, %v160
  %v162 = vpop.f32.mrf.mxu0
  %v163 = vpop.f32.mrf.mxu0
  %v164 = vadd.f32 0.0, %v163
  %v165 = vpop.f32.mrf.mxu0
  %166 = vmatprep.mubr.bf16.mxu0 %v124
  %167 = vmatmul.mubr.bf16.gmra.mxu0 %v61
  %v168 = vpop.f32.mrf.mxu0
  %v169 = vadd.f32 0.0, %v168
  %v170 = vpop.f32.mrf.mxu0
  %v171 = vpop.f32.mrf.mxu0
  %v172 = vadd.f32 0.0, %v171
  %v173 = vpop.f32.mrf.mxu0
  %174 = vdwg.mxu0
  %v175 = vadd.f32 %v21, %v161
  %v176 = vadd.f32 %v22, %v164
  %v177 = vadd.f32 %v23, %v169
  %v178 = vadd.f32 %v24, %v172
  %vm179 = vcmask 261120
  %180 = vst.msk [vmem:[#allocation2] sm:$0xff] %vm179, %v175
  %181 = vst.msk [vmem:[#allocation2 + $0x8] sm:$0xff] %vm179, %v176
  %182 = vst.msk [vmem:[#allocation2 + $0x10] sm:$0xff] %vm179, %v177
  %183 = vst.msk [vmem:[#allocation2 + $0x18] sm:$0xff] %vm179, %v178
  // Predicated region
  $region14: #{resnet_generator_forward.36} parent=0 // pred_check
    %p184 = pneg %p12
  $region15: #{resnet_generator_forward.36} parent=0 // pred_check_branch
    %186 = sbr.rel (%p184) target = $region17
  $region16: #{resnet_generator_forward.36} parent=0 // pred_region
    %v187 = vld [vmem:[#allocation2] sm:$0xff]
    %v188 = vld [vmem:[#allocation2 + $0x8] sm:$0xff]
    %v189 = vld [vmem:[#allocation2 + $0x10] sm:$0xff]
    %v190 = vld [vmem:[#allocation2 + $0x18] sm:$0xff]
    %191 = vst.msk [vmem:[%s2] sm:$0xff] %vm179, %v187
    %192 = vst.msk [vmem:[%s2 + $0x8] sm:$0xff] %vm179, %v188
    %193 = vst.msk [vmem:[%s2 + $0x10] sm:$0xff] %vm179, %v189
    %194 = vst.msk [vmem:[%s2 + $0x18] sm:$0xff] %vm179, %v190
  $region17: #{resnet_generator_forward.36} parent=0 // pred_fallthru
    _
  // Predicated region
  $region18: #{resnet_generator_forward.36} parent=0 // pred_check
    _
  $region19: #{resnet_generator_forward.36} parent=0 // pred_check_branch
    %196 = sbr.rel (0) target = $region21
  $region20: #{resnet_generator_forward.36} parent=0 // pred_region
    _
  $region21: #{resnet_generator_forward.36} parent=0 // pred_fallthru
    _
  // Predicated region
  $region22: #{resnet_generator_forward.36} parent=0 // pred_check
    _
  $region23: #{resnet_generator_forward.36} parent=0 // pred_check_branch
    %198 = sbr.rel (0) target = $region25
  $region24: #{resnet_generator_forward.36} parent=0 // pred_region
    _
  $region25: #{resnet_generator_forward.36} parent=0 // pred_fallthru
    _

// kernel: resnet_generator_forward.37
$region0: #{resnet_generator_forward.37}
  #allocation0 [shape = 'u32[]', space=smem, size = 0x4, offset = 0x4, fixed_abs, tag = 'smem constant byte address 0x4 - core index']
  #allocation1 [shape = 'u32[144,128]{1,0:T(1,128)}', space=vmem, size = 0x12000, scoped, tag = 'internal scratch']
  %s0 = inlined_call_operand.vmem [shape: f32[8,128], index: 0, kind: input, shape index: {}]
  %s1 = inlined_call_operand.vmem [shape: f32[1,128], index: 1, kind: output, shape index: {0}]
  %s2 = inlined_call_operand.vmem [shape: f32[1,128], index: 2, kind: output, shape index: {1}]
  %3 = xla_tuple %s1, %s2
  %s4 = sld [smem:[#allocation0]]
  $region26: #{resnet_generator_forward.37} parent=0
    _
  %s6 = ssub.s32 1, %s4
  %s7 = scalar_select 0, %s6, %s4
  // Predicated region
  $region2: #{resnet_generator_forward.37} parent=0 // pred_check
    _
  $region3: #{resnet_generator_forward.37} parent=0 // pred_check_branch
    %9 = sbr.rel (0) target = $region5
  $region4: #{resnet_generator_forward.37} parent=0 // pred_region
    _
  $region5: #{resnet_generator_forward.37} parent=0 // pred_fallthru
    _
  %p10 = scmp.eq.s32.totalorder 0, 0
  // Predicated region
  $region6: #{resnet_generator_forward.37} parent=0 // pred_check
    %p11 = pneg %p10
  $region7: #{resnet_generator_forward.37} parent=0 // pred_check_branch
    %13 = sbr.rel (%p11) target = $region9
  $region8: #{resnet_generator_forward.37} parent=0 // pred_region
    %14 = vst [vmem:[%s1] sm:$0x1] 0.0
    %15 = vst [vmem:[%s2] sm:$0x1] 0.0
  $region9: #{resnet_generator_forward.37} parent=0 // pred_fallthru
    _
  %v16 = vld [vmem:[%s0] sm:$0xff]
  %v17 = vld [vmem:[%s1] sm:$0x1]
  %v18 = vrot.slane %v16, 4
  %v19 = vadd.f32 %v16, %v18
  %v20 = vrot.slane %v19, 2
  %v21 = vadd.f32 %v19, %v20
  %v22 = vrot.slane %v21, 1
  %v23 = vadd.f32 %v21, %v22
  %v24 = vadd.f32 %v17, %v23
  %25 = vst [vmem:[%s1] sm:$0x1] %v24
  %v26 = vld [vmem:[%s2] sm:$0x1]
  %v27 = vmul.f32 %v16, %v16
  %v28 = vrot.slane %v27, 4
  %v29 = vadd.f32 %v27, %v28
  %v30 = vrot.slane %v29, 2
  %v31 = vadd.f32 %v29, %v30
  %v32 = vrot.slane %v31, 1
  %v33 = vadd.f32 %v31, %v32
  %v34 = vadd.f32 %v26, %v33
  %35 = vst [vmem:[%s2] sm:$0x1] %v34
  // Predicated region
  $region10: #{resnet_generator_forward.37} parent=0 // pred_check
    _
  $region11: #{resnet_generator_forward.37} parent=0 // pred_check_branch
    %37 = sbr.rel (0) target = $region13
  $region12: #{resnet_generator_forward.37} parent=0 // pred_region
    _
  $region13: #{resnet_generator_forward.37} parent=0 // pred_fallthru
    _
  // Predicated region
  $region14: #{resnet_generator_forward.37} parent=0 // pred_check
    _
  $region15: #{resnet_generator_forward.37} parent=0 // pred_check_branch
    %39 = sbr.rel (0) target = $region17
  $region16: #{resnet_generator_forward.37} parent=0 // pred_region
    _
  $region17: #{resnet_generator_forward.37} parent=0 // pred_fallthru
    _
  // Predicated region
  $region18: #{resnet_generator_forward.37} parent=0 // pred_check
    _
  $region19: #{resnet_generator_forward.37} parent=0 // pred_check_branch
    %41 = sbr.rel (0) target = $region21
  $region20: #{resnet_generator_forward.37} parent=0 // pred_region
    _
  $region21: #{resnet_generator_forward.37} parent=0 // pred_fallthru
    _
  // Predicated region
  $region22: #{resnet_generator_forward.37} parent=0 // pred_check
    _
  $region23: #{resnet_generator_forward.37} parent=0 // pred_check_branch
    %43 = sbr.rel (0) target = $region25
  $region24: #{resnet_generator_forward.37} parent=0 // pred_region
    _
  $region25: #{resnet_generator_forward.37} parent=0 // pred_fallthru
    _

// kernel: resnet_generator_forward.38
$region0: #{resnet_generator_forward.38}
  #allocation0 [shape = 'u32[]', space=smem, size = 0x4, offset = 0x4, fixed_abs, tag = 'smem constant byte address 0x4 - core index']
  #allocation1 [shape = 'u32[144,128]{1,0:T(1,128)}', space=vmem, size = 0x12000, scoped, tag = 'internal scratch']
  %s0 = inlined_call_operand.vmem [shape: f32[8,128], index: 0, kind: input, shape index: {}]
  %s1 = inlined_call_operand.vmem [shape: f32[1,128], index: 1, kind: input, shape index: {}]
  %s2 = inlined_call_operand.vmem [shape: f32[1,128], index: 2, kind: input, shape index: {}]
  %s3 = inlined_call_operand.vmem [shape: f32[8,128], index: 3, kind: output, shape index: {}]
  %s4 = sld [smem:[#allocation0]]
  $region22: #{resnet_generator_forward.38} parent=0
    _
  %s6 = ssub.s32 1, %s4
  %s7 = scalar_select 0, %s6, %s4
  // Predicated region
  $region2: #{resnet_generator_forward.38} parent=0 // pred_check
    _
  $region3: #{resnet_generator_forward.38} parent=0 // pred_check_branch
    %9 = sbr.rel (0) target = $region5
  $region4: #{resnet_generator_forward.38} parent=0 // pred_region
    _
  $region5: #{resnet_generator_forward.38} parent=0 // pred_fallthru
    _
  // Predicated region
  $region6: #{resnet_generator_forward.38} parent=0 // pred_check
    _
  $region7: #{resnet_generator_forward.38} parent=0 // pred_check_branch
    %11 = sbr.rel (0) target = $region9
  $region8: #{resnet_generator_forward.38} parent=0 // pred_region
    _
  $region9: #{resnet_generator_forward.38} parent=0 // pred_fallthru
    _
  // Predicated region
  $region10: #{resnet_generator_forward.38} parent=0 // pred_check
    _
  $region11: #{resnet_generator_forward.38} parent=0 // pred_check_branch
    %13 = sbr.rel (0) target = $region13
  $region12: #{resnet_generator_forward.38} parent=0 // pred_region
    _
  $region13: #{resnet_generator_forward.38} parent=0 // pred_fallthru
    _
  %v14 = vld [vmem:[%s0] sm:$0xff]
  %v15 = vld [vmem:[%s1] sm:$0x1]
  %v17 = vlaneseq
  %v18 = vshrl.u32 %v17, 7
  %v19 = vsub.s32 0, %v18
  %v20 = vrot.slane %v15, %v19
  %v22 = vmul.f32 %v14, %v20
  %v23 = vld [vmem:[%s2] sm:$0x1]
  %v25 = vlaneseq
  %v26 = vshrl.u32 %v25, 7
  %v27 = vsub.s32 0, %v26
  %v28 = vrot.slane %v23, %v27
  %v30 = vadd.f32 %v22, %v28
  %v31 = vmax.f32 %v30, 0.0
  %32 = vst [vmem:[%s3] sm:$0xff] %v31
  // Predicated region
  $region14: #{resnet_generator_forward.38} parent=0 // pred_check
    _
  $region15: #{resnet_generator_forward.38} parent=0 // pred_check_branch
    %34 = sbr.rel (0) target = $region17
  $region16: #{resnet_generator_forward.38} parent=0 // pred_region
    _
  $region17: #{resnet_generator_forward.38} parent=0 // pred_fallthru
    _
  // Predicated region
  $region18: #{resnet_generator_forward.38} parent=0 // pred_check
    _
  $region19: #{resnet_generator_forward.38} parent=0 // pred_check_branch
    %36 = sbr.rel (0) target = $region21
  $region20: #{resnet_generator_forward.38} parent=0 // pred_region
    _
  $region21: #{resnet_generator_forward.38} parent=0 // pred_fallthru
    _

// kernel: resnet_generator_forward.44
$region0: #{resnet_generator_forward.44}
  #allocation0 [shape = 'u32[]', space=smem, size = 0x4, offset = 0x4, fixed_abs, tag = 'smem constant byte address 0x4 - core index']
  #allocation1 [shape = 'u32[144,128]{1,0:T(1,128)}', space=vmem, size = 0x12000, scoped, tag = 'internal scratch']
  %s0 = inlined_call_operand.vmem [shape: f32[8,128], index: 0, kind: input, shape index: {}]
  %s1 = inlined_call_operand.vmem [shape: f32[1,128], index: 1, kind: input, shape index: {}]
  %s2 = inlined_call_operand.vmem [shape: f32[1,128], index: 2, kind: input, shape index: {}]
  %s3 = inlined_call_operand.vmem [shape: f32[8,128], index: 3, kind: input, shape index: {}]
  %s4 = inlined_call_operand.vmem [shape: f32[8,128], index: 4, kind: output, shape index: {}]
  %s5 = sld [smem:[#allocation0]]
  $region26: #{resnet_generator_forward.44} parent=0
    _
  %s7 = ssub.s32 1, %s5
  %s8 = scalar_select 0, %s7, %s5
  // Predicated region
  $region2: #{resnet_generator_forward.44} parent=0 // pred_check
    _
  $region3: #{resnet_generator_forward.44} parent=0 // pred_check_branch
    %10 = sbr.rel (0) target = $region5
  $region4: #{resnet_generator_forward.44} parent=0 // pred_region
    _
  $region5: #{resnet_generator_forward.44} parent=0 // pred_fallthru
    _
  // Predicated region
  $region6: #{resnet_generator_forward.44} parent=0 // pred_check
    _
  $region7: #{resnet_generator_forward.44} parent=0 // pred_check_branch
    %12 = sbr.rel (0) target = $region9
  $region8: #{resnet_generator_forward.44} parent=0 // pred_region
    _
  $region9: #{resnet_generator_forward.44} parent=0 // pred_fallthru
    _
  // Predicated region
  $region10: #{resnet_generator_forward.44} parent=0 // pred_check
    _
  $region11: #{resnet_generator_forward.44} parent=0 // pred_check_branch
    %14 = sbr.rel (0) target = $region13
  $region12: #{resnet_generator_forward.44} parent=0 // pred_region
    _
  $region13: #{resnet_generator_forward.44} parent=0 // pred_fallthru
    _
  // Predicated region
  $region14: #{resnet_generator_forward.44} parent=0 // pred_check
    _
  $region15: #{resnet_generator_forward.44} parent=0 // pred_check_branch
    %16 = sbr.rel (0) target = $region17
  $region16: #{resnet_generator_forward.44} parent=0 // pred_region
    _
  $region17: #{resnet_generator_forward.44} parent=0 // pred_fallthru
    _
  %v17 = vld [vmem:[%s0] sm:$0xff]
  %v18 = vld [vmem:[%s1] sm:$0x1]
  %v20 = vlaneseq
  %v21 = vshrl.u32 %v20, 7
  %v22 = vsub.s32 0, %v21
  %v23 = vrot.slane %v18, %v22
  %v25 = vmul.f32 %v17, %v23
  %v26 = vld [vmem:[%s2] sm:$0x1]
  %v28 = vlaneseq
  %v29 = vshrl.u32 %v28, 7
  %v30 = vsub.s32 0, %v29
  %v31 = vrot.slane %v26, %v30
  %v33 = vadd.f32 %v25, %v31
  %v34 = vld [vmem:[%s3] sm:$0xff]
  %v35 = vadd.f32 %v33, %v34
  %36 = vst [vmem:[%s4] sm:$0xff] %v35
  // Predicated region
  $region18: #{resnet_generator_forward.44} parent=0 // pred_check
    _
  $region19: #{resnet_generator_forward.44} parent=0 // pred_check_branch
    %38 = sbr.rel (0) target = $region21
  $region20: #{resnet_generator_forward.44} parent=0 // pred_region
    _
  $region21: #{resnet_generator_forward.44} parent=0 // pred_fallthru
    _
  // Predicated region
  $region22: #{resnet_generator_forward.44} parent=0 // pred_check
    _
  $region23: #{resnet_generator_forward.44} parent=0 // pred_check_branch
    %40 = sbr.rel (0) target = $region25
  $region24: #{resnet_generator_forward.44} parent=0 // pred_region
    _
  $region25: #{resnet_generator_forward.44} parent=0 // pred_fallthru
    _

// kernel: resnet_generator_forward.39
$region0: #{resnet_generator_forward.39}
  #allocation0 [shape = 'u32[]', space=smem, size = 0x4, offset = 0x4, fixed_abs, tag = 'smem constant byte address 0x4 - core index']
  #allocation1 [shape = 'u32[144,128]{1,0:T(1,128)}', space=vmem, size = 0x12000, scoped, tag = 'internal scratch']
  #allocation2 [shape = 'f32[32,32]{1,0:T(8,128)}', space=vmem, size = 0x4000, scoped, tag = 'scratch operand']
  %s0 = inlined_call_operand.vmem [shape: bf16[32,288], index: 0, kind: input, shape index: {}]
  %s1 = inlined_call_operand.vmem [shape: bf16[288,32], index: 1, kind: input, shape index: {}]
  %s2 = inlined_call_operand.vmem [shape: f32[32,32], index: 2, kind: output, shape index: {}]
  %s3 = sld [smem:[#allocation0]]
  $region26: #{resnet_generator_forward.39} parent=0
    _
  %s5 = ssub.s32 1, %s3
  %s6 = scalar_select 0, %s5, %s3
  // Predicated region
  $region2: #{resnet_generator_forward.39} parent=0 // pred_check
    _
  $region3: #{resnet_generator_forward.39} parent=0 // pred_check_branch
    %8 = sbr.rel (0) target = $region5
  $region4: #{resnet_generator_forward.39} parent=0 // pred_region
    _
  $region5: #{resnet_generator_forward.39} parent=0 // pred_fallthru
    _
  // Predicated region
  $region6: #{resnet_generator_forward.39} parent=0 // pred_check
    _
  $region7: #{resnet_generator_forward.39} parent=0 // pred_check_branch
    %10 = sbr.rel (0) target = $region9
  $region8: #{resnet_generator_forward.39} parent=0 // pred_region
    _
  $region9: #{resnet_generator_forward.39} parent=0 // pred_fallthru
    _
  %p12 = scmp.eq.s32.totalorder 0, 0
  // Predicated region
  $region10: #{resnet_generator_forward.39} parent=0 // pred_check
    %p13 = pneg %p12
  $region11: #{resnet_generator_forward.39} parent=0 // pred_check_branch
    %15 = sbr.rel (%p13) target = $region13
  $region12: #{resnet_generator_forward.39} parent=0 // pred_region
    %vm16 = vcmask 261120
    %17 = vst.msk [vmem:[#allocation2] sm:$0xff] %vm16, 0.0
    %18 = vst.msk [vmem:[#allocation2 + $0x8] sm:$0xff] %vm16, 0.0
    %19 = vst.msk [vmem:[#allocation2 + $0x10] sm:$0xff] %vm16, 0.0
    %20 = vst.msk [vmem:[#allocation2 + $0x18] sm:$0xff] %vm16, 0.0
  $region13: #{resnet_generator_forward.39} parent=0 // pred_fallthru
    _
  %v21 = vld [vmem:[#allocation2] sm:$0xff]
  %v22 = vld [vmem:[#allocation2 + $0x8] sm:$0xff]
  %v23 = vld [vmem:[#allocation2 + $0x10] sm:$0xff]
  %v24 = vld [vmem:[#allocation2 + $0x18] sm:$0xff]
  %v25 = vld [vmem:[%s0] sm:$0xff]
  %v26 = vld [vmem:[%s0 + $0x8] sm:$0xf]
  %v27 = vld [vmem:[%s0 + $0xc] sm:$0xff]
  %v28 = vld [vmem:[%s0 + $0x14] sm:$0xf]
  %v29 = vld [vmem:[%s0 + $0x18] sm:$0xff]
  %v30 = vld [vmem:[%s0 + $0x20] sm:$0xf]
  %v31 = vld [vmem:[%s0 + $0x24] sm:$0xff]
  %v32 = vld [vmem:[%s0 + $0x2c] sm:$0xf]
  %v33 = vld [vmem:[%s1] sm:$0xf]
  %v34 = vld [vmem:[%s1 + $0x4] sm:$0xf]
  %v35 = vld [vmem:[%s1 + $0x8] sm:$0xf]
  %v36 = vld [vmem:[%s1 + $0xc] sm:$0xf]
  %v37 = vld [vmem:[%s1 + $0x10] sm:$0xf]
  %v38 = vld [vmem:[%s1 + $0x14] sm:$0xf]
  %v39 = vld [vmem:[%s1 + $0x18] sm:$0xf]
  %v40 = vld [vmem:[%s1 + $0x1c] sm:$0xf]
  %v41 = vld [vmem:[%s1 + $0x20] sm:$0xf]
  %v42 = vld [vmem:[%s1 + $0x24] sm:$0xf]
  %v43 = vld [vmem:[%s1 + $0x28] sm:$0xf]
  %v44 = vld [vmem:[%s1 + $0x2c] sm:$0xf]
  %v45 = vld [vmem:[%s1 + $0x30] sm:$0xf]
  %v46 = vld [vmem:[%s1 + $0x34] sm:$0xf]
  %v47 = vld [vmem:[%s1 + $0x38] sm:$0xf]
  %v48 = vld [vmem:[%s1 + $0x3c] sm:$0xf]
  %v49 = vld [vmem:[%s1 + $0x40] sm:$0xf]
  %v50 = vld [vmem:[%s1 + $0x44] sm:$0xf]
  %v51 = vld [vmem:[%s1 + $0x48] sm:$0xf]
  %v52 = vld [vmem:[%s1 + $0x4c] sm:$0xf]
  %v53 = vld [vmem:[%s1 + $0x50] sm:$0xf]
  %v54 = vld [vmem:[%s1 + $0x54] sm:$0xf]
  %v55 = vld [vmem:[%s1 + $0x58] sm:$0xf]
  %v56 = vld [vmem:[%s1 + $0x5c] sm:$0xf]
  %v57 = vld [vmem:[%s1 + $0x60] sm:$0xf]
  %v58 = vld [vmem:[%s1 + $0x64] sm:$0xf]
  %v59 = vld [vmem:[%s1 + $0x68] sm:$0xf]
  %v60 = vld [vmem:[%s1 + $0x6c] sm:$0xf]
  %v61 = vld [vmem:[%s1 + $0x70] sm:$0xf]
  %v62 = vld [vmem:[%s1 + $0x74] sm:$0xf]
  %v63 = vld [vmem:[%s1 + $0x78] sm:$0xf]
  %v64 = vld [vmem:[%s1 + $0x7c] sm:$0xf]
  %v65 = vld [vmem:[%s1 + $0x80] sm:$0xf]
  %v66 = vld [vmem:[%s1 + $0x84] sm:$0xf]
  %v67 = vld [vmem:[%s1 + $0x88] sm:$0xf]
  %v68 = vld [vmem:[%s1 + $0x8c] sm:$0xf]
  %v77 = vunpack.c.l.b16 %v25
  %v78 = vunpack.c.h.b16 %v25
  %v79 = vunpack.c.l.b16 %v26
  %v80 = vunpack.c.l.b16 %v27
  %v81 = vunpack.c.h.b16 %v27
  %v82 = vunpack.c.l.b16 %v28
  %v83 = vunpack.c.l.b16 %v29
  %v84 = vunpack.c.h.b16 %v29
  %v85 = vunpack.c.l.b16 %v30
  %v86 = vunpack.c.l.b16 %v31
  %v87 = vunpack.c.h.b16 %v31
  %v88 = vunpack.c.l.b16 %v32
  %v89 = vpack.c.b16 %v80, %v77
  %v90 = vpack.c.b16 %v81, %v78
  %v91 = vpack.c.b16 %v82, %v79
  %v92 = vpack.c.b16 %v86, %v83
  %v93 = vpack.c.b16 %v87, %v84
  %v94 = vpack.c.b16 %v88, %v85
  %v135 = vunpack.c.l.b16 %v33
  %v136 = vunpack.c.l.b16 %v34
  %v137 = vunpack.c.l.b16 %v35
  %v138 = vunpack.c.l.b16 %v36
  %v139 = vunpack.c.l.b16 %v37
  %v140 = vunpack.c.l.b16 %v38
  %v141 = vunpack.c.l.b16 %v39
  %v142 = vunpack.c.l.b16 %v40
  %v143 = vunpack.c.l.b16 %v41
  %v144 = vunpack.c.l.b16 %v42
  %v145 = vunpack.c.l.b16 %v43
  %v146 = vunpack.c.l.b16 %v44
  %v147 = vunpack.c.l.b16 %v45
  %v148 = vunpack.c.l.b16 %v46
  %v149 = vunpack.c.l.b16 %v47
  %v150 = vunpack.c.l.b16 %v48
  %v151 = vunpack.c.l.b16 %v49
  %v152 = vunpack.c.l.b16 %v50
  %v153 = vunpack.c.l.b16 %v51
  %v154 = vunpack.c.l.b16 %v52
  %v155 = vunpack.c.l.b16 %v53
  %v156 = vunpack.c.l.b16 %v54
  %v157 = vunpack.c.l.b16 %v55
  %v158 = vunpack.c.l.b16 %v56
  %v159 = vunpack.c.l.b16 %v57
  %v160 = vunpack.c.l.b16 %v58
  %v161 = vunpack.c.l.b16 %v59
  %v162 = vunpack.c.l.b16 %v60
  %v163 = vunpack.c.l.b16 %v61
  %v164 = vunpack.c.l.b16 %v62
  %v165 = vunpack.c.l.b16 %v63
  %v166 = vunpack.c.l.b16 %v64
  %v167 = vunpack.c.l.b16 %v65
  %v168 = vunpack.c.l.b16 %v66
  %v169 = vunpack.c.l.b16 %v67
  %v170 = vunpack.c.l.b16 %v68
  %v171 = vpack.c.b16 %v136, %v135
  %v172 = vpack.c.b16 %v138, %v137
  %v173 = vpack.c.b16 %v140, %v139
  %v174 = vpack.c.b16 %v142, %v141
  %v175 = vpack.c.b16 %v144, %v143
  %v176 = vpack.c.b16 %v146, %v145
  %v177 = vpack.c.b16 %v148, %v147
  %v178 = vpack.c.b16 %v150, %v149
  %v179 = vpack.c.b16 %v152, %v151
  %v180 = vpack.c.b16 %v154, %v153
  %v181 = vpack.c.b16 %v156, %v155
  %v182 = vpack.c.b16 %v158, %v157
  %v183 = vpack.c.b16 %v160, %v159
  %v184 = vpack.c.b16 %v162, %v161
  %v185 = vpack.c.b16 %v164, %v163
  %v186 = vpack.c.b16 %v166, %v165
  %v187 = vpack.c.b16 %v168, %v167
  %v188 = vpack.c.b16 %v170, %v169
  %vm207 = vcmask 261120
  %v209 = vsel %vm207, %v91, 0
  %v212 = vsel %vm207, %v94, 0
  %214 = vmatprep.subr.bf16.mxu0 0
  %215 = vmatpush1.bf16.msra.mxu0 %v178
  %216 = vmatprep.subr.bf16.mxu0 0
  %217 = vmatpush1.bf16.msra.mxu0 %v177
  %218 = vmatprep.subr.bf16.mxu0 0
  %219 = vmatpush1.bf16.msra.mxu0 %v176
  %220 = vmatprep.subr.bf16.mxu0 0
  %221 = vmatpush1.bf16.msra.mxu0 %v175
  %222 = vmatprep.subr.bf16.mxu0 0
  %223 = vmatpush1.bf16.msra.mxu0 %v174
  %224 = vmatprep.subr.bf16.mxu0 0
  %225 = vmatpush1.bf16.msra.mxu0 %v173
  %226 = vmatprep.subr.bf16.mxu0 0
  %227 = vmatpush1.bf16.msra.mxu0 %v172
  %228 = vmatprep.subr.bf16.mxu0 0
  %229 = vmatpush1.bf16.msra.mxu0 %v171
  %230 = vmatprep.subr.bf16.mxu0 0
  %231 = vmatpush2.bf16.msra.mxu0 %v186
  %232 = vmatprep.subr.bf16.mxu0 0
  %233 = vmatpush2.bf16.msra.mxu0 %v185
  %234 = vmatprep.subr.bf16.mxu0 0
  %235 = vmatpush2.bf16.msra.mxu0 %v184
  %236 = vmatprep.subr.bf16.mxu0 0
  %237 = vmatpush2.bf16.msra.mxu0 %v183
  %238 = vmatprep.subr.bf16.mxu0 0
  %239 = vmatpush2.bf16.msra.mxu0 %v182
  %240 = vmatprep.subr.bf16.mxu0 0
  %241 = vmatpush2.bf16.msra.mxu0 %v181
  %242 = vmatprep.subr.bf16.mxu0 0
  %243 = vmatpush2.bf16.msra.mxu0 %v180
  %244 = vmatprep.subr.bf16.mxu0 0
  %245 = vmatpush2.bf16.msra.mxu0 %v179
  %246 = vmatprep.mubr.bf16.mxu0 %v90
  %247 = vmatmul.mubr.bf16.gmra.mxu0 %v89
  %v248 = vpop.f32.mrf.mxu0
  %v249 = vadd.f32 0.0, %v248
  %v250 = vpop.f32.mrf.mxu0
  %v251 = vpop.f32.mrf.mxu0
  %v252 = vadd.f32 0.0, %v251
  %v253 = vpop.f32.mrf.mxu0
  %254 = vmatprep.mubr.bf16.mxu0 %v93
  %255 = vmatmul.mubr.bf16.gmra.mxu0 %v92
  %v256 = vpop.f32.mrf.mxu0
  %v257 = vadd.f32 0.0, %v256
  %v258 = vpop.f32.mrf.mxu0
  %v259 = vpop.f32.mrf.mxu0
  %v260 = vadd.f32 0.0, %v259
  %v261 = vpop.f32.mrf.mxu0
  %262 = vdwg.mxu0
  %263 = vmatprep.subr.bf16.mxu0 0
  %264 = vmatpush1.bf16.msra.mxu0 0
  %265 = vmatprep.subr.bf16.mxu0 0
  %266 = vmatpush1.bf16.msra.mxu0 0
  %267 = vmatprep.subr.bf16.mxu0 0
  %268 = vmatpush1.bf16.msra.mxu0 0
  %269 = vmatprep.subr.bf16.mxu0 0
  %270 = vmatpush1.bf16.msra.mxu0 0
  %271 = vmatprep.subr.bf16.mxu0 0
  %272 = vmatpush1.bf16.msra.mxu0 0
  %273 = vmatprep.subr.bf16.mxu0 0
  %274 = vmatpush1.bf16.msra.mxu0 0
  %275 = vmatprep.subr.bf16.mxu0 0
  %276 = vmatpush1.bf16.msra.mxu0 %v188
  %277 = vmatprep.subr.bf16.mxu0 0
  %278 = vmatpush1.bf16.msra.mxu0 %v187
  %279 = vmatprep.subr.bf16.mxu0 0
  %280 = vmatpush2.bf16.msra.mxu0 0
  %281 = vmatprep.subr.bf16.mxu0 0
  %282 = vmatpush2.bf16.msra.mxu0 0
  %283 = vmatprep.subr.bf16.mxu0 0
  %284 = vmatpush2.bf16.msra.mxu0 0
  %285 = vmatprep.subr.bf16.mxu0 0
  %286 = vmatpush2.bf16.msra.mxu0 0
  %287 = vmatprep.subr.bf16.mxu0 0
  %288 = vmatpush2.bf16.msra.mxu0 0
  %289 = vmatprep.subr.bf16.mxu0 0
  %290 = vmatpush2.bf16.msra.mxu0 0
  %291 = vmatprep.subr.bf16.mxu0 0
  %292 = vmatpush2.bf16.msra.mxu0 0
  %293 = vmatprep.subr.bf16.mxu0 0
  %294 = vmatpush2.bf16.msra.mxu0 0
  %295 = vmatprep.mubr.bf16.mxu0 0
  %296 = vmatmul.mubr.bf16.gmra.mxu0 %v209
  %v297 = vpop.f32.mrf.mxu0
  %v298 = vadd.f32 %v249, %v297
  %v299 = vpop.f32.mrf.mxu0
  %v300 = vpop.f32.mrf.mxu0
  %v301 = vadd.f32 %v252, %v300
  %v302 = vpop.f32.mrf.mxu0
  %303 = vmatprep.mubr.bf16.mxu0 0
  %304 = vmatmul.mubr.bf16.gmra.mxu0 %v212
  %v305 = vpop.f32.mrf.mxu0
  %v306 = vadd.f32 %v257, %v305
  %v307 = vpop.f32.mrf.mxu0
  %v308 = vpop.f32.mrf.mxu0
  %v309 = vadd.f32 %v260, %v308
  %v310 = vpop.f32.mrf.mxu0
  %311 = vdwg.mxu0
  %v312 = vadd.f32 %v21, %v298
  %v313 = vadd.f32 %v22, %v301
  %v314 = vadd.f32 %v23, %v306
  %v315 = vadd.f32 %v24, %v309
  %316 = vst.msk [vmem:[#allocation2] sm:$0xff] %vm207, %v312
  %317 = vst.msk [vmem:[#allocation2 + $0x8] sm:$0xff] %vm207, %v313
  %318 = vst.msk [vmem:[#allocation2 + $0x10] sm:$0xff] %vm207, %v314
  %319 = vst.msk [vmem:[#allocation2 + $0x18] sm:$0xff] %vm207, %v315
  // Predicated region
  $region14: #{resnet_generator_forward.39} parent=0 // pred_check
    %p320 = pneg %p12
  $region15: #{resnet_generator_forward.39} parent=0 // pred_check_branch
    %322 = sbr.rel (%p320) target = $region17
  $region16: #{resnet_generator_forward.39} parent=0 // pred_region
    %v323 = vld [vmem:[#allocation2] sm:$0xff]
    %v324 = vld [vmem:[#allocation2 + $0x8] sm:$0xff]
    %v325 = vld [vmem:[#allocation2 + $0x10] sm:$0xff]
    %v326 = vld [vmem:[#allocation2 + $0x18] sm:$0xff]
    %327 = vst.msk [vmem:[%s2] sm:$0xff] %vm207, %v323
    %328 = vst.msk [vmem:[%s2 + $0x8] sm:$0xff] %vm207, %v324
    %329 = vst.msk [vmem:[%s2 + $0x10] sm:$0xff] %vm207, %v325
    %330 = vst.msk [vmem:[%s2 + $0x18] sm:$0xff] %vm207, %v326
  $region17: #{resnet_generator_forward.39} parent=0 // pred_fallthru
    _
  // Predicated region
  $region18: #{resnet_generator_forward.39} parent=0 // pred_check
    _
  $region19: #{resnet_generator_forward.39} parent=0 // pred_check_branch
    %332 = sbr.rel (0) target = $region21
  $region20: #{resnet_generator_forward.39} parent=0 // pred_region
    _
  $region21: #{resnet_generator_forward.39} parent=0 // pred_fallthru
    _
  // Predicated region
  $region22: #{resnet_generator_forward.39} parent=0 // pred_check
    _
  $region23: #{resnet_generator_forward.39} parent=0 // pred_check_branch
    %334 = sbr.rel (0) target = $region25
  $region24: #{resnet_generator_forward.39} parent=0 // pred_region
    _
  $region25: #{resnet_generator_forward.39} parent=0 // pred_fallthru
    _

// kernel: resnet_generator_forward.51
$region0: #{resnet_generator_forward.51}
  #allocation0 [shape = 'u32[]', space=smem, size = 0x4, offset = 0x4, fixed_abs, tag = 'smem constant byte address 0x4 - core index']
  #allocation1 [shape = 'u32[144,128]{1,0:T(1,128)}', space=vmem, size = 0x12000, scoped, tag = 'internal scratch']
  #allocation2 [shape = 'f32[128,16]{1,0:T(8,128)}', space=vmem, size = 0x10000, scoped, tag = 'scratch operand']
  %s0 = inlined_call_operand.vmem [shape: bf16[128,288], index: 0, kind: input, shape index: {}]
  %s1 = inlined_call_operand.vmem [shape: bf16[288,16], index: 1, kind: input, shape index: {}]
  %s2 = inlined_call_operand.vmem [shape: f32[128,16], index: 2, kind: output, shape index: {}]
  %s3 = sld [smem:[#allocation0]]
  $region26: #{resnet_generator_forward.51} parent=0
    _
  %s5 = ssub.s32 1, %s3
  %s6 = scalar_select 0, %s5, %s3
  // Predicated region
  $region2: #{resnet_generator_forward.51} parent=0 // pred_check
    _
  $region3: #{resnet_generator_forward.51} parent=0 // pred_check_branch
    %8 = sbr.rel (0) target = $region5
  $region4: #{resnet_generator_forward.51} parent=0 // pred_region
    _
  $region5: #{resnet_generator_forward.51} parent=0 // pred_fallthru
    _
  // Predicated region
  $region6: #{resnet_generator_forward.51} parent=0 // pred_check
    _
  $region7: #{resnet_generator_forward.51} parent=0 // pred_check_branch
    %10 = sbr.rel (0) target = $region9
  $region8: #{resnet_generator_forward.51} parent=0 // pred_region
    _
  $region9: #{resnet_generator_forward.51} parent=0 // pred_fallthru
    _
  %p12 = scmp.eq.s32.totalorder 0, 0
  // Predicated region
  $region10: #{resnet_generator_forward.51} parent=0 // pred_check
    %p13 = pneg %p12
  $region11: #{resnet_generator_forward.51} parent=0 // pred_check_branch
    %15 = sbr.rel (%p13) target = $region13
  $region12: #{resnet_generator_forward.51} parent=0 // pred_region
    %vm16 = vcmask 130048
    %17 = vst.msk [vmem:[#allocation2] sm:$0xff] %vm16, 0.0
    %18 = vst.msk [vmem:[#allocation2 + $0x8] sm:$0xff] %vm16, 0.0
    %19 = vst.msk [vmem:[#allocation2 + $0x10] sm:$0xff] %vm16, 0.0
    %20 = vst.msk [vmem:[#allocation2 + $0x18] sm:$0xff] %vm16, 0.0
    %21 = vst.msk [vmem:[#allocation2 + $0x20] sm:$0xff] %vm16, 0.0
    %22 = vst.msk [vmem:[#allocation2 + $0x28] sm:$0xff] %vm16, 0.0
    %23 = vst.msk [vmem:[#allocation2 + $0x30] sm:$0xff] %vm16, 0.0
    %24 = vst.msk [vmem:[#allocation2 + $0x38] sm:$0xff] %vm16, 0.0
    %25 = vst.msk [vmem:[#allocation2 + $0x40] sm:$0xff] %vm16, 0.0
    %26 = vst.msk [vmem:[#allocation2 + $0x48] sm:$0xff] %vm16, 0.0
    %27 = vst.msk [vmem:[#allocation2 + $0x50] sm:$0xff] %vm16, 0.0
    %28 = vst.msk [vmem:[#allocation2 + $0x58] sm:$0xff] %vm16, 0.0
    %29 = vst.msk [vmem:[#allocation2 + $0x60] sm:$0xff] %vm16, 0.0
    %30 = vst.msk [vmem:[#allocation2 + $0x68] sm:$0xff] %vm16, 0.0
    %31 = vst.msk [vmem:[#allocation2 + $0x70] sm:$0xff] %vm16, 0.0
    %32 = vst.msk [vmem:[#allocation2 + $0x78] sm:$0xff] %vm16, 0.0
  $region13: #{resnet_generator_forward.51} parent=0 // pred_fallthru
    _
  %v33 = vld [vmem:[#allocation2] sm:$0xff]
  %v34 = vld [vmem:[#allocation2 + $0x8] sm:$0xff]
  %v35 = vld [vmem:[#allocation2 + $0x10] sm:$0xff]
  %v36 = vld [vmem:[#allocation2 + $0x18] sm:$0xff]
  %v37 = vld [vmem:[#allocation2 + $0x20] sm:$0xff]
  %v38 = vld [vmem:[#allocation2 + $0x28] sm:$0xff]
  %v39 = vld [vmem:[#allocation2 + $0x30] sm:$0xff]
  %v40 = vld [vmem:[#allocation2 + $0x38] sm:$0xff]
  %v41 = vld [vmem:[#allocation2 + $0x40] sm:$0xff]
  %v42 = vld [vmem:[#allocation2 + $0x48] sm:$0xff]
  %v43 = vld [vmem:[#allocation2 + $0x50] sm:$0xff]
  %v44 = vld [vmem:[#allocation2 + $0x58] sm:$0xff]
  %v45 = vld [vmem:[#allocation2 + $0x60] sm:$0xff]
  %v46 = vld [vmem:[#allocation2 + $0x68] sm:$0xff]
  %v47 = vld [vmem:[#allocation2 + $0x70] sm:$0xff]
  %v48 = vld [vmem:[#allocation2 + $0x78] sm:$0xff]
  %v49 = vld [vmem:[%s0] sm:$0xff]
  %v50 = vld [vmem:[%s0 + $0x8] sm:$0xf]
  %v51 = vld [vmem:[%s0 + $0xc] sm:$0xff]
  %v52 = vld [vmem:[%s0 + $0x14] sm:$0xf]
  %v53 = vld [vmem:[%s0 + $0x18] sm:$0xff]
  %v54 = vld [vmem:[%s0 + $0x20] sm:$0xf]
  %v55 = vld [vmem:[%s0 + $0x24] sm:$0xff]
  %v56 = vld [vmem:[%s0 + $0x2c] sm:$0xf]
  %v57 = vld [vmem:[%s0 + $0x30] sm:$0xff]
  %v58 = vld [vmem:[%s0 + $0x38] sm:$0xf]
  %v59 = vld [vmem:[%s0 + $0x3c] sm:$0xff]
  %v60 = vld [vmem:[%s0 + $0x44] sm:$0xf]
  %v61 = vld [vmem:[%s0 + $0x48] sm:$0xff]
  %v62 = vld [vmem:[%s0 + $0x50] sm:$0xf]
  %v63 = vld [vmem:[%s0 + $0x54] sm:$0xff]
  %v64 = vld [vmem:[%s0 + $0x5c] sm:$0xf]
  %v65 = vld [vmem:[%s0 + $0x60] sm:$0xff]
  %v66 = vld [vmem:[%s0 + $0x68] sm:$0xf]
  %v67 = vld [vmem:[%s0 + $0x6c] sm:$0xff]
  %v68 = vld [vmem:[%s0 + $0x74] sm:$0xf]
  %v69 = vld [vmem:[%s0 + $0x78] sm:$0xff]
  %v70 = vld [vmem:[%s0 + $0x80] sm:$0xf]
  %v71 = vld [vmem:[%s0 + $0x84] sm:$0xff]
  %v72 = vld [vmem:[%s0 + $0x8c] sm:$0xf]
  %v73 = vld [vmem:[%s0 + $0x90] sm:$0xff]
  %v74 = vld [vmem:[%s0 + $0x98] sm:$0xf]
  %v75 = vld [vmem:[%s0 + $0x9c] sm:$0xff]
  %v76 = vld [vmem:[%s0 + $0xa4] sm:$0xf]
  %v77 = vld [vmem:[%s0 + $0xa8] sm:$0xff]
  %v78 = vld [vmem:[%s0 + $0xb0] sm:$0xf]
  %v79 = vld [vmem:[%s0 + $0xb4] sm:$0xff]
  %v80 = vld [vmem:[%s0 + $0xbc] sm:$0xf]
  %v81 = vld [vmem:[%s1] sm:$0xf]
  %v82 = vld [vmem:[%s1 + $0x4] sm:$0xf]
  %v83 = vld [vmem:[%s1 + $0x8] sm:$0xf]
  %v84 = vld [vmem:[%s1 + $0xc] sm:$0xf]
  %v85 = vld [vmem:[%s1 + $0x10] sm:$0xf]
  %v86 = vld [vmem:[%s1 + $0x14] sm:$0xf]
  %v87 = vld [vmem:[%s1 + $0x18] sm:$0xf]
  %v88 = vld [vmem:[%s1 + $0x1c] sm:$0xf]
  %v89 = vld [vmem:[%s1 + $0x20] sm:$0xf]
  %v90 = vld [vmem:[%s1 + $0x24] sm:$0xf]
  %v91 = vld [vmem:[%s1 + $0x28] sm:$0xf]
  %v92 = vld [vmem:[%s1 + $0x2c] sm:$0xf]
  %v93 = vld [vmem:[%s1 + $0x30] sm:$0xf]
  %v94 = vld [vmem:[%s1 + $0x34] sm:$0xf]
  %v95 = vld [vmem:[%s1 + $0x38] sm:$0xf]
  %v96 = vld [vmem:[%s1 + $0x3c] sm:$0xf]
  %v97 = vld [vmem:[%s1 + $0x40] sm:$0xf]
  %v98 = vld [vmem:[%s1 + $0x44] sm:$0xf]
  %v99 = vld [vmem:[%s1 + $0x48] sm:$0xf]
  %v100 = vld [vmem:[%s1 + $0x4c] sm:$0xf]
  %v101 = vld [vmem:[%s1 + $0x50] sm:$0xf]
  %v102 = vld [vmem:[%s1 + $0x54] sm:$0xf]
  %v103 = vld [vmem:[%s1 + $0x58] sm:$0xf]
  %v104 = vld [vmem:[%s1 + $0x5c] sm:$0xf]
  %v105 = vld [vmem:[%s1 + $0x60] sm:$0xf]
  %v106 = vld [vmem:[%s1 + $0x64] sm:$0xf]
  %v107 = vld [vmem:[%s1 + $0x68] sm:$0xf]
  %v108 = vld [vmem:[%s1 + $0x6c] sm:$0xf]
  %v109 = vld [vmem:[%s1 + $0x70] sm:$0xf]
  %v110 = vld [vmem:[%s1 + $0x74] sm:$0xf]
  %v111 = vld [vmem:[%s1 + $0x78] sm:$0xf]
  %v112 = vld [vmem:[%s1 + $0x7c] sm:$0xf]
  %v113 = vld [vmem:[%s1 + $0x80] sm:$0xf]
  %v114 = vld [vmem:[%s1 + $0x84] sm:$0xf]
  %v115 = vld [vmem:[%s1 + $0x88] sm:$0xf]
  %v116 = vld [vmem:[%s1 + $0x8c] sm:$0xf]
  %v149 = vunpack.c.l.b16 %v49
  %v150 = vunpack.c.h.b16 %v49
  %v151 = vunpack.c.l.b16 %v50
  %v152 = vunpack.c.l.b16 %v51
  %v153 = vunpack.c.h.b16 %v51
  %v154 = vunpack.c.l.b16 %v52
  %v155 = vunpack.c.l.b16 %v53
  %v156 = vunpack.c.h.b16 %v53
  %v157 = vunpack.c.l.b16 %v54
  %v158 = vunpack.c.l.b16 %v55
  %v159 = vunpack.c.h.b16 %v55
  %v160 = vunpack.c.l.b16 %v56
  %v161 = vunpack.c.l.b16 %v57
  %v162 = vunpack.c.h.b16 %v57
  %v163 = vunpack.c.l.b16 %v58
  %v164 = vunpack.c.l.b16 %v59
  %v165 = vunpack.c.h.b16 %v59
  %v166 = vunpack.c.l.b16 %v60
  %v167 = vunpack.c.l.b16 %v61
  %v168 = vunpack.c.h.b16 %v61
  %v169 = vunpack.c.l.b16 %v62
  %v170 = vunpack.c.l.b16 %v63
  %v171 = vunpack.c.h.b16 %v63
  %v172 = vunpack.c.l.b16 %v64
  %v173 = vunpack.c.l.b16 %v65
  %v174 = vunpack.c.h.b16 %v65
  %v175 = vunpack.c.l.b16 %v66
  %v176 = vunpack.c.l.b16 %v67
  %v177 = vunpack.c.h.b16 %v67
  %v178 = vunpack.c.l.b16 %v68
  %v179 = vunpack.c.l.b16 %v69
  %v180 = vunpack.c.h.b16 %v69
  %v181 = vunpack.c.l.b16 %v70
  %v182 = vunpack.c.l.b16 %v71
  %v183 = vunpack.c.h.b16 %v71
  %v184 = vunpack.c.l.b16 %v72
  %v185 = vunpack.c.l.b16 %v73
  %v186 = vunpack.c.h.b16 %v73
  %v187 = vunpack.c.l.b16 %v74
  %v188 = vunpack.c.l.b16 %v75
  %v189 = vunpack.c.h.b16 %v75
  %v190 = vunpack.c.l.b16 %v76
  %v191 = vunpack.c.l.b16 %v77
  %v192 = vunpack.c.h.b16 %v77
  %v193 = vunpack.c.l.b16 %v78
  %v194 = vunpack.c.l.b16 %v79
  %v195 = vunpack.c.h.b16 %v79
  %v196 = vunpack.c.l.b16 %v80
  %v197 = vpack.c.b16 %v152, %v149
  %v198 = vpack.c.b16 %v153, %v150
  %v199 = vpack.c.b16 %v154, %v151
  %v200 = vpack.c.b16 %v158, %v155
  %v201 = vpack.c.b16 %v159, %v156
  %v202 = vpack.c.b16 %v160, %v157
  %v203 = vpack.c.b16 %v164, %v161
  %v204 = vpack.c.b16 %v165, %v162
  %v205 = vpack.c.b16 %v166, %v163
  %v206 = vpack.c.b16 %v170, %v167
  %v207 = vpack.c.b16 %v171, %v168
  %v208 = vpack.c.b16 %v172, %v169
  %v209 = vpack.c.b16 %v176, %v173
  %v210 = vpack.c.b16 %v177, %v174
  %v211 = vpack.c.b16 %v178, %v175
  %v212 = vpack.c.b16 %v182, %v179
  %v213 = vpack.c.b16 %v183, %v180
  %v214 = vpack.c.b16 %v184, %v181
  %v215 = vpack.c.b16 %v188, %v185
  %v216 = vpack.c.b16 %v189, %v186
  %v217 = vpack.c.b16 %v190, %v187
  %v218 = vpack.c.b16 %v194, %v191
  %v219 = vpack.c.b16 %v195, %v192
  %v220 = vpack.c.b16 %v196, %v193
  %v273 = vunpack.c.l.b16 %v81
  %v274 = vunpack.c.l.b16 %v82
  %v275 = vunpack.c.l.b16 %v83
  %v276 = vunpack.c.l.b16 %v84
  %v277 = vunpack.c.l.b16 %v85
  %v278 = vunpack.c.l.b16 %v86
  %v279 = vunpack.c.l.b16 %v87
  %v280 = vunpack.c.l.b16 %v88
  %v281 = vunpack.c.l.b16 %v89
  %v282 = vunpack.c.l.b16 %v90
  %v283 = vunpack.c.l.b16 %v91
  %v284 = vunpack.c.l.b16 %v92
  %v285 = vunpack.c.l.b16 %v93
  %v286 = vunpack.c.l.b16 %v94
  %v287 = vunpack.c.l.b16 %v95
  %v288 = vunpack.c.l.b16 %v96
  %v289 = vunpack.c.l.b16 %v97
  %v290 = vunpack.c.l.b16 %v98
  %v291 = vunpack.c.l.b16 %v99
  %v292 = vunpack.c.l.b16 %v100
  %v293 = vunpack.c.l.b16 %v101
  %v294 = vunpack.c.l.b16 %v102
  %v295 = vunpack.c.l.b16 %v103
  %v296 = vunpack.c.l.b16 %v104
  %v297 = vunpack.c.l.b16 %v105
  %v298 = vunpack.c.l.b16 %v106
  %v299 = vunpack.c.l.b16 %v107
  %v300 = vunpack.c.l.b16 %v108
  %v301 = vunpack.c.l.b16 %v109
  %v302 = vunpack.c.l.b16 %v110
  %v303 = vunpack.c.l.b16 %v111
  %v304 = vunpack.c.l.b16 %v112
  %v305 = vunpack.c.l.b16 %v113
  %v306 = vunpack.c.l.b16 %v114
  %v307 = vunpack.c.l.b16 %v115
  %v308 = vunpack.c.l.b16 %v116
  %v309 = vpack.c.b16 %v274, %v273
  %v310 = vpack.c.b16 %v276, %v275
  %v311 = vpack.c.b16 %v278, %v277
  %v312 = vpack.c.b16 %v280, %v279
  %v313 = vpack.c.b16 %v282, %v281
  %v314 = vpack.c.b16 %v284, %v283
  %v315 = vpack.c.b16 %v286, %v285
  %v316 = vpack.c.b16 %v288, %v287
  %v317 = vpack.c.b16 %v290, %v289
  %v318 = vpack.c.b16 %v292, %v291
  %v319 = vpack.c.b16 %v294, %v293
  %v320 = vpack.c.b16 %v296, %v295
  %v321 = vpack.c.b16 %v298, %v297
  %v322 = vpack.c.b16 %v300, %v299
  %v323 = vpack.c.b16 %v302, %v301
  %v324 = vpack.c.b16 %v304, %v303
  %v325 = vpack.c.b16 %v306, %v305
  %v326 = vpack.c.b16 %v308, %v307
  %vm345 = vcmask 261120
  %v347 = vsel %vm345, %v199, 0
  %v350 = vsel %vm345, %v202, 0
  %v353 = vsel %vm345, %v205, 0
  %v356 = vsel %vm345, %v208, 0
  %v359 = vsel %vm345, %v211, 0
  %v362 = vsel %vm345, %v214, 0
  %v365 = vsel %vm345, %v217, 0
  %v368 = vsel %vm345, %v220, 0
  %370 = vmatprep.subr.bf16.mxu0 0
  %371 = vmatpush1.bf16.msra.mxu0 %v316
  %372 = vmatprep.subr.bf16.mxu0 0
  %373 = vmatpush1.bf16.msra.mxu0 %v315
  %374 = vmatprep.subr.bf16.mxu0 0
  %375 = vmatpush1.bf16.msra.mxu0 %v314
  %376 = vmatprep.subr.bf16.mxu0 0
  %377 = vmatpush1.bf16.msra.mxu0 %v313
  %378 = vmatprep.subr.bf16.mxu0 0
  %379 = vmatpush1.bf16.msra.mxu0 %v312
  %380 = vmatprep.subr.bf16.mxu0 0
  %381 = vmatpush1.bf16.msra.mxu0 %v311
  %382 = vmatprep.subr.bf16.mxu0 0
  %383 = vmatpush1.bf16.msra.mxu0 %v310
  %384 = vmatprep.subr.bf16.mxu0 0
  %385 = vmatpush1.bf16.msra.mxu0 %v309
  %386 = vmatprep.subr.bf16.mxu0 0
  %387 = vmatpush2.bf16.msra.mxu0 %v324
  %388 = vmatprep.subr.bf16.mxu0 0
  %389 = vmatpush2.bf16.msra.mxu0 %v323
  %390 = vmatprep.subr.bf16.mxu0 0
  %391 = vmatpush2.bf16.msra.mxu0 %v322
  %392 = vmatprep.subr.bf16.mxu0 0
  %393 = vmatpush2.bf16.msra.mxu0 %v321
  %394 = vmatprep.subr.bf16.mxu0 0
  %395 = vmatpush2.bf16.msra.mxu0 %v320
  %396 = vmatprep.subr.bf16.mxu0 0
  %397 = vmatpush2.bf16.msra.mxu0 %v319
  %398 = vmatprep.subr.bf16.mxu0 0
  %399 = vmatpush2.bf16.msra.mxu0 %v318
  %400 = vmatprep.subr.bf16.mxu0 0
  %401 = vmatpush2.bf16.msra.mxu0 %v317
  %402 = vmatprep.mubr.bf16.mxu0 %v198
  %403 = vmatmul.mubr.bf16.gmra.mxu0 %v197
  %v404 = vpop.f32.mrf.mxu0
  %v405 = vadd.f32 0.0, %v404
  %v406 = vpop.f32.mrf.mxu0
  %v407 = vpop.f32.mrf.mxu0
  %v408 = vadd.f32 0.0, %v407
  %v409 = vpop.f32.mrf.mxu0
  %410 = vmatprep.mubr.bf16.mxu0 %v201
  %411 = vmatmul.mubr.bf16.gmra.mxu0 %v200
  %v412 = vpop.f32.mrf.mxu0
  %v413 = vadd.f32 0.0, %v412
  %v414 = vpop.f32.mrf.mxu0
  %v415 = vpop.f32.mrf.mxu0
  %v416 = vadd.f32 0.0, %v415
  %v417 = vpop.f32.mrf.mxu0
  %418 = vmatprep.mubr.bf16.mxu0 %v204
  %419 = vmatmul.mubr.bf16.gmra.mxu0 %v203
  %v420 = vpop.f32.mrf.mxu0
  %v421 = vadd.f32 0.0, %v420
  %v422 = vpop.f32.mrf.mxu0
  %v423 = vpop.f32.mrf.mxu0
  %v424 = vadd.f32 0.0, %v423
  %v425 = vpop.f32.mrf.mxu0
  %426 = vmatprep.mubr.bf16.mxu0 %v207
  %427 = vmatmul.mubr.bf16.gmra.mxu0 %v206
  %v428 = vpop.f32.mrf.mxu0
  %v429 = vadd.f32 0.0, %v428
  %v430 = vpop.f32.mrf.mxu0
  %v431 = vpop.f32.mrf.mxu0
  %v432 = vadd.f32 0.0, %v431
  %v433 = vpop.f32.mrf.mxu0
  %434 = vmatprep.mubr.bf16.mxu0 %v210
  %435 = vmatmul.mubr.bf16.gmra.mxu0 %v209
  %v436 = vpop.f32.mrf.mxu0
  %v437 = vadd.f32 0.0, %v436
  %v438 = vpop.f32.mrf.mxu0
  %v439 = vpop.f32.mrf.mxu0
  %v440 = vadd.f32 0.0, %v439
  %v441 = vpop.f32.mrf.mxu0
  %442 = vmatprep.mubr.bf16.mxu0 %v213
  %443 = vmatmul.mubr.bf16.gmra.mxu0 %v212
  %v444 = vpop.f32.mrf.mxu0
  %v445 = vadd.f32 0.0, %v444
  %v446 = vpop.f32.mrf.mxu0
  %v447 = vpop.f32.mrf.mxu0
  %v448 = vadd.f32 0.0, %v447
  %v449 = vpop.f32.mrf.mxu0
  %450 = vmatprep.mubr.bf16.mxu0 %v216
  %451 = vmatmul.mubr.bf16.gmra.mxu0 %v215
  %v452 = vpop.f32.mrf.mxu0
  %v453 = vadd.f32 0.0, %v452
  %v454 = vpop.f32.mrf.mxu0
  %v455 = vpop.f32.mrf.mxu0
  %v456 = vadd.f32 0.0, %v455
  %v457 = vpop.f32.mrf.mxu0
  %458 = vmatprep.mubr.bf16.mxu0 %v219
  %459 = vmatmul.mubr.bf16.gmra.mxu0 %v218
  %v460 = vpop.f32.mrf.mxu0
  %v461 = vadd.f32 0.0, %v460
  %v462 = vpop.f32.mrf.mxu0
  %v463 = vpop.f32.mrf.mxu0
  %v464 = vadd.f32 0.0, %v463
  %v465 = vpop.f32.mrf.mxu0
  %466 = vdwg.mxu0
  %467 = vmatprep.subr.bf16.mxu0 0
  %468 = vmatpush1.bf16.msra.mxu0 0
  %469 = vmatprep.subr.bf16.mxu0 0
  %470 = vmatpush1.bf16.msra.mxu0 0
  %471 = vmatprep.subr.bf16.mxu0 0
  %472 = vmatpush1.bf16.msra.mxu0 0
  %473 = vmatprep.subr.bf16.mxu0 0
  %474 = vmatpush1.bf16.msra.mxu0 0
  %475 = vmatprep.subr.bf16.mxu0 0
  %476 = vmatpush1.bf16.msra.mxu0 0
  %477 = vmatprep.subr.bf16.mxu0 0
  %478 = vmatpush1.bf16.msra.mxu0 0
  %479 = vmatprep.subr.bf16.mxu0 0
  %480 = vmatpush1.bf16.msra.mxu0 %v326
  %481 = vmatprep.subr.bf16.mxu0 0
  %482 = vmatpush1.bf16.msra.mxu0 %v325
  %483 = vmatprep.subr.bf16.mxu0 0
  %484 = vmatpush2.bf16.msra.mxu0 0
  %485 = vmatprep.subr.bf16.mxu0 0
  %486 = vmatpush2.bf16.msra.mxu0 0
  %487 = vmatprep.subr.bf16.mxu0 0
  %488 = vmatpush2.bf16.msra.mxu0 0
  %489 = vmatprep.subr.bf16.mxu0 0
  %490 = vmatpush2.bf16.msra.mxu0 0
  %491 = vmatprep.subr.bf16.mxu0 0
  %492 = vmatpush2.bf16.msra.mxu0 0
  %493 = vmatprep.subr.bf16.mxu0 0
  %494 = vmatpush2.bf16.msra.mxu0 0
  %495 = vmatprep.subr.bf16.mxu0 0
  %496 = vmatpush2.bf16.msra.mxu0 0
  %497 = vmatprep.subr.bf16.mxu0 0
  %498 = vmatpush2.bf16.msra.mxu0 0
  %499 = vmatprep.mubr.bf16.mxu0 0
  %500 = vmatmul.mubr.bf16.gmra.mxu0 %v347
  %v501 = vpop.f32.mrf.mxu0
  %v502 = vadd.f32 %v405, %v501
  %v503 = vpop.f32.mrf.mxu0
  %v504 = vpop.f32.mrf.mxu0
  %v505 = vadd.f32 %v408, %v504
  %v506 = vpop.f32.mrf.mxu0
  %507 = vmatprep.mubr.bf16.mxu0 0
  %508 = vmatmul.mubr.bf16.gmra.mxu0 %v350
  %v509 = vpop.f32.mrf.mxu0
  %v510 = vadd.f32 %v413, %v509
  %v511 = vpop.f32.mrf.mxu0
  %v512 = vpop.f32.mrf.mxu0
  %v513 = vadd.f32 %v416, %v512
  %v514 = vpop.f32.mrf.mxu0
  %515 = vmatprep.mubr.bf16.mxu0 0
  %516 = vmatmul.mubr.bf16.gmra.mxu0 %v353
  %v517 = vpop.f32.mrf.mxu0
  %v518 = vadd.f32 %v421, %v517
  %v519 = vpop.f32.mrf.mxu0
  %v520 = vpop.f32.mrf.mxu0
  %v521 = vadd.f32 %v424, %v520
  %v522 = vpop.f32.mrf.mxu0
  %523 = vmatprep.mubr.bf16.mxu0 0
  %524 = vmatmul.mubr.bf16.gmra.mxu0 %v356
  %v525 = vpop.f32.mrf.mxu0
  %v526 = vadd.f32 %v429, %v525
  %v527 = vpop.f32.mrf.mxu0
  %v528 = vpop.f32.mrf.mxu0
  %v529 = vadd.f32 %v432, %v528
  %v530 = vpop.f32.mrf.mxu0
  %531 = vmatprep.mubr.bf16.mxu0 0
  %532 = vmatmul.mubr.bf16.gmra.mxu0 %v359
  %v533 = vpop.f32.mrf.mxu0
  %v534 = vadd.f32 %v437, %v533
  %v535 = vpop.f32.mrf.mxu0
  %v536 = vpop.f32.mrf.mxu0
  %v537 = vadd.f32 %v440, %v536
  %v538 = vpop.f32.mrf.mxu0
  %539 = vmatprep.mubr.bf16.mxu0 0
  %540 = vmatmul.mubr.bf16.gmra.mxu0 %v362
  %v541 = vpop.f32.mrf.mxu0
  %v542 = vadd.f32 %v445, %v541
  %v543 = vpop.f32.mrf.mxu0
  %v544 = vpop.f32.mrf.mxu0
  %v545 = vadd.f32 %v448, %v544
  %v546 = vpop.f32.mrf.mxu0
  %547 = vmatprep.mubr.bf16.mxu0 0
  %548 = vmatmul.mubr.bf16.gmra.mxu0 %v365
  %v549 = vpop.f32.mrf.mxu0
  %v550 = vadd.f32 %v453, %v549
  %v551 = vpop.f32.mrf.mxu0
  %v552 = vpop.f32.mrf.mxu0
  %v553 = vadd.f32 %v456, %v552
  %v554 = vpop.f32.mrf.mxu0
  %555 = vmatprep.mubr.bf16.mxu0 0
  %556 = vmatmul.mubr.bf16.gmra.mxu0 %v368
  %v557 = vpop.f32.mrf.mxu0
  %v558 = vadd.f32 %v461, %v557
  %v559 = vpop.f32.mrf.mxu0
  %v560 = vpop.f32.mrf.mxu0
  %v561 = vadd.f32 %v464, %v560
  %v562 = vpop.f32.mrf.mxu0
  %563 = vdwg.mxu0
  %v564 = vadd.f32 %v33, %v502
  %v565 = vadd.f32 %v34, %v505
  %v566 = vadd.f32 %v35, %v510
  %v567 = vadd.f32 %v36, %v513
  %v568 = vadd.f32 %v37, %v518
  %v569 = vadd.f32 %v38, %v521
  %v570 = vadd.f32 %v39, %v526
  %v571 = vadd.f32 %v40, %v529
  %v572 = vadd.f32 %v41, %v534
  %v573 = vadd.f32 %v42, %v537
  %v574 = vadd.f32 %v43, %v542
  %v575 = vadd.f32 %v44, %v545
  %v576 = vadd.f32 %v45, %v550
  %v577 = vadd.f32 %v46, %v553
  %v578 = vadd.f32 %v47, %v558
  %v579 = vadd.f32 %v48, %v561
  %vm580 = vcmask 130048
  %581 = vst.msk [vmem:[#allocation2] sm:$0xff] %vm580, %v564
  %582 = vst.msk [vmem:[#allocation2 + $0x8] sm:$0xff] %vm580, %v565
  %583 = vst.msk [vmem:[#allocation2 + $0x10] sm:$0xff] %vm580, %v566
  %584 = vst.msk [vmem:[#allocation2 + $0x18] sm:$0xff] %vm580, %v567
  %585 = vst.msk [vmem:[#allocation2 + $0x20] sm:$0xff] %vm580, %v568
  %586 = vst.msk [vmem:[#allocation2 + $0x28] sm:$0xff] %vm580, %v569
  %587 = vst.msk [vmem:[#allocation2 + $0x30] sm:$0xff] %vm580, %v570
  %588 = vst.msk [vmem:[#allocation2 + $0x38] sm:$0xff] %vm580, %v571
  %589 = vst.msk [vmem:[#allocation2 + $0x40] sm:$0xff] %vm580, %v572
  %590 = vst.msk [vmem:[#allocation2 + $0x48] sm:$0xff] %vm580, %v573
  %591 = vst.msk [vmem:[#allocation2 + $0x50] sm:$0xff] %vm580, %v574
  %592 = vst.msk [vmem:[#allocation2 + $0x58] sm:$0xff] %vm580, %v575
  %593 = vst.msk [vmem:[#allocation2 + $0x60] sm:$0xff] %vm580, %v576
  %594 = vst.msk [vmem:[#allocation2 + $0x68] sm:$0xff] %vm580, %v577
  %595 = vst.msk [vmem:[#allocation2 + $0x70] sm:$0xff] %vm580, %v578
  %596 = vst.msk [vmem:[#allocation2 + $0x78] sm:$0xff] %vm580, %v579
  // Predicated region
  $region14: #{resnet_generator_forward.51} parent=0 // pred_check
    %p597 = pneg %p12
  $region15: #{resnet_generator_forward.51} parent=0 // pred_check_branch
    %599 = sbr.rel (%p597) target = $region17
  $region16: #{resnet_generator_forward.51} parent=0 // pred_region
    %v600 = vld [vmem:[#allocation2] sm:$0xff]
    %v601 = vld [vmem:[#allocation2 + $0x8] sm:$0xff]
    %v602 = vld [vmem:[#allocation2 + $0x10] sm:$0xff]
    %v603 = vld [vmem:[#allocation2 + $0x18] sm:$0xff]
    %v604 = vld [vmem:[#allocation2 + $0x20] sm:$0xff]
    %v605 = vld [vmem:[#allocation2 + $0x28] sm:$0xff]
    %v606 = vld [vmem:[#allocation2 + $0x30] sm:$0xff]
    %v607 = vld [vmem:[#allocation2 + $0x38] sm:$0xff]
    %v608 = vld [vmem:[#allocation2 + $0x40] sm:$0xff]
    %v609 = vld [vmem:[#allocation2 + $0x48] sm:$0xff]
    %v610 = vld [vmem:[#allocation2 + $0x50] sm:$0xff]
    %v611 = vld [vmem:[#allocation2 + $0x58] sm:$0xff]
    %v612 = vld [vmem:[#allocation2 + $0x60] sm:$0xff]
    %v613 = vld [vmem:[#allocation2 + $0x68] sm:$0xff]
    %v614 = vld [vmem:[#allocation2 + $0x70] sm:$0xff]
    %v615 = vld [vmem:[#allocation2 + $0x78] sm:$0xff]
    %616 = vst.msk [vmem:[%s2] sm:$0xff] %vm580, %v600
    %617 = vst.msk [vmem:[%s2 + $0x8] sm:$0xff] %vm580, %v601
    %618 = vst.msk [vmem:[%s2 + $0x10] sm:$0xff] %vm580, %v602
    %619 = vst.msk [vmem:[%s2 + $0x18] sm:$0xff] %vm580, %v603
    %620 = vst.msk [vmem:[%s2 + $0x20] sm:$0xff] %vm580, %v604
    %621 = vst.msk [vmem:[%s2 + $0x28] sm:$0xff] %vm580, %v605
    %622 = vst.msk [vmem:[%s2 + $0x30] sm:$0xff] %vm580, %v606
    %623 = vst.msk [vmem:[%s2 + $0x38] sm:$0xff] %vm580, %v607
    %624 = vst.msk [vmem:[%s2 + $0x40] sm:$0xff] %vm580, %v608
    %625 = vst.msk [vmem:[%s2 + $0x48] sm:$0xff] %vm580, %v609
    %626 = vst.msk [vmem:[%s2 + $0x50] sm:$0xff] %vm580, %v610
    %627 = vst.msk [vmem:[%s2 + $0x58] sm:$0xff] %vm580, %v611
    %628 = vst.msk [vmem:[%s2 + $0x60] sm:$0xff] %vm580, %v612
    %629 = vst.msk [vmem:[%s2 + $0x68] sm:$0xff] %vm580, %v613
    %630 = vst.msk [vmem:[%s2 + $0x70] sm:$0xff] %vm580, %v614
    %631 = vst.msk [vmem:[%s2 + $0x78] sm:$0xff] %vm580, %v615
  $region17: #{resnet_generator_forward.51} parent=0 // pred_fallthru
    _
  // Predicated region
  $region18: #{resnet_generator_forward.51} parent=0 // pred_check
    _
  $region19: #{resnet_generator_forward.51} parent=0 // pred_check_branch
    %633 = sbr.rel (0) target = $region21
  $region20: #{resnet_generator_forward.51} parent=0 // pred_region
    _
  $region21: #{resnet_generator_forward.51} parent=0 // pred_fallthru
    _
  // Predicated region
  $region22: #{resnet_generator_forward.51} parent=0 // pred_check
    _
  $region23: #{resnet_generator_forward.51} parent=0 // pred_check_branch
    %635 = sbr.rel (0) target = $region25
  $region24: #{resnet_generator_forward.51} parent=0 // pred_region
    _
  $region25: #{resnet_generator_forward.51} parent=0 // pred_fallthru
    _

// kernel: resnet_generator_forward.54
$region0: #{resnet_generator_forward.54}
  #allocation0 [shape = 'u32[]', space=smem, size = 0x4, offset = 0x4, fixed_abs, tag = 'smem constant byte address 0x4 - core index']
  #allocation1 [shape = 'u32[144,128]{1,0:T(1,128)}', space=vmem, size = 0x12000, scoped, tag = 'internal scratch']
  #allocation2 [shape = 'f32[256,8]{1,0:T(8,128)}', space=vmem, size = 0x20000, scoped, tag = 'scratch operand']
  %s0 = inlined_call_operand.vmem [shape: bf16[512,144], index: 0, kind: input, shape index: {}]
  %s1 = inlined_call_operand.vmem [shape: bf16[144,8], index: 1, kind: input, shape index: {}]
  %s2 = inlined_call_operand.vmem [shape: f32[512,8], index: 2, kind: output, shape index: {}]
  %s3 = sld [smem:[#allocation0]]
  $region49: #{resnet_generator_forward.54} parent=0
    _
  %s5 = ssub.s32 1, %s3
  %s6 = scalar_select 0, %s5, %s3
  loop: start=0, step=1, limit=4
  $region2: #{resnet_generator_forward.54} parent=0 // loop_pre_header
    _
  $region3: #{resnet_generator_forward.54} parent=0 // loop_header
    %s8 = sphi 0, %s12
    %p9 = scmp.ge.s32.totalorder %s8, 4
    %s15 = sphi 0, %s34
    %s16 = sphi 0, %s30
    %s17 = sphi 0, %s26
    %s18 = sphi 0, %s15
    %s19 = sphi 0, %s16
    %s20 = sphi 0, %s17
    %s21 = sphi 0, %s18
    %s22 = sphi 0, %s19
    %s23 = sphi 0, %s20
    %s39 = sphi 0, %s41
    %s42 = sphi 0, %s39
    %s43 = sphi 0, %s42
    %s59 = sphi 0, %s43
    %s67 = sphi 0, %s69
    %s70 = sphi 0, %s67
    %s71 = sphi 0, %s70
    %s87 = sphi 0, %s71
    %s95 = sphi 0, %s97
    %s98 = sphi 0, %s95
    %s99 = sphi 0, %s98
    %s115 = sphi 0, %s99
  $region4: #{resnet_generator_forward.54} parent=0 // loop_header_branch
    %11 = sbr.rel (%p9) target = $region8
  $region5: #{resnet_generator_forward.54} parent=0 // loop_body
    %s13 = ssub.s32 %s8, 1
    %s14 = ssub.s32 %s8, 2
    %s24 = sadd.s32 1, %s17
    %p25 = scmp.ge.s32.totalorder %s24, 1
    %s26 = scalar_select %p25, 0, %s24
    %s27 = sadd.s32 1, %s16
    %s28 = scalar_select %p25, %s27, %s16
    %p29 = scmp.ge.s32.totalorder %s28, 1
    %s30 = scalar_select %p29, 0, %s28
    %s31 = sadd.s32 1, %s15
    %s32 = scalar_select %p29, %s31, %s15
    %p33 = scmp.ge.s32.totalorder %s32, 2
    %s34 = scalar_select %p33, 0, %s32
    %s35 = ssub.s32 %s15, %s34
    %s36 = ssub.s32 %s17, %s26
    %s37 = sor.u32 %s35, %s36
    %p38 = scmp.eq.s32.totalorder %s37, 0
    %s40 = sadd.s32 %s39, 1
    %s41 = scalar_select %p38, %s39, %s40
    %p44 = pneg %p38
    %p45 = scmp.eq.s32.totalorder %s8, 1
    %p46 = por %p44, %p45
    %p47 = scmp.ne.s32.totalorder %s39, %s42
    %p48 = scmp.eq.s32.totalorder %s8, 0
    %p49 = por %p47, %p48
    %p50 = scmp.ne.s32.totalorder %s39, %s42
    %p51 = scmp.eq.s32.totalorder %s13, 1
    %p52 = por %p50, %p51
    %p53 = scmp.ne.s32.totalorder %s42, %s43
    %p54 = scmp.eq.s32.totalorder %s13, 0
    %p55 = por %p53, %p54
    %p56 = scmp.ne.s32.totalorder %s42, %s43
    %p57 = scmp.eq.s32.totalorder %s14, 1
    %p58 = por %p56, %p57
    %p60 = scmp.ne.s32.totalorder %s43, %s59
    %p61 = scmp.eq.s32.totalorder %s14, 0
    %p62 = por %p60, %p61
    %s63 = ssub.s32 %s17, %s26
    %s64 = ssub.s32 %s16, %s30
    %s65 = sor.u32 %s63, %s64
    %p66 = scmp.eq.s32.totalorder %s65, 0
    %s68 = sadd.s32 %s67, 1
    %s69 = scalar_select %p66, %s67, %s68
    %p72 = pneg %p66
    %p73 = scmp.eq.s32.totalorder %s8, 1
    %p74 = por %p72, %p73
    %p75 = scmp.ne.s32.totalorder %s67, %s70
    %p76 = scmp.eq.s32.totalorder %s8, 0
    %p77 = por %p75, %p76
    %p78 = scmp.ne.s32.totalorder %s67, %s70
    %p79 = scmp.eq.s32.totalorder %s13, 1
    %p80 = por %p78, %p79
    %p81 = scmp.ne.s32.totalorder %s70, %s71
    %p82 = scmp.eq.s32.totalorder %s13, 0
    %p83 = por %p81, %p82
    %p84 = scmp.ne.s32.totalorder %s70, %s71
    %p85 = scmp.eq.s32.totalorder %s14, 1
    %p86 = por %p84, %p85
    %p88 = scmp.ne.s32.totalorder %s71, %s87
    %p89 = scmp.eq.s32.totalorder %s14, 0
    %p90 = por %p88, %p89
    %s91 = ssub.s32 %s15, %s34
    %s92 = ssub.s32 %s16, %s30
    %s93 = sor.u32 %s91, %s92
    %p94 = scmp.eq.s32.totalorder %s93, 0
    %s96 = sadd.s32 %s95, 1
    %s97 = scalar_select %p94, %s95, %s96
    %p100 = pneg %p94
    %p101 = scmp.eq.s32.totalorder %s8, 1
    %p102 = por %p100, %p101
    %p103 = scmp.ne.s32.totalorder %s95, %s98
    %p104 = scmp.eq.s32.totalorder %s8, 0
    %p105 = por %p103, %p104
    %p106 = scmp.ne.s32.totalorder %s95, %s98
    %p107 = scmp.eq.s32.totalorder %s13, 1
    %p108 = por %p106, %p107
    %p109 = scmp.ne.s32.totalorder %s98, %s99
    %p110 = scmp.eq.s32.totalorder %s13, 0
    %p111 = por %p109, %p110
    %p112 = scmp.ne.s32.totalorder %s98, %s99
    %p113 = scmp.eq.s32.totalorder %s14, 1
    %p114 = por %p112, %p113
    %p116 = scmp.ne.s32.totalorder %s99, %s115
    %p117 = scmp.eq.s32.totalorder %s14, 0
    %p118 = por %p116, %p117
    %p119 = scmp.le.s32.totalorder 1, %s8
    %p120 = scmp.lt.s32.totalorder %s8, 3
    %p121 = pnand %p119, %p120
    %p122 = pneg %p121
    // Predicated region
    $region9: #{resnet_generator_forward.54} parent=5 // pred_check
      _
    $region10: #{resnet_generator_forward.54} parent=5 // pred_check_branch
      %124 = sbr.rel (%p121) target = $region12
    $region11: #{resnet_generator_forward.54} parent=5 // pred_region
      %s125 = ssub.s32 %s8, 1
      // Predicated region
      $region13: #{resnet_generator_forward.54} parent=11 // pred_check
        %p126 = pneg %p83
      $region14: #{resnet_generator_forward.54} parent=11 // pred_check_branch
        %128 = sbr.rel (%p126) target = $region16
      $region15: #{resnet_generator_forward.54} parent=11 // pred_region
        %s129 = smul.u32 18, %s20
        %p130 = scmp.lt.s32.totalorder %s129, 17
        %s131 = scalar_select %p130, %s129, 17
        %p132 = scmp.lt.s32.totalorder %s19, 0
        %s133 = scalar_select %p132, %s19, 0
        %s134 = sadd.s32 %s133, %s131
        %s135 = smul.addr %s134, 4
        %s136 = scalar_lea.vmem %s1, %s135
        %s137 = smul.u32 18, %s20
      $region16: #{resnet_generator_forward.54} parent=11 // pred_fallthru
        _
    $region12: #{resnet_generator_forward.54} parent=5 // pred_fallthru
      _
    %p138 = scmp.lt.s32.totalorder %s8, 2
    // Predicated region
    $region17: #{resnet_generator_forward.54} parent=5 // pred_check
      %p139 = pneg %p138
    $region18: #{resnet_generator_forward.54} parent=5 // pred_check_branch
      %141 = sbr.rel (%p139) target = $region20
    $region19: #{resnet_generator_forward.54} parent=5 // pred_region
      // Predicated region
      $region21: #{resnet_generator_forward.54} parent=19 // pred_check
        %p142 = pneg %p49
      $region22: #{resnet_generator_forward.54} parent=19 // pred_check_branch
        %144 = sbr.rel (%p142) target = $region24
      $region23: #{resnet_generator_forward.54} parent=19 // pred_region
        %s145 = smul.u32 32, %s15
        %s146 = smul.u32 2, %s17
        %p147 = scmp.lt.s32.totalorder %s145, 63
        %s148 = scalar_select %p147, %s145, 63
        %p149 = scmp.lt.s32.totalorder %s146, 1
        %s150 = scalar_select %p149, %s146, 1
        %s151 = smul.addr %s148, 2
        %s152 = sadd.s32 %s150, %s151
        %s153 = smul.addr %s152, 4
        %s154 = scalar_lea.vmem %s0, %s153
        %s155 = smul.u32 32, %s15
        %s156 = smul.u32 2, %s17
      $region24: #{resnet_generator_forward.54} parent=19 // pred_fallthru
        _
    $region20: #{resnet_generator_forward.54} parent=5 // pred_fallthru
      _
    %p157 = scmp.le.s32.totalorder 1, %s8
    %p158 = scmp.lt.s32.totalorder %s8, 3
    %p159 = pnand %p157, %p158
    %p160 = pneg %p159
    // Predicated region
    $region25: #{resnet_generator_forward.54} parent=5 // pred_check
      _
    $region26: #{resnet_generator_forward.54} parent=5 // pred_check_branch
      %162 = sbr.rel (%p159) target = $region28
    $region27: #{resnet_generator_forward.54} parent=5 // pred_region
      %s163 = ssub.s32 %s8, 1
      %s164 = smul.u32 32, %s18
      %s165 = smul.u32 2, %s20
      %p166 = scmp.lt.s32.totalorder %s164, 63
      %s167 = scalar_select %p166, %s164, 63
      %p168 = scmp.lt.s32.totalorder %s165, 1
      %s169 = scalar_select %p168, %s165, 1
      %s170 = smul.addr %s167, 2
      %s171 = sadd.s32 %s169, %s170
      %s172 = smul.addr %s171, 4
      %s173 = scalar_lea.vmem %s0, %s172
      %p174 = pneg %p55
      %p175 = pneg %p52
      %s176 = smul.u32 18, %s20
      %p177 = scmp.lt.s32.totalorder %s176, 17
      %s178 = scalar_select %p177, %s176, 17
      %p179 = scmp.lt.s32.totalorder %s19, 0
      %s180 = scalar_select %p179, %s19, 0
      %s181 = sadd.s32 %s180, %s178
      %s182 = smul.addr %s181, 4
      %s183 = scalar_lea.vmem %s1, %s182
      %p184 = pneg %p83
      %p185 = pneg %p80
      %p186 = pneg %p111
      %p187 = pneg %p108
      %s188 = smul.u32 32, %s18
      %p189 = scmp.lt.s32.totalorder %s188, 63
      %s190 = scalar_select %p189, %s188, 63
      %p191 = scmp.lt.s32.totalorder %s19, 0
      %s192 = scalar_select %p191, %s19, 0
      %s193 = sadd.s32 %s192, %s190
      %s194 = smul.addr %s193, 8
      %s195 = scalar_lea.vmem %s2, %s194
      %s196 = smul.u32 32, %s18
      %s197 = smul.u32 2, %s20
      %p198 = scmp.lt.s32.totalorder %s196, 63
      %s199 = scalar_select %p198, %s196, 63
      %p200 = scmp.lt.s32.totalorder %s197, 1
      %s201 = scalar_select %p200, %s197, 1
      %s202 = smul.addr %s199, 2
      %s203 = sadd.s32 %s201, %s202
      %s204 = smul.addr %s203, 4
      %s205 = scalar_lea.vmem %s0, %s204
      %s206 = smul.u32 32, %s18
      %s207 = smul.u32 2, %s20
      %s208 = smul.u32 18, %s20
      %p209 = scmp.lt.s32.totalorder %s208, 17
      %s210 = scalar_select %p209, %s208, 17
      %p211 = scmp.lt.s32.totalorder %s19, 0
      %s212 = scalar_select %p211, %s19, 0
      %s213 = sadd.s32 %s212, %s210
      %s214 = smul.addr %s213, 4
      %s215 = scalar_lea.vmem %s1, %s214
      %s216 = smul.u32 18, %s20
      %s217 = smul.u32 32, %s18
      %p218 = scmp.lt.s32.totalorder %s217, 63
      %s219 = scalar_select %p218, %s217, 63
      %p220 = scmp.lt.s32.totalorder %s19, 0
      %s221 = scalar_select %p220, %s19, 0
      %s222 = sadd.s32 %s221, %s219
      %s223 = smul.addr %s222, 8
      %s224 = scalar_lea.vmem %s2, %s223
      %s225 = smul.u32 32, %s18
      %p227 = scmp.eq.s32.totalorder %s20, 0
      // Predicated region
      $region29: #{resnet_generator_forward.54} parent=27 // pred_check
        %p228 = pneg %p227
      $region30: #{resnet_generator_forward.54} parent=27 // pred_check_branch
        %230 = sbr.rel (%p228) target = $region32
      $region31: #{resnet_generator_forward.54} parent=27 // pred_region
        %vm231 = vcmask 64512
        %232 = vst.msk [vmem:[#allocation2] sm:$0xff] %vm231, 0.0
        %233 = vst.msk [vmem:[#allocation2 + $0x8] sm:$0xff] %vm231, 0.0
        %234 = vst.msk [vmem:[#allocation2 + $0x10] sm:$0xff] %vm231, 0.0
        %235 = vst.msk [vmem:[#allocation2 + $0x18] sm:$0xff] %vm231, 0.0
        %236 = vst.msk [vmem:[#allocation2 + $0x20] sm:$0xff] %vm231, 0.0
        %237 = vst.msk [vmem:[#allocation2 + $0x28] sm:$0xff] %vm231, 0.0
        %238 = vst.msk [vmem:[#allocation2 + $0x30] sm:$0xff] %vm231, 0.0
        %239 = vst.msk [vmem:[#allocation2 + $0x38] sm:$0xff] %vm231, 0.0
        %240 = vst.msk [vmem:[#allocation2 + $0x40] sm:$0xff] %vm231, 0.0
        %241 = vst.msk [vmem:[#allocation2 + $0x48] sm:$0xff] %vm231, 0.0
        %242 = vst.msk [vmem:[#allocation2 + $0x50] sm:$0xff] %vm231, 0.0
        %243 = vst.msk [vmem:[#allocation2 + $0x58] sm:$0xff] %vm231, 0.0
        %244 = vst.msk [vmem:[#allocation2 + $0x60] sm:$0xff] %vm231, 0.0
        %245 = vst.msk [vmem:[#allocation2 + $0x68] sm:$0xff] %vm231, 0.0
        %246 = vst.msk [vmem:[#allocation2 + $0x70] sm:$0xff] %vm231, 0.0
        %247 = vst.msk [vmem:[#allocation2 + $0x78] sm:$0xff] %vm231, 0.0
        %248 = vst.msk [vmem:[#allocation2 + $0x80] sm:$0xff] %vm231, 0.0
        %249 = vst.msk [vmem:[#allocation2 + $0x88] sm:$0xff] %vm231, 0.0
        %250 = vst.msk [vmem:[#allocation2 + $0x90] sm:$0xff] %vm231, 0.0
        %251 = vst.msk [vmem:[#allocation2 + $0x98] sm:$0xff] %vm231, 0.0
        %252 = vst.msk [vmem:[#allocation2 + $0xa0] sm:$0xff] %vm231, 0.0
        %253 = vst.msk [vmem:[#allocation2 + $0xa8] sm:$0xff] %vm231, 0.0
        %254 = vst.msk [vmem:[#allocation2 + $0xb0] sm:$0xff] %vm231, 0.0
        %255 = vst.msk [vmem:[#allocation2 + $0xb8] sm:$0xff] %vm231, 0.0
        %256 = vst.msk [vmem:[#allocation2 + $0xc0] sm:$0xff] %vm231, 0.0
        %257 = vst.msk [vmem:[#allocation2 + $0xc8] sm:$0xff] %vm231, 0.0
        %258 = vst.msk [vmem:[#allocation2 + $0xd0] sm:$0xff] %vm231, 0.0
        %259 = vst.msk [vmem:[#allocation2 + $0xd8] sm:$0xff] %vm231, 0.0
        %260 = vst.msk [vmem:[#allocation2 + $0xe0] sm:$0xff] %vm231, 0.0
        %261 = vst.msk [vmem:[#allocation2 + $0xe8] sm:$0xff] %vm231, 0.0
        %262 = vst.msk [vmem:[#allocation2 + $0xf0] sm:$0xff] %vm231, 0.0
        %263 = vst.msk [vmem:[#allocation2 + $0xf8] sm:$0xff] %vm231, 0.0
      $region32: #{resnet_generator_forward.54} parent=27 // pred_fallthru
        _
      %v264 = vld [vmem:[#allocation2] sm:$0xff]
      %v265 = vld [vmem:[#allocation2 + $0x8] sm:$0xff]
      %v266 = vld [vmem:[#allocation2 + $0x10] sm:$0xff]
      %v267 = vld [vmem:[#allocation2 + $0x18] sm:$0xff]
      %v268 = vld [vmem:[#allocation2 + $0x20] sm:$0xff]
      %v269 = vld [vmem:[#allocation2 + $0x28] sm:$0xff]
      %v270 = vld [vmem:[#allocation2 + $0x30] sm:$0xff]
      %v271 = vld [vmem:[#allocation2 + $0x38] sm:$0xff]
      %v272 = vld [vmem:[#allocation2 + $0x40] sm:$0xff]
      %v273 = vld [vmem:[#allocation2 + $0x48] sm:$0xff]
      %v274 = vld [vmem:[#allocation2 + $0x50] sm:$0xff]
      %v275 = vld [vmem:[#allocation2 + $0x58] sm:$0xff]
      %v276 = vld [vmem:[#allocation2 + $0x60] sm:$0xff]
      %v277 = vld [vmem:[#allocation2 + $0x68] sm:$0xff]
      %v278 = vld [vmem:[#allocation2 + $0x70] sm:$0xff]
      %v279 = vld [vmem:[#allocation2 + $0x78] sm:$0xff]
      %v280 = vld [vmem:[#allocation2 + $0x80] sm:$0xff]
      %v281 = vld [vmem:[#allocation2 + $0x88] sm:$0xff]
      %v282 = vld [vmem:[#allocation2 + $0x90] sm:$0xff]
      %v283 = vld [vmem:[#allocation2 + $0x98] sm:$0xff]
      %v284 = vld [vmem:[#allocation2 + $0xa0] sm:$0xff]
      %v285 = vld [vmem:[#allocation2 + $0xa8] sm:$0xff]
      %v286 = vld [vmem:[#allocation2 + $0xb0] sm:$0xff]
      %v287 = vld [vmem:[#allocation2 + $0xb8] sm:$0xff]
      %v288 = vld [vmem:[#allocation2 + $0xc0] sm:$0xff]
      %v289 = vld [vmem:[#allocation2 + $0xc8] sm:$0xff]
      %v290 = vld [vmem:[#allocation2 + $0xd0] sm:$0xff]
      %v291 = vld [vmem:[#allocation2 + $0xd8] sm:$0xff]
      %v292 = vld [vmem:[#allocation2 + $0xe0] sm:$0xff]
      %v293 = vld [vmem:[#allocation2 + $0xe8] sm:$0xff]
      %v294 = vld [vmem:[#allocation2 + $0xf0] sm:$0xff]
      %v295 = vld [vmem:[#allocation2 + $0xf8] sm:$0xff]
      %v296 = vld [vmem:[%s205] sm:$0xff]
      %v297 = vld [vmem:[%s205 + $0x8] sm:$0xff]
      %v298 = vld [vmem:[%s205 + $0x10] sm:$0xff]
      %v299 = vld [vmem:[%s205 + $0x18] sm:$0xff]
      %v300 = vld [vmem:[%s205 + $0x20] sm:$0xff]
      %v301 = vld [vmem:[%s205 + $0x28] sm:$0xff]
      %v302 = vld [vmem:[%s205 + $0x30] sm:$0xff]
      %v303 = vld [vmem:[%s205 + $0x38] sm:$0xff]
      %v304 = vld [vmem:[%s205 + $0x40] sm:$0xff]
      %v305 = vld [vmem:[%s205 + $0x48] sm:$0xff]
      %v306 = vld [vmem:[%s205 + $0x50] sm:$0xff]
      %v307 = vld [vmem:[%s205 + $0x58] sm:$0xff]
      %v308 = vld [vmem:[%s205 + $0x60] sm:$0xff]
      %v309 = vld [vmem:[%s205 + $0x68] sm:$0xff]
      %v310 = vld [vmem:[%s205 + $0x70] sm:$0xff]
      %v311 = vld [vmem:[%s205 + $0x78] sm:$0xff]
      %v312 = vld [vmem:[%s205 + $0x80] sm:$0xff]
      %v313 = vld [vmem:[%s205 + $0x88] sm:$0xff]
      %v314 = vld [vmem:[%s205 + $0x90] sm:$0xff]
      %v315 = vld [vmem:[%s205 + $0x98] sm:$0xff]
      %v316 = vld [vmem:[%s205 + $0xa0] sm:$0xff]
      %v317 = vld [vmem:[%s205 + $0xa8] sm:$0xff]
      %v318 = vld [vmem:[%s205 + $0xb0] sm:$0xff]
      %v319 = vld [vmem:[%s205 + $0xb8] sm:$0xff]
      %v320 = vld [vmem:[%s205 + $0xc0] sm:$0xff]
      %v321 = vld [vmem:[%s205 + $0xc8] sm:$0xff]
      %v322 = vld [vmem:[%s205 + $0xd0] sm:$0xff]
      %v323 = vld [vmem:[%s205 + $0xd8] sm:$0xff]
      %v324 = vld [vmem:[%s205 + $0xe0] sm:$0xff]
      %v325 = vld [vmem:[%s205 + $0xe8] sm:$0xff]
      %v326 = vld [vmem:[%s205 + $0xf0] sm:$0xff]
      %v327 = vld [vmem:[%s205 + $0xf8] sm:$0xff]
      %v328 = vld [vmem:[%s215] sm:$0xf]
      %v329 = vld [vmem:[%s215 + $0x4] sm:$0xf]
      %v330 = vld [vmem:[%s215 + $0x8] sm:$0xf]
      %v331 = vld [vmem:[%s215 + $0xc] sm:$0xf]
      %v332 = vld [vmem:[%s215 + $0x10] sm:$0xf]
      %v333 = vld [vmem:[%s215 + $0x14] sm:$0xf]
      %v334 = vld [vmem:[%s215 + $0x18] sm:$0xf]
      %v335 = vld [vmem:[%s215 + $0x1c] sm:$0xf]
      %v336 = vld [vmem:[%s215 + $0x20] sm:$0xf]
      %v337 = vld [vmem:[%s215 + $0x24] sm:$0xf]
      %v338 = vld [vmem:[%s215 + $0x28] sm:$0xf]
      %v339 = vld [vmem:[%s215 + $0x2c] sm:$0xf]
      %v340 = vld [vmem:[%s215 + $0x30] sm:$0xf]
      %v341 = vld [vmem:[%s215 + $0x34] sm:$0xf]
      %v342 = vld [vmem:[%s215 + $0x38] sm:$0xf]
      %v343 = vld [vmem:[%s215 + $0x3c] sm:$0xf]
      %v344 = vld [vmem:[%s215 + $0x40] sm:$0xf]
      %v345 = vld [vmem:[%s215 + $0x44] sm:$0xf]
      %v378 = vunpack.c.l.b16 %v296
      %v379 = vunpack.c.h.b16 %v296
      %v380 = vunpack.c.l.b16 %v297
      %v381 = vunpack.c.h.b16 %v297
      %v382 = vunpack.c.l.b16 %v298
      %v383 = vunpack.c.h.b16 %v298
      %v384 = vunpack.c.l.b16 %v299
      %v385 = vunpack.c.h.b16 %v299
      %v386 = vunpack.c.l.b16 %v300
      %v387 = vunpack.c.h.b16 %v300
      %v388 = vunpack.c.l.b16 %v301
      %v389 = vunpack.c.h.b16 %v301
      %v390 = vunpack.c.l.b16 %v302
      %v391 = vunpack.c.h.b16 %v302
      %v392 = vunpack.c.l.b16 %v303
      %v393 = vunpack.c.h.b16 %v303
      %v394 = vunpack.c.l.b16 %v304
      %v395 = vunpack.c.h.b16 %v304
      %v396 = vunpack.c.l.b16 %v305
      %v397 = vunpack.c.h.b16 %v305
      %v398 = vunpack.c.l.b16 %v306
      %v399 = vunpack.c.h.b16 %v306
      %v400 = vunpack.c.l.b16 %v307
      %v401 = vunpack.c.h.b16 %v307
      %v402 = vunpack.c.l.b16 %v308
      %v403 = vunpack.c.h.b16 %v308
      %v404 = vunpack.c.l.b16 %v309
      %v405 = vunpack.c.h.b16 %v309
      %v406 = vunpack.c.l.b16 %v310
      %v407 = vunpack.c.h.b16 %v310
      %v408 = vunpack.c.l.b16 %v311
      %v409 = vunpack.c.h.b16 %v311
      %v410 = vunpack.c.l.b16 %v312
      %v411 = vunpack.c.h.b16 %v312
      %v412 = vunpack.c.l.b16 %v313
      %v413 = vunpack.c.h.b16 %v313
      %v414 = vunpack.c.l.b16 %v314
      %v415 = vunpack.c.h.b16 %v314
      %v416 = vunpack.c.l.b16 %v315
      %v417 = vunpack.c.h.b16 %v315
      %v418 = vunpack.c.l.b16 %v316
      %v419 = vunpack.c.h.b16 %v316
      %v420 = vunpack.c.l.b16 %v317
      %v421 = vunpack.c.h.b16 %v317
      %v422 = vunpack.c.l.b16 %v318
      %v423 = vunpack.c.h.b16 %v318
      %v424 = vunpack.c.l.b16 %v319
      %v425 = vunpack.c.h.b16 %v319
      %v426 = vunpack.c.l.b16 %v320
      %v427 = vunpack.c.h.b16 %v320
      %v428 = vunpack.c.l.b16 %v321
      %v429 = vunpack.c.h.b16 %v321
      %v430 = vunpack.c.l.b16 %v322
      %v431 = vunpack.c.h.b16 %v322
      %v432 = vunpack.c.l.b16 %v323
      %v433 = vunpack.c.h.b16 %v323
      %v434 = vunpack.c.l.b16 %v324
      %v435 = vunpack.c.h.b16 %v324
      %v436 = vunpack.c.l.b16 %v325
      %v437 = vunpack.c.h.b16 %v325
      %v438 = vunpack.c.l.b16 %v326
      %v439 = vunpack.c.h.b16 %v326
      %v440 = vunpack.c.l.b16 %v327
      %v441 = vunpack.c.h.b16 %v327
      %v442 = vpack.c.b16 %v380, %v378
      %v443 = vpack.c.b16 %v381, %v379
      %v444 = vpack.c.b16 %v384, %v382
      %v445 = vpack.c.b16 %v385, %v383
      %v446 = vpack.c.b16 %v388, %v386
      %v447 = vpack.c.b16 %v389, %v387
      %v448 = vpack.c.b16 %v392, %v390
      %v449 = vpack.c.b16 %v393, %v391
      %v450 = vpack.c.b16 %v396, %v394
      %v451 = vpack.c.b16 %v397, %v395
      %v452 = vpack.c.b16 %v400, %v398
      %v453 = vpack.c.b16 %v401, %v399
      %v454 = vpack.c.b16 %v404, %v402
      %v455 = vpack.c.b16 %v405, %v403
      %v456 = vpack.c.b16 %v408, %v406
      %v457 = vpack.c.b16 %v409, %v407
      %v458 = vpack.c.b16 %v412, %v410
      %v459 = vpack.c.b16 %v413, %v411
      %v460 = vpack.c.b16 %v416, %v414
      %v461 = vpack.c.b16 %v417, %v415
      %v462 = vpack.c.b16 %v420, %v418
      %v463 = vpack.c.b16 %v421, %v419
      %v464 = vpack.c.b16 %v424, %v422
      %v465 = vpack.c.b16 %v425, %v423
      %v466 = vpack.c.b16 %v428, %v426
      %v467 = vpack.c.b16 %v429, %v427
      %v468 = vpack.c.b16 %v432, %v430
      %v469 = vpack.c.b16 %v433, %v431
      %v470 = vpack.c.b16 %v436, %v434
      %v471 = vpack.c.b16 %v437, %v435
      %v472 = vpack.c.b16 %v440, %v438
      %v473 = vpack.c.b16 %v441, %v439
      %v508 = vunpack.c.l.b16 %v328
      %v509 = vunpack.c.l.b16 %v329
      %v510 = vunpack.c.l.b16 %v330
      %v511 = vunpack.c.l.b16 %v331
      %v512 = vunpack.c.l.b16 %v332
      %v513 = vunpack.c.l.b16 %v333
      %v514 = vunpack.c.l.b16 %v334
      %v515 = vunpack.c.l.b16 %v335
      %v516 = vunpack.c.l.b16 %v336
      %v517 = vunpack.c.l.b16 %v337
      %v518 = vunpack.c.l.b16 %v338
      %v519 = vunpack.c.l.b16 %v339
      %v520 = vunpack.c.l.b16 %v340
      %v521 = vunpack.c.l.b16 %v341
      %v522 = vunpack.c.l.b16 %v342
      %v523 = vunpack.c.l.b16 %v343
      %v524 = vunpack.c.l.b16 %v344
      %v525 = vunpack.c.l.b16 %v345
      %v526 = vpack.c.b16 %v509, %v508
      %v527 = vpack.c.b16 %v511, %v510
      %v528 = vpack.c.b16 %v513, %v512
      %v529 = vpack.c.b16 %v515, %v514
      %v530 = vpack.c.b16 %v517, %v516
      %v531 = vpack.c.b16 %v519, %v518
      %v532 = vpack.c.b16 %v521, %v520
      %v533 = vpack.c.b16 %v523, %v522
      %v534 = vpack.c.b16 %v525, %v524
      %vm544 = vcmask 130048
      %v546 = vsel %vm544, %v443, 0
      %v549 = vsel %vm544, %v445, 0
      %v552 = vsel %vm544, %v447, 0
      %v555 = vsel %vm544, %v449, 0
      %v558 = vsel %vm544, %v451, 0
      %v561 = vsel %vm544, %v453, 0
      %v564 = vsel %vm544, %v455, 0
      %v567 = vsel %vm544, %v457, 0
      %v570 = vsel %vm544, %v459, 0
      %v573 = vsel %vm544, %v461, 0
      %v576 = vsel %vm544, %v463, 0
      %v579 = vsel %vm544, %v465, 0
      %v582 = vsel %vm544, %v467, 0
      %v585 = vsel %vm544, %v469, 0
      %v588 = vsel %vm544, %v471, 0
      %v591 = vsel %vm544, %v473, 0
      %593 = vmatprep.subr.bf16.mxu0 0
      %594 = vmatpush1.bf16.msra.mxu0 %v533
      %595 = vmatprep.subr.bf16.mxu0 0
      %596 = vmatpush1.bf16.msra.mxu0 %v532
      %597 = vmatprep.subr.bf16.mxu0 0
      %598 = vmatpush1.bf16.msra.mxu0 %v531
      %599 = vmatprep.subr.bf16.mxu0 0
      %600 = vmatpush1.bf16.msra.mxu0 %v530
      %601 = vmatprep.subr.bf16.mxu0 0
      %602 = vmatpush1.bf16.msra.mxu0 %v529
      %603 = vmatprep.subr.bf16.mxu0 0
      %604 = vmatpush1.bf16.msra.mxu0 %v528
      %605 = vmatprep.subr.bf16.mxu0 0
      %606 = vmatpush1.bf16.msra.mxu0 %v527
      %607 = vmatprep.subr.bf16.mxu0 0
      %608 = vmatpush1.bf16.msra.mxu0 %v526
      %609 = vmatprep.subr.bf16.mxu0 0
      %610 = vmatpush2.bf16.msra.mxu0 0
      %611 = vmatprep.subr.bf16.mxu0 0
      %612 = vmatpush2.bf16.msra.mxu0 0
      %613 = vmatprep.subr.bf16.mxu0 0
      %614 = vmatpush2.bf16.msra.mxu0 0
      %615 = vmatprep.subr.bf16.mxu0 0
      %616 = vmatpush2.bf16.msra.mxu0 0
      %617 = vmatprep.subr.bf16.mxu0 0
      %618 = vmatpush2.bf16.msra.mxu0 0
      %619 = vmatprep.subr.bf16.mxu0 0
      %620 = vmatpush2.bf16.msra.mxu0 0
      %621 = vmatprep.subr.bf16.mxu0 0
      %622 = vmatpush2.bf16.msra.mxu0 0
      %623 = vmatprep.subr.bf16.mxu0 0
      %624 = vmatpush2.bf16.msra.mxu0 %v534
      %625 = vmatprep.mubr.bf16.mxu0 %v546
      %626 = vmatmul.mubr.bf16.gmra.mxu0 %v442
      %v627 = vpop.f32.mrf.mxu0
      %v628 = vadd.f32 0.0, %v627
      %v629 = vpop.f32.mrf.mxu0
      %v630 = vpop.f32.mrf.mxu0
      %v631 = vadd.f32 0.0, %v630
      %v632 = vpop.f32.mrf.mxu0
      %633 = vmatprep.mubr.bf16.mxu0 %v549
      %634 = vmatmul.mubr.bf16.gmra.mxu0 %v444
      %v635 = vpop.f32.mrf.mxu0
      %v636 = vadd.f32 0.0, %v635
      %v637 = vpop.f32.mrf.mxu0
      %v638 = vpop.f32.mrf.mxu0
      %v639 = vadd.f32 0.0, %v638
      %v640 = vpop.f32.mrf.mxu0
      %641 = vmatprep.mubr.bf16.mxu0 %v552
      %642 = vmatmul.mubr.bf16.gmra.mxu0 %v446
      %v643 = vpop.f32.mrf.mxu0
      %v644 = vadd.f32 0.0, %v643
      %v645 = vpop.f32.mrf.mxu0
      %v646 = vpop.f32.mrf.mxu0
      %v647 = vadd.f32 0.0, %v646
      %v648 = vpop.f32.mrf.mxu0
      %649 = vmatprep.mubr.bf16.mxu0 %v555
      %650 = vmatmul.mubr.bf16.gmra.mxu0 %v448
      %v651 = vpop.f32.mrf.mxu0
      %v652 = vadd.f32 0.0, %v651
      %v653 = vpop.f32.mrf.mxu0
      %v654 = vpop.f32.mrf.mxu0
      %v655 = vadd.f32 0.0, %v654
      %v656 = vpop.f32.mrf.mxu0
      %657 = vmatprep.mubr.bf16.mxu0 %v558
      %658 = vmatmul.mubr.bf16.gmra.mxu0 %v450
      %v659 = vpop.f32.mrf.mxu0
      %v660 = vadd.f32 0.0, %v659
      %v661 = vpop.f32.mrf.mxu0
      %v662 = vpop.f32.mrf.mxu0
      %v663 = vadd.f32 0.0, %v662
      %v664 = vpop.f32.mrf.mxu0
      %665 = vmatprep.mubr.bf16.mxu0 %v561
      %666 = vmatmul.mubr.bf16.gmra.mxu0 %v452
      %v667 = vpop.f32.mrf.mxu0
      %v668 = vadd.f32 0.0, %v667
      %v669 = vpop.f32.mrf.mxu0
      %v670 = vpop.f32.mrf.mxu0
      %v671 = vadd.f32 0.0, %v670
      %v672 = vpop.f32.mrf.mxu0
      %673 = vmatprep.mubr.bf16.mxu0 %v564
      %674 = vmatmul.mubr.bf16.gmra.mxu0 %v454
      %v675 = vpop.f32.mrf.mxu0
      %v676 = vadd.f32 0.0, %v675
      %v677 = vpop.f32.mrf.mxu0
      %v678 = vpop.f32.mrf.mxu0
      %v679 = vadd.f32 0.0, %v678
      %v680 = vpop.f32.mrf.mxu0
      %681 = vmatprep.mubr.bf16.mxu0 %v567
      %682 = vmatmul.mubr.bf16.gmra.mxu0 %v456
      %v683 = vpop.f32.mrf.mxu0
      %v684 = vadd.f32 0.0, %v683
      %v685 = vpop.f32.mrf.mxu0
      %v686 = vpop.f32.mrf.mxu0
      %v687 = vadd.f32 0.0, %v686
      %v688 = vpop.f32.mrf.mxu0
      %689 = vmatprep.mubr.bf16.mxu0 %v570
      %690 = vmatmul.mubr.bf16.gmra.mxu0 %v458
      %v691 = vpop.f32.mrf.mxu0
      %v692 = vadd.f32 0.0, %v691
      %v693 = vpop.f32.mrf.mxu0
      %v694 = vpop.f32.mrf.mxu0
      %v695 = vadd.f32 0.0, %v694
      %v696 = vpop.f32.mrf.mxu0
      %697 = vmatprep.mubr.bf16.mxu0 %v573
      %698 = vmatmul.mubr.bf16.gmra.mxu0 %v460
      %v699 = vpop.f32.mrf.mxu0
      %v700 = vadd.f32 0.0, %v699
      %v701 = vpop.f32.mrf.mxu0
      %v702 = vpop.f32.mrf.mxu0
      %v703 = vadd.f32 0.0, %v702
      %v704 = vpop.f32.mrf.mxu0
      %705 = vmatprep.mubr.bf16.mxu0 %v576
      %706 = vmatmul.mubr.bf16.gmra.mxu0 %v462
      %v707 = vpop.f32.mrf.mxu0
      %v708 = vadd.f32 0.0, %v707
      %v709 = vpop.f32.mrf.mxu0
      %v710 = vpop.f32.mrf.mxu0
      %v711 = vadd.f32 0.0, %v710
      %v712 = vpop.f32.mrf.mxu0
      %713 = vmatprep.mubr.bf16.mxu0 %v579
      %714 = vmatmul.mubr.bf16.gmra.mxu0 %v464
      %v715 = vpop.f32.mrf.mxu0
      %v716 = vadd.f32 0.0, %v715
      %v717 = vpop.f32.mrf.mxu0
      %v718 = vpop.f32.mrf.mxu0
      %v719 = vadd.f32 0.0, %v718
      %v720 = vpop.f32.mrf.mxu0
      %721 = vmatprep.mubr.bf16.mxu0 %v582
      %722 = vmatmul.mubr.bf16.gmra.mxu0 %v466
      %v723 = vpop.f32.mrf.mxu0
      %v724 = vadd.f32 0.0, %v723
      %v725 = vpop.f32.mrf.mxu0
      %v726 = vpop.f32.mrf.mxu0
      %v727 = vadd.f32 0.0, %v726
      %v728 = vpop.f32.mrf.mxu0
      %729 = vmatprep.mubr.bf16.mxu0 %v585
      %730 = vmatmul.mubr.bf16.gmra.mxu0 %v468
      %v731 = vpop.f32.mrf.mxu0
      %v732 = vadd.f32 0.0, %v731
      %v733 = vpop.f32.mrf.mxu0
      %v734 = vpop.f32.mrf.mxu0
      %v735 = vadd.f32 0.0, %v734
      %v736 = vpop.f32.mrf.mxu0
      %737 = vmatprep.mubr.bf16.mxu0 %v588
      %738 = vmatmul.mubr.bf16.gmra.mxu0 %v470
      %v739 = vpop.f32.mrf.mxu0
      %v740 = vadd.f32 0.0, %v739
      %v741 = vpop.f32.mrf.mxu0
      %v742 = vpop.f32.mrf.mxu0
      %v743 = vadd.f32 0.0, %v742
      %v744 = vpop.f32.mrf.mxu0
      %745 = vmatprep.mubr.bf16.mxu0 %v591
      %746 = vmatmul.mubr.bf16.gmra.mxu0 %v472
      %v747 = vpop.f32.mrf.mxu0
      %v748 = vadd.f32 0.0, %v747
      %v749 = vpop.f32.mrf.mxu0
      %v750 = vpop.f32.mrf.mxu0
      %v751 = vadd.f32 0.0, %v750
      %v752 = vpop.f32.mrf.mxu0
      %753 = vdwg.mxu0
      %v754 = vadd.f32 %v264, %v628
      %v755 = vadd.f32 %v265, %v631
      %v756 = vadd.f32 %v266, %v636
      %v757 = vadd.f32 %v267, %v639
      %v758 = vadd.f32 %v268, %v644
      %v759 = vadd.f32 %v269, %v647
      %v760 = vadd.f32 %v270, %v652
      %v761 = vadd.f32 %v271, %v655
      %v762 = vadd.f32 %v272, %v660
      %v763 = vadd.f32 %v273, %v663
      %v764 = vadd.f32 %v274, %v668
      %v765 = vadd.f32 %v275, %v671
      %v766 = vadd.f32 %v276, %v676
      %v767 = vadd.f32 %v277, %v679
      %v768 = vadd.f32 %v278, %v684
      %v769 = vadd.f32 %v279, %v687
      %v770 = vadd.f32 %v280, %v692
      %v771 = vadd.f32 %v281, %v695
      %v772 = vadd.f32 %v282, %v700
      %v773 = vadd.f32 %v283, %v703
      %v774 = vadd.f32 %v284, %v708
      %v775 = vadd.f32 %v285, %v711
      %v776 = vadd.f32 %v286, %v716
      %v777 = vadd.f32 %v287, %v719
      %v778 = vadd.f32 %v288, %v724
      %v779 = vadd.f32 %v289, %v727
      %v780 = vadd.f32 %v290, %v732
      %v781 = vadd.f32 %v291, %v735
      %v782 = vadd.f32 %v292, %v740
      %v783 = vadd.f32 %v293, %v743
      %v784 = vadd.f32 %v294, %v748
      %v785 = vadd.f32 %v295, %v751
      %vm786 = vcmask 64512
      %787 = vst.msk [vmem:[#allocation2] sm:$0xff] %vm786, %v754
      %788 = vst.msk [vmem:[#allocation2 + $0x8] sm:$0xff] %vm786, %v755
      %789 = vst.msk [vmem:[#allocation2 + $0x10] sm:$0xff] %vm786, %v756
      %790 = vst.msk [vmem:[#allocation2 + $0x18] sm:$0xff] %vm786, %v757
      %791 = vst.msk [vmem:[#allocation2 + $0x20] sm:$0xff] %vm786, %v758
      %792 = vst.msk [vmem:[#allocation2 + $0x28] sm:$0xff] %vm786, %v759
      %793 = vst.msk [vmem:[#allocation2 + $0x30] sm:$0xff] %vm786, %v760
      %794 = vst.msk [vmem:[#allocation2 + $0x38] sm:$0xff] %vm786, %v761
      %795 = vst.msk [vmem:[#allocation2 + $0x40] sm:$0xff] %vm786, %v762
      %796 = vst.msk [vmem:[#allocation2 + $0x48] sm:$0xff] %vm786, %v763
      %797 = vst.msk [vmem:[#allocation2 + $0x50] sm:$0xff] %vm786, %v764
      %798 = vst.msk [vmem:[#allocation2 + $0x58] sm:$0xff] %vm786, %v765
      %799 = vst.msk [vmem:[#allocation2 + $0x60] sm:$0xff] %vm786, %v766
      %800 = vst.msk [vmem:[#allocation2 + $0x68] sm:$0xff] %vm786, %v767
      %801 = vst.msk [vmem:[#allocation2 + $0x70] sm:$0xff] %vm786, %v768
      %802 = vst.msk [vmem:[#allocation2 + $0x78] sm:$0xff] %vm786, %v769
      %803 = vst.msk [vmem:[#allocation2 + $0x80] sm:$0xff] %vm786, %v770
      %804 = vst.msk [vmem:[#allocation2 + $0x88] sm:$0xff] %vm786, %v771
      %805 = vst.msk [vmem:[#allocation2 + $0x90] sm:$0xff] %vm786, %v772
      %806 = vst.msk [vmem:[#allocation2 + $0x98] sm:$0xff] %vm786, %v773
      %807 = vst.msk [vmem:[#allocation2 + $0xa0] sm:$0xff] %vm786, %v774
      %808 = vst.msk [vmem:[#allocation2 + $0xa8] sm:$0xff] %vm786, %v775
      %809 = vst.msk [vmem:[#allocation2 + $0xb0] sm:$0xff] %vm786, %v776
      %810 = vst.msk [vmem:[#allocation2 + $0xb8] sm:$0xff] %vm786, %v777
      %811 = vst.msk [vmem:[#allocation2 + $0xc0] sm:$0xff] %vm786, %v778
      %812 = vst.msk [vmem:[#allocation2 + $0xc8] sm:$0xff] %vm786, %v779
      %813 = vst.msk [vmem:[#allocation2 + $0xd0] sm:$0xff] %vm786, %v780
      %814 = vst.msk [vmem:[#allocation2 + $0xd8] sm:$0xff] %vm786, %v781
      %815 = vst.msk [vmem:[#allocation2 + $0xe0] sm:$0xff] %vm786, %v782
      %816 = vst.msk [vmem:[#allocation2 + $0xe8] sm:$0xff] %vm786, %v783
      %817 = vst.msk [vmem:[#allocation2 + $0xf0] sm:$0xff] %vm786, %v784
      %818 = vst.msk [vmem:[#allocation2 + $0xf8] sm:$0xff] %vm786, %v785
      // Predicated region
      $region33: #{resnet_generator_forward.54} parent=27 // pred_check
        %p819 = pneg %p227
      $region34: #{resnet_generator_forward.54} parent=27 // pred_check_branch
        %821 = sbr.rel (%p819) target = $region36
      $region35: #{resnet_generator_forward.54} parent=27 // pred_region
        %v822 = vld [vmem:[#allocation2] sm:$0xff]
        %v823 = vld [vmem:[#allocation2 + $0x8] sm:$0xff]
        %v824 = vld [vmem:[#allocation2 + $0x10] sm:$0xff]
        %v825 = vld [vmem:[#allocation2 + $0x18] sm:$0xff]
        %v826 = vld [vmem:[#allocation2 + $0x20] sm:$0xff]
        %v827 = vld [vmem:[#allocation2 + $0x28] sm:$0xff]
        %v828 = vld [vmem:[#allocation2 + $0x30] sm:$0xff]
        %v829 = vld [vmem:[#allocation2 + $0x38] sm:$0xff]
        %v830 = vld [vmem:[#allocation2 + $0x40] sm:$0xff]
        %v831 = vld [vmem:[#allocation2 + $0x48] sm:$0xff]
        %v832 = vld [vmem:[#allocation2 + $0x50] sm:$0xff]
        %v833 = vld [vmem:[#allocation2 + $0x58] sm:$0xff]
        %v834 = vld [vmem:[#allocation2 + $0x60] sm:$0xff]
        %v835 = vld [vmem:[#allocation2 + $0x68] sm:$0xff]
        %v836 = vld [vmem:[#allocation2 + $0x70] sm:$0xff]
        %v837 = vld [vmem:[#allocation2 + $0x78] sm:$0xff]
        %v838 = vld [vmem:[#allocation2 + $0x80] sm:$0xff]
        %v839 = vld [vmem:[#allocation2 + $0x88] sm:$0xff]
        %v840 = vld [vmem:[#allocation2 + $0x90] sm:$0xff]
        %v841 = vld [vmem:[#allocation2 + $0x98] sm:$0xff]
        %v842 = vld [vmem:[#allocation2 + $0xa0] sm:$0xff]
        %v843 = vld [vmem:[#allocation2 + $0xa8] sm:$0xff]
        %v844 = vld [vmem:[#allocation2 + $0xb0] sm:$0xff]
        %v845 = vld [vmem:[#allocation2 + $0xb8] sm:$0xff]
        %v846 = vld [vmem:[#allocation2 + $0xc0] sm:$0xff]
        %v847 = vld [vmem:[#allocation2 + $0xc8] sm:$0xff]
        %v848 = vld [vmem:[#allocation2 + $0xd0] sm:$0xff]
        %v849 = vld [vmem:[#allocation2 + $0xd8] sm:$0xff]
        %v850 = vld [vmem:[#allocation2 + $0xe0] sm:$0xff]
        %v851 = vld [vmem:[#allocation2 + $0xe8] sm:$0xff]
        %v852 = vld [vmem:[#allocation2 + $0xf0] sm:$0xff]
        %v853 = vld [vmem:[#allocation2 + $0xf8] sm:$0xff]
        %854 = vst.msk [vmem:[%s224] sm:$0xff] %vm786, %v822
        %855 = vst.msk [vmem:[%s224 + $0x8] sm:$0xff] %vm786, %v823
        %856 = vst.msk [vmem:[%s224 + $0x10] sm:$0xff] %vm786, %v824
        %857 = vst.msk [vmem:[%s224 + $0x18] sm:$0xff] %vm786, %v825
        %858 = vst.msk [vmem:[%s224 + $0x20] sm:$0xff] %vm786, %v826
        %859 = vst.msk [vmem:[%s224 + $0x28] sm:$0xff] %vm786, %v827
        %860 = vst.msk [vmem:[%s224 + $0x30] sm:$0xff] %vm786, %v828
        %861 = vst.msk [vmem:[%s224 + $0x38] sm:$0xff] %vm786, %v829
        %862 = vst.msk [vmem:[%s224 + $0x40] sm:$0xff] %vm786, %v830
        %863 = vst.msk [vmem:[%s224 + $0x48] sm:$0xff] %vm786, %v831
        %864 = vst.msk [vmem:[%s224 + $0x50] sm:$0xff] %vm786, %v832
        %865 = vst.msk [vmem:[%s224 + $0x58] sm:$0xff] %vm786, %v833
        %866 = vst.msk [vmem:[%s224 + $0x60] sm:$0xff] %vm786, %v834
        %867 = vst.msk [vmem:[%s224 + $0x68] sm:$0xff] %vm786, %v835
        %868 = vst.msk [vmem:[%s224 + $0x70] sm:$0xff] %vm786, %v836
        %869 = vst.msk [vmem:[%s224 + $0x78] sm:$0xff] %vm786, %v837
        %870 = vst.msk [vmem:[%s224 + $0x80] sm:$0xff] %vm786, %v838
        %871 = vst.msk [vmem:[%s224 + $0x88] sm:$0xff] %vm786, %v839
        %872 = vst.msk [vmem:[%s224 + $0x90] sm:$0xff] %vm786, %v840
        %873 = vst.msk [vmem:[%s224 + $0x98] sm:$0xff] %vm786, %v841
        %874 = vst.msk [vmem:[%s224 + $0xa0] sm:$0xff] %vm786, %v842
        %875 = vst.msk [vmem:[%s224 + $0xa8] sm:$0xff] %vm786, %v843
        %876 = vst.msk [vmem:[%s224 + $0xb0] sm:$0xff] %vm786, %v844
        %877 = vst.msk [vmem:[%s224 + $0xb8] sm:$0xff] %vm786, %v845
        %878 = vst.msk [vmem:[%s224 + $0xc0] sm:$0xff] %vm786, %v846
        %879 = vst.msk [vmem:[%s224 + $0xc8] sm:$0xff] %vm786, %v847
        %880 = vst.msk [vmem:[%s224 + $0xd0] sm:$0xff] %vm786, %v848
        %881 = vst.msk [vmem:[%s224 + $0xd8] sm:$0xff] %vm786, %v849
        %882 = vst.msk [vmem:[%s224 + $0xe0] sm:$0xff] %vm786, %v850
        %883 = vst.msk [vmem:[%s224 + $0xe8] sm:$0xff] %vm786, %v851
        %884 = vst.msk [vmem:[%s224 + $0xf0] sm:$0xff] %vm786, %v852
        %885 = vst.msk [vmem:[%s224 + $0xf8] sm:$0xff] %vm786, %v853
      $region36: #{resnet_generator_forward.54} parent=27 // pred_fallthru
        _
      %s886 = smul.u32 32, %s18
      %p887 = scmp.lt.s32.totalorder %s886, 63
      %s888 = scalar_select %p887, %s886, 63
      %p889 = scmp.lt.s32.totalorder %s19, 0
      %s890 = scalar_select %p889, %s19, 0
      %s891 = sadd.s32 %s890, %s888
      %s892 = smul.addr %s891, 8
      %s893 = scalar_lea.vmem %s2, %s892
      // Predicated region
      $region37: #{resnet_generator_forward.54} parent=27 // pred_check
        %p894 = pneg %p108
      $region38: #{resnet_generator_forward.54} parent=27 // pred_check_branch
        %896 = sbr.rel (%p894) target = $region40
      $region39: #{resnet_generator_forward.54} parent=27 // pred_region
        %s897 = smul.u32 32, %s18
      $region40: #{resnet_generator_forward.54} parent=27 // pred_fallthru
        _
    $region28: #{resnet_generator_forward.54} parent=5 // pred_fallthru
      _
    %p898 = scmp.le.s32.totalorder 2, %s8
    // Predicated region
    $region41: #{resnet_generator_forward.54} parent=5 // pred_check
      %p899 = pneg %p898
    $region42: #{resnet_generator_forward.54} parent=5 // pred_check_branch
      %901 = sbr.rel (%p899) target = $region44
    $region43: #{resnet_generator_forward.54} parent=5 // pred_region
      %s902 = ssub.s32 %s8, 2
      // Predicated region
      $region45: #{resnet_generator_forward.54} parent=43 // pred_check
        %p903 = pneg %p114
      $region46: #{resnet_generator_forward.54} parent=43 // pred_check_branch
        %905 = sbr.rel (%p903) target = $region48
      $region47: #{resnet_generator_forward.54} parent=43 // pred_region
        %s906 = smul.u32 32, %s21
        %p907 = scmp.lt.s32.totalorder %s906, 63
        %s908 = scalar_select %p907, %s906, 63
        %p909 = scmp.lt.s32.totalorder %s22, 0
        %s910 = scalar_select %p909, %s22, 0
        %s911 = sadd.s32 %s910, %s908
        %s912 = smul.addr %s911, 8
        %s913 = scalar_lea.vmem %s2, %s912
      $region48: #{resnet_generator_forward.54} parent=43 // pred_fallthru
        _
    $region44: #{resnet_generator_forward.54} parent=5 // pred_fallthru
      _
  $region6: #{resnet_generator_forward.54} parent=0 // loop_footer
    %s12 = sadd.s32 1, %s8
  $region7: #{resnet_generator_forward.54} parent=0 // loop_footer_branch
    %7 = sbr.rel target = $region3
  $region8: #{resnet_generator_forward.54} parent=0 // loop_exit
    _

// kernel: resnet_generator_forward.57
$region0: #{resnet_generator_forward.57}
  #allocation0 [shape = 'u32[]', space=smem, size = 0x4, offset = 0x4, fixed_abs, tag = 'smem constant byte address 0x4 - core index']
  #allocation1 [shape = 'u32[144,128]{1,0:T(1,128)}', space=vmem, size = 0x12000, scoped, tag = 'internal scratch']
  #allocation2 [shape = 'f32[256,4]{1,0:T(8,128)}', space=vmem, size = 0x20000, scoped, tag = 'scratch operand']
  %s0 = inlined_call_operand.vmem [shape: bf16[512,392], index: 0, kind: input, shape index: {}]
  %s1 = inlined_call_operand.vmem [shape: bf16[392,4], index: 1, kind: input, shape index: {}]
  %s2 = inlined_call_operand.vmem [shape: f32[1,4], index: 2, kind: input, shape index: {}]
  %s3 = inlined_call_operand.vmem [shape: f32[512,4], index: 3, kind: output, shape index: {}]
  %s4 = sld [smem:[#allocation0]]
  $region53: #{resnet_generator_forward.57} parent=0
    _
  %s6 = ssub.s32 1, %s4
  %s7 = scalar_select 0, %s6, %s4
  loop: start=0, step=1, limit=4
  $region2: #{resnet_generator_forward.57} parent=0 // loop_pre_header
    _
  $region3: #{resnet_generator_forward.57} parent=0 // loop_header
    %s9 = sphi 0, %s13
    %p10 = scmp.ge.s32.totalorder %s9, 4
    %s16 = sphi 0, %s35
    %s17 = sphi 0, %s31
    %s18 = sphi 0, %s27
    %s19 = sphi 0, %s16
    %s20 = sphi 0, %s17
    %s21 = sphi 0, %s18
    %s22 = sphi 0, %s19
    %s23 = sphi 0, %s20
    %s24 = sphi 0, %s21
    %s40 = sphi 0, %s42
    %s43 = sphi 0, %s40
    %s44 = sphi 0, %s43
    %s60 = sphi 0, %s44
    %s68 = sphi 0, %s70
    %s71 = sphi 0, %s68
    %s72 = sphi 0, %s71
    %s88 = sphi 0, %s72
    %s94 = sphi 0, %s96
    %s97 = sphi 0, %s94
    %s98 = sphi 0, %s97
    %s114 = sphi 0, %s98
    %s122 = sphi 0, %s124
    %s125 = sphi 0, %s122
    %s126 = sphi 0, %s125
    %s142 = sphi 0, %s126
  $region4: #{resnet_generator_forward.57} parent=0 // loop_header_branch
    %12 = sbr.rel (%p10) target = $region8
  $region5: #{resnet_generator_forward.57} parent=0 // loop_body
    %s14 = ssub.s32 %s9, 1
    %s15 = ssub.s32 %s9, 2
    %s25 = sadd.s32 1, %s18
    %p26 = scmp.ge.s32.totalorder %s25, 1
    %s27 = scalar_select %p26, 0, %s25
    %s28 = sadd.s32 1, %s17
    %s29 = scalar_select %p26, %s28, %s17
    %p30 = scmp.ge.s32.totalorder %s29, 1
    %s31 = scalar_select %p30, 0, %s29
    %s32 = sadd.s32 1, %s16
    %s33 = scalar_select %p30, %s32, %s16
    %p34 = scmp.ge.s32.totalorder %s33, 2
    %s35 = scalar_select %p34, 0, %s33
    %s36 = ssub.s32 %s16, %s35
    %s37 = ssub.s32 %s18, %s27
    %s38 = sor.u32 %s36, %s37
    %p39 = scmp.eq.s32.totalorder %s38, 0
    %s41 = sadd.s32 %s40, 1
    %s42 = scalar_select %p39, %s40, %s41
    %p45 = pneg %p39
    %p46 = scmp.eq.s32.totalorder %s9, 1
    %p47 = por %p45, %p46
    %p48 = scmp.ne.s32.totalorder %s40, %s43
    %p49 = scmp.eq.s32.totalorder %s9, 0
    %p50 = por %p48, %p49
    %p51 = scmp.ne.s32.totalorder %s40, %s43
    %p52 = scmp.eq.s32.totalorder %s14, 1
    %p53 = por %p51, %p52
    %p54 = scmp.ne.s32.totalorder %s43, %s44
    %p55 = scmp.eq.s32.totalorder %s14, 0
    %p56 = por %p54, %p55
    %p57 = scmp.ne.s32.totalorder %s43, %s44
    %p58 = scmp.eq.s32.totalorder %s15, 1
    %p59 = por %p57, %p58
    %p61 = scmp.ne.s32.totalorder %s44, %s60
    %p62 = scmp.eq.s32.totalorder %s15, 0
    %p63 = por %p61, %p62
    %s64 = ssub.s32 %s18, %s27
    %s65 = ssub.s32 %s17, %s31
    %s66 = sor.u32 %s64, %s65
    %p67 = scmp.eq.s32.totalorder %s66, 0
    %s69 = sadd.s32 %s68, 1
    %s70 = scalar_select %p67, %s68, %s69
    %p73 = pneg %p67
    %p74 = scmp.eq.s32.totalorder %s9, 1
    %p75 = por %p73, %p74
    %p76 = scmp.ne.s32.totalorder %s68, %s71
    %p77 = scmp.eq.s32.totalorder %s9, 0
    %p78 = por %p76, %p77
    %p79 = scmp.ne.s32.totalorder %s68, %s71
    %p80 = scmp.eq.s32.totalorder %s14, 1
    %p81 = por %p79, %p80
    %p82 = scmp.ne.s32.totalorder %s71, %s72
    %p83 = scmp.eq.s32.totalorder %s14, 0
    %p84 = por %p82, %p83
    %p85 = scmp.ne.s32.totalorder %s71, %s72
    %p86 = scmp.eq.s32.totalorder %s15, 1
    %p87 = por %p85, %p86
    %p89 = scmp.ne.s32.totalorder %s72, %s88
    %p90 = scmp.eq.s32.totalorder %s15, 0
    %p91 = por %p89, %p90
    %s92 = ssub.s32 %s17, %s31
    %p93 = scmp.eq.s32.totalorder %s92, 0
    %s95 = sadd.s32 %s94, 1
    %s96 = scalar_select %p93, %s94, %s95
    %p99 = pneg %p93
    %p100 = scmp.eq.s32.totalorder %s9, 1
    %p101 = por %p99, %p100
    %p102 = scmp.ne.s32.totalorder %s94, %s97
    %p103 = scmp.eq.s32.totalorder %s9, 0
    %p104 = por %p102, %p103
    %p105 = scmp.ne.s32.totalorder %s94, %s97
    %p106 = scmp.eq.s32.totalorder %s14, 1
    %p107 = por %p105, %p106
    %p108 = scmp.ne.s32.totalorder %s97, %s98
    %p109 = scmp.eq.s32.totalorder %s14, 0
    %p110 = por %p108, %p109
    %p111 = scmp.ne.s32.totalorder %s97, %s98
    %p112 = scmp.eq.s32.totalorder %s15, 1
    %p113 = por %p111, %p112
    %p115 = scmp.ne.s32.totalorder %s98, %s114
    %p116 = scmp.eq.s32.totalorder %s15, 0
    %p117 = por %p115, %p116
    %s118 = ssub.s32 %s16, %s35
    %s119 = ssub.s32 %s17, %s31
    %s120 = sor.u32 %s118, %s119
    %p121 = scmp.eq.s32.totalorder %s120, 0
    %s123 = sadd.s32 %s122, 1
    %s124 = scalar_select %p121, %s122, %s123
    %p127 = pneg %p121
    %p128 = scmp.eq.s32.totalorder %s9, 1
    %p129 = por %p127, %p128
    %p130 = scmp.ne.s32.totalorder %s122, %s125
    %p131 = scmp.eq.s32.totalorder %s9, 0
    %p132 = por %p130, %p131
    %p133 = scmp.ne.s32.totalorder %s122, %s125
    %p134 = scmp.eq.s32.totalorder %s14, 1
    %p135 = por %p133, %p134
    %p136 = scmp.ne.s32.totalorder %s125, %s126
    %p137 = scmp.eq.s32.totalorder %s14, 0
    %p138 = por %p136, %p137
    %p139 = scmp.ne.s32.totalorder %s125, %s126
    %p140 = scmp.eq.s32.totalorder %s15, 1
    %p141 = por %p139, %p140
    %p143 = scmp.ne.s32.totalorder %s126, %s142
    %p144 = scmp.eq.s32.totalorder %s15, 0
    %p145 = por %p143, %p144
    %p146 = scmp.le.s32.totalorder 1, %s9
    %p147 = scmp.lt.s32.totalorder %s9, 3
    %p148 = pnand %p146, %p147
    %p149 = pneg %p148
    // Predicated region
    $region9: #{resnet_generator_forward.57} parent=5 // pred_check
      _
    $region10: #{resnet_generator_forward.57} parent=5 // pred_check_branch
      %151 = sbr.rel (%p148) target = $region12
    $region11: #{resnet_generator_forward.57} parent=5 // pred_region
      %s152 = ssub.s32 %s9, 1
      // Predicated region
      $region13: #{resnet_generator_forward.57} parent=11 // pred_check
        %p153 = pneg %p84
      $region14: #{resnet_generator_forward.57} parent=11 // pred_check_branch
        %155 = sbr.rel (%p153) target = $region16
      $region15: #{resnet_generator_forward.57} parent=11 // pred_region
        %s156 = smul.u32 49, %s21
        %p157 = scmp.lt.s32.totalorder %s156, 48
        %s158 = scalar_select %p157, %s156, 48
        %p159 = scmp.lt.s32.totalorder %s20, 0
        %s160 = scalar_select %p159, %s20, 0
        %s161 = sadd.s32 %s160, %s158
        %s162 = smul.addr %s161, 4
        %s163 = scalar_lea.vmem %s1, %s162
        %s164 = smul.u32 49, %s21
      $region16: #{resnet_generator_forward.57} parent=11 // pred_fallthru
        _
      // Predicated region
      $region17: #{resnet_generator_forward.57} parent=11 // pred_check
        %p165 = pneg %p110
      $region18: #{resnet_generator_forward.57} parent=11 // pred_check_branch
        %167 = sbr.rel (%p165) target = $region20
      $region19: #{resnet_generator_forward.57} parent=11 // pred_region
        %p168 = scmp.lt.s32.totalorder %s20, 0
        %s169 = scalar_select %p168, %s20, 0
        %s170 = scalar_lea.vmem %s2, %s169
      $region20: #{resnet_generator_forward.57} parent=11 // pred_fallthru
        _
    $region12: #{resnet_generator_forward.57} parent=5 // pred_fallthru
      _
    %p171 = scmp.lt.s32.totalorder %s9, 2
    // Predicated region
    $region21: #{resnet_generator_forward.57} parent=5 // pred_check
      %p172 = pneg %p171
    $region22: #{resnet_generator_forward.57} parent=5 // pred_check_branch
      %174 = sbr.rel (%p172) target = $region24
    $region23: #{resnet_generator_forward.57} parent=5 // pred_region
      // Predicated region
      $region25: #{resnet_generator_forward.57} parent=23 // pred_check
        %p175 = pneg %p50
      $region26: #{resnet_generator_forward.57} parent=23 // pred_check_branch
        %177 = sbr.rel (%p175) target = $region28
      $region27: #{resnet_generator_forward.57} parent=23 // pred_region
        %s178 = smul.u32 32, %s16
        %s179 = smul.u32 4, %s18
        %p180 = scmp.lt.s32.totalorder %s178, 63
        %s181 = scalar_select %p180, %s178, 63
        %p182 = scmp.lt.s32.totalorder %s179, 3
        %s183 = scalar_select %p182, %s179, 3
        %s184 = smul.addr %s181, 4
        %s185 = sadd.s32 %s183, %s184
        %s186 = smul.addr %s185, 4
        %s187 = scalar_lea.vmem %s0, %s186
        %s188 = smul.u32 32, %s16
        %s189 = smul.u32 4, %s18
      $region28: #{resnet_generator_forward.57} parent=23 // pred_fallthru
        _
    $region24: #{resnet_generator_forward.57} parent=5 // pred_fallthru
      _
    %p190 = scmp.le.s32.totalorder 1, %s9
    %p191 = scmp.lt.s32.totalorder %s9, 3
    %p192 = pnand %p190, %p191
    %p193 = pneg %p192
    // Predicated region
    $region29: #{resnet_generator_forward.57} parent=5 // pred_check
      _
    $region30: #{resnet_generator_forward.57} parent=5 // pred_check_branch
      %195 = sbr.rel (%p192) target = $region32
    $region31: #{resnet_generator_forward.57} parent=5 // pred_region
      %s196 = ssub.s32 %s9, 1
      %s197 = smul.u32 32, %s19
      %s198 = smul.u32 4, %s21
      %p199 = scmp.lt.s32.totalorder %s197, 63
      %s200 = scalar_select %p199, %s197, 63
      %p201 = scmp.lt.s32.totalorder %s198, 3
      %s202 = scalar_select %p201, %s198, 3
      %s203 = smul.addr %s200, 4
      %s204 = sadd.s32 %s202, %s203
      %s205 = smul.addr %s204, 4
      %s206 = scalar_lea.vmem %s0, %s205
      %p207 = pneg %p56
      %p208 = pneg %p53
      %s209 = smul.u32 49, %s21
      %p210 = scmp.lt.s32.totalorder %s209, 48
      %s211 = scalar_select %p210, %s209, 48
      %p212 = scmp.lt.s32.totalorder %s20, 0
      %s213 = scalar_select %p212, %s20, 0
      %s214 = sadd.s32 %s213, %s211
      %s215 = smul.addr %s214, 4
      %s216 = scalar_lea.vmem %s1, %s215
      %p217 = pneg %p84
      %p218 = pneg %p81
      %p219 = scmp.lt.s32.totalorder %s20, 0
      %s220 = scalar_select %p219, %s20, 0
      %s221 = scalar_lea.vmem %s2, %s220
      %p222 = pneg %p110
      %p223 = pneg %p107
      %p224 = pneg %p138
      %p225 = pneg %p135
      %s226 = smul.u32 32, %s19
      %p227 = scmp.lt.s32.totalorder %s226, 63
      %s228 = scalar_select %p227, %s226, 63
      %p229 = scmp.lt.s32.totalorder %s20, 0
      %s230 = scalar_select %p229, %s20, 0
      %s231 = sadd.s32 %s230, %s228
      %s232 = smul.addr %s231, 8
      %s233 = scalar_lea.vmem %s3, %s232
      %s234 = smul.u32 32, %s19
      %s235 = smul.u32 4, %s21
      %p236 = scmp.lt.s32.totalorder %s234, 63
      %s237 = scalar_select %p236, %s234, 63
      %p238 = scmp.lt.s32.totalorder %s235, 3
      %s239 = scalar_select %p238, %s235, 3
      %s240 = smul.addr %s237, 4
      %s241 = sadd.s32 %s239, %s240
      %s242 = smul.addr %s241, 4
      %s243 = scalar_lea.vmem %s0, %s242
      %s244 = smul.u32 32, %s19
      %s245 = smul.u32 4, %s21
      %s246 = smul.u32 49, %s21
      %p247 = scmp.lt.s32.totalorder %s246, 48
      %s248 = scalar_select %p247, %s246, 48
      %p249 = scmp.lt.s32.totalorder %s20, 0
      %s250 = scalar_select %p249, %s20, 0
      %s251 = sadd.s32 %s250, %s248
      %s252 = smul.addr %s251, 4
      %s253 = scalar_lea.vmem %s1, %s252
      %s254 = smul.u32 49, %s21
      %p255 = scmp.lt.s32.totalorder %s20, 0
      %s256 = scalar_select %p255, %s20, 0
      %s257 = scalar_lea.vmem %s2, %s256
      %s258 = smul.u32 32, %s19
      %p259 = scmp.lt.s32.totalorder %s258, 63
      %s260 = scalar_select %p259, %s258, 63
      %p261 = scmp.lt.s32.totalorder %s20, 0
      %s262 = scalar_select %p261, %s20, 0
      %s263 = sadd.s32 %s262, %s260
      %s264 = smul.addr %s263, 8
      %s265 = scalar_lea.vmem %s3, %s264
      %s266 = smul.u32 32, %s19
      %p268 = scmp.eq.s32.totalorder %s21, 0
      // Predicated region
      $region33: #{resnet_generator_forward.57} parent=31 // pred_check
        %p269 = pneg %p268
      $region34: #{resnet_generator_forward.57} parent=31 // pred_check_branch
        %271 = sbr.rel (%p269) target = $region36
      $region35: #{resnet_generator_forward.57} parent=31 // pred_region
        %vm272 = vcmask 31744
        %273 = vst.msk [vmem:[#allocation2] sm:$0xff] %vm272, 0.0
        %274 = vst.msk [vmem:[#allocation2 + $0x8] sm:$0xff] %vm272, 0.0
        %275 = vst.msk [vmem:[#allocation2 + $0x10] sm:$0xff] %vm272, 0.0
        %276 = vst.msk [vmem:[#allocation2 + $0x18] sm:$0xff] %vm272, 0.0
        %277 = vst.msk [vmem:[#allocation2 + $0x20] sm:$0xff] %vm272, 0.0
        %278 = vst.msk [vmem:[#allocation2 + $0x28] sm:$0xff] %vm272, 0.0
        %279 = vst.msk [vmem:[#allocation2 + $0x30] sm:$0xff] %vm272, 0.0
        %280 = vst.msk [vmem:[#allocation2 + $0x38] sm:$0xff] %vm272, 0.0
        %281 = vst.msk [vmem:[#allocation2 + $0x40] sm:$0xff] %vm272, 0.0
        %282 = vst.msk [vmem:[#allocation2 + $0x48] sm:$0xff] %vm272, 0.0
        %283 = vst.msk [vmem:[#allocation2 + $0x50] sm:$0xff] %vm272, 0.0
        %284 = vst.msk [vmem:[#allocation2 + $0x58] sm:$0xff] %vm272, 0.0
        %285 = vst.msk [vmem:[#allocation2 + $0x60] sm:$0xff] %vm272, 0.0
        %286 = vst.msk [vmem:[#allocation2 + $0x68] sm:$0xff] %vm272, 0.0
        %287 = vst.msk [vmem:[#allocation2 + $0x70] sm:$0xff] %vm272, 0.0
        %288 = vst.msk [vmem:[#allocation2 + $0x78] sm:$0xff] %vm272, 0.0
        %289 = vst.msk [vmem:[#allocation2 + $0x80] sm:$0xff] %vm272, 0.0
        %290 = vst.msk [vmem:[#allocation2 + $0x88] sm:$0xff] %vm272, 0.0
        %291 = vst.msk [vmem:[#allocation2 + $0x90] sm:$0xff] %vm272, 0.0
        %292 = vst.msk [vmem:[#allocation2 + $0x98] sm:$0xff] %vm272, 0.0
        %293 = vst.msk [vmem:[#allocation2 + $0xa0] sm:$0xff] %vm272, 0.0
        %294 = vst.msk [vmem:[#allocation2 + $0xa8] sm:$0xff] %vm272, 0.0
        %295 = vst.msk [vmem:[#allocation2 + $0xb0] sm:$0xff] %vm272, 0.0
        %296 = vst.msk [vmem:[#allocation2 + $0xb8] sm:$0xff] %vm272, 0.0
        %297 = vst.msk [vmem:[#allocation2 + $0xc0] sm:$0xff] %vm272, 0.0
        %298 = vst.msk [vmem:[#allocation2 + $0xc8] sm:$0xff] %vm272, 0.0
        %299 = vst.msk [vmem:[#allocation2 + $0xd0] sm:$0xff] %vm272, 0.0
        %300 = vst.msk [vmem:[#allocation2 + $0xd8] sm:$0xff] %vm272, 0.0
        %301 = vst.msk [vmem:[#allocation2 + $0xe0] sm:$0xff] %vm272, 0.0
        %302 = vst.msk [vmem:[#allocation2 + $0xe8] sm:$0xff] %vm272, 0.0
        %303 = vst.msk [vmem:[#allocation2 + $0xf0] sm:$0xff] %vm272, 0.0
        %304 = vst.msk [vmem:[#allocation2 + $0xf8] sm:$0xff] %vm272, 0.0
      $region36: #{resnet_generator_forward.57} parent=31 // pred_fallthru
        _
      %v305 = vld [vmem:[#allocation2] sm:$0xff]
      %v306 = vld [vmem:[#allocation2 + $0x8] sm:$0xff]
      %v307 = vld [vmem:[#allocation2 + $0x10] sm:$0xff]
      %v308 = vld [vmem:[#allocation2 + $0x18] sm:$0xff]
      %v309 = vld [vmem:[#allocation2 + $0x20] sm:$0xff]
      %v310 = vld [vmem:[#allocation2 + $0x28] sm:$0xff]
      %v311 = vld [vmem:[#allocation2 + $0x30] sm:$0xff]
      %v312 = vld [vmem:[#allocation2 + $0x38] sm:$0xff]
      %v313 = vld [vmem:[#allocation2 + $0x40] sm:$0xff]
      %v314 = vld [vmem:[#allocation2 + $0x48] sm:$0xff]
      %v315 = vld [vmem:[#allocation2 + $0x50] sm:$0xff]
      %v316 = vld [vmem:[#allocation2 + $0x58] sm:$0xff]
      %v317 = vld [vmem:[#allocation2 + $0x60] sm:$0xff]
      %v318 = vld [vmem:[#allocation2 + $0x68] sm:$0xff]
      %v319 = vld [vmem:[#allocation2 + $0x70] sm:$0xff]
      %v320 = vld [vmem:[#allocation2 + $0x78] sm:$0xff]
      %v321 = vld [vmem:[#allocation2 + $0x80] sm:$0xff]
      %v322 = vld [vmem:[#allocation2 + $0x88] sm:$0xff]
      %v323 = vld [vmem:[#allocation2 + $0x90] sm:$0xff]
      %v324 = vld [vmem:[#allocation2 + $0x98] sm:$0xff]
      %v325 = vld [vmem:[#allocation2 + $0xa0] sm:$0xff]
      %v326 = vld [vmem:[#allocation2 + $0xa8] sm:$0xff]
      %v327 = vld [vmem:[#allocation2 + $0xb0] sm:$0xff]
      %v328 = vld [vmem:[#allocation2 + $0xb8] sm:$0xff]
      %v329 = vld [vmem:[#allocation2 + $0xc0] sm:$0xff]
      %v330 = vld [vmem:[#allocation2 + $0xc8] sm:$0xff]
      %v331 = vld [vmem:[#allocation2 + $0xd0] sm:$0xff]
      %v332 = vld [vmem:[#allocation2 + $0xd8] sm:$0xff]
      %v333 = vld [vmem:[#allocation2 + $0xe0] sm:$0xff]
      %v334 = vld [vmem:[#allocation2 + $0xe8] sm:$0xff]
      %v335 = vld [vmem:[#allocation2 + $0xf0] sm:$0xff]
      %v336 = vld [vmem:[#allocation2 + $0xf8] sm:$0xff]
      %v337 = vld [vmem:[%s243] sm:$0xff]
      %v338 = vld [vmem:[%s243 + $0x8] sm:$0xff]
      %v339 = vld [vmem:[%s243 + $0x10] sm:$0xff]
      %v340 = vld [vmem:[%s243 + $0x18] sm:$0xff]
      %v341 = vld [vmem:[%s243 + $0x20] sm:$0xff]
      %v342 = vld [vmem:[%s243 + $0x28] sm:$0xff]
      %v343 = vld [vmem:[%s243 + $0x30] sm:$0xff]
      %v344 = vld [vmem:[%s243 + $0x38] sm:$0xff]
      %v345 = vld [vmem:[%s243 + $0x40] sm:$0xff]
      %v346 = vld [vmem:[%s243 + $0x48] sm:$0xff]
      %v347 = vld [vmem:[%s243 + $0x50] sm:$0xff]
      %v348 = vld [vmem:[%s243 + $0x58] sm:$0xff]
      %v349 = vld [vmem:[%s243 + $0x60] sm:$0xff]
      %v350 = vld [vmem:[%s243 + $0x68] sm:$0xff]
      %v351 = vld [vmem:[%s243 + $0x70] sm:$0xff]
      %v352 = vld [vmem:[%s243 + $0x78] sm:$0xff]
      %v353 = vld [vmem:[%s243 + $0x80] sm:$0xff]
      %v354 = vld [vmem:[%s243 + $0x88] sm:$0xff]
      %v355 = vld [vmem:[%s243 + $0x90] sm:$0xff]
      %v356 = vld [vmem:[%s243 + $0x98] sm:$0xff]
      %v357 = vld [vmem:[%s243 + $0xa0] sm:$0xff]
      %v358 = vld [vmem:[%s243 + $0xa8] sm:$0xff]
      %v359 = vld [vmem:[%s243 + $0xb0] sm:$0xff]
      %v360 = vld [vmem:[%s243 + $0xb8] sm:$0xff]
      %v361 = vld [vmem:[%s243 + $0xc0] sm:$0xff]
      %v362 = vld [vmem:[%s243 + $0xc8] sm:$0xff]
      %v363 = vld [vmem:[%s243 + $0xd0] sm:$0xff]
      %v364 = vld [vmem:[%s243 + $0xd8] sm:$0xff]
      %v365 = vld [vmem:[%s243 + $0xe0] sm:$0xff]
      %v366 = vld [vmem:[%s243 + $0xe8] sm:$0xff]
      %v367 = vld [vmem:[%s243 + $0xf0] sm:$0xff]
      %v368 = vld [vmem:[%s243 + $0xf8] sm:$0xff]
      %v369 = vld [vmem:[%s243 + $0x100] sm:$0xff]
      %v370 = vld [vmem:[%s243 + $0x108] sm:$0xff]
      %v371 = vld [vmem:[%s243 + $0x110] sm:$0xff]
      %v372 = vld [vmem:[%s243 + $0x118] sm:$0xff]
      %v373 = vld [vmem:[%s243 + $0x120] sm:$0xff]
      %v374 = vld [vmem:[%s243 + $0x128] sm:$0xff]
      %v375 = vld [vmem:[%s243 + $0x130] sm:$0xff]
      %v376 = vld [vmem:[%s243 + $0x138] sm:$0xff]
      %v377 = vld [vmem:[%s243 + $0x140] sm:$0xff]
      %v378 = vld [vmem:[%s243 + $0x148] sm:$0xff]
      %v379 = vld [vmem:[%s243 + $0x150] sm:$0xff]
      %v380 = vld [vmem:[%s243 + $0x158] sm:$0xff]
      %v381 = vld [vmem:[%s243 + $0x160] sm:$0xff]
      %v382 = vld [vmem:[%s243 + $0x168] sm:$0xff]
      %v383 = vld [vmem:[%s243 + $0x170] sm:$0xff]
      %v384 = vld [vmem:[%s243 + $0x178] sm:$0xff]
      %v385 = vld [vmem:[%s243 + $0x180] sm:$0xff]
      %v386 = vld [vmem:[%s243 + $0x188] sm:$0xff]
      %v387 = vld [vmem:[%s243 + $0x190] sm:$0xff]
      %v388 = vld [vmem:[%s243 + $0x198] sm:$0xff]
      %v389 = vld [vmem:[%s243 + $0x1a0] sm:$0xff]
      %v390 = vld [vmem:[%s243 + $0x1a8] sm:$0xff]
      %v391 = vld [vmem:[%s243 + $0x1b0] sm:$0xff]
      %v392 = vld [vmem:[%s243 + $0x1b8] sm:$0xff]
      %v393 = vld [vmem:[%s243 + $0x1c0] sm:$0xff]
      %v394 = vld [vmem:[%s243 + $0x1c8] sm:$0xff]
      %v395 = vld [vmem:[%s243 + $0x1d0] sm:$0xff]
      %v396 = vld [vmem:[%s243 + $0x1d8] sm:$0xff]
      %v397 = vld [vmem:[%s243 + $0x1e0] sm:$0xff]
      %v398 = vld [vmem:[%s243 + $0x1e8] sm:$0xff]
      %v399 = vld [vmem:[%s243 + $0x1f0] sm:$0xff]
      %v400 = vld [vmem:[%s243 + $0x1f8] sm:$0xff]
      %v401 = vld [vmem:[%s253] sm:$0xf]
      %v402 = vld [vmem:[%s253 + $0x4] sm:$0xf]
      %v403 = vld [vmem:[%s253 + $0x8] sm:$0xf]
      %v404 = vld [vmem:[%s253 + $0xc] sm:$0xf]
      %v405 = vld [vmem:[%s253 + $0x10] sm:$0xf]
      %v406 = vld [vmem:[%s253 + $0x14] sm:$0xf]
      %v407 = vld [vmem:[%s253 + $0x18] sm:$0xf]
      %v408 = vld [vmem:[%s253 + $0x1c] sm:$0xf]
      %v409 = vld [vmem:[%s253 + $0x20] sm:$0xf]
      %v410 = vld [vmem:[%s253 + $0x24] sm:$0xf]
      %v411 = vld [vmem:[%s253 + $0x28] sm:$0xf]
      %v412 = vld [vmem:[%s253 + $0x2c] sm:$0xf]
      %v413 = vld [vmem:[%s253 + $0x30] sm:$0xf]
      %v414 = vld [vmem:[%s253 + $0x34] sm:$0xf]
      %v415 = vld [vmem:[%s253 + $0x38] sm:$0xf]
      %v416 = vld [vmem:[%s253 + $0x3c] sm:$0xf]
      %v417 = vld [vmem:[%s253 + $0x40] sm:$0xf]
      %v418 = vld [vmem:[%s253 + $0x44] sm:$0xf]
      %v419 = vld [vmem:[%s253 + $0x48] sm:$0xf]
      %v420 = vld [vmem:[%s253 + $0x4c] sm:$0xf]
      %v421 = vld [vmem:[%s253 + $0x50] sm:$0xf]
      %v422 = vld [vmem:[%s253 + $0x54] sm:$0xf]
      %v423 = vld [vmem:[%s253 + $0x58] sm:$0xf]
      %v424 = vld [vmem:[%s253 + $0x5c] sm:$0xf]
      %v425 = vld [vmem:[%s253 + $0x60] sm:$0xf]
      %v426 = vld [vmem:[%s253 + $0x64] sm:$0xf]
      %v427 = vld [vmem:[%s253 + $0x68] sm:$0xf]
      %v428 = vld [vmem:[%s253 + $0x6c] sm:$0xf]
      %v429 = vld [vmem:[%s253 + $0x70] sm:$0xf]
      %v430 = vld [vmem:[%s253 + $0x74] sm:$0xf]
      %v431 = vld [vmem:[%s253 + $0x78] sm:$0xf]
      %v432 = vld [vmem:[%s253 + $0x7c] sm:$0xf]
      %v433 = vld [vmem:[%s253 + $0x80] sm:$0xf]
      %v434 = vld [vmem:[%s253 + $0x84] sm:$0xf]
      %v435 = vld [vmem:[%s253 + $0x88] sm:$0xf]
      %v436 = vld [vmem:[%s253 + $0x8c] sm:$0xf]
      %v437 = vld [vmem:[%s253 + $0x90] sm:$0xf]
      %v438 = vld [vmem:[%s253 + $0x94] sm:$0xf]
      %v439 = vld [vmem:[%s253 + $0x98] sm:$0xf]
      %v440 = vld [vmem:[%s253 + $0x9c] sm:$0xf]
      %v441 = vld [vmem:[%s253 + $0xa0] sm:$0xf]
      %v442 = vld [vmem:[%s253 + $0xa4] sm:$0xf]
      %v443 = vld [vmem:[%s253 + $0xa8] sm:$0xf]
      %v444 = vld [vmem:[%s253 + $0xac] sm:$0xf]
      %v445 = vld [vmem:[%s253 + $0xb0] sm:$0xf]
      %v446 = vld [vmem:[%s253 + $0xb4] sm:$0xf]
      %v447 = vld [vmem:[%s253 + $0xb8] sm:$0xf]
      %v448 = vld [vmem:[%s253 + $0xbc] sm:$0xf]
      %v449 = vld [vmem:[%s253 + $0xc0] sm:$0xf]
      %v514 = vunpack.c.l.b16 %v337
      %v515 = vunpack.c.h.b16 %v337
      %v516 = vunpack.c.l.b16 %v338
      %v517 = vunpack.c.h.b16 %v338
      %v518 = vunpack.c.l.b16 %v339
      %v519 = vunpack.c.h.b16 %v339
      %v520 = vunpack.c.l.b16 %v340
      %v521 = vunpack.c.h.b16 %v340
      %v522 = vunpack.c.l.b16 %v341
      %v523 = vunpack.c.h.b16 %v341
      %v524 = vunpack.c.l.b16 %v342
      %v525 = vunpack.c.h.b16 %v342
      %v526 = vunpack.c.l.b16 %v343
      %v527 = vunpack.c.h.b16 %v343
      %v528 = vunpack.c.l.b16 %v344
      %v529 = vunpack.c.h.b16 %v344
      %v530 = vunpack.c.l.b16 %v345
      %v531 = vunpack.c.h.b16 %v345
      %v532 = vunpack.c.l.b16 %v346
      %v533 = vunpack.c.h.b16 %v346
      %v534 = vunpack.c.l.b16 %v347
      %v535 = vunpack.c.h.b16 %v347
      %v536 = vunpack.c.l.b16 %v348
      %v537 = vunpack.c.h.b16 %v348
      %v538 = vunpack.c.l.b16 %v349
      %v539 = vunpack.c.h.b16 %v349
      %v540 = vunpack.c.l.b16 %v350
      %v541 = vunpack.c.h.b16 %v350
      %v542 = vunpack.c.l.b16 %v351
      %v543 = vunpack.c.h.b16 %v351
      %v544 = vunpack.c.l.b16 %v352
      %v545 = vunpack.c.h.b16 %v352
      %v546 = vunpack.c.l.b16 %v353
      %v547 = vunpack.c.h.b16 %v353
      %v548 = vunpack.c.l.b16 %v354
      %v549 = vunpack.c.h.b16 %v354
      %v550 = vunpack.c.l.b16 %v355
      %v551 = vunpack.c.h.b16 %v355
      %v552 = vunpack.c.l.b16 %v356
      %v553 = vunpack.c.h.b16 %v356
      %v554 = vunpack.c.l.b16 %v357
      %v555 = vunpack.c.h.b16 %v357
      %v556 = vunpack.c.l.b16 %v358
      %v557 = vunpack.c.h.b16 %v358
      %v558 = vunpack.c.l.b16 %v359
      %v559 = vunpack.c.h.b16 %v359
      %v560 = vunpack.c.l.b16 %v360
      %v561 = vunpack.c.h.b16 %v360
      %v562 = vunpack.c.l.b16 %v361
      %v563 = vunpack.c.h.b16 %v361
      %v564 = vunpack.c.l.b16 %v362
      %v565 = vunpack.c.h.b16 %v362
      %v566 = vunpack.c.l.b16 %v363
      %v567 = vunpack.c.h.b16 %v363
      %v568 = vunpack.c.l.b16 %v364
      %v569 = vunpack.c.h.b16 %v364
      %v570 = vunpack.c.l.b16 %v365
      %v571 = vunpack.c.h.b16 %v365
      %v572 = vunpack.c.l.b16 %v366
      %v573 = vunpack.c.h.b16 %v366
      %v574 = vunpack.c.l.b16 %v367
      %v575 = vunpack.c.h.b16 %v367
      %v576 = vunpack.c.l.b16 %v368
      %v577 = vunpack.c.h.b16 %v368
      %v578 = vunpack.c.l.b16 %v369
      %v579 = vunpack.c.h.b16 %v369
      %v580 = vunpack.c.l.b16 %v370
      %v581 = vunpack.c.h.b16 %v370
      %v582 = vunpack.c.l.b16 %v371
      %v583 = vunpack.c.h.b16 %v371
      %v584 = vunpack.c.l.b16 %v372
      %v585 = vunpack.c.h.b16 %v372
      %v586 = vunpack.c.l.b16 %v373
      %v587 = vunpack.c.h.b16 %v373
      %v588 = vunpack.c.l.b16 %v374
      %v589 = vunpack.c.h.b16 %v374
      %v590 = vunpack.c.l.b16 %v375
      %v591 = vunpack.c.h.b16 %v375
      %v592 = vunpack.c.l.b16 %v376
      %v593 = vunpack.c.h.b16 %v376
      %v594 = vunpack.c.l.b16 %v377
      %v595 = vunpack.c.h.b16 %v377
      %v596 = vunpack.c.l.b16 %v378
      %v597 = vunpack.c.h.b16 %v378
      %v598 = vunpack.c.l.b16 %v379
      %v599 = vunpack.c.h.b16 %v379
      %v600 = vunpack.c.l.b16 %v380
      %v601 = vunpack.c.h.b16 %v380
      %v602 = vunpack.c.l.b16 %v381
      %v603 = vunpack.c.h.b16 %v381
      %v604 = vunpack.c.l.b16 %v382
      %v605 = vunpack.c.h.b16 %v382
      %v606 = vunpack.c.l.b16 %v383
      %v607 = vunpack.c.h.b16 %v383
      %v608 = vunpack.c.l.b16 %v384
      %v609 = vunpack.c.h.b16 %v384
      %v610 = vunpack.c.l.b16 %v385
      %v611 = vunpack.c.h.b16 %v385
      %v612 = vunpack.c.l.b16 %v386
      %v613 = vunpack.c.h.b16 %v386
      %v614 = vunpack.c.l.b16 %v387
      %v615 = vunpack.c.h.b16 %v387
      %v616 = vunpack.c.l.b16 %v388
      %v617 = vunpack.c.h.b16 %v388
      %v618 = vunpack.c.l.b16 %v389
      %v619 = vunpack.c.h.b16 %v389
      %v620 = vunpack.c.l.b16 %v390
      %v621 = vunpack.c.h.b16 %v390
      %v622 = vunpack.c.l.b16 %v391
      %v623 = vunpack.c.h.b16 %v391
      %v624 = vunpack.c.l.b16 %v392
      %v625 = vunpack.c.h.b16 %v392
      %v626 = vunpack.c.l.b16 %v393
      %v627 = vunpack.c.h.b16 %v393
      %v628 = vunpack.c.l.b16 %v394
      %v629 = vunpack.c.h.b16 %v394
      %v630 = vunpack.c.l.b16 %v395
      %v631 = vunpack.c.h.b16 %v395
      %v632 = vunpack.c.l.b16 %v396
      %v633 = vunpack.c.h.b16 %v396
      %v634 = vunpack.c.l.b16 %v397
      %v635 = vunpack.c.h.b16 %v397
      %v636 = vunpack.c.l.b16 %v398
      %v637 = vunpack.c.h.b16 %v398
      %v638 = vunpack.c.l.b16 %v399
      %v639 = vunpack.c.h.b16 %v399
      %v640 = vunpack.c.l.b16 %v400
      %v641 = vunpack.c.h.b16 %v400
      %v642 = vpack.c.b16 %v518, %v514
      %v643 = vpack.c.b16 %v519, %v515
      %v644 = vpack.c.b16 %v520, %v516
      %v645 = vpack.c.b16 %v521, %v517
      %v646 = vpack.c.b16 %v526, %v522
      %v647 = vpack.c.b16 %v527, %v523
      %v648 = vpack.c.b16 %v528, %v524
      %v649 = vpack.c.b16 %v529, %v525
      %v650 = vpack.c.b16 %v534, %v530
      %v651 = vpack.c.b16 %v535, %v531
      %v652 = vpack.c.b16 %v536, %v532
      %v653 = vpack.c.b16 %v537, %v533
      %v654 = vpack.c.b16 %v542, %v538
      %v655 = vpack.c.b16 %v543, %v539
      %v656 = vpack.c.b16 %v544, %v540
      %v657 = vpack.c.b16 %v545, %v541
      %v658 = vpack.c.b16 %v550, %v546
      %v659 = vpack.c.b16 %v551, %v547
      %v660 = vpack.c.b16 %v552, %v548
      %v661 = vpack.c.b16 %v553, %v549
      %v662 = vpack.c.b16 %v558, %v554
      %v663 = vpack.c.b16 %v559, %v555
      %v664 = vpack.c.b16 %v560, %v556
      %v665 = vpack.c.b16 %v561, %v557
      %v666 = vpack.c.b16 %v566, %v562
      %v667 = vpack.c.b16 %v567, %v563
      %v668 = vpack.c.b16 %v568, %v564
      %v669 = vpack.c.b16 %v569, %v565
      %v670 = vpack.c.b16 %v574, %v570
      %v671 = vpack.c.b16 %v575, %v571
      %v672 = vpack.c.b16 %v576, %v572
      %v673 = vpack.c.b16 %v577, %v573
      %v674 = vpack.c.b16 %v582, %v578
      %v675 = vpack.c.b16 %v583, %v579
      %v676 = vpack.c.b16 %v584, %v580
      %v677 = vpack.c.b16 %v585, %v581
      %v678 = vpack.c.b16 %v590, %v586
      %v679 = vpack.c.b16 %v591, %v587
      %v680 = vpack.c.b16 %v592, %v588
      %v681 = vpack.c.b16 %v593, %v589
      %v682 = vpack.c.b16 %v598, %v594
      %v683 = vpack.c.b16 %v599, %v595
      %v684 = vpack.c.b16 %v600, %v596
      %v685 = vpack.c.b16 %v601, %v597
      %v686 = vpack.c.b16 %v606, %v602
      %v687 = vpack.c.b16 %v607, %v603
      %v688 = vpack.c.b16 %v608, %v604
      %v689 = vpack.c.b16 %v609, %v605
      %v690 = vpack.c.b16 %v614, %v610
      %v691 = vpack.c.b16 %v615, %v611
      %v692 = vpack.c.b16 %v616, %v612
      %v693 = vpack.c.b16 %v617, %v613
      %v694 = vpack.c.b16 %v622, %v618
      %v695 = vpack.c.b16 %v623, %v619
      %v696 = vpack.c.b16 %v624, %v620
      %v697 = vpack.c.b16 %v625, %v621
      %v698 = vpack.c.b16 %v630, %v626
      %v699 = vpack.c.b16 %v631, %v627
      %v700 = vpack.c.b16 %v632, %v628
      %v701 = vpack.c.b16 %v633, %v629
      %v702 = vpack.c.b16 %v638, %v634
      %v703 = vpack.c.b16 %v639, %v635
      %v704 = vpack.c.b16 %v640, %v636
      %v705 = vpack.c.b16 %v641, %v637
      %v803 = vunpack.c.l.b16 %v401
      %v804 = vunpack.c.l.b16 %v402
      %v805 = vunpack.c.l.b16 %v403
      %v806 = vunpack.c.l.b16 %v404
      %v807 = vunpack.c.l.b16 %v405
      %v808 = vunpack.c.l.b16 %v406
      %v809 = vunpack.c.l.b16 %v407
      %v810 = vunpack.c.l.b16 %v408
      %v811 = vunpack.c.l.b16 %v409
      %v812 = vunpack.c.l.b16 %v410
      %v813 = vunpack.c.l.b16 %v411
      %v814 = vunpack.c.l.b16 %v412
      %v815 = vunpack.c.l.b16 %v413
      %v816 = vunpack.c.l.b16 %v414
      %v817 = vunpack.c.l.b16 %v415
      %v818 = vunpack.c.l.b16 %v416
      %v819 = vunpack.c.l.b16 %v417
      %v820 = vunpack.c.l.b16 %v418
      %v821 = vunpack.c.l.b16 %v419
      %v822 = vunpack.c.l.b16 %v420
      %v823 = vunpack.c.l.b16 %v421
      %v824 = vunpack.c.l.b16 %v422
      %v825 = vunpack.c.l.b16 %v423
      %v826 = vunpack.c.l.b16 %v424
      %v827 = vunpack.c.l.b16 %v425
      %v828 = vunpack.c.l.b16 %v426
      %v829 = vunpack.c.l.b16 %v427
      %v830 = vunpack.c.l.b16 %v428
      %v831 = vunpack.c.l.b16 %v429
      %v832 = vunpack.c.l.b16 %v430
      %v833 = vunpack.c.l.b16 %v431
      %v834 = vunpack.c.l.b16 %v432
      %v835 = vunpack.c.l.b16 %v433
      %v836 = vunpack.c.l.b16 %v434
      %v837 = vunpack.c.l.b16 %v435
      %v838 = vunpack.c.l.b16 %v436
      %v839 = vunpack.c.l.b16 %v437
      %v840 = vunpack.c.l.b16 %v438
      %v841 = vunpack.c.l.b16 %v439
      %v842 = vunpack.c.l.b16 %v440
      %v843 = vunpack.c.l.b16 %v441
      %v844 = vunpack.c.l.b16 %v442
      %v845 = vunpack.c.l.b16 %v443
      %v846 = vunpack.c.l.b16 %v444
      %v847 = vunpack.c.l.b16 %v445
      %v848 = vunpack.c.l.b16 %v446
      %v849 = vunpack.c.l.b16 %v447
      %v850 = vunpack.c.l.b16 %v448
      %v851 = vunpack.c.l.b16 %v449
      %v852 = vpack.c.b16 %v804, %v803
      %v853 = vpack.c.b16 %v806, %v805
      %v854 = vpack.c.b16 %v808, %v807
      %v855 = vpack.c.b16 %v810, %v809
      %v856 = vpack.c.b16 %v812, %v811
      %v857 = vpack.c.b16 %v814, %v813
      %v858 = vpack.c.b16 %v816, %v815
      %v859 = vpack.c.b16 %v818, %v817
      %v860 = vpack.c.b16 %v820, %v819
      %v861 = vpack.c.b16 %v822, %v821
      %v862 = vpack.c.b16 %v824, %v823
      %v863 = vpack.c.b16 %v826, %v825
      %v864 = vpack.c.b16 %v828, %v827
      %v865 = vpack.c.b16 %v830, %v829
      %v866 = vpack.c.b16 %v832, %v831
      %v867 = vpack.c.b16 %v834, %v833
      %v868 = vpack.c.b16 %v836, %v835
      %v869 = vpack.c.b16 %v838, %v837
      %v870 = vpack.c.b16 %v840, %v839
      %v871 = vpack.c.b16 %v842, %v841
      %v872 = vpack.c.b16 %v844, %v843
      %v873 = vpack.c.b16 %v846, %v845
      %v874 = vpack.c.b16 %v848, %v847
      %v875 = vpack.c.b16 %v850, %v849
      %v876 = vpack.c.b16 %v851, %v851
      %vm901 = vcmask 64512
      %v903 = vsel %vm901, %v645, 0
      %v906 = vsel %vm901, %v649, 0
      %v909 = vsel %vm901, %v653, 0
      %v912 = vsel %vm901, %v657, 0
      %v915 = vsel %vm901, %v661, 0
      %v918 = vsel %vm901, %v665, 0
      %v921 = vsel %vm901, %v669, 0
      %v924 = vsel %vm901, %v673, 0
      %v927 = vsel %vm901, %v677, 0
      %v930 = vsel %vm901, %v681, 0
      %v933 = vsel %vm901, %v685, 0
      %v936 = vsel %vm901, %v689, 0
      %v939 = vsel %vm901, %v693, 0
      %v942 = vsel %vm901, %v697, 0
      %v945 = vsel %vm901, %v701, 0
      %v948 = vsel %vm901, %v705, 0
      %vm950 = vcmask 1043456
      %v952 = vsel %vm950, %v876, 0
      %954 = vmatprep.subr.bf16.mxu0 0
      %955 = vmatpush1.bf16.msra.mxu0 %v859
      %956 = vmatprep.subr.bf16.mxu0 0
      %957 = vmatpush1.bf16.msra.mxu0 %v858
      %958 = vmatprep.subr.bf16.mxu0 0
      %959 = vmatpush1.bf16.msra.mxu0 %v857
      %960 = vmatprep.subr.bf16.mxu0 0
      %961 = vmatpush1.bf16.msra.mxu0 %v856
      %962 = vmatprep.subr.bf16.mxu0 0
      %963 = vmatpush1.bf16.msra.mxu0 %v855
      %964 = vmatprep.subr.bf16.mxu0 0
      %965 = vmatpush1.bf16.msra.mxu0 %v854
      %966 = vmatprep.subr.bf16.mxu0 0
      %967 = vmatpush1.bf16.msra.mxu0 %v853
      %968 = vmatprep.subr.bf16.mxu0 0
      %969 = vmatpush1.bf16.msra.mxu0 %v852
      %970 = vmatprep.subr.bf16.mxu0 0
      %971 = vmatpush2.bf16.msra.mxu0 %v867
      %972 = vmatprep.subr.bf16.mxu0 0
      %973 = vmatpush2.bf16.msra.mxu0 %v866
      %974 = vmatprep.subr.bf16.mxu0 0
      %975 = vmatpush2.bf16.msra.mxu0 %v865
      %976 = vmatprep.subr.bf16.mxu0 0
      %977 = vmatpush2.bf16.msra.mxu0 %v864
      %978 = vmatprep.subr.bf16.mxu0 0
      %979 = vmatpush2.bf16.msra.mxu0 %v863
      %980 = vmatprep.subr.bf16.mxu0 0
      %981 = vmatpush2.bf16.msra.mxu0 %v862
      %982 = vmatprep.subr.bf16.mxu0 0
      %983 = vmatpush2.bf16.msra.mxu0 %v861
      %984 = vmatprep.subr.bf16.mxu0 0
      %985 = vmatpush2.bf16.msra.mxu0 %v860
      %986 = vmatprep.mubr.bf16.mxu0 %v643
      %987 = vmatmul.mubr.bf16.gmra.mxu0 %v642
      %v988 = vpop.f32.mrf.mxu0
      %v989 = vadd.f32 0.0, %v988
      %v990 = vpop.f32.mrf.mxu0
      %v991 = vpop.f32.mrf.mxu0
      %v992 = vadd.f32 0.0, %v991
      %v993 = vpop.f32.mrf.mxu0
      %994 = vmatprep.mubr.bf16.mxu0 %v647
      %995 = vmatmul.mubr.bf16.gmra.mxu0 %v646
      %v996 = vpop.f32.mrf.mxu0
      %v997 = vadd.f32 0.0, %v996
      %v998 = vpop.f32.mrf.mxu0
      %v999 = vpop.f32.mrf.mxu0
      %v1000 = vadd.f32 0.0, %v999
      %v1001 = vpop.f32.mrf.mxu0
      %1002 = vmatprep.mubr.bf16.mxu0 %v651
      %1003 = vmatmul.mubr.bf16.gmra.mxu0 %v650
      %v1004 = vpop.f32.mrf.mxu0
      %v1005 = vadd.f32 0.0, %v1004
      %v1006 = vpop.f32.mrf.mxu0
      %v1007 = vpop.f32.mrf.mxu0
      %v1008 = vadd.f32 0.0, %v1007
      %v1009 = vpop.f32.mrf.mxu0
      %1010 = vmatprep.mubr.bf16.mxu0 %v655
      %1011 = vmatmul.mubr.bf16.gmra.mxu0 %v654
      %v1012 = vpop.f32.mrf.mxu0
      %v1013 = vadd.f32 0.0, %v1012
      %v1014 = vpop.f32.mrf.mxu0
      %v1015 = vpop.f32.mrf.mxu0
      %v1016 = vadd.f32 0.0, %v1015
      %v1017 = vpop.f32.mrf.mxu0
      %1018 = vmatprep.mubr.bf16.mxu0 %v659
      %1019 = vmatmul.mubr.bf16.gmra.mxu0 %v658
      %v1020 = vpop.f32.mrf.mxu0
      %v1021 = vadd.f32 0.0, %v1020
      %v1022 = vpop.f32.mrf.mxu0
      %v1023 = vpop.f32.mrf.mxu0
      %v1024 = vadd.f32 0.0, %v1023
      %v1025 = vpop.f32.mrf.mxu0
      %1026 = vmatprep.mubr.bf16.mxu0 %v663
      %1027 = vmatmul.mubr.bf16.gmra.mxu0 %v662
      %v1028 = vpop.f32.mrf.mxu0
      %v1029 = vadd.f32 0.0, %v1028
      %v1030 = vpop.f32.mrf.mxu0
      %v1031 = vpop.f32.mrf.mxu0
      %v1032 = vadd.f32 0.0, %v1031
      %v1033 = vpop.f32.mrf.mxu0
      %1034 = vmatprep.mubr.bf16.mxu0 %v667
      %1035 = vmatmul.mubr.bf16.gmra.mxu0 %v666
      %v1036 = vpop.f32.mrf.mxu0
      %v1037 = vadd.f32 0.0, %v1036
      %v1038 = vpop.f32.mrf.mxu0
      %v1039 = vpop.f32.mrf.mxu0
      %v1040 = vadd.f32 0.0, %v1039
      %v1041 = vpop.f32.mrf.mxu0
      %1042 = vmatprep.mubr.bf16.mxu0 %v671
      %1043 = vmatmul.mubr.bf16.gmra.mxu0 %v670
      %v1044 = vpop.f32.mrf.mxu0
      %v1045 = vadd.f32 0.0, %v1044
      %v1046 = vpop.f32.mrf.mxu0
      %v1047 = vpop.f32.mrf.mxu0
      %v1048 = vadd.f32 0.0, %v1047
      %v1049 = vpop.f32.mrf.mxu0
      %1050 = vmatprep.mubr.bf16.mxu0 %v675
      %1051 = vmatmul.mubr.bf16.gmra.mxu0 %v674
      %v1052 = vpop.f32.mrf.mxu0
      %v1053 = vadd.f32 0.0, %v1052
      %v1054 = vpop.f32.mrf.mxu0
      %v1055 = vpop.f32.mrf.mxu0
      %v1056 = vadd.f32 0.0, %v1055
      %v1057 = vpop.f32.mrf.mxu0
      %1058 = vmatprep.mubr.bf16.mxu0 %v679
      %1059 = vmatmul.mubr.bf16.gmra.mxu0 %v678
      %v1060 = vpop.f32.mrf.mxu0
      %v1061 = vadd.f32 0.0, %v1060
      %v1062 = vpop.f32.mrf.mxu0
      %v1063 = vpop.f32.mrf.mxu0
      %v1064 = vadd.f32 0.0, %v1063
      %v1065 = vpop.f32.mrf.mxu0
      %1066 = vmatprep.mubr.bf16.mxu0 %v683
      %1067 = vmatmul.mubr.bf16.gmra.mxu0 %v682
      %v1068 = vpop.f32.mrf.mxu0
      %v1069 = vadd.f32 0.0, %v1068
      %v1070 = vpop.f32.mrf.mxu0
      %v1071 = vpop.f32.mrf.mxu0
      %v1072 = vadd.f32 0.0, %v1071
      %v1073 = vpop.f32.mrf.mxu0
      %1074 = vmatprep.mubr.bf16.mxu0 %v687
      %1075 = vmatmul.mubr.bf16.gmra.mxu0 %v686
      %v1076 = vpop.f32.mrf.mxu0
      %v1077 = vadd.f32 0.0, %v1076
      %v1078 = vpop.f32.mrf.mxu0
      %v1079 = vpop.f32.mrf.mxu0
      %v1080 = vadd.f32 0.0, %v1079
      %v1081 = vpop.f32.mrf.mxu0
      %1082 = vmatprep.mubr.bf16.mxu0 %v691
      %1083 = vmatmul.mubr.bf16.gmra.mxu0 %v690
      %v1084 = vpop.f32.mrf.mxu0
      %v1085 = vadd.f32 0.0, %v1084
      %v1086 = vpop.f32.mrf.mxu0
      %v1087 = vpop.f32.mrf.mxu0
      %v1088 = vadd.f32 0.0, %v1087
      %v1089 = vpop.f32.mrf.mxu0
      %1090 = vmatprep.mubr.bf16.mxu0 %v695
      %1091 = vmatmul.mubr.bf16.gmra.mxu0 %v694
      %v1092 = vpop.f32.mrf.mxu0
      %v1093 = vadd.f32 0.0, %v1092
      %v1094 = vpop.f32.mrf.mxu0
      %v1095 = vpop.f32.mrf.mxu0
      %v1096 = vadd.f32 0.0, %v1095
      %v1097 = vpop.f32.mrf.mxu0
      %1098 = vmatprep.mubr.bf16.mxu0 %v699
      %1099 = vmatmul.mubr.bf16.gmra.mxu0 %v698
      %v1100 = vpop.f32.mrf.mxu0
      %v1101 = vadd.f32 0.0, %v1100
      %v1102 = vpop.f32.mrf.mxu0
      %v1103 = vpop.f32.mrf.mxu0
      %v1104 = vadd.f32 0.0, %v1103
      %v1105 = vpop.f32.mrf.mxu0
      %1106 = vmatprep.mubr.bf16.mxu0 %v703
      %1107 = vmatmul.mubr.bf16.gmra.mxu0 %v702
      %v1108 = vpop.f32.mrf.mxu0
      %v1109 = vadd.f32 0.0, %v1108
      %v1110 = vpop.f32.mrf.mxu0
      %v1111 = vpop.f32.mrf.mxu0
      %v1112 = vadd.f32 0.0, %v1111
      %v1113 = vpop.f32.mrf.mxu0
      %1114 = vdwg.mxu0
      %1115 = vmatprep.subr.bf16.mxu0 0
      %1116 = vmatpush1.bf16.msra.mxu0 %v875
      %1117 = vmatprep.subr.bf16.mxu0 0
      %1118 = vmatpush1.bf16.msra.mxu0 %v874
      %1119 = vmatprep.subr.bf16.mxu0 0
      %1120 = vmatpush1.bf16.msra.mxu0 %v873
      %1121 = vmatprep.subr.bf16.mxu0 0
      %1122 = vmatpush1.bf16.msra.mxu0 %v872
      %1123 = vmatprep.subr.bf16.mxu0 0
      %1124 = vmatpush1.bf16.msra.mxu0 %v871
      %1125 = vmatprep.subr.bf16.mxu0 0
      %1126 = vmatpush1.bf16.msra.mxu0 %v870
      %1127 = vmatprep.subr.bf16.mxu0 0
      %1128 = vmatpush1.bf16.msra.mxu0 %v869
      %1129 = vmatprep.subr.bf16.mxu0 0
      %1130 = vmatpush1.bf16.msra.mxu0 %v868
      %1131 = vmatprep.subr.bf16.mxu0 0
      %1132 = vmatpush2.bf16.msra.mxu0 0
      %1133 = vmatprep.subr.bf16.mxu0 0
      %1134 = vmatpush2.bf16.msra.mxu0 0
      %1135 = vmatprep.subr.bf16.mxu0 0
      %1136 = vmatpush2.bf16.msra.mxu0 0
      %1137 = vmatprep.subr.bf16.mxu0 0
      %1138 = vmatpush2.bf16.msra.mxu0 0
      %1139 = vmatprep.subr.bf16.mxu0 0
      %1140 = vmatpush2.bf16.msra.mxu0 0
      %1141 = vmatprep.subr.bf16.mxu0 0
      %1142 = vmatpush2.bf16.msra.mxu0 0
      %1143 = vmatprep.subr.bf16.mxu0 0
      %1144 = vmatpush2.bf16.msra.mxu0 0
      %1145 = vmatprep.subr.bf16.mxu0 0
      %1146 = vmatpush2.bf16.msra.mxu0 %v952
      %1147 = vmatprep.mubr.bf16.mxu0 %v903
      %1148 = vmatmul.mubr.bf16.gmra.mxu0 %v644
      %v1149 = vpop.f32.mrf.mxu0
      %v1150 = vadd.f32 %v989, %v1149
      %v1151 = vpop.f32.mrf.mxu0
      %v1152 = vpop.f32.mrf.mxu0
      %v1153 = vadd.f32 %v992, %v1152
      %v1154 = vpop.f32.mrf.mxu0
      %1155 = vmatprep.mubr.bf16.mxu0 %v906
      %1156 = vmatmul.mubr.bf16.gmra.mxu0 %v648
      %v1157 = vpop.f32.mrf.mxu0
      %v1158 = vadd.f32 %v997, %v1157
      %v1159 = vpop.f32.mrf.mxu0
      %v1160 = vpop.f32.mrf.mxu0
      %v1161 = vadd.f32 %v1000, %v1160
      %v1162 = vpop.f32.mrf.mxu0
      %1163 = vmatprep.mubr.bf16.mxu0 %v909
      %1164 = vmatmul.mubr.bf16.gmra.mxu0 %v652
      %v1165 = vpop.f32.mrf.mxu0
      %v1166 = vadd.f32 %v1005, %v1165
      %v1167 = vpop.f32.mrf.mxu0
      %v1168 = vpop.f32.mrf.mxu0
      %v1169 = vadd.f32 %v1008, %v1168
      %v1170 = vpop.f32.mrf.mxu0
      %1171 = vmatprep.mubr.bf16.mxu0 %v912
      %1172 = vmatmul.mubr.bf16.gmra.mxu0 %v656
      %v1173 = vpop.f32.mrf.mxu0
      %v1174 = vadd.f32 %v1013, %v1173
      %v1175 = vpop.f32.mrf.mxu0
      %v1176 = vpop.f32.mrf.mxu0
      %v1177 = vadd.f32 %v1016, %v1176
      %v1178 = vpop.f32.mrf.mxu0
      %1179 = vmatprep.mubr.bf16.mxu0 %v915
      %1180 = vmatmul.mubr.bf16.gmra.mxu0 %v660
      %v1181 = vpop.f32.mrf.mxu0
      %v1182 = vadd.f32 %v1021, %v1181
      %v1183 = vpop.f32.mrf.mxu0
      %v1184 = vpop.f32.mrf.mxu0
      %v1185 = vadd.f32 %v1024, %v1184
      %v1186 = vpop.f32.mrf.mxu0
      %1187 = vmatprep.mubr.bf16.mxu0 %v918
      %1188 = vmatmul.mubr.bf16.gmra.mxu0 %v664
      %v1189 = vpop.f32.mrf.mxu0
      %v1190 = vadd.f32 %v1029, %v1189
      %v1191 = vpop.f32.mrf.mxu0
      %v1192 = vpop.f32.mrf.mxu0
      %v1193 = vadd.f32 %v1032, %v1192
      %v1194 = vpop.f32.mrf.mxu0
      %1195 = vmatprep.mubr.bf16.mxu0 %v921
      %1196 = vmatmul.mubr.bf16.gmra.mxu0 %v668
      %v1197 = vpop.f32.mrf.mxu0
      %v1198 = vadd.f32 %v1037, %v1197
      %v1199 = vpop.f32.mrf.mxu0
      %v1200 = vpop.f32.mrf.mxu0
      %v1201 = vadd.f32 %v1040, %v1200
      %v1202 = vpop.f32.mrf.mxu0
      %1203 = vmatprep.mubr.bf16.mxu0 %v924
      %1204 = vmatmul.mubr.bf16.gmra.mxu0 %v672
      %v1205 = vpop.f32.mrf.mxu0
      %v1206 = vadd.f32 %v1045, %v1205
      %v1207 = vpop.f32.mrf.mxu0
      %v1208 = vpop.f32.mrf.mxu0
      %v1209 = vadd.f32 %v1048, %v1208
      %v1210 = vpop.f32.mrf.mxu0
      %1211 = vmatprep.mubr.bf16.mxu0 %v927
      %1212 = vmatmul.mubr.bf16.gmra.mxu0 %v676
      %v1213 = vpop.f32.mrf.mxu0
      %v1214 = vadd.f32 %v1053, %v1213
      %v1215 = vpop.f32.mrf.mxu0
      %v1216 = vpop.f32.mrf.mxu0
      %v1217 = vadd.f32 %v1056, %v1216
      %v1218 = vpop.f32.mrf.mxu0
      %1219 = vmatprep.mubr.bf16.mxu0 %v930
      %1220 = vmatmul.mubr.bf16.gmra.mxu0 %v680
      %v1221 = vpop.f32.mrf.mxu0
      %v1222 = vadd.f32 %v1061, %v1221
      %v1223 = vpop.f32.mrf.mxu0
      %v1224 = vpop.f32.mrf.mxu0
      %v1225 = vadd.f32 %v1064, %v1224
      %v1226 = vpop.f32.mrf.mxu0
      %1227 = vmatprep.mubr.bf16.mxu0 %v933
      %1228 = vmatmul.mubr.bf16.gmra.mxu0 %v684
      %v1229 = vpop.f32.mrf.mxu0
      %v1230 = vadd.f32 %v1069, %v1229
      %v1231 = vpop.f32.mrf.mxu0
      %v1232 = vpop.f32.mrf.mxu0
      %v1233 = vadd.f32 %v1072, %v1232
      %v1234 = vpop.f32.mrf.mxu0
      %1235 = vmatprep.mubr.bf16.mxu0 %v936
      %1236 = vmatmul.mubr.bf16.gmra.mxu0 %v688
      %v1237 = vpop.f32.mrf.mxu0
      %v1238 = vadd.f32 %v1077, %v1237
      %v1239 = vpop.f32.mrf.mxu0
      %v1240 = vpop.f32.mrf.mxu0
      %v1241 = vadd.f32 %v1080, %v1240
      %v1242 = vpop.f32.mrf.mxu0
      %1243 = vmatprep.mubr.bf16.mxu0 %v939
      %1244 = vmatmul.mubr.bf16.gmra.mxu0 %v692
      %v1245 = vpop.f32.mrf.mxu0
      %v1246 = vadd.f32 %v1085, %v1245
      %v1247 = vpop.f32.mrf.mxu0
      %v1248 = vpop.f32.mrf.mxu0
      %v1249 = vadd.f32 %v1088, %v1248
      %v1250 = vpop.f32.mrf.mxu0
      %1251 = vmatprep.mubr.bf16.mxu0 %v942
      %1252 = vmatmul.mubr.bf16.gmra.mxu0 %v696
      %v1253 = vpop.f32.mrf.mxu0
      %v1254 = vadd.f32 %v1093, %v1253
      %v1255 = vpop.f32.mrf.mxu0
      %v1256 = vpop.f32.mrf.mxu0
      %v1257 = vadd.f32 %v1096, %v1256
      %v1258 = vpop.f32.mrf.mxu0
      %1259 = vmatprep.mubr.bf16.mxu0 %v945
      %1260 = vmatmul.mubr.bf16.gmra.mxu0 %v700
      %v1261 = vpop.f32.mrf.mxu0
      %v1262 = vadd.f32 %v1101, %v1261
      %v1263 = vpop.f32.mrf.mxu0
      %v1264 = vpop.f32.mrf.mxu0
      %v1265 = vadd.f32 %v1104, %v1264
      %v1266 = vpop.f32.mrf.mxu0
      %1267 = vmatprep.mubr.bf16.mxu0 %v948
      %1268 = vmatmul.mubr.bf16.gmra.mxu0 %v704
      %v1269 = vpop.f32.mrf.mxu0
      %v1270 = vadd.f32 %v1109, %v1269
      %v1271 = vpop.f32.mrf.mxu0
      %v1272 = vpop.f32.mrf.mxu0
      %v1273 = vadd.f32 %v1112, %v1272
      %v1274 = vpop.f32.mrf.mxu0
      %1275 = vdwg.mxu0
      %v1276 = vadd.f32 %v305, %v1150
      %v1277 = vadd.f32 %v306, %v1153
      %v1278 = vadd.f32 %v307, %v1158
      %v1279 = vadd.f32 %v308, %v1161
      %v1280 = vadd.f32 %v309, %v1166
      %v1281 = vadd.f32 %v310, %v1169
      %v1282 = vadd.f32 %v311, %v1174
      %v1283 = vadd.f32 %v312, %v1177
      %v1284 = vadd.f32 %v313, %v1182
      %v1285 = vadd.f32 %v314, %v1185
      %v1286 = vadd.f32 %v315, %v1190
      %v1287 = vadd.f32 %v316, %v1193
      %v1288 = vadd.f32 %v317, %v1198
      %v1289 = vadd.f32 %v318, %v1201
      %v1290 = vadd.f32 %v319, %v1206
      %v1291 = vadd.f32 %v320, %v1209
      %v1292 = vadd.f32 %v321, %v1214
      %v1293 = vadd.f32 %v322, %v1217
      %v1294 = vadd.f32 %v323, %v1222
      %v1295 = vadd.f32 %v324, %v1225
      %v1296 = vadd.f32 %v325, %v1230
      %v1297 = vadd.f32 %v326, %v1233
      %v1298 = vadd.f32 %v327, %v1238
      %v1299 = vadd.f32 %v328, %v1241
      %v1300 = vadd.f32 %v329, %v1246
      %v1301 = vadd.f32 %v330, %v1249
      %v1302 = vadd.f32 %v331, %v1254
      %v1303 = vadd.f32 %v332, %v1257
      %v1304 = vadd.f32 %v333, %v1262
      %v1305 = vadd.f32 %v334, %v1265
      %v1306 = vadd.f32 %v335, %v1270
      %v1307 = vadd.f32 %v336, %v1273
      %vm1308 = vcmask 31744
      %1309 = vst.msk [vmem:[#allocation2] sm:$0xff] %vm1308, %v1276
      %1310 = vst.msk [vmem:[#allocation2 + $0x8] sm:$0xff] %vm1308, %v1277
      %1311 = vst.msk [vmem:[#allocation2 + $0x10] sm:$0xff] %vm1308, %v1278
      %1312 = vst.msk [vmem:[#allocation2 + $0x18] sm:$0xff] %vm1308, %v1279
      %1313 = vst.msk [vmem:[#allocation2 + $0x20] sm:$0xff] %vm1308, %v1280
      %1314 = vst.msk [vmem:[#allocation2 + $0x28] sm:$0xff] %vm1308, %v1281
      %1315 = vst.msk [vmem:[#allocation2 + $0x30] sm:$0xff] %vm1308, %v1282
      %1316 = vst.msk [vmem:[#allocation2 + $0x38] sm:$0xff] %vm1308, %v1283
      %1317 = vst.msk [vmem:[#allocation2 + $0x40] sm:$0xff] %vm1308, %v1284
      %1318 = vst.msk [vmem:[#allocation2 + $0x48] sm:$0xff] %vm1308, %v1285
      %1319 = vst.msk [vmem:[#allocation2 + $0x50] sm:$0xff] %vm1308, %v1286
      %1320 = vst.msk [vmem:[#allocation2 + $0x58] sm:$0xff] %vm1308, %v1287
      %1321 = vst.msk [vmem:[#allocation2 + $0x60] sm:$0xff] %vm1308, %v1288
      %1322 = vst.msk [vmem:[#allocation2 + $0x68] sm:$0xff] %vm1308, %v1289
      %1323 = vst.msk [vmem:[#allocation2 + $0x70] sm:$0xff] %vm1308, %v1290
      %1324 = vst.msk [vmem:[#allocation2 + $0x78] sm:$0xff] %vm1308, %v1291
      %1325 = vst.msk [vmem:[#allocation2 + $0x80] sm:$0xff] %vm1308, %v1292
      %1326 = vst.msk [vmem:[#allocation2 + $0x88] sm:$0xff] %vm1308, %v1293
      %1327 = vst.msk [vmem:[#allocation2 + $0x90] sm:$0xff] %vm1308, %v1294
      %1328 = vst.msk [vmem:[#allocation2 + $0x98] sm:$0xff] %vm1308, %v1295
      %1329 = vst.msk [vmem:[#allocation2 + $0xa0] sm:$0xff] %vm1308, %v1296
      %1330 = vst.msk [vmem:[#allocation2 + $0xa8] sm:$0xff] %vm1308, %v1297
      %1331 = vst.msk [vmem:[#allocation2 + $0xb0] sm:$0xff] %vm1308, %v1298
      %1332 = vst.msk [vmem:[#allocation2 + $0xb8] sm:$0xff] %vm1308, %v1299
      %1333 = vst.msk [vmem:[#allocation2 + $0xc0] sm:$0xff] %vm1308, %v1300
      %1334 = vst.msk [vmem:[#allocation2 + $0xc8] sm:$0xff] %vm1308, %v1301
      %1335 = vst.msk [vmem:[#allocation2 + $0xd0] sm:$0xff] %vm1308, %v1302
      %1336 = vst.msk [vmem:[#allocation2 + $0xd8] sm:$0xff] %vm1308, %v1303
      %1337 = vst.msk [vmem:[#allocation2 + $0xe0] sm:$0xff] %vm1308, %v1304
      %1338 = vst.msk [vmem:[#allocation2 + $0xe8] sm:$0xff] %vm1308, %v1305
      %1339 = vst.msk [vmem:[#allocation2 + $0xf0] sm:$0xff] %vm1308, %v1306
      %1340 = vst.msk [vmem:[#allocation2 + $0xf8] sm:$0xff] %vm1308, %v1307
      // Predicated region
      $region37: #{resnet_generator_forward.57} parent=31 // pred_check
        %p1341 = pneg %p268
      $region38: #{resnet_generator_forward.57} parent=31 // pred_check_branch
        %1343 = sbr.rel (%p1341) target = $region40
      $region39: #{resnet_generator_forward.57} parent=31 // pred_region
        %v1344 = vld [vmem:[#allocation2] sm:$0xff]
        %v1345 = vld [vmem:[#allocation2 + $0x8] sm:$0xff]
        %v1346 = vld [vmem:[#allocation2 + $0x10] sm:$0xff]
        %v1347 = vld [vmem:[#allocation2 + $0x18] sm:$0xff]
        %v1348 = vld [vmem:[#allocation2 + $0x20] sm:$0xff]
        %v1349 = vld [vmem:[#allocation2 + $0x28] sm:$0xff]
        %v1350 = vld [vmem:[#allocation2 + $0x30] sm:$0xff]
        %v1351 = vld [vmem:[#allocation2 + $0x38] sm:$0xff]
        %v1352 = vld [vmem:[#allocation2 + $0x40] sm:$0xff]
        %v1353 = vld [vmem:[#allocation2 + $0x48] sm:$0xff]
        %v1354 = vld [vmem:[#allocation2 + $0x50] sm:$0xff]
        %v1355 = vld [vmem:[#allocation2 + $0x58] sm:$0xff]
        %v1356 = vld [vmem:[#allocation2 + $0x60] sm:$0xff]
        %v1357 = vld [vmem:[#allocation2 + $0x68] sm:$0xff]
        %v1358 = vld [vmem:[#allocation2 + $0x70] sm:$0xff]
        %v1359 = vld [vmem:[#allocation2 + $0x78] sm:$0xff]
        %v1360 = vld [vmem:[#allocation2 + $0x80] sm:$0xff]
        %v1361 = vld [vmem:[#allocation2 + $0x88] sm:$0xff]
        %v1362 = vld [vmem:[#allocation2 + $0x90] sm:$0xff]
        %v1363 = vld [vmem:[#allocation2 + $0x98] sm:$0xff]
        %v1364 = vld [vmem:[#allocation2 + $0xa0] sm:$0xff]
        %v1365 = vld [vmem:[#allocation2 + $0xa8] sm:$0xff]
        %v1366 = vld [vmem:[#allocation2 + $0xb0] sm:$0xff]
        %v1367 = vld [vmem:[#allocation2 + $0xb8] sm:$0xff]
        %v1368 = vld [vmem:[#allocation2 + $0xc0] sm:$0xff]
        %v1369 = vld [vmem:[#allocation2 + $0xc8] sm:$0xff]
        %v1370 = vld [vmem:[#allocation2 + $0xd0] sm:$0xff]
        %v1371 = vld [vmem:[#allocation2 + $0xd8] sm:$0xff]
        %v1372 = vld [vmem:[#allocation2 + $0xe0] sm:$0xff]
        %v1373 = vld [vmem:[#allocation2 + $0xe8] sm:$0xff]
        %v1374 = vld [vmem:[#allocation2 + $0xf0] sm:$0xff]
        %v1375 = vld [vmem:[#allocation2 + $0xf8] sm:$0xff]
        %v1376 = vld [vmem:[%s257] sm:$0x1]
        %v1378 = vlaneseq
        %v1379 = vshrl.u32 %v1378, 7
        %v1380 = vsub.s32 0, %v1379
        %v1381 = vrot.slane %v1376, %v1380
        %v1383 = vadd.f32 %v1344, %v1381
        %v1384 = vadd.f32 %v1345, %v1381
        %v1385 = vadd.f32 %v1346, %v1381
        %v1386 = vadd.f32 %v1347, %v1381
        %v1387 = vadd.f32 %v1348, %v1381
        %v1388 = vadd.f32 %v1349, %v1381
        %v1389 = vadd.f32 %v1350, %v1381
        %v1390 = vadd.f32 %v1351, %v1381
        %v1391 = vadd.f32 %v1352, %v1381
        %v1392 = vadd.f32 %v1353, %v1381
        %v1393 = vadd.f32 %v1354, %v1381
        %v1394 = vadd.f32 %v1355, %v1381
        %v1395 = vadd.f32 %v1356, %v1381
        %v1396 = vadd.f32 %v1357, %v1381
        %v1397 = vadd.f32 %v1358, %v1381
        %v1398 = vadd.f32 %v1359, %v1381
        %v1399 = vadd.f32 %v1360, %v1381
        %v1400 = vadd.f32 %v1361, %v1381
        %v1401 = vadd.f32 %v1362, %v1381
        %v1402 = vadd.f32 %v1363, %v1381
        %v1403 = vadd.f32 %v1364, %v1381
        %v1404 = vadd.f32 %v1365, %v1381
        %v1405 = vadd.f32 %v1366, %v1381
        %v1406 = vadd.f32 %v1367, %v1381
        %v1407 = vadd.f32 %v1368, %v1381
        %v1408 = vadd.f32 %v1369, %v1381
        %v1409 = vadd.f32 %v1370, %v1381
        %v1410 = vadd.f32 %v1371, %v1381
        %v1411 = vadd.f32 %v1372, %v1381
        %v1412 = vadd.f32 %v1373, %v1381
        %v1413 = vadd.f32 %v1374, %v1381
        %v1414 = vadd.f32 %v1375, %v1381
        %v1415 = vtanh.pop %v1383
        %v1416 = vtanh.pop %v1384
        %v1417 = vtanh.pop %v1385
        %v1418 = vtanh.pop %v1386
        %v1419 = vtanh.pop %v1387
        %v1420 = vtanh.pop %v1388
        %v1421 = vtanh.pop %v1389
        %v1422 = vtanh.pop %v1390
        %v1423 = vtanh.pop %v1391
        %v1424 = vtanh.pop %v1392
        %v1425 = vtanh.pop %v1393
        %v1426 = vtanh.pop %v1394
        %v1427 = vtanh.pop %v1395
        %v1428 = vtanh.pop %v1396
        %v1429 = vtanh.pop %v1397
        %v1430 = vtanh.pop %v1398
        %v1431 = vtanh.pop %v1399
        %v1432 = vtanh.pop %v1400
        %v1433 = vtanh.pop %v1401
        %v1434 = vtanh.pop %v1402
        %v1435 = vtanh.pop %v1403
        %v1436 = vtanh.pop %v1404
        %v1437 = vtanh.pop %v1405
        %v1438 = vtanh.pop %v1406
        %v1439 = vtanh.pop %v1407
        %v1440 = vtanh.pop %v1408
        %v1441 = vtanh.pop %v1409
        %v1442 = vtanh.pop %v1410
        %v1443 = vtanh.pop %v1411
        %v1444 = vtanh.pop %v1412
        %v1445 = vtanh.pop %v1413
        %v1446 = vtanh.pop %v1414
        %1447 = vst.msk [vmem:[%s265] sm:$0xff] %vm1308, %v1415
        %1448 = vst.msk [vmem:[%s265 + $0x8] sm:$0xff] %vm1308, %v1416
        %1449 = vst.msk [vmem:[%s265 + $0x10] sm:$0xff] %vm1308, %v1417
        %1450 = vst.msk [vmem:[%s265 + $0x18] sm:$0xff] %vm1308, %v1418
        %1451 = vst.msk [vmem:[%s265 + $0x20] sm:$0xff] %vm1308, %v1419
        %1452 = vst.msk [vmem:[%s265 + $0x28] sm:$0xff] %vm1308, %v1420
        %1453 = vst.msk [vmem:[%s265 + $0x30] sm:$0xff] %vm1308, %v1421
        %1454 = vst.msk [vmem:[%s265 + $0x38] sm:$0xff] %vm1308, %v1422
        %1455 = vst.msk [vmem:[%s265 + $0x40] sm:$0xff] %vm1308, %v1423
        %1456 = vst.msk [vmem:[%s265 + $0x48] sm:$0xff] %vm1308, %v1424
        %1457 = vst.msk [vmem:[%s265 + $0x50] sm:$0xff] %vm1308, %v1425
        %1458 = vst.msk [vmem:[%s265 + $0x58] sm:$0xff] %vm1308, %v1426
        %1459 = vst.msk [vmem:[%s265 + $0x60] sm:$0xff] %vm1308, %v1427
        %1460 = vst.msk [vmem:[%s265 + $0x68] sm:$0xff] %vm1308, %v1428
        %1461 = vst.msk [vmem:[%s265 + $0x70] sm:$0xff] %vm1308, %v1429
        %1462 = vst.msk [vmem:[%s265 + $0x78] sm:$0xff] %vm1308, %v1430
        %1463 = vst.msk [vmem:[%s265 + $0x80] sm:$0xff] %vm1308, %v1431
        %1464 = vst.msk [vmem:[%s265 + $0x88] sm:$0xff] %vm1308, %v1432
        %1465 = vst.msk [vmem:[%s265 + $0x90] sm:$0xff] %vm1308, %v1433
        %1466 = vst.msk [vmem:[%s265 + $0x98] sm:$0xff] %vm1308, %v1434
        %1467 = vst.msk [vmem:[%s265 + $0xa0] sm:$0xff] %vm1308, %v1435
        %1468 = vst.msk [vmem:[%s265 + $0xa8] sm:$0xff] %vm1308, %v1436
        %1469 = vst.msk [vmem:[%s265 + $0xb0] sm:$0xff] %vm1308, %v1437
        %1470 = vst.msk [vmem:[%s265 + $0xb8] sm:$0xff] %vm1308, %v1438
        %1471 = vst.msk [vmem:[%s265 + $0xc0] sm:$0xff] %vm1308, %v1439
        %1472 = vst.msk [vmem:[%s265 + $0xc8] sm:$0xff] %vm1308, %v1440
        %1473 = vst.msk [vmem:[%s265 + $0xd0] sm:$0xff] %vm1308, %v1441
        %1474 = vst.msk [vmem:[%s265 + $0xd8] sm:$0xff] %vm1308, %v1442
        %1475 = vst.msk [vmem:[%s265 + $0xe0] sm:$0xff] %vm1308, %v1443
        %1476 = vst.msk [vmem:[%s265 + $0xe8] sm:$0xff] %vm1308, %v1444
        %1477 = vst.msk [vmem:[%s265 + $0xf0] sm:$0xff] %vm1308, %v1445
        %1478 = vst.msk [vmem:[%s265 + $0xf8] sm:$0xff] %vm1308, %v1446
      $region40: #{resnet_generator_forward.57} parent=31 // pred_fallthru
        _
      %s1479 = smul.u32 32, %s19
      %p1480 = scmp.lt.s32.totalorder %s1479, 63
      %s1481 = scalar_select %p1480, %s1479, 63
      %p1482 = scmp.lt.s32.totalorder %s20, 0
      %s1483 = scalar_select %p1482, %s20, 0
      %s1484 = sadd.s32 %s1483, %s1481
      %s1485 = smul.addr %s1484, 8
      %s1486 = scalar_lea.vmem %s3, %s1485
      // Predicated region
      $region41: #{resnet_generator_forward.57} parent=31 // pred_check
        %p1487 = pneg %p135
      $region42: #{resnet_generator_forward.57} parent=31 // pred_check_branch
        %1489 = sbr.rel (%p1487) target = $region44
      $region43: #{resnet_generator_forward.57} parent=31 // pred_region
        %s1490 = smul.u32 32, %s19
      $region44: #{resnet_generator_forward.57} parent=31 // pred_fallthru
        _
    $region32: #{resnet_generator_forward.57} parent=5 // pred_fallthru
      _
    %p1491 = scmp.le.s32.totalorder 2, %s9
    // Predicated region
    $region45: #{resnet_generator_forward.57} parent=5 // pred_check
      %p1492 = pneg %p1491
    $region46: #{resnet_generator_forward.57} parent=5 // pred_check_branch
      %1494 = sbr.rel (%p1492) target = $region48
    $region47: #{resnet_generator_forward.57} parent=5 // pred_region
      %s1495 = ssub.s32 %s9, 2
      // Predicated region
      $region49: #{resnet_generator_forward.57} parent=47 // pred_check
        %p1496 = pneg %p141
      $region50: #{resnet_generator_forward.57} parent=47 // pred_check_branch
        %1498 = sbr.rel (%p1496) target = $region52
      $region51: #{resnet_generator_forward.57} parent=47 // pred_region
        %s1499 = smul.u32 32, %s22
        %p1500 = scmp.lt.s32.totalorder %s1499, 63
        %s1501 = scalar_select %p1500, %s1499, 63
        %p1502 = scmp.lt.s32.totalorder %s23, 0
        %s1503 = scalar_select %p1502, %s23, 0
        %s1504 = sadd.s32 %s1503, %s1501
        %s1505 = smul.addr %s1504, 8
        %s1506 = scalar_lea.vmem %s3, %s1505
      $region52: #{resnet_generator_forward.57} parent=47 // pred_fallthru
        _
    $region48: #{resnet_generator_forward.57} parent=5 // pred_fallthru
      _
  $region6: #{resnet_generator_forward.57} parent=0 // loop_footer
    %s13 = sadd.s32 1, %s9
  $region7: #{resnet_generator_forward.57} parent=0 // loop_footer_branch
    %8 = sbr.rel target = $region3
  $region8: #{resnet_generator_forward.57} parent=0 // loop_exit
    _

</llo_original>
